<compile_context>
chip_gen: v7x
topology: tpu7x:2x2x1
jax: 0.10.0
libtpu: 0.0.40
codegen_flags: <defaults>
</compile_context>

<pallas_src>
import math
import functools

import jax
import jax.numpy as jnp
from jax.experimental import pallas as pl
from jax.experimental.pallas import tpu as pltpu

# ----- model hyper-parameters (module defaults) -----
D = 8
W = 256
CLS = 3
IN_XYZ = 63
IN_DIR = 27
SKIPS = (4,)
HIDDEN = 2 * W            # parse hidden
PAD = 128                 # lane padding for input / head outputs
DIR_OFF = 64              # lane offset of the dir features inside the packed input
SIG_COL = 3               # lane where sigma lands inside its 128-wide slab
CLS_OFF = 4               # first lane of the cls logits inside the output slab
N_PACKED_PARAMS = 28      # number of packed weight/bias arrays fed to the kernel


def _const_map(i, *, n):
    """Constant (resident) block index for weights/biases."""
    return (0,) * n


def nerf_kernel(*refs):
    """refs = (x_ref, *packed_param_refs, out_ref)."""
    x_ref = refs[0]
    out_ref = refs[-1]
    p = refs[1:-1]

    idx = 0

    def nxt():
        nonlocal idx
        r = p[idx]
        idx += 1
        return r[...]

    bf16 = jnp.bfloat16
    f32 = jnp.float32

    x = x_ref[...]              # (TB, 128) bf16: xyz lanes 0..62, dir lanes 64..90

    # --- xyz encoder layer 0 (weight rows 0..62 real, rest zero) ---
    W0, b0 = nxt(), nxt()
    h = jnp.maximum(jnp.dot(x, W0, preferred_element_type=f32) + b0, 0.0)

    # --- layers 1..3 ---
    for _ in range(3):
        Wi, bi = nxt(), nxt()
        h = jnp.maximum(
            jnp.dot(h.astype(bf16), Wi, preferred_element_type=f32) + bi, 0.0)

    # --- layer 4 with skip connection: split dots, no concat ---
    W4h, W4x, b4 = nxt(), nxt(), nxt()
    h = jnp.maximum(
        jnp.dot(h.astype(bf16), W4h, preferred_element_type=f32)
        + jnp.dot(x, W4x, preferred_element_type=f32) + b4, 0.0)

    # --- layers 5..7 ---
    for _ in range(3):
        Wi, bi = nxt(), nxt()
        h = jnp.maximum(
            jnp.dot(h.astype(bf16), Wi, preferred_element_type=f32) + bi, 0.0)

    hb = h.astype(bf16)

    # --- fused xyz_encoding_final (cols 0..255) + sigma (col 256+SIG_COL) ---
    Wfs, bfs = nxt(), nxt()
    fused = jnp.dot(hb, Wfs, preferred_element_type=f32) + bfs     # (TB, 384)
    xf = fused[:, :W]                                              # (TB, 256)
    sigma_slab = fused[:, W:W + PAD]                               # sigma at lane 3

    xfb = xf.astype(bf16)

    # --- parse head: Linear(W, 2W) -> Linear(2W, CLS @ lanes 4..6) ---
    Wp1, bp1, Wp2, bp2 = nxt(), nxt(), nxt(), nxt()
    p1 = jnp.dot(xfb, Wp1, preferred_element_type=f32) + bp1       # (TB, 512)
    cls_logits = jnp.dot(p1.astype(bf16), Wp2,
                         preferred_element_type=f32) + bp2         # (TB, 128)

    # --- dir encoding: split dots (xf part + dir part of packed input), ReLU ---
    Wdx, Wdd, bd = nxt(), nxt(), nxt()
    de = jnp.maximum(
        jnp.dot(xfb, Wdx, preferred_element_type=f32)
        + jnp.dot(x, Wdd, preferred_element_type=f32) + bd, 0.0)   # (TB, 128)

    # --- rgb head: Linear(W//2, 3 @ lanes 0..2) ---
    Wr, br = nxt(), nxt()
    rgb_logits = jnp.dot(de.astype(bf16), Wr,
                         preferred_element_type=f32) + br          # (TB, 128)

    # rgb_logits nonzero only in lanes 0..2, cls_logits only in lanes 4..6:
    # one sigmoid over their sum covers both heads; sigma (no activation) is
    # spliced in at lane 3.  Single unmasked 128-lane store.
    act = jax.nn.sigmoid(rgb_logits + cls_logits)
    lane = jax.lax.broadcasted_iota(jnp.int32, out_ref.shape, 1)
    out_ref[...] = jnp.where(lane == SIG_COL, sigma_slab,
                             jnp.where(lane < 4 + CLS, act, 0.0))


def nerf_forward_pallas(x_pad, packed, *, tb=256):
    """x_pad: (B, 128) bf16 packed input; packed: kernel params. Returns (B, 4+CLS)."""
    B = x_pad.shape[0]
    assert B % tb == 0
    assert len(packed) == N_PACKED_PARAMS

    in_specs = [pl.BlockSpec((tb, PAD), lambda i: (i, 0))]
    for prm in packed:
        in_specs.append(
            pl.BlockSpec(prm.shape, functools.partial(_const_map, n=prm.ndim)))

    out_p = pl.pallas_call(
        nerf_kernel,
        out_shape=jax.ShapeDtypeStruct((B, PAD), jnp.float32),
        grid_spec=pltpu.PrefetchScalarGridSpec(
            num_scalar_prefetch=0,
            grid=(B // tb,),
            in_specs=in_specs,
            out_specs=pl.BlockSpec((tb, PAD), lambda i: (i, 0)),
        ),
        compiler_params=pltpu.CompilerParams(
            dimension_semantics=("parallel",),          # batch axis -> both TCs on v7x
            vmem_limit_bytes=32 * 1024 * 1024,          # fits v5e/v6e/v7x
        ),
    )(x_pad, *packed)

    # lanes 0..6 = [rgb(3), sigma(1), cls(3)] -- same order as torch.cat.
    return out_p[:, :4 + CLS]


# ----- deterministic parameter init (PyTorch nn.Linear default scheme) -----
def init_linear(key, fan_in, fan_out):
    kw, kb = jax.random.split(key)
    bound = 1.0 / math.sqrt(fan_in)
    w = jax.random.uniform(kw, (fan_in, fan_out), jnp.float32, -bound, bound)
    b = jax.random.uniform(kb, (1, fan_out), jnp.float32, -bound, bound)
    return w, b


def make_params(key):
    """Natural (torch-layout, pre-transposed) f32 params, reference order."""
    params = []
    keys = jax.random.split(key, 16)
    k = iter(keys)
    for i in range(D):
        if i == 0:
            fin = IN_XYZ
        elif i in SKIPS:
            fin = W + IN_XYZ
        else:
            fin = W
        params += list(init_linear(next(k), fin, W))
    params += list(init_linear(next(k), W, 1))                 # sigma
    params += list(init_linear(next(k), W, W))                 # xyz_encoding_final
    params += list(init_linear(next(k), W, HIDDEN))            # parse[0]
    params += list(init_linear(next(k), HIDDEN, CLS))          # parse[1]
    params += list(init_linear(next(k), W + IN_DIR, W // 2))   # dir_encoding
    params += list(init_linear(next(k), W // 2, 3))            # rgb
    return params


def pack_params(params):
    """Split/pad/fuse the natural params into the kernel's bf16 layout."""
    bf16 = jnp.bfloat16
    idx = 0

    def take():
        nonlocal idx
        w, b = params[idx], params[idx + 1]
        idx += 2
        return w, b

    packed = []
    # layer 0: rows 0..62 = xyz weights, rows 63..127 zero (matches packed input)
    w, b = take()
    w0 = jnp.zeros((PAD, W), jnp.float32).at[:IN_XYZ].set(w)
    packed += [w0.astype(bf16), b]
    # layers 1..3
    for _ in range(3):
        w, b = take()
        packed += [w.astype(bf16), b]
    # layer 4 (skip): torch concat order is [xyz, h] -> rows 0..62 xyz, 63.. h
    w, b = take()
    w_x = jnp.zeros((PAD, W), jnp.float32).at[:IN_XYZ].set(w[:IN_XYZ])
    w_h = w[IN_XYZ:]
    packed += [w_h.astype(bf16), w_x.astype(bf16), b]
    # layers 5..7
    for _ in range(3):
        w, b = take()
        packed += [w.astype(bf16), b]
    # sigma (256,1) + xyz_encoding_final (256,256) -> fused (256,384),
    # sigma weight at column W+SIG_COL so it lands in output lane 3.
    ws, bs = take()
    wf, bfin = take()
    wfs = (jnp.zeros((W, W + PAD), jnp.float32)
           .at[:, :W].set(wf).at[:, W + SIG_COL:W + SIG_COL + 1].set(ws))
    bfs = (jnp.zeros((1, W + PAD), jnp.float32)
           .at[:, :W].set(bfin).at[:, W + SIG_COL:W + SIG_COL + 1].set(bs))
    packed += [wfs.astype(bf16), bfs]
    # parse: (256,512) and (512,3) padded to (512,128), cls at lanes 4..6
    wp1, bp1 = take()
    wp2, bp2 = take()
    wp2p = jnp.zeros((HIDDEN, PAD), jnp.float32).at[:, CLS_OFF:CLS_OFF + CLS].set(wp2)
    bp2p = jnp.zeros((1, PAD), jnp.float32).at[:, CLS_OFF:CLS_OFF + CLS].set(bp2)
    packed += [wp1.astype(bf16), bp1, wp2p.astype(bf16), bp2p]
    # dir_encoding: concat order [xf, dirs] -> rows 0..255 xf, 256..282 dir;
    # dir rows placed at DIR_OFF..DIR_OFF+26 to match the packed input layout.
    wd, bd = take()
    wd_xf = wd[:W]
    wd_dir = jnp.zeros((PAD, W // 2), jnp.float32).at[DIR_OFF:DIR_OFF + IN_DIR].set(wd[W:])
    packed += [wd_xf.astype(bf16), wd_dir.astype(bf16), bd]
    # rgb: (128,3) padded to (128,128), rgb at lanes 0..2
    wr, br = take()
    wrp = jnp.zeros((W // 2, PAD), jnp.float32).at[:, :3].set(wr)
    brp = jnp.zeros((1, PAD), jnp.float32).at[:, :3].set(br)
    packed += [wrp.astype(bf16), brp]

    assert len(packed) == N_PACKED_PARAMS
    return packed


# ----- pure-JAX f32 reference (mirrors the PyTorch forward) -----
def nerf_forward_ref(x, params):
    xyz = x[:, :IN_XYZ]
    dirs = x[:, IN_XYZ:]
    h = xyz
    idx = 0
    for i in range(D):
        if i in SKIPS:
            h = jnp.concatenate([xyz, h], axis=-1)
        Wi, bi = params[idx], params[idx + 1]; idx += 2
        h = jnp.maximum(h @ Wi + bi, 0.0)
    Ws, bs = params[idx], params[idx + 1]; idx += 2
    sigma = h @ Ws + bs
    Wf, bf = params[idx], params[idx + 1]; idx += 2
    xf = h @ Wf + bf
    Wp1, bp1 = params[idx], params[idx + 1]; idx += 2
    Wp2, bp2 = params[idx], params[idx + 1]; idx += 2
    clss = jax.nn.sigmoid((xf @ Wp1 + bp1) @ Wp2 + bp2)
    Wd, bd = params[idx], params[idx + 1]; idx += 2
    de = jnp.maximum(jnp.concatenate([xf, dirs], axis=-1) @ Wd + bd, 0.0)
    Wr, br = params[idx], params[idx + 1]; idx += 2
    rgb = jax.nn.sigmoid(de @ Wr + br)
    return jnp.concatenate([rgb, sigma, clss], axis=-1)


if __name__ == "__main__":
    key = jax.random.PRNGKey(0)
    kx, kp = jax.random.split(key)

    B, TB = 512, 256
    x = jax.random.normal(kx, (B, IN_XYZ + IN_DIR), jnp.float32)
    params = make_params(kp)
    packed = pack_params(params)

    # packed lane-padded bf16 input: xyz in lanes 0..62, dir in lanes 64..90
    x_in = (jnp.zeros((B, PAD), jnp.float32)
            .at[:, :IN_XYZ].set(x[:, :IN_XYZ])
            .at[:, DIR_OFF:DIR_OFF + IN_DIR].set(x[:, IN_XYZ:])
            .astype(jnp.bfloat16))

    out = jax.block_until_ready(nerf_forward_pallas(x_in, packed, tb=TB))

    # f32 reference on the same (bf16-rounded) inputs; loose tolerance because
    # the kernel uses bf16 MXU operands with f32 accumulation.
    x_ref_in = jnp.concatenate(
        [x_in[:, :IN_XYZ].astype(jnp.float32),
         x_in[:, DIR_OFF:DIR_OFF + IN_DIR].astype(jnp.float32)], axis=-1)
    ref = jax.block_until_ready(nerf_forward_ref(x_ref_in, params))

    assert out.shape == (B, 4 + CLS), out.shape
    max_err = float(jnp.max(jnp.abs(out - ref)))
    assert jnp.allclose(out, ref, atol=5e-2, rtol=5e-2), max_err

    print("KERNEL_OK")
</pallas_src>

<mosaic_0001>
module attributes {stable_mosaic.version = 11 : i64} {
  func.func @nerf_kernel(%arg0: i32, %arg1: memref<256x128xbf16, #tpu.memory_space<vmem>>, %arg2: memref<128x256xbf16, #tpu.memory_space<vmem>>, %arg3: memref<1x256xf32, #tpu.memory_space<vmem>>, %arg4: memref<256x256xbf16, #tpu.memory_space<vmem>>, %arg5: memref<1x256xf32, #tpu.memory_space<vmem>>, %arg6: memref<256x256xbf16, #tpu.memory_space<vmem>>, %arg7: memref<1x256xf32, #tpu.memory_space<vmem>>, %arg8: memref<256x256xbf16, #tpu.memory_space<vmem>>, %arg9: memref<1x256xf32, #tpu.memory_space<vmem>>, %arg10: memref<256x256xbf16, #tpu.memory_space<vmem>>, %arg11: memref<128x256xbf16, #tpu.memory_space<vmem>>, %arg12: memref<1x256xf32, #tpu.memory_space<vmem>>, %arg13: memref<256x256xbf16, #tpu.memory_space<vmem>>, %arg14: memref<1x256xf32, #tpu.memory_space<vmem>>, %arg15: memref<256x256xbf16, #tpu.memory_space<vmem>>, %arg16: memref<1x256xf32, #tpu.memory_space<vmem>>, %arg17: memref<256x256xbf16, #tpu.memory_space<vmem>>, %arg18: memref<1x256xf32, #tpu.memory_space<vmem>>, %arg19: memref<256x384xbf16, #tpu.memory_space<vmem>>, %arg20: memref<1x384xf32, #tpu.memory_space<vmem>>, %arg21: memref<256x512xbf16, #tpu.memory_space<vmem>>, %arg22: memref<1x512xf32, #tpu.memory_space<vmem>>, %arg23: memref<512x128xbf16, #tpu.memory_space<vmem>>, %arg24: memref<1x128xf32, #tpu.memory_space<vmem>>, %arg25: memref<256x128xbf16, #tpu.memory_space<vmem>>, %arg26: memref<128x128xbf16, #tpu.memory_space<vmem>>, %arg27: memref<1x128xf32, #tpu.memory_space<vmem>>, %arg28: memref<128x128xbf16, #tpu.memory_space<vmem>>, %arg29: memref<1x128xf32, #tpu.memory_space<vmem>>, %arg30: memref<256x128xf32, #tpu.memory_space<vmem>>) attributes {dimension_semantics = [#tpu.dimension_semantics<parallel>], iteration_bounds = array<i64: 2>, scalar_prefetch = 0 : i64, scratch_operands = 0 : i64, tpu.core_type = #tpu.core_type<tc>, window_params = [{transform_indices = @transform_0, window_bounds = array<i64: 256, 128>}, {pipeline_mode = #tpu.pipeline_mode<synchronous>, transform_indices = @transform_1, window_bounds = array<i64: 128, 256>}, {pipeline_mode = #tpu.pipeline_mode<synchronous>, transform_indices = @transform_2, window_bounds = array<i64: 1, 256>}, {pipeline_mode = #tpu.pipeline_mode<synchronous>, transform_indices = @transform_3, window_bounds = array<i64: 256, 256>}, {pipeline_mode = #tpu.pipeline_mode<synchronous>, transform_indices = @transform_4, window_bounds = array<i64: 1, 256>}, {pipeline_mode = #tpu.pipeline_mode<synchronous>, transform_indices = @transform_5, window_bounds = array<i64: 256, 256>}, {pipeline_mode = #tpu.pipeline_mode<synchronous>, transform_indices = @transform_6, window_bounds = array<i64: 1, 256>}, {pipeline_mode = #tpu.pipeline_mode<synchronous>, transform_indices = @transform_7, window_bounds = array<i64: 256, 256>}, {pipeline_mode = #tpu.pipeline_mode<synchronous>, transform_indices = @transform_8, window_bounds = array<i64: 1, 256>}, {pipeline_mode = #tpu.pipeline_mode<synchronous>, transform_indices = @transform_9, window_bounds = array<i64: 256, 256>}, {pipeline_mode = #tpu.pipeline_mode<synchronous>, transform_indices = @transform_10, window_bounds = array<i64: 128, 256>}, {pipeline_mode = #tpu.pipeline_mode<synchronous>, transform_indices = @transform_11, window_bounds = array<i64: 1, 256>}, {pipeline_mode = #tpu.pipeline_mode<synchronous>, transform_indices = @transform_12, window_bounds = array<i64: 256, 256>}, {pipeline_mode = #tpu.pipeline_mode<synchronous>, transform_indices = @transform_13, window_bounds = array<i64: 1, 256>}, {pipeline_mode = #tpu.pipeline_mode<synchronous>, transform_indices = @transform_14, window_bounds = array<i64: 256, 256>}, {pipeline_mode = #tpu.pipeline_mode<synchronous>, transform_indices = @transform_15, window_bounds = array<i64: 1, 256>}, {pipeline_mode = #tpu.pipeline_mode<synchronous>, transform_indices = @transform_16, window_bounds = array<i64: 256, 256>}, {pipeline_mode = #tpu.pipeline_mode<synchronous>, transform_indices = @transform_17, window_bounds = array<i64: 1, 256>}, {pipeline_mode = #tpu.pipeline_mode<synchronous>, transform_indices = @transform_18, window_bounds = array<i64: 256, 384>}, {pipeline_mode = #tpu.pipeline_mode<synchronous>, transform_indices = @transform_19, window_bounds = array<i64: 1, 384>}, {pipeline_mode = #tpu.pipeline_mode<synchronous>, transform_indices = @transform_20, window_bounds = array<i64: 256, 512>}, {pipeline_mode = #tpu.pipeline_mode<synchronous>, transform_indices = @transform_21, window_bounds = array<i64: 1, 512>}, {pipeline_mode = #tpu.pipeline_mode<synchronous>, transform_indices = @transform_22, window_bounds = array<i64: 512, 128>}, {pipeline_mode = #tpu.pipeline_mode<synchronous>, transform_indices = @transform_23, window_bounds = array<i64: 1, 128>}, {pipeline_mode = #tpu.pipeline_mode<synchronous>, transform_indices = @transform_24, window_bounds = array<i64: 256, 128>}, {pipeline_mode = #tpu.pipeline_mode<synchronous>, transform_indices = @transform_25, window_bounds = array<i64: 128, 128>}, {pipeline_mode = #tpu.pipeline_mode<synchronous>, transform_indices = @transform_26, window_bounds = array<i64: 1, 128>}, {pipeline_mode = #tpu.pipeline_mode<synchronous>, transform_indices = @transform_27, window_bounds = array<i64: 128, 128>}, {pipeline_mode = #tpu.pipeline_mode<synchronous>, transform_indices = @transform_28, window_bounds = array<i64: 1, 128>}, {transform_indices = @transform_29, window_bounds = array<i64: 256, 128>}]} {
    %c0 = arith.constant 0 : index
    %c0_0 = arith.constant 0 : index
    %0 = vector.load %arg1[%c0, %c0_0] : memref<256x128xbf16, #tpu.memory_space<vmem>>, vector<256x128xbf16>
    %c0_1 = arith.constant 0 : index
    %c0_2 = arith.constant 0 : index
    %1 = vector.load %arg2[%c0_1, %c0_2] : memref<128x256xbf16, #tpu.memory_space<vmem>>, vector<128x256xbf16>
    %c0_3 = arith.constant 0 : index
    %c0_4 = arith.constant 0 : index
    %2 = vector.load %arg3[%c0_3, %c0_4] : memref<1x256xf32, #tpu.memory_space<vmem>>, vector<1x256xf32>
    %cst = arith.constant dense<0.000000e+00> : vector<256x256xf32>
    %3 = tpu.matmul %0, %1, %cst {dimension_numbers = #tpu.dot_dimension_numbers<[1], [0], [0], [1], [0, 0, 1, 1], [], []>} : vector<256x128xbf16>, vector<128x256xbf16>, vector<256x256xf32> -> vector<256x256xf32>
    %4 = vector.broadcast %2 : vector<1x256xf32> to vector<256x256xf32>
    %5 = arith.addf %3, %4 : vector<256x256xf32>
    %cst_5 = arith.constant 0.000000e+00 : f32
    %6 = vector.broadcast %cst_5 : f32 to vector<256x256xf32>
    %7 = arith.maximumf %5, %6 : vector<256x256xf32>
    %c0_6 = arith.constant 0 : index
    %c0_7 = arith.constant 0 : index
    %8 = vector.load %arg4[%c0_6, %c0_7] : memref<256x256xbf16, #tpu.memory_space<vmem>>, vector<256x256xbf16>
    %c0_8 = arith.constant 0 : index
    %c0_9 = arith.constant 0 : index
    %9 = vector.load %arg5[%c0_8, %c0_9] : memref<1x256xf32, #tpu.memory_space<vmem>>, vector<1x256xf32>
    %10 = arith.truncf %7 : vector<256x256xf32> to vector<256x256xbf16>
    %cst_10 = arith.constant dense<0.000000e+00> : vector<256x256xf32>
    %11 = tpu.matmul %10, %8, %cst_10 {dimension_numbers = #tpu.dot_dimension_numbers<[1], [0], [0], [1], [0, 0, 1, 1], [], []>} : vector<256x256xbf16>, vector<256x256xbf16>, vector<256x256xf32> -> vector<256x256xf32>
    %12 = vector.broadcast %9 : vector<1x256xf32> to vector<256x256xf32>
    %13 = arith.addf %11, %12 : vector<256x256xf32>
    %cst_11 = arith.constant 0.000000e+00 : f32
    %14 = vector.broadcast %cst_11 : f32 to vector<256x256xf32>
    %15 = arith.maximumf %13, %14 : vector<256x256xf32>
    %c0_12 = arith.constant 0 : index
    %c0_13 = arith.constant 0 : index
    %16 = vector.load %arg6[%c0_12, %c0_13] : memref<256x256xbf16, #tpu.memory_space<vmem>>, vector<256x256xbf16>
    %c0_14 = arith.constant 0 : index
    %c0_15 = arith.constant 0 : index
    %17 = vector.load %arg7[%c0_14, %c0_15] : memref<1x256xf32, #tpu.memory_space<vmem>>, vector<1x256xf32>
    %18 = arith.truncf %15 : vector<256x256xf32> to vector<256x256xbf16>
    %cst_16 = arith.constant dense<0.000000e+00> : vector<256x256xf32>
    %19 = tpu.matmul %18, %16, %cst_16 {dimension_numbers = #tpu.dot_dimension_numbers<[1], [0], [0], [1], [0, 0, 1, 1], [], []>} : vector<256x256xbf16>, vector<256x256xbf16>, vector<256x256xf32> -> vector<256x256xf32>
    %20 = vector.broadcast %17 : vector<1x256xf32> to vector<256x256xf32>
    %21 = arith.addf %19, %20 : vector<256x256xf32>
    %cst_17 = arith.constant 0.000000e+00 : f32
    %22 = vector.broadcast %cst_17 : f32 to vector<256x256xf32>
    %23 = arith.maximumf %21, %22 : vector<256x256xf32>
    %c0_18 = arith.constant 0 : index
    %c0_19 = arith.constant 0 : index
    %24 = vector.load %arg8[%c0_18, %c0_19] : memref<256x256xbf16, #tpu.memory_space<vmem>>, vector<256x256xbf16>
    %c0_20 = arith.constant 0 : index
    %c0_21 = arith.constant 0 : index
    %25 = vector.load %arg9[%c0_20, %c0_21] : memref<1x256xf32, #tpu.memory_space<vmem>>, vector<1x256xf32>
    %26 = arith.truncf %23 : vector<256x256xf32> to vector<256x256xbf16>
    %cst_22 = arith.constant dense<0.000000e+00> : vector<256x256xf32>
    %27 = tpu.matmul %26, %24, %cst_22 {dimension_numbers = #tpu.dot_dimension_numbers<[1], [0], [0], [1], [0, 0, 1, 1], [], []>} : vector<256x256xbf16>, vector<256x256xbf16>, vector<256x256xf32> -> vector<256x256xf32>
    %28 = vector.broadcast %25 : vector<1x256xf32> to vector<256x256xf32>
    %29 = arith.addf %27, %28 : vector<256x256xf32>
    %cst_23 = arith.constant 0.000000e+00 : f32
    %30 = vector.broadcast %cst_23 : f32 to vector<256x256xf32>
    %31 = arith.maximumf %29, %30 : vector<256x256xf32>
    %c0_24 = arith.constant 0 : index
    %c0_25 = arith.constant 0 : index
    %32 = vector.load %arg10[%c0_24, %c0_25] : memref<256x256xbf16, #tpu.memory_space<vmem>>, vector<256x256xbf16>
    %c0_26 = arith.constant 0 : index
    %c0_27 = arith.constant 0 : index
    %33 = vector.load %arg11[%c0_26, %c0_27] : memref<128x256xbf16, #tpu.memory_space<vmem>>, vector<128x256xbf16>
    %c0_28 = arith.constant 0 : index
    %c0_29 = arith.constant 0 : index
    %34 = vector.load %arg12[%c0_28, %c0_29] : memref<1x256xf32, #tpu.memory_space<vmem>>, vector<1x256xf32>
    %35 = arith.truncf %31 : vector<256x256xf32> to vector<256x256xbf16>
    %cst_30 = arith.constant dense<0.000000e+00> : vector<256x256xf32>
    %36 = tpu.matmul %35, %32, %cst_30 {dimension_numbers = #tpu.dot_dimension_numbers<[1], [0], [0], [1], [0, 0, 1, 1], [], []>} : vector<256x256xbf16>, vector<256x256xbf16>, vector<256x256xf32> -> vector<256x256xf32>
    %cst_31 = arith.constant dense<0.000000e+00> : vector<256x256xf32>
    %37 = tpu.matmul %0, %33, %cst_31 {dimension_numbers = #tpu.dot_dimension_numbers<[1], [0], [0], [1], [0, 0, 1, 1], [], []>} : vector<256x128xbf16>, vector<128x256xbf16>, vector<256x256xf32> -> vector<256x256xf32>
    %38 = arith.addf %36, %37 : vector<256x256xf32>
    %39 = vector.broadcast %34 : vector<1x256xf32> to vector<256x256xf32>
    %40 = arith.addf %38, %39 : vector<256x256xf32>
    %cst_32 = arith.constant 0.000000e+00 : f32
    %41 = vector.broadcast %cst_32 : f32 to vector<256x256xf32>
    %42 = arith.maximumf %40, %41 : vector<256x256xf32>
    %c0_33 = arith.constant 0 : index
    %c0_34 = arith.constant 0 : index
    %43 = vector.load %arg13[%c0_33, %c0_34] : memref<256x256xbf16, #tpu.memory_space<vmem>>, vector<256x256xbf16>
    %c0_35 = arith.constant 0 : index
    %c0_36 = arith.constant 0 : index
    %44 = vector.load %arg14[%c0_35, %c0_36] : memref<1x256xf32, #tpu.memory_space<vmem>>, vector<1x256xf32>
    %45 = arith.truncf %42 : vector<256x256xf32> to vector<256x256xbf16>
    %cst_37 = arith.constant dense<0.000000e+00> : vector<256x256xf32>
    %46 = tpu.matmul %45, %43, %cst_37 {dimension_numbers = #tpu.dot_dimension_numbers<[1], [0], [0], [1], [0, 0, 1, 1], [], []>} : vector<256x256xbf16>, vector<256x256xbf16>, vector<256x256xf32> -> vector<256x256xf32>
    %47 = vector.broadcast %44 : vector<1x256xf32> to vector<256x256xf32>
    %48 = arith.addf %46, %47 : vector<256x256xf32>
    %cst_38 = arith.constant 0.000000e+00 : f32
    %49 = vector.broadcast %cst_38 : f32 to vector<256x256xf32>
    %50 = arith.maximumf %48, %49 : vector<256x256xf32>
    %c0_39 = arith.constant 0 : index
    %c0_40 = arith.constant 0 : index
    %51 = vector.load %arg15[%c0_39, %c0_40] : memref<256x256xbf16, #tpu.memory_space<vmem>>, vector<256x256xbf16>
    %c0_41 = arith.constant 0 : index
    %c0_42 = arith.constant 0 : index
    %52 = vector.load %arg16[%c0_41, %c0_42] : memref<1x256xf32, #tpu.memory_space<vmem>>, vector<1x256xf32>
    %53 = arith.truncf %50 : vector<256x256xf32> to vector<256x256xbf16>
    %cst_43 = arith.constant dense<0.000000e+00> : vector<256x256xf32>
    %54 = tpu.matmul %53, %51, %cst_43 {dimension_numbers = #tpu.dot_dimension_numbers<[1], [0], [0], [1], [0, 0, 1, 1], [], []>} : vector<256x256xbf16>, vector<256x256xbf16>, vector<256x256xf32> -> vector<256x256xf32>
    %55 = vector.broadcast %52 : vector<1x256xf32> to vector<256x256xf32>
    %56 = arith.addf %54, %55 : vector<256x256xf32>
    %cst_44 = arith.constant 0.000000e+00 : f32
    %57 = vector.broadcast %cst_44 : f32 to vector<256x256xf32>
    %58 = arith.maximumf %56, %57 : vector<256x256xf32>
    %c0_45 = arith.constant 0 : index
    %c0_46 = arith.constant 0 : index
    %59 = vector.load %arg17[%c0_45, %c0_46] : memref<256x256xbf16, #tpu.memory_space<vmem>>, vector<256x256xbf16>
    %c0_47 = arith.constant 0 : index
    %c0_48 = arith.constant 0 : index
    %60 = vector.load %arg18[%c0_47, %c0_48] : memref<1x256xf32, #tpu.memory_space<vmem>>, vector<1x256xf32>
    %61 = arith.truncf %58 : vector<256x256xf32> to vector<256x256xbf16>
    %cst_49 = arith.constant dense<0.000000e+00> : vector<256x256xf32>
    %62 = tpu.matmul %61, %59, %cst_49 {dimension_numbers = #tpu.dot_dimension_numbers<[1], [0], [0], [1], [0, 0, 1, 1], [], []>} : vector<256x256xbf16>, vector<256x256xbf16>, vector<256x256xf32> -> vector<256x256xf32>
    %63 = vector.broadcast %60 : vector<1x256xf32> to vector<256x256xf32>
    %64 = arith.addf %62, %63 : vector<256x256xf32>
    %cst_50 = arith.constant 0.000000e+00 : f32
    %65 = vector.broadcast %cst_50 : f32 to vector<256x256xf32>
    %66 = arith.maximumf %64, %65 : vector<256x256xf32>
    %67 = arith.truncf %66 : vector<256x256xf32> to vector<256x256xbf16>
    %c0_51 = arith.constant 0 : index
    %c0_52 = arith.constant 0 : index
    %68 = vector.load %arg19[%c0_51, %c0_52] : memref<256x384xbf16, #tpu.memory_space<vmem>>, vector<256x384xbf16>
    %c0_53 = arith.constant 0 : index
    %c0_54 = arith.constant 0 : index
    %69 = vector.load %arg20[%c0_53, %c0_54] : memref<1x384xf32, #tpu.memory_space<vmem>>, vector<1x384xf32>
    %cst_55 = arith.constant dense<0.000000e+00> : vector<256x384xf32>
    %70 = tpu.matmul %67, %68, %cst_55 {dimension_numbers = #tpu.dot_dimension_numbers<[1], [0], [0], [1], [0, 0, 1, 1], [], []>} : vector<256x256xbf16>, vector<256x384xbf16>, vector<256x384xf32> -> vector<256x384xf32>
    %71 = vector.broadcast %69 : vector<1x384xf32> to vector<256x384xf32>
    %72 = arith.addf %70, %71 : vector<256x384xf32>
    %73 = vector.extract_strided_slice %72 {offsets = [0, 0], sizes = [256, 256], strides = [1, 1]} : vector<256x384xf32> to vector<256x256xf32>
    %74 = vector.extract_strided_slice %72 {offsets = [0, 256], sizes = [256, 128], strides = [1, 1]} : vector<256x384xf32> to vector<256x128xf32>
    %75 = arith.truncf %73 : vector<256x256xf32> to vector<256x256xbf16>
    %c0_56 = arith.constant 0 : index
    %c0_57 = arith.constant 0 : index
    %76 = vector.load %arg21[%c0_56, %c0_57] : memref<256x512xbf16, #tpu.memory_space<vmem>>, vector<256x512xbf16>
    %c0_58 = arith.constant 0 : index
    %c0_59 = arith.constant 0 : index
    %77 = vector.load %arg22[%c0_58, %c0_59] : memref<1x512xf32, #tpu.memory_space<vmem>>, vector<1x512xf32>
    %c0_60 = arith.constant 0 : index
    %c0_61 = arith.constant 0 : index
    %78 = vector.load %arg23[%c0_60, %c0_61] : memref<512x128xbf16, #tpu.memory_space<vmem>>, vector<512x128xbf16>
    %c0_62 = arith.constant 0 : index
    %c0_63 = arith.constant 0 : index
    %79 = vector.load %arg24[%c0_62, %c0_63] : memref<1x128xf32, #tpu.memory_space<vmem>>, vector<1x128xf32>
    %cst_64 = arith.constant dense<0.000000e+00> : vector<256x512xf32>
    %80 = tpu.matmul %75, %76, %cst_64 {dimension_numbers = #tpu.dot_dimension_numbers<[1], [0], [0], [1], [0, 0, 1, 1], [], []>} : vector<256x256xbf16>, vector<256x512xbf16>, vector<256x512xf32> -> vector<256x512xf32>
    %81 = vector.broadcast %77 : vector<1x512xf32> to vector<256x512xf32>
    %82 = arith.addf %80, %81 : vector<256x512xf32>
    %83 = arith.truncf %82 : vector<256x512xf32> to vector<256x512xbf16>
    %cst_65 = arith.constant dense<0.000000e+00> : vector<256x128xf32>
    %84 = tpu.matmul %83, %78, %cst_65 {dimension_numbers = #tpu.dot_dimension_numbers<[1], [0], [0], [1], [0, 0, 1, 1], [], []>} : vector<256x512xbf16>, vector<512x128xbf16>, vector<256x128xf32> -> vector<256x128xf32>
    %85 = vector.broadcast %79 : vector<1x128xf32> to vector<256x128xf32>
    %86 = arith.addf %84, %85 : vector<256x128xf32>
    %c0_66 = arith.constant 0 : index
    %c0_67 = arith.constant 0 : index
    %87 = vector.load %arg25[%c0_66, %c0_67] : memref<256x128xbf16, #tpu.memory_space<vmem>>, vector<256x128xbf16>
    %c0_68 = arith.constant 0 : index
    %c0_69 = arith.constant 0 : index
    %88 = vector.load %arg26[%c0_68, %c0_69] : memref<128x128xbf16, #tpu.memory_space<vmem>>, vector<128x128xbf16>
    %c0_70 = arith.constant 0 : index
    %c0_71 = arith.constant 0 : index
    %89 = vector.load %arg27[%c0_70, %c0_71] : memref<1x128xf32, #tpu.memory_space<vmem>>, vector<1x128xf32>
    %cst_72 = arith.constant dense<0.000000e+00> : vector<256x128xf32>
    %90 = tpu.matmul %75, %87, %cst_72 {dimension_numbers = #tpu.dot_dimension_numbers<[1], [0], [0], [1], [0, 0, 1, 1], [], []>} : vector<256x256xbf16>, vector<256x128xbf16>, vector<256x128xf32> -> vector<256x128xf32>
    %cst_73 = arith.constant dense<0.000000e+00> : vector<256x128xf32>
    %91 = tpu.matmul %0, %88, %cst_73 {dimension_numbers = #tpu.dot_dimension_numbers<[1], [0], [0], [1], [0, 0, 1, 1], [], []>} : vector<256x128xbf16>, vector<128x128xbf16>, vector<256x128xf32> -> vector<256x128xf32>
    %92 = arith.addf %90, %91 : vector<256x128xf32>
    %93 = vector.broadcast %89 : vector<1x128xf32> to vector<256x128xf32>
    %94 = arith.addf %92, %93 : vector<256x128xf32>
    %cst_74 = arith.constant 0.000000e+00 : f32
    %95 = vector.broadcast %cst_74 : f32 to vector<256x128xf32>
    %96 = arith.maximumf %94, %95 : vector<256x128xf32>
    %c0_75 = arith.constant 0 : index
    %c0_76 = arith.constant 0 : index
    %97 = vector.load %arg28[%c0_75, %c0_76] : memref<128x128xbf16, #tpu.memory_space<vmem>>, vector<128x128xbf16>
    %c0_77 = arith.constant 0 : index
    %c0_78 = arith.constant 0 : index
    %98 = vector.load %arg29[%c0_77, %c0_78] : memref<1x128xf32, #tpu.memory_space<vmem>>, vector<1x128xf32>
    %99 = arith.truncf %96 : vector<256x128xf32> to vector<256x128xbf16>
    %cst_79 = arith.constant dense<0.000000e+00> : vector<256x128xf32>
    %100 = tpu.matmul %99, %97, %cst_79 {dimension_numbers = #tpu.dot_dimension_numbers<[1], [0], [0], [1], [0, 0, 1, 1], [], []>} : vector<256x128xbf16>, vector<128x128xbf16>, vector<256x128xf32> -> vector<256x128xf32>
    %101 = vector.broadcast %98 : vector<1x128xf32> to vector<256x128xf32>
    %102 = arith.addf %100, %101 : vector<256x128xf32>
    %103 = arith.addf %102, %86 : vector<256x128xf32>
    %104 = arith.negf %103 : vector<256x128xf32>
    %105 = math.exp %104 : vector<256x128xf32>
    %cst_80 = arith.constant 1.000000e+00 : f32
    %106 = vector.broadcast %cst_80 : f32 to vector<256x128xf32>
    %107 = arith.addf %106, %105 : vector<256x128xf32>
    %108 = arith.divf %106, %107 : vector<256x128xf32>
    %109 = tpu.iota {dimensions = array<i32: 1>} : vector<256x128xi32>
    %c3_i32 = arith.constant 3 : i32
    %110 = vector.broadcast %c3_i32 : i32 to vector<256x128xi32>
    %111 = arith.cmpi eq, %109, %110 : vector<256x128xi32>
    %c7_i32 = arith.constant 7 : i32
    %112 = vector.broadcast %c7_i32 : i32 to vector<256x128xi32>
    %113 = arith.cmpi slt, %109, %112 : vector<256x128xi32>
    %cst_81 = arith.constant 0.000000e+00 : f32
    %114 = vector.broadcast %cst_81 : f32 to vector<256x128xf32>
    %115 = arith.select %113, %108, %114 : vector<256x128xi1>, vector<256x128xf32>
    %116 = arith.select %111, %74, %115 : vector<256x128xi1>, vector<256x128xf32>
    %c0_82 = arith.constant 0 : index
    %c0_83 = arith.constant 0 : index
    %117 = vector.load %arg30[%c0_82, %c0_83] : memref<256x128xf32, #tpu.memory_space<vmem>>, vector<256x128xf32>
    tpu.vector_store %arg30[%c0_82, %c0_83], %116 {strides = array<i32>} : memref<256x128xf32, #tpu.memory_space<vmem>>, vector<256x128xf32>,
    return
  }
  func.func @transform_0(%arg0: i32) -> (i32, i32) {
    %c0_i32 = arith.constant 0 : i32
    %c0_i32_0 = arith.constant 0 : i32
    return %arg0, %c0_i32 : i32, i32
  }
  func.func @transform_1(%arg0: i32) -> (i32, i32) {
    %c0_i32 = arith.constant 0 : i32
    %c0_i32_0 = arith.constant 0 : i32
    %c0_i32_1 = arith.constant 0 : i32
    return %c0_i32, %c0_i32_0 : i32, i32
  }
  func.func @transform_2(%arg0: i32) -> (i32, i32) {
    %c0_i32 = arith.constant 0 : i32
    %c0_i32_0 = arith.constant 0 : i32
    %c0_i32_1 = arith.constant 0 : i32
    return %c0_i32, %c0_i32_0 : i32, i32
  }
  func.func @transform_3(%arg0: i32) -> (i32, i32) {
    %c0_i32 = arith.constant 0 : i32
    %c0_i32_0 = arith.constant 0 : i32
    %c0_i32_1 = arith.constant 0 : i32
    return %c0_i32, %c0_i32_0 : i32, i32
  }
  func.func @transform_4(%arg0: i32) -> (i32, i32) {
    %c0_i32 = arith.constant 0 : i32
    %c0_i32_0 = arith.constant 0 : i32
    %c0_i32_1 = arith.constant 0 : i32
    return %c0_i32, %c0_i32_0 : i32, i32
  }
  func.func @transform_5(%arg0: i32) -> (i32, i32) {
    %c0_i32 = arith.constant 0 : i32
    %c0_i32_0 = arith.constant 0 : i32
    %c0_i32_1 = arith.constant 0 : i32
    return %c0_i32, %c0_i32_0 : i32, i32
  }
  func.func @transform_6(%arg0: i32) -> (i32, i32) {
    %c0_i32 = arith.constant 0 : i32
    %c0_i32_0 = arith.constant 0 : i32
    %c0_i32_1 = arith.constant 0 : i32
    return %c0_i32, %c0_i32_0 : i32, i32
  }
  func.func @transform_7(%arg0: i32) -> (i32, i32) {
    %c0_i32 = arith.constant 0 : i32
    %c0_i32_0 = arith.constant 0 : i32
    %c0_i32_1 = arith.constant 0 : i32
    return %c0_i32, %c0_i32_0 : i32, i32
  }
  func.func @transform_8(%arg0: i32) -> (i32, i32) {
    %c0_i32 = arith.constant 0 : i32
    %c0_i32_0 = arith.constant 0 : i32
    %c0_i32_1 = arith.constant 0 : i32
    return %c0_i32, %c0_i32_0 : i32, i32
  }
  func.func @transform_9(%arg0: i32) -> (i32, i32) {
    %c0_i32 = arith.constant 0 : i32
    %c0_i32_0 = arith.constant 0 : i32
    %c0_i32_1 = arith.constant 0 : i32
    return %c0_i32, %c0_i32_0 : i32, i32
  }
  func.func @transform_10(%arg0: i32) -> (i32, i32) {
    %c0_i32 = arith.constant 0 : i32
    %c0_i32_0 = arith.constant 0 : i32
    %c0_i32_1 = arith.constant 0 : i32
    return %c0_i32, %c0_i32_0 : i32, i32
  }
  func.func @transform_11(%arg0: i32) -> (i32, i32) {
    %c0_i32 = arith.constant 0 : i32
    %c0_i32_0 = arith.constant 0 : i32
    %c0_i32_1 = arith.constant 0 : i32
    return %c0_i32, %c0_i32_0 : i32, i32
  }
  func.func @transform_12(%arg0: i32) -> (i32, i32) {
    %c0_i32 = arith.constant 0 : i32
    %c0_i32_0 = arith.constant 0 : i32
    %c0_i32_1 = arith.constant 0 : i32
    return %c0_i32, %c0_i32_0 : i32, i32
  }
  func.func @transform_13(%arg0: i32) -> (i32, i32) {
    %c0_i32 = arith.constant 0 : i32
    %c0_i32_0 = arith.constant 0 : i32
    %c0_i32_1 = arith.constant 0 : i32
    return %c0_i32, %c0_i32_0 : i32, i32
  }
  func.func @transform_14(%arg0: i32) -> (i32, i32) {
    %c0_i32 = arith.constant 0 : i32
    %c0_i32_0 = arith.constant 0 : i32
    %c0_i32_1 = arith.constant 0 : i32
    return %c0_i32, %c0_i32_0 : i32, i32
  }
  func.func @transform_15(%arg0: i32) -> (i32, i32) {
    %c0_i32 = arith.constant 0 : i32
    %c0_i32_0 = arith.constant 0 : i32
    %c0_i32_1 = arith.constant 0 : i32
    return %c0_i32, %c0_i32_0 : i32, i32
  }
  func.func @transform_16(%arg0: i32) -> (i32, i32) {
    %c0_i32 = arith.constant 0 : i32
    %c0_i32_0 = arith.constant 0 : i32
    %c0_i32_1 = arith.constant 0 : i32
    return %c0_i32, %c0_i32_0 : i32, i32
  }
  func.func @transform_17(%arg0: i32) -> (i32, i32) {
    %c0_i32 = arith.constant 0 : i32
    %c0_i32_0 = arith.constant 0 : i32
    %c0_i32_1 = arith.constant 0 : i32
    return %c0_i32, %c0_i32_0 : i32, i32
  }
  func.func @transform_18(%arg0: i32) -> (i32, i32) {
    %c0_i32 = arith.constant 0 : i32
    %c0_i32_0 = arith.constant 0 : i32
    %c0_i32_1 = arith.constant 0 : i32
    return %c0_i32, %c0_i32_0 : i32, i32
  }
  func.func @transform_19(%arg0: i32) -> (i32, i32) {
    %c0_i32 = arith.constant 0 : i32
    %c0_i32_0 = arith.constant 0 : i32
    %c0_i32_1 = arith.constant 0 : i32
    return %c0_i32, %c0_i32_0 : i32, i32
  }
  func.func @transform_20(%arg0: i32) -> (i32, i32) {
    %c0_i32 = arith.constant 0 : i32
    %c0_i32_0 = arith.constant 0 : i32
    %c0_i32_1 = arith.constant 0 : i32
    return %c0_i32, %c0_i32_0 : i32, i32
  }
  func.func @transform_21(%arg0: i32) -> (i32, i32) {
    %c0_i32 = arith.constant 0 : i32
    %c0_i32_0 = arith.constant 0 : i32
    %c0_i32_1 = arith.constant 0 : i32
    return %c0_i32, %c0_i32_0 : i32, i32
  }
  func.func @transform_22(%arg0: i32) -> (i32, i32) {
    %c0_i32 = arith.constant 0 : i32
    %c0_i32_0 = arith.constant 0 : i32
    %c0_i32_1 = arith.constant 0 : i32
    return %c0_i32, %c0_i32_0 : i32, i32
  }
  func.func @transform_23(%arg0: i32) -> (i32, i32) {
    %c0_i32 = arith.constant 0 : i32
    %c0_i32_0 = arith.constant 0 : i32
    %c0_i32_1 = arith.constant 0 : i32
    return %c0_i32, %c0_i32_0 : i32, i32
  }
  func.func @transform_24(%arg0: i32) -> (i32, i32) {
    %c0_i32 = arith.constant 0 : i32
    %c0_i32_0 = arith.constant 0 : i32
    %c0_i32_1 = arith.constant 0 : i32
    return %c0_i32, %c0_i32_0 : i32, i32
  }
  func.func @transform_25(%arg0: i32) -> (i32, i32) {
    %c0_i32 = arith.constant 0 : i32
    %c0_i32_0 = arith.constant 0 : i32
    %c0_i32_1 = arith.constant 0 : i32
    return %c0_i32, %c0_i32_0 : i32, i32
  }
  func.func @transform_26(%arg0: i32) -> (i32, i32) {
    %c0_i32 = arith.constant 0 : i32
    %c0_i32_0 = arith.constant 0 : i32
    %c0_i32_1 = arith.constant 0 : i32
    return %c0_i32, %c0_i32_0 : i32, i32
  }
  func.func @transform_27(%arg0: i32) -> (i32, i32) {
    %c0_i32 = arith.constant 0 : i32
    %c0_i32_0 = arith.constant 0 : i32
    %c0_i32_1 = arith.constant 0 : i32
    return %c0_i32, %c0_i32_0 : i32, i32
  }
  func.func @transform_28(%arg0: i32) -> (i32, i32) {
    %c0_i32 = arith.constant 0 : i32
    %c0_i32_0 = arith.constant 0 : i32
    %c0_i32_1 = arith.constant 0 : i32
    return %c0_i32, %c0_i32_0 : i32, i32
  }
  func.func @transform_29(%arg0: i32) -> (i32, i32) {
    %c0_i32 = arith.constant 0 : i32
    %c0_i32_0 = arith.constant 0 : i32
    return %arg0, %c0_i32 : i32, i32
  }
}

</mosaic_0001>

<llo_original>
// kernel: tpu_custom_call.1
$region0: #{tpu_custom_call.1}
  #allocation0 [shape = 'u32[]', space=smem, size = 0x4, offset = 0x4, fixed_abs, tag = 'smem constant byte address 0x4 - core index']
  #allocation1 [shape = 'u32[144,128]{1,0:T(1,128)}', space=vmem, size = 0x12000, scoped, tag = 'internal scratch']
  %s0 = inlined_call_operand.smem [shape: u32[30], index: -1, kind: input, shape index: {}]
  %s1 = sld [smem:[%s0]]
  %s2 = scalar_lea.smem %s0, 1
  %s3 = sld [smem:[%s2]]
  %s4 = scalar_lea.smem %s0, 2
  %s5 = sld [smem:[%s4]]
  %s6 = scalar_lea.smem %s0, 3
  %s7 = sld [smem:[%s6]]
  %s8 = scalar_lea.smem %s0, 4
  %s9 = sld [smem:[%s8]]
  %s10 = scalar_lea.smem %s0, 5
  %s11 = sld [smem:[%s10]]
  %s12 = scalar_lea.smem %s0, 6
  %s13 = sld [smem:[%s12]]
  %s14 = scalar_lea.smem %s0, 7
  %s15 = sld [smem:[%s14]]
  %s16 = scalar_lea.smem %s0, 8
  %s17 = sld [smem:[%s16]]
  %s18 = scalar_lea.smem %s0, 9
  %s19 = sld [smem:[%s18]]
  %s20 = scalar_lea.smem %s0, 10
  %s21 = sld [smem:[%s20]]
  %s22 = scalar_lea.smem %s0, 11
  %s23 = sld [smem:[%s22]]
  %s24 = scalar_lea.smem %s0, 12
  %s25 = sld [smem:[%s24]]
  %s26 = scalar_lea.smem %s0, 13
  %s27 = sld [smem:[%s26]]
  %s28 = scalar_lea.smem %s0, 14
  %s29 = sld [smem:[%s28]]
  %s30 = scalar_lea.smem %s0, 15
  %s31 = sld [smem:[%s30]]
  %s32 = scalar_lea.smem %s0, 16
  %s33 = sld [smem:[%s32]]
  %s34 = scalar_lea.smem %s0, 17
  %s35 = sld [smem:[%s34]]
  %s36 = scalar_lea.smem %s0, 18
  %s37 = sld [smem:[%s36]]
  %s38 = scalar_lea.smem %s0, 19
  %s39 = sld [smem:[%s38]]
  %s40 = scalar_lea.smem %s0, 20
  %s41 = sld [smem:[%s40]]
  %s42 = scalar_lea.smem %s0, 21
  %s43 = sld [smem:[%s42]]
  %s44 = scalar_lea.smem %s0, 22
  %s45 = sld [smem:[%s44]]
  %s46 = scalar_lea.smem %s0, 23
  %s47 = sld [smem:[%s46]]
  %s48 = scalar_lea.smem %s0, 24
  %s49 = sld [smem:[%s48]]
  %s50 = scalar_lea.smem %s0, 25
  %s51 = sld [smem:[%s50]]
  %s52 = scalar_lea.smem %s0, 26
  %s53 = sld [smem:[%s52]]
  %s54 = scalar_lea.smem %s0, 27
  %s55 = sld [smem:[%s54]]
  %s56 = scalar_lea.smem %s0, 28
  %s57 = sld [smem:[%s56]]
  %s58 = scalar_lea.smem %s0, 29
  %s59 = sld [smem:[%s58]]
  %s60 = sld [smem:[#allocation0]]
  $region213: #{tpu_custom_call.1} parent=0
    _
  %s62 = ssub.s32 1, %s60
  %s63 = scalar_select 0, %s62, %s60
  $region1: #{tpu_custom_call.1} parent=0
    #allocation2 [shape = 'u8[131072]{0}', space=vmem, size = 0x20000, scoped, tag = 'input window, operand 0']
    #allocation3 [shape = 's32[2]{0}', space=sflag, size = 0x8, scoped, tag = 'scoped memory for tpu_custom_call.1']
    #allocation4 [shape = 's32[2]{0}', space=sflag, size = 0x8, scoped, tag = 'scoped memory for tpu_custom_call.1']
    #allocation5 [shape = 'u8[65536]{0}', space=vmem, size = 0x10000, scoped, tag = 'input window, operand 1, single buffered']
    #allocation6 [shape = 's32[1]{0}', space=sflag, size = 0x4, scoped, tag = 'scoped memory for tpu_custom_call.1']
    #allocation7 [shape = 'u8[1024]{0}', space=vmem, size = 0x400, scoped, tag = 'input window, operand 2, single buffered']
    #allocation8 [shape = 'u8[131072]{0}', space=vmem, size = 0x20000, scoped, tag = 'input window, operand 3, single buffered']
    #allocation9 [shape = 's32[1]{0}', space=sflag, size = 0x4, scoped, tag = 'scoped memory for tpu_custom_call.1']
    #allocation10 [shape = 'u8[131072]{0}', space=vmem, size = 0x20000, scoped, tag = 'input window, operand 5, single buffered']
    #allocation11 [shape = 'u8[131072]{0}', space=vmem, size = 0x20000, scoped, tag = 'input window, operand 7, single buffered']
    #allocation12 [shape = 's32[1]{0}', space=sflag, size = 0x4, scoped, tag = 'scoped memory for tpu_custom_call.1']
    #allocation13 [shape = 'u8[131072]{0}', space=vmem, size = 0x20000, scoped, tag = 'input window, operand 9, single buffered']
    #allocation14 [shape = 'u8[65536]{0}', space=vmem, size = 0x10000, scoped, tag = 'input window, operand 10, single buffered']
    #allocation15 [shape = 's32[1]{0}', space=sflag, size = 0x4, scoped, tag = 'scoped memory for tpu_custom_call.1']
    #allocation16 [shape = 'u8[131072]{0}', space=vmem, size = 0x20000, scoped, tag = 'input window, operand 12, single buffered']
    #allocation17 [shape = 'u8[131072]{0}', space=vmem, size = 0x20000, scoped, tag = 'input window, operand 14, single buffered']
    #allocation18 [shape = 's32[1]{0}', space=sflag, size = 0x4, scoped, tag = 'scoped memory for tpu_custom_call.1']
    #allocation19 [shape = 'u8[131072]{0}', space=vmem, size = 0x20000, scoped, tag = 'input window, operand 16, single buffered']
    #allocation20 [shape = 'u8[196608]{0}', space=vmem, size = 0x30000, scoped, tag = 'input window, operand 18, single buffered']
    #allocation21 [shape = 's32[1]{0}', space=sflag, size = 0x4, scoped, tag = 'scoped memory for tpu_custom_call.1']
    #allocation22 [shape = 'u8[262144]{0}', space=vmem, size = 0x40000, scoped, tag = 'input window, operand 20, single buffered']
    #allocation23 [shape = 'u8[131072]{0}', space=vmem, size = 0x20000, scoped, tag = 'input window, operand 22, single buffered']
    #allocation24 [shape = 's32[1]{0}', space=sflag, size = 0x4, scoped, tag = 'scoped memory for tpu_custom_call.1']
    #allocation25 [shape = 'u8[65536]{0}', space=vmem, size = 0x10000, scoped, tag = 'input window, operand 24, single buffered']
    #allocation26 [shape = 'u8[32768]{0}', space=vmem, size = 0x8000, scoped, tag = 'input window, operand 27, single buffered']
    #allocation27 [shape = 's32[1]{0}', space=sflag, size = 0x4, scoped, tag = 'scoped memory for tpu_custom_call.1']
    #allocation28 [shape = 'u8[262144]{0}', space=vmem, size = 0x40000, scoped, tag = 'output window, operand 0']
    %64 = vsyncpa [#allocation3], 0
    %s65 = scalar_lea.sflag [#allocation3], 1
    %66 = vsyncpa %s65, 0
    %67 = vsyncpa [#allocation6], 0
    %68 = vsyncpa [#allocation9], 0
    %69 = vsyncpa [#allocation12], 0
    %70 = vsyncpa [#allocation15], 0
    %71 = vsyncpa [#allocation18], 0
    %72 = vsyncpa [#allocation21], 0
    %73 = vsyncpa [#allocation24], 0
    %74 = vsyncpa [#allocation27], 0
    %75 = vsyncpa [#allocation4], 0
    %s76 = scalar_lea.sflag [#allocation4], 1
    %77 = vsyncpa %s76, 0
    loop: start=0, step=1, limit=4
    $region2: #{tpu_custom_call.1} parent=1 // loop_pre_header
      _
    $region3: #{tpu_custom_call.1} parent=1 // loop_header
      %s79 = sphi 0, %s83
      %p80 = scmp.ge.s32.totalorder %s79, 4
      %s89 = sphi 0, %s91
      %s92 = sphi 0, %s89
      %s93 = sphi 0, %s92
      %s109 = sphi 0, %s93
      %s113 = sphi 0, %s113
      %s115 = sphi 0, %s113
      %s116 = sphi 0, %s115
      %s130 = sphi 0, %s116
      %s134 = sphi 0, %s134
      %s136 = sphi 0, %s134
      %s137 = sphi 0, %s136
      %s151 = sphi 0, %s137
      %s155 = sphi 0, %s155
      %s157 = sphi 0, %s155
      %s158 = sphi 0, %s157
      %s172 = sphi 0, %s158
      %s176 = sphi 0, %s176
      %s178 = sphi 0, %s176
      %s179 = sphi 0, %s178
      %s193 = sphi 0, %s179
      %s197 = sphi 0, %s197
      %s199 = sphi 0, %s197
      %s200 = sphi 0, %s199
      %s214 = sphi 0, %s200
      %s218 = sphi 0, %s218
      %s220 = sphi 0, %s218
      %s221 = sphi 0, %s220
      %s235 = sphi 0, %s221
      %s239 = sphi 0, %s239
      %s241 = sphi 0, %s239
      %s242 = sphi 0, %s241
      %s256 = sphi 0, %s242
      %s260 = sphi 0, %s260
      %s262 = sphi 0, %s260
      %s263 = sphi 0, %s262
      %s277 = sphi 0, %s263
      %s281 = sphi 0, %s281
      %s283 = sphi 0, %s281
      %s284 = sphi 0, %s283
      %s298 = sphi 0, %s284
      %s302 = sphi 0, %s302
      %s304 = sphi 0, %s302
      %s305 = sphi 0, %s304
      %s319 = sphi 0, %s305
      %s323 = sphi 0, %s323
      %s325 = sphi 0, %s323
      %s326 = sphi 0, %s325
      %s340 = sphi 0, %s326
      %s344 = sphi 0, %s344
      %s346 = sphi 0, %s344
      %s347 = sphi 0, %s346
      %s361 = sphi 0, %s347
      %s365 = sphi 0, %s365
      %s367 = sphi 0, %s365
      %s368 = sphi 0, %s367
      %s382 = sphi 0, %s368
      %s386 = sphi 0, %s386
      %s388 = sphi 0, %s386
      %s389 = sphi 0, %s388
      %s403 = sphi 0, %s389
      %s407 = sphi 0, %s407
      %s409 = sphi 0, %s407
      %s410 = sphi 0, %s409
      %s424 = sphi 0, %s410
      %s428 = sphi 0, %s428
      %s430 = sphi 0, %s428
      %s431 = sphi 0, %s430
      %s445 = sphi 0, %s431
      %s449 = sphi 0, %s449
      %s451 = sphi 0, %s449
      %s452 = sphi 0, %s451
      %s466 = sphi 0, %s452
      %s470 = sphi 0, %s470
      %s472 = sphi 0, %s470
      %s473 = sphi 0, %s472
      %s487 = sphi 0, %s473
      %s491 = sphi 0, %s491
      %s493 = sphi 0, %s491
      %s494 = sphi 0, %s493
      %s508 = sphi 0, %s494
      %s512 = sphi 0, %s512
      %s514 = sphi 0, %s512
      %s515 = sphi 0, %s514
      %s529 = sphi 0, %s515
      %s533 = sphi 0, %s533
      %s535 = sphi 0, %s533
      %s536 = sphi 0, %s535
      %s550 = sphi 0, %s536
      %s554 = sphi 0, %s554
      %s556 = sphi 0, %s554
      %s557 = sphi 0, %s556
      %s571 = sphi 0, %s557
      %s575 = sphi 0, %s575
      %s577 = sphi 0, %s575
      %s578 = sphi 0, %s577
      %s592 = sphi 0, %s578
      %s596 = sphi 0, %s596
      %s598 = sphi 0, %s596
      %s599 = sphi 0, %s598
      %s613 = sphi 0, %s599
      %s617 = sphi 0, %s617
      %s619 = sphi 0, %s617
      %s620 = sphi 0, %s619
      %s634 = sphi 0, %s620
      %s638 = sphi 0, %s638
      %s640 = sphi 0, %s638
      %s641 = sphi 0, %s640
      %s655 = sphi 0, %s641
      %s659 = sphi 0, %s659
      %s661 = sphi 0, %s659
      %s662 = sphi 0, %s661
      %s676 = sphi 0, %s662
      %s680 = sphi 0, %s680
      %s682 = sphi 0, %s680
      %s683 = sphi 0, %s682
      %s697 = sphi 0, %s683
      %s703 = sphi 0, %s705
      %s706 = sphi 0, %s703
      %s707 = sphi 0, %s706
      %s723 = sphi 0, %s707
    $region4: #{tpu_custom_call.1} parent=1 // loop_header_branch
      %82 = sbr.rel (%p80) target = $region8
    $region5: #{tpu_custom_call.1} parent=1 // loop_body
      %s84 = ssub.s32 %s79, 1
      %s85 = ssub.s32 %s79, 2
      %s86 = sadd.s32 %s79, 1
      %s87 = ssub.s32 %s79, %s86
      %p88 = scmp.eq.s32.totalorder %s87, 0
      %s90 = sadd.s32 %s89, 1
      %s91 = scalar_select %p88, %s89, %s90
      %p94 = pneg %p88
      %p95 = scmp.eq.s32.totalorder %s79, 1
      %p96 = por %p94, %p95
      %p97 = scmp.ne.s32.totalorder %s89, %s92
      %p98 = scmp.eq.s32.totalorder %s79, 0
      %p99 = por %p97, %p98
      %p100 = scmp.ne.s32.totalorder %s89, %s92
      %p101 = scmp.eq.s32.totalorder %s84, 1
      %p102 = por %p100, %p101
      %p103 = scmp.ne.s32.totalorder %s92, %s93
      %p104 = scmp.eq.s32.totalorder %s84, 0
      %p105 = por %p103, %p104
      %p106 = scmp.ne.s32.totalorder %s92, %s93
      %p107 = scmp.eq.s32.totalorder %s85, 1
      %p108 = por %p106, %p107
      %p110 = scmp.ne.s32.totalorder %s93, %s109
      %p111 = scmp.eq.s32.totalorder %s85, 0
      %p112 = por %p110, %p111
      %s114 = sadd.s32 %s113, 1
      %p117 = scmp.eq.s32.totalorder %s79, 1
      %p118 = scmp.ne.s32.totalorder %s113, %s115
      %p119 = scmp.eq.s32.totalorder %s79, 0
      %p120 = por %p118, %p119
      %p121 = scmp.ne.s32.totalorder %s113, %s115
      %p122 = scmp.eq.s32.totalorder %s84, 1
      %p123 = por %p121, %p122
      %p124 = scmp.ne.s32.totalorder %s115, %s116
      %p125 = scmp.eq.s32.totalorder %s84, 0
      %p126 = por %p124, %p125
      %p127 = scmp.ne.s32.totalorder %s115, %s116
      %p128 = scmp.eq.s32.totalorder %s85, 1
      %p129 = por %p127, %p128
      %p131 = scmp.ne.s32.totalorder %s116, %s130
      %p132 = scmp.eq.s32.totalorder %s85, 0
      %p133 = por %p131, %p132
      %s135 = sadd.s32 %s134, 1
      %p138 = scmp.eq.s32.totalorder %s79, 1
      %p139 = scmp.ne.s32.totalorder %s134, %s136
      %p140 = scmp.eq.s32.totalorder %s79, 0
      %p141 = por %p139, %p140
      %p142 = scmp.ne.s32.totalorder %s134, %s136
      %p143 = scmp.eq.s32.totalorder %s84, 1
      %p144 = por %p142, %p143
      %p145 = scmp.ne.s32.totalorder %s136, %s137
      %p146 = scmp.eq.s32.totalorder %s84, 0
      %p147 = por %p145, %p146
      %p148 = scmp.ne.s32.totalorder %s136, %s137
      %p149 = scmp.eq.s32.totalorder %s85, 1
      %p150 = por %p148, %p149
      %p152 = scmp.ne.s32.totalorder %s137, %s151
      %p153 = scmp.eq.s32.totalorder %s85, 0
      %p154 = por %p152, %p153
      %s156 = sadd.s32 %s155, 1
      %p159 = scmp.eq.s32.totalorder %s79, 1
      %p160 = scmp.ne.s32.totalorder %s155, %s157
      %p161 = scmp.eq.s32.totalorder %s79, 0
      %p162 = por %p160, %p161
      %p163 = scmp.ne.s32.totalorder %s155, %s157
      %p164 = scmp.eq.s32.totalorder %s84, 1
      %p165 = por %p163, %p164
      %p166 = scmp.ne.s32.totalorder %s157, %s158
      %p167 = scmp.eq.s32.totalorder %s84, 0
      %p168 = por %p166, %p167
      %p169 = scmp.ne.s32.totalorder %s157, %s158
      %p170 = scmp.eq.s32.totalorder %s85, 1
      %p171 = por %p169, %p170
      %p173 = scmp.ne.s32.totalorder %s158, %s172
      %p174 = scmp.eq.s32.totalorder %s85, 0
      %p175 = por %p173, %p174
      %s177 = sadd.s32 %s176, 1
      %p180 = scmp.eq.s32.totalorder %s79, 1
      %p181 = scmp.ne.s32.totalorder %s176, %s178
      %p182 = scmp.eq.s32.totalorder %s79, 0
      %p183 = por %p181, %p182
      %p184 = scmp.ne.s32.totalorder %s176, %s178
      %p185 = scmp.eq.s32.totalorder %s84, 1
      %p186 = por %p184, %p185
      %p187 = scmp.ne.s32.totalorder %s178, %s179
      %p188 = scmp.eq.s32.totalorder %s84, 0
      %p189 = por %p187, %p188
      %p190 = scmp.ne.s32.totalorder %s178, %s179
      %p191 = scmp.eq.s32.totalorder %s85, 1
      %p192 = por %p190, %p191
      %p194 = scmp.ne.s32.totalorder %s179, %s193
      %p195 = scmp.eq.s32.totalorder %s85, 0
      %p196 = por %p194, %p195
      %s198 = sadd.s32 %s197, 1
      %p201 = scmp.eq.s32.totalorder %s79, 1
      %p202 = scmp.ne.s32.totalorder %s197, %s199
      %p203 = scmp.eq.s32.totalorder %s79, 0
      %p204 = por %p202, %p203
      %p205 = scmp.ne.s32.totalorder %s197, %s199
      %p206 = scmp.eq.s32.totalorder %s84, 1
      %p207 = por %p205, %p206
      %p208 = scmp.ne.s32.totalorder %s199, %s200
      %p209 = scmp.eq.s32.totalorder %s84, 0
      %p210 = por %p208, %p209
      %p211 = scmp.ne.s32.totalorder %s199, %s200
      %p212 = scmp.eq.s32.totalorder %s85, 1
      %p213 = por %p211, %p212
      %p215 = scmp.ne.s32.totalorder %s200, %s214
      %p216 = scmp.eq.s32.totalorder %s85, 0
      %p217 = por %p215, %p216
      %s219 = sadd.s32 %s218, 1
      %p222 = scmp.eq.s32.totalorder %s79, 1
      %p223 = scmp.ne.s32.totalorder %s218, %s220
      %p224 = scmp.eq.s32.totalorder %s79, 0
      %p225 = por %p223, %p224
      %p226 = scmp.ne.s32.totalorder %s218, %s220
      %p227 = scmp.eq.s32.totalorder %s84, 1
      %p228 = por %p226, %p227
      %p229 = scmp.ne.s32.totalorder %s220, %s221
      %p230 = scmp.eq.s32.totalorder %s84, 0
      %p231 = por %p229, %p230
      %p232 = scmp.ne.s32.totalorder %s220, %s221
      %p233 = scmp.eq.s32.totalorder %s85, 1
      %p234 = por %p232, %p233
      %p236 = scmp.ne.s32.totalorder %s221, %s235
      %p237 = scmp.eq.s32.totalorder %s85, 0
      %p238 = por %p236, %p237
      %s240 = sadd.s32 %s239, 1
      %p243 = scmp.eq.s32.totalorder %s79, 1
      %p244 = scmp.ne.s32.totalorder %s239, %s241
      %p245 = scmp.eq.s32.totalorder %s79, 0
      %p246 = por %p244, %p245
      %p247 = scmp.ne.s32.totalorder %s239, %s241
      %p248 = scmp.eq.s32.totalorder %s84, 1
      %p249 = por %p247, %p248
      %p250 = scmp.ne.s32.totalorder %s241, %s242
      %p251 = scmp.eq.s32.totalorder %s84, 0
      %p252 = por %p250, %p251
      %p253 = scmp.ne.s32.totalorder %s241, %s242
      %p254 = scmp.eq.s32.totalorder %s85, 1
      %p255 = por %p253, %p254
      %p257 = scmp.ne.s32.totalorder %s242, %s256
      %p258 = scmp.eq.s32.totalorder %s85, 0
      %p259 = por %p257, %p258
      %s261 = sadd.s32 %s260, 1
      %p264 = scmp.eq.s32.totalorder %s79, 1
      %p265 = scmp.ne.s32.totalorder %s260, %s262
      %p266 = scmp.eq.s32.totalorder %s79, 0
      %p267 = por %p265, %p266
      %p268 = scmp.ne.s32.totalorder %s260, %s262
      %p269 = scmp.eq.s32.totalorder %s84, 1
      %p270 = por %p268, %p269
      %p271 = scmp.ne.s32.totalorder %s262, %s263
      %p272 = scmp.eq.s32.totalorder %s84, 0
      %p273 = por %p271, %p272
      %p274 = scmp.ne.s32.totalorder %s262, %s263
      %p275 = scmp.eq.s32.totalorder %s85, 1
      %p276 = por %p274, %p275
      %p278 = scmp.ne.s32.totalorder %s263, %s277
      %p279 = scmp.eq.s32.totalorder %s85, 0
      %p280 = por %p278, %p279
      %s282 = sadd.s32 %s281, 1
      %p285 = scmp.eq.s32.totalorder %s79, 1
      %p286 = scmp.ne.s32.totalorder %s281, %s283
      %p287 = scmp.eq.s32.totalorder %s79, 0
      %p288 = por %p286, %p287
      %p289 = scmp.ne.s32.totalorder %s281, %s283
      %p290 = scmp.eq.s32.totalorder %s84, 1
      %p291 = por %p289, %p290
      %p292 = scmp.ne.s32.totalorder %s283, %s284
      %p293 = scmp.eq.s32.totalorder %s84, 0
      %p294 = por %p292, %p293
      %p295 = scmp.ne.s32.totalorder %s283, %s284
      %p296 = scmp.eq.s32.totalorder %s85, 1
      %p297 = por %p295, %p296
      %p299 = scmp.ne.s32.totalorder %s284, %s298
      %p300 = scmp.eq.s32.totalorder %s85, 0
      %p301 = por %p299, %p300
      %s303 = sadd.s32 %s302, 1
      %p306 = scmp.eq.s32.totalorder %s79, 1
      %p307 = scmp.ne.s32.totalorder %s302, %s304
      %p308 = scmp.eq.s32.totalorder %s79, 0
      %p309 = por %p307, %p308
      %p310 = scmp.ne.s32.totalorder %s302, %s304
      %p311 = scmp.eq.s32.totalorder %s84, 1
      %p312 = por %p310, %p311
      %p313 = scmp.ne.s32.totalorder %s304, %s305
      %p314 = scmp.eq.s32.totalorder %s84, 0
      %p315 = por %p313, %p314
      %p316 = scmp.ne.s32.totalorder %s304, %s305
      %p317 = scmp.eq.s32.totalorder %s85, 1
      %p318 = por %p316, %p317
      %p320 = scmp.ne.s32.totalorder %s305, %s319
      %p321 = scmp.eq.s32.totalorder %s85, 0
      %p322 = por %p320, %p321
      %s324 = sadd.s32 %s323, 1
      %p327 = scmp.eq.s32.totalorder %s79, 1
      %p328 = scmp.ne.s32.totalorder %s323, %s325
      %p329 = scmp.eq.s32.totalorder %s79, 0
      %p330 = por %p328, %p329
      %p331 = scmp.ne.s32.totalorder %s323, %s325
      %p332 = scmp.eq.s32.totalorder %s84, 1
      %p333 = por %p331, %p332
      %p334 = scmp.ne.s32.totalorder %s325, %s326
      %p335 = scmp.eq.s32.totalorder %s84, 0
      %p336 = por %p334, %p335
      %p337 = scmp.ne.s32.totalorder %s325, %s326
      %p338 = scmp.eq.s32.totalorder %s85, 1
      %p339 = por %p337, %p338
      %p341 = scmp.ne.s32.totalorder %s326, %s340
      %p342 = scmp.eq.s32.totalorder %s85, 0
      %p343 = por %p341, %p342
      %s345 = sadd.s32 %s344, 1
      %p348 = scmp.eq.s32.totalorder %s79, 1
      %p349 = scmp.ne.s32.totalorder %s344, %s346
      %p350 = scmp.eq.s32.totalorder %s79, 0
      %p351 = por %p349, %p350
      %p352 = scmp.ne.s32.totalorder %s344, %s346
      %p353 = scmp.eq.s32.totalorder %s84, 1
      %p354 = por %p352, %p353
      %p355 = scmp.ne.s32.totalorder %s346, %s347
      %p356 = scmp.eq.s32.totalorder %s84, 0
      %p357 = por %p355, %p356
      %p358 = scmp.ne.s32.totalorder %s346, %s347
      %p359 = scmp.eq.s32.totalorder %s85, 1
      %p360 = por %p358, %p359
      %p362 = scmp.ne.s32.totalorder %s347, %s361
      %p363 = scmp.eq.s32.totalorder %s85, 0
      %p364 = por %p362, %p363
      %s366 = sadd.s32 %s365, 1
      %p369 = scmp.eq.s32.totalorder %s79, 1
      %p370 = scmp.ne.s32.totalorder %s365, %s367
      %p371 = scmp.eq.s32.totalorder %s79, 0
      %p372 = por %p370, %p371
      %p373 = scmp.ne.s32.totalorder %s365, %s367
      %p374 = scmp.eq.s32.totalorder %s84, 1
      %p375 = por %p373, %p374
      %p376 = scmp.ne.s32.totalorder %s367, %s368
      %p377 = scmp.eq.s32.totalorder %s84, 0
      %p378 = por %p376, %p377
      %p379 = scmp.ne.s32.totalorder %s367, %s368
      %p380 = scmp.eq.s32.totalorder %s85, 1
      %p381 = por %p379, %p380
      %p383 = scmp.ne.s32.totalorder %s368, %s382
      %p384 = scmp.eq.s32.totalorder %s85, 0
      %p385 = por %p383, %p384
      %s387 = sadd.s32 %s386, 1
      %p390 = scmp.eq.s32.totalorder %s79, 1
      %p391 = scmp.ne.s32.totalorder %s386, %s388
      %p392 = scmp.eq.s32.totalorder %s79, 0
      %p393 = por %p391, %p392
      %p394 = scmp.ne.s32.totalorder %s386, %s388
      %p395 = scmp.eq.s32.totalorder %s84, 1
      %p396 = por %p394, %p395
      %p397 = scmp.ne.s32.totalorder %s388, %s389
      %p398 = scmp.eq.s32.totalorder %s84, 0
      %p399 = por %p397, %p398
      %p400 = scmp.ne.s32.totalorder %s388, %s389
      %p401 = scmp.eq.s32.totalorder %s85, 1
      %p402 = por %p400, %p401
      %p404 = scmp.ne.s32.totalorder %s389, %s403
      %p405 = scmp.eq.s32.totalorder %s85, 0
      %p406 = por %p404, %p405
      %s408 = sadd.s32 %s407, 1
      %p411 = scmp.eq.s32.totalorder %s79, 1
      %p412 = scmp.ne.s32.totalorder %s407, %s409
      %p413 = scmp.eq.s32.totalorder %s79, 0
      %p414 = por %p412, %p413
      %p415 = scmp.ne.s32.totalorder %s407, %s409
      %p416 = scmp.eq.s32.totalorder %s84, 1
      %p417 = por %p415, %p416
      %p418 = scmp.ne.s32.totalorder %s409, %s410
      %p419 = scmp.eq.s32.totalorder %s84, 0
      %p420 = por %p418, %p419
      %p421 = scmp.ne.s32.totalorder %s409, %s410
      %p422 = scmp.eq.s32.totalorder %s85, 1
      %p423 = por %p421, %p422
      %p425 = scmp.ne.s32.totalorder %s410, %s424
      %p426 = scmp.eq.s32.totalorder %s85, 0
      %p427 = por %p425, %p426
      %s429 = sadd.s32 %s428, 1
      %p432 = scmp.eq.s32.totalorder %s79, 1
      %p433 = scmp.ne.s32.totalorder %s428, %s430
      %p434 = scmp.eq.s32.totalorder %s79, 0
      %p435 = por %p433, %p434
      %p436 = scmp.ne.s32.totalorder %s428, %s430
      %p437 = scmp.eq.s32.totalorder %s84, 1
      %p438 = por %p436, %p437
      %p439 = scmp.ne.s32.totalorder %s430, %s431
      %p440 = scmp.eq.s32.totalorder %s84, 0
      %p441 = por %p439, %p440
      %p442 = scmp.ne.s32.totalorder %s430, %s431
      %p443 = scmp.eq.s32.totalorder %s85, 1
      %p444 = por %p442, %p443
      %p446 = scmp.ne.s32.totalorder %s431, %s445
      %p447 = scmp.eq.s32.totalorder %s85, 0
      %p448 = por %p446, %p447
      %s450 = sadd.s32 %s449, 1
      %p453 = scmp.eq.s32.totalorder %s79, 1
      %p454 = scmp.ne.s32.totalorder %s449, %s451
      %p455 = scmp.eq.s32.totalorder %s79, 0
      %p456 = por %p454, %p455
      %p457 = scmp.ne.s32.totalorder %s449, %s451
      %p458 = scmp.eq.s32.totalorder %s84, 1
      %p459 = por %p457, %p458
      %p460 = scmp.ne.s32.totalorder %s451, %s452
      %p461 = scmp.eq.s32.totalorder %s84, 0
      %p462 = por %p460, %p461
      %p463 = scmp.ne.s32.totalorder %s451, %s452
      %p464 = scmp.eq.s32.totalorder %s85, 1
      %p465 = por %p463, %p464
      %p467 = scmp.ne.s32.totalorder %s452, %s466
      %p468 = scmp.eq.s32.totalorder %s85, 0
      %p469 = por %p467, %p468
      %s471 = sadd.s32 %s470, 1
      %p474 = scmp.eq.s32.totalorder %s79, 1
      %p475 = scmp.ne.s32.totalorder %s470, %s472
      %p476 = scmp.eq.s32.totalorder %s79, 0
      %p477 = por %p475, %p476
      %p478 = scmp.ne.s32.totalorder %s470, %s472
      %p479 = scmp.eq.s32.totalorder %s84, 1
      %p480 = por %p478, %p479
      %p481 = scmp.ne.s32.totalorder %s472, %s473
      %p482 = scmp.eq.s32.totalorder %s84, 0
      %p483 = por %p481, %p482
      %p484 = scmp.ne.s32.totalorder %s472, %s473
      %p485 = scmp.eq.s32.totalorder %s85, 1
      %p486 = por %p484, %p485
      %p488 = scmp.ne.s32.totalorder %s473, %s487
      %p489 = scmp.eq.s32.totalorder %s85, 0
      %p490 = por %p488, %p489
      %s492 = sadd.s32 %s491, 1
      %p495 = scmp.eq.s32.totalorder %s79, 1
      %p496 = scmp.ne.s32.totalorder %s491, %s493
      %p497 = scmp.eq.s32.totalorder %s79, 0
      %p498 = por %p496, %p497
      %p499 = scmp.ne.s32.totalorder %s491, %s493
      %p500 = scmp.eq.s32.totalorder %s84, 1
      %p501 = por %p499, %p500
      %p502 = scmp.ne.s32.totalorder %s493, %s494
      %p503 = scmp.eq.s32.totalorder %s84, 0
      %p504 = por %p502, %p503
      %p505 = scmp.ne.s32.totalorder %s493, %s494
      %p506 = scmp.eq.s32.totalorder %s85, 1
      %p507 = por %p505, %p506
      %p509 = scmp.ne.s32.totalorder %s494, %s508
      %p510 = scmp.eq.s32.totalorder %s85, 0
      %p511 = por %p509, %p510
      %s513 = sadd.s32 %s512, 1
      %p516 = scmp.eq.s32.totalorder %s79, 1
      %p517 = scmp.ne.s32.totalorder %s512, %s514
      %p518 = scmp.eq.s32.totalorder %s79, 0
      %p519 = por %p517, %p518
      %p520 = scmp.ne.s32.totalorder %s512, %s514
      %p521 = scmp.eq.s32.totalorder %s84, 1
      %p522 = por %p520, %p521
      %p523 = scmp.ne.s32.totalorder %s514, %s515
      %p524 = scmp.eq.s32.totalorder %s84, 0
      %p525 = por %p523, %p524
      %p526 = scmp.ne.s32.totalorder %s514, %s515
      %p527 = scmp.eq.s32.totalorder %s85, 1
      %p528 = por %p526, %p527
      %p530 = scmp.ne.s32.totalorder %s515, %s529
      %p531 = scmp.eq.s32.totalorder %s85, 0
      %p532 = por %p530, %p531
      %s534 = sadd.s32 %s533, 1
      %p537 = scmp.eq.s32.totalorder %s79, 1
      %p538 = scmp.ne.s32.totalorder %s533, %s535
      %p539 = scmp.eq.s32.totalorder %s79, 0
      %p540 = por %p538, %p539
      %p541 = scmp.ne.s32.totalorder %s533, %s535
      %p542 = scmp.eq.s32.totalorder %s84, 1
      %p543 = por %p541, %p542
      %p544 = scmp.ne.s32.totalorder %s535, %s536
      %p545 = scmp.eq.s32.totalorder %s84, 0
      %p546 = por %p544, %p545
      %p547 = scmp.ne.s32.totalorder %s535, %s536
      %p548 = scmp.eq.s32.totalorder %s85, 1
      %p549 = por %p547, %p548
      %p551 = scmp.ne.s32.totalorder %s536, %s550
      %p552 = scmp.eq.s32.totalorder %s85, 0
      %p553 = por %p551, %p552
      %s555 = sadd.s32 %s554, 1
      %p558 = scmp.eq.s32.totalorder %s79, 1
      %p559 = scmp.ne.s32.totalorder %s554, %s556
      %p560 = scmp.eq.s32.totalorder %s79, 0
      %p561 = por %p559, %p560
      %p562 = scmp.ne.s32.totalorder %s554, %s556
      %p563 = scmp.eq.s32.totalorder %s84, 1
      %p564 = por %p562, %p563
      %p565 = scmp.ne.s32.totalorder %s556, %s557
      %p566 = scmp.eq.s32.totalorder %s84, 0
      %p567 = por %p565, %p566
      %p568 = scmp.ne.s32.totalorder %s556, %s557
      %p569 = scmp.eq.s32.totalorder %s85, 1
      %p570 = por %p568, %p569
      %p572 = scmp.ne.s32.totalorder %s557, %s571
      %p573 = scmp.eq.s32.totalorder %s85, 0
      %p574 = por %p572, %p573
      %s576 = sadd.s32 %s575, 1
      %p579 = scmp.eq.s32.totalorder %s79, 1
      %p580 = scmp.ne.s32.totalorder %s575, %s577
      %p581 = scmp.eq.s32.totalorder %s79, 0
      %p582 = por %p580, %p581
      %p583 = scmp.ne.s32.totalorder %s575, %s577
      %p584 = scmp.eq.s32.totalorder %s84, 1
      %p585 = por %p583, %p584
      %p586 = scmp.ne.s32.totalorder %s577, %s578
      %p587 = scmp.eq.s32.totalorder %s84, 0
      %p588 = por %p586, %p587
      %p589 = scmp.ne.s32.totalorder %s577, %s578
      %p590 = scmp.eq.s32.totalorder %s85, 1
      %p591 = por %p589, %p590
      %p593 = scmp.ne.s32.totalorder %s578, %s592
      %p594 = scmp.eq.s32.totalorder %s85, 0
      %p595 = por %p593, %p594
      %s597 = sadd.s32 %s596, 1
      %p600 = scmp.eq.s32.totalorder %s79, 1
      %p601 = scmp.ne.s32.totalorder %s596, %s598
      %p602 = scmp.eq.s32.totalorder %s79, 0
      %p603 = por %p601, %p602
      %p604 = scmp.ne.s32.totalorder %s596, %s598
      %p605 = scmp.eq.s32.totalorder %s84, 1
      %p606 = por %p604, %p605
      %p607 = scmp.ne.s32.totalorder %s598, %s599
      %p608 = scmp.eq.s32.totalorder %s84, 0
      %p609 = por %p607, %p608
      %p610 = scmp.ne.s32.totalorder %s598, %s599
      %p611 = scmp.eq.s32.totalorder %s85, 1
      %p612 = por %p610, %p611
      %p614 = scmp.ne.s32.totalorder %s599, %s613
      %p615 = scmp.eq.s32.totalorder %s85, 0
      %p616 = por %p614, %p615
      %s618 = sadd.s32 %s617, 1
      %p621 = scmp.eq.s32.totalorder %s79, 1
      %p622 = scmp.ne.s32.totalorder %s617, %s619
      %p623 = scmp.eq.s32.totalorder %s79, 0
      %p624 = por %p622, %p623
      %p625 = scmp.ne.s32.totalorder %s617, %s619
      %p626 = scmp.eq.s32.totalorder %s84, 1
      %p627 = por %p625, %p626
      %p628 = scmp.ne.s32.totalorder %s619, %s620
      %p629 = scmp.eq.s32.totalorder %s84, 0
      %p630 = por %p628, %p629
      %p631 = scmp.ne.s32.totalorder %s619, %s620
      %p632 = scmp.eq.s32.totalorder %s85, 1
      %p633 = por %p631, %p632
      %p635 = scmp.ne.s32.totalorder %s620, %s634
      %p636 = scmp.eq.s32.totalorder %s85, 0
      %p637 = por %p635, %p636
      %s639 = sadd.s32 %s638, 1
      %p642 = scmp.eq.s32.totalorder %s79, 1
      %p643 = scmp.ne.s32.totalorder %s638, %s640
      %p644 = scmp.eq.s32.totalorder %s79, 0
      %p645 = por %p643, %p644
      %p646 = scmp.ne.s32.totalorder %s638, %s640
      %p647 = scmp.eq.s32.totalorder %s84, 1
      %p648 = por %p646, %p647
      %p649 = scmp.ne.s32.totalorder %s640, %s641
      %p650 = scmp.eq.s32.totalorder %s84, 0
      %p651 = por %p649, %p650
      %p652 = scmp.ne.s32.totalorder %s640, %s641
      %p653 = scmp.eq.s32.totalorder %s85, 1
      %p654 = por %p652, %p653
      %p656 = scmp.ne.s32.totalorder %s641, %s655
      %p657 = scmp.eq.s32.totalorder %s85, 0
      %p658 = por %p656, %p657
      %s660 = sadd.s32 %s659, 1
      %p663 = scmp.eq.s32.totalorder %s79, 1
      %p664 = scmp.ne.s32.totalorder %s659, %s661
      %p665 = scmp.eq.s32.totalorder %s79, 0
      %p666 = por %p664, %p665
      %p667 = scmp.ne.s32.totalorder %s659, %s661
      %p668 = scmp.eq.s32.totalorder %s84, 1
      %p669 = por %p667, %p668
      %p670 = scmp.ne.s32.totalorder %s661, %s662
      %p671 = scmp.eq.s32.totalorder %s84, 0
      %p672 = por %p670, %p671
      %p673 = scmp.ne.s32.totalorder %s661, %s662
      %p674 = scmp.eq.s32.totalorder %s85, 1
      %p675 = por %p673, %p674
      %p677 = scmp.ne.s32.totalorder %s662, %s676
      %p678 = scmp.eq.s32.totalorder %s85, 0
      %p679 = por %p677, %p678
      %s681 = sadd.s32 %s680, 1
      %p684 = scmp.eq.s32.totalorder %s79, 1
      %p685 = scmp.ne.s32.totalorder %s680, %s682
      %p686 = scmp.eq.s32.totalorder %s79, 0
      %p687 = por %p685, %p686
      %p688 = scmp.ne.s32.totalorder %s680, %s682
      %p689 = scmp.eq.s32.totalorder %s84, 1
      %p690 = por %p688, %p689
      %p691 = scmp.ne.s32.totalorder %s682, %s683
      %p692 = scmp.eq.s32.totalorder %s84, 0
      %p693 = por %p691, %p692
      %p694 = scmp.ne.s32.totalorder %s682, %s683
      %p695 = scmp.eq.s32.totalorder %s85, 1
      %p696 = por %p694, %p695
      %p698 = scmp.ne.s32.totalorder %s683, %s697
      %p699 = scmp.eq.s32.totalorder %s85, 0
      %p700 = por %p698, %p699
      %s701 = ssub.s32 %s79, %s86
      %p702 = scmp.eq.s32.totalorder %s701, 0
      %s704 = sadd.s32 %s703, 1
      %s705 = scalar_select %p702, %s703, %s704
      %p708 = pneg %p702
      %p709 = scmp.eq.s32.totalorder %s79, 1
      %p710 = por %p708, %p709
      %p711 = scmp.ne.s32.totalorder %s703, %s706
      %p712 = scmp.eq.s32.totalorder %s79, 0
      %p713 = por %p711, %p712
      %p714 = scmp.ne.s32.totalorder %s703, %s706
      %p715 = scmp.eq.s32.totalorder %s84, 1
      %p716 = por %p714, %p715
      %p717 = scmp.ne.s32.totalorder %s706, %s707
      %p718 = scmp.eq.s32.totalorder %s84, 0
      %p719 = por %p717, %p718
      %p720 = scmp.ne.s32.totalorder %s706, %s707
      %p721 = scmp.eq.s32.totalorder %s85, 1
      %p722 = por %p720, %p721
      %p724 = scmp.ne.s32.totalorder %s707, %s723
      %p725 = scmp.eq.s32.totalorder %s85, 0
      %p726 = por %p724, %p725
      %p727 = scmp.le.s32.totalorder 1, %s79
      %p728 = scmp.lt.s32.totalorder %s79, 3
      %p729 = pnand %p727, %p728
      %p730 = pneg %p729
      // Predicated region
      $region9: #{tpu_custom_call.1} parent=5 // pred_check
        _
      $region10: #{tpu_custom_call.1} parent=5 // pred_check_branch
        %732 = sbr.rel (%p729) target = $region12
      $region11: #{tpu_custom_call.1} parent=5 // pred_region
        %s733 = ssub.s32 %s79, 1
        // Predicated region
        $region13: #{tpu_custom_call.1} parent=11 // pred_check
          %p734 = pneg %p126
        $region14: #{tpu_custom_call.1} parent=11 // pred_check_branch
          %736 = sbr.rel (%p734) target = $region16
        $region15: #{tpu_custom_call.1} parent=11 // pred_region
          %s738 = ssub.s32 2048, 2048
          %739 = vsyncadd [#allocation6], %s738
          %s740 = sshll.u32 [#allocation5], 4
          %s741 = int_to_ptr.vmem [resolvable:$true] %s740
          %746 = dma.hbm_to_vmem [thread:$0]  %s3, 2048, %s741, [#allocation6], 128, 128, 8
        $region16: #{tpu_custom_call.1} parent=11 // pred_fallthru
          _
        // Predicated region
        $region17: #{tpu_custom_call.1} parent=11 // pred_check
          %p747 = pneg %p147
        $region18: #{tpu_custom_call.1} parent=11 // pred_check_branch
          %749 = sbr.rel (%p747) target = $region20
        $region19: #{tpu_custom_call.1} parent=11 // pred_region
          %s751 = ssub.s32 32, 32
          %752 = vsyncadd [#allocation6], %s751
          %s754 = sshll.u32 [#allocation7], 4
          %s755 = int_to_ptr.vmem [resolvable:$true] %s754
          %757 = dma.hbm_to_vmem [thread:$0]  %s5, 32, %s755, [#allocation6]
        $region20: #{tpu_custom_call.1} parent=11 // pred_fallthru
          _
        // Predicated region
        $region21: #{tpu_custom_call.1} parent=11 // pred_check
          %p758 = pneg %p168
        $region22: #{tpu_custom_call.1} parent=11 // pred_check_branch
          %760 = sbr.rel (%p758) target = $region24
        $region23: #{tpu_custom_call.1} parent=11 // pred_region
          %s762 = ssub.s32 4096, 4096
          %763 = vsyncadd [#allocation9], %s762
          %s764 = sshll.u32 [#allocation8], 4
          %s765 = int_to_ptr.vmem [resolvable:$true] %s764
          %770 = dma.hbm_to_vmem [thread:$0]  %s7, 4096, %s765, [#allocation9], 128, 128, 8
        $region24: #{tpu_custom_call.1} parent=11 // pred_fallthru
          _
        // Predicated region
        $region25: #{tpu_custom_call.1} parent=11 // pred_check
          %p771 = pneg %p189
        $region26: #{tpu_custom_call.1} parent=11 // pred_check_branch
          %773 = sbr.rel (%p771) target = $region28
        $region27: #{tpu_custom_call.1} parent=11 // pred_region
          _
        $region28: #{tpu_custom_call.1} parent=11 // pred_fallthru
          _
        // Predicated region
        $region29: #{tpu_custom_call.1} parent=11 // pred_check
          %p774 = pneg %p210
        $region30: #{tpu_custom_call.1} parent=11 // pred_check_branch
          %776 = sbr.rel (%p774) target = $region32
        $region31: #{tpu_custom_call.1} parent=11 // pred_region
          %s778 = ssub.s32 4096, 4096
          %779 = vsyncadd [#allocation9], %s778
          %s780 = sshll.u32 [#allocation10], 4
          %s781 = int_to_ptr.vmem [resolvable:$true] %s780
          %786 = dma.hbm_to_vmem [thread:$0]  %s11, 4096, %s781, [#allocation9], 128, 128, 8
        $region32: #{tpu_custom_call.1} parent=11 // pred_fallthru
          _
        // Predicated region
        $region33: #{tpu_custom_call.1} parent=11 // pred_check
          %p787 = pneg %p231
        $region34: #{tpu_custom_call.1} parent=11 // pred_check_branch
          %789 = sbr.rel (%p787) target = $region36
        $region35: #{tpu_custom_call.1} parent=11 // pred_region
          _
        $region36: #{tpu_custom_call.1} parent=11 // pred_fallthru
          _
        // Predicated region
        $region37: #{tpu_custom_call.1} parent=11 // pred_check
          %p790 = pneg %p252
        $region38: #{tpu_custom_call.1} parent=11 // pred_check_branch
          %792 = sbr.rel (%p790) target = $region40
        $region39: #{tpu_custom_call.1} parent=11 // pred_region
          %s794 = ssub.s32 4096, 4096
          %795 = vsyncadd [#allocation12], %s794
          %s796 = sshll.u32 [#allocation11], 4
          %s797 = int_to_ptr.vmem [resolvable:$true] %s796
          %802 = dma.hbm_to_vmem [thread:$0]  %s15, 4096, %s797, [#allocation12], 128, 128, 8
        $region40: #{tpu_custom_call.1} parent=11 // pred_fallthru
          _
        // Predicated region
        $region41: #{tpu_custom_call.1} parent=11 // pred_check
          %p803 = pneg %p273
        $region42: #{tpu_custom_call.1} parent=11 // pred_check_branch
          %805 = sbr.rel (%p803) target = $region44
        $region43: #{tpu_custom_call.1} parent=11 // pred_region
          _
        $region44: #{tpu_custom_call.1} parent=11 // pred_fallthru
          _
        // Predicated region
        $region45: #{tpu_custom_call.1} parent=11 // pred_check
          %p806 = pneg %p294
        $region46: #{tpu_custom_call.1} parent=11 // pred_check_branch
          %808 = sbr.rel (%p806) target = $region48
        $region47: #{tpu_custom_call.1} parent=11 // pred_region
          %s810 = ssub.s32 4096, 4096
          %811 = vsyncadd [#allocation12], %s810
          %s812 = sshll.u32 [#allocation13], 4
          %s813 = int_to_ptr.vmem [resolvable:$true] %s812
          %818 = dma.hbm_to_vmem [thread:$0]  %s19, 4096, %s813, [#allocation12], 128, 128, 8
        $region48: #{tpu_custom_call.1} parent=11 // pred_fallthru
          _
        // Predicated region
        $region49: #{tpu_custom_call.1} parent=11 // pred_check
          %p819 = pneg %p315
        $region50: #{tpu_custom_call.1} parent=11 // pred_check_branch
          %821 = sbr.rel (%p819) target = $region52
        $region51: #{tpu_custom_call.1} parent=11 // pred_region
          %s823 = ssub.s32 2048, 2048
          %824 = vsyncadd [#allocation15], %s823
          %s825 = sshll.u32 [#allocation14], 4
          %s826 = int_to_ptr.vmem [resolvable:$true] %s825
          %831 = dma.hbm_to_vmem [thread:$0]  %s21, 2048, %s826, [#allocation15], 128, 128, 8
        $region52: #{tpu_custom_call.1} parent=11 // pred_fallthru
          _
        // Predicated region
        $region53: #{tpu_custom_call.1} parent=11 // pred_check
          %p832 = pneg %p336
        $region54: #{tpu_custom_call.1} parent=11 // pred_check_branch
          %834 = sbr.rel (%p832) target = $region56
        $region55: #{tpu_custom_call.1} parent=11 // pred_region
          _
        $region56: #{tpu_custom_call.1} parent=11 // pred_fallthru
          _
        // Predicated region
        $region57: #{tpu_custom_call.1} parent=11 // pred_check
          %p835 = pneg %p357
        $region58: #{tpu_custom_call.1} parent=11 // pred_check_branch
          %837 = sbr.rel (%p835) target = $region60
        $region59: #{tpu_custom_call.1} parent=11 // pred_region
          %s839 = ssub.s32 4096, 4096
          %840 = vsyncadd [#allocation15], %s839
          %s841 = sshll.u32 [#allocation16], 4
          %s842 = int_to_ptr.vmem [resolvable:$true] %s841
          %847 = dma.hbm_to_vmem [thread:$0]  %s25, 4096, %s842, [#allocation15], 128, 128, 8
        $region60: #{tpu_custom_call.1} parent=11 // pred_fallthru
          _
        // Predicated region
        $region61: #{tpu_custom_call.1} parent=11 // pred_check
          %p848 = pneg %p378
        $region62: #{tpu_custom_call.1} parent=11 // pred_check_branch
          %850 = sbr.rel (%p848) target = $region64
        $region63: #{tpu_custom_call.1} parent=11 // pred_region
          _
        $region64: #{tpu_custom_call.1} parent=11 // pred_fallthru
          _
        // Predicated region
        $region65: #{tpu_custom_call.1} parent=11 // pred_check
          %p851 = pneg %p399
        $region66: #{tpu_custom_call.1} parent=11 // pred_check_branch
          %853 = sbr.rel (%p851) target = $region68
        $region67: #{tpu_custom_call.1} parent=11 // pred_region
          %s855 = ssub.s32 4096, 4096
          %856 = vsyncadd [#allocation18], %s855
          %s857 = sshll.u32 [#allocation17], 4
          %s858 = int_to_ptr.vmem [resolvable:$true] %s857
          %863 = dma.hbm_to_vmem [thread:$0]  %s29, 4096, %s858, [#allocation18], 128, 128, 8
        $region68: #{tpu_custom_call.1} parent=11 // pred_fallthru
          _
        // Predicated region
        $region69: #{tpu_custom_call.1} parent=11 // pred_check
          %p864 = pneg %p420
        $region70: #{tpu_custom_call.1} parent=11 // pred_check_branch
          %866 = sbr.rel (%p864) target = $region72
        $region71: #{tpu_custom_call.1} parent=11 // pred_region
          _
        $region72: #{tpu_custom_call.1} parent=11 // pred_fallthru
          _
        // Predicated region
        $region73: #{tpu_custom_call.1} parent=11 // pred_check
          %p867 = pneg %p441
        $region74: #{tpu_custom_call.1} parent=11 // pred_check_branch
          %869 = sbr.rel (%p867) target = $region76
        $region75: #{tpu_custom_call.1} parent=11 // pred_region
          %s871 = ssub.s32 4096, 4096
          %872 = vsyncadd [#allocation18], %s871
          %s873 = sshll.u32 [#allocation19], 4
          %s874 = int_to_ptr.vmem [resolvable:$true] %s873
          %879 = dma.hbm_to_vmem [thread:$0]  %s33, 4096, %s874, [#allocation18], 128, 128, 8
        $region76: #{tpu_custom_call.1} parent=11 // pred_fallthru
          _
        // Predicated region
        $region77: #{tpu_custom_call.1} parent=11 // pred_check
          %p880 = pneg %p462
        $region78: #{tpu_custom_call.1} parent=11 // pred_check_branch
          %882 = sbr.rel (%p880) target = $region80
        $region79: #{tpu_custom_call.1} parent=11 // pred_region
          _
        $region80: #{tpu_custom_call.1} parent=11 // pred_fallthru
          _
        // Predicated region
        $region81: #{tpu_custom_call.1} parent=11 // pred_check
          %p883 = pneg %p483
        $region82: #{tpu_custom_call.1} parent=11 // pred_check_branch
          %885 = sbr.rel (%p883) target = $region84
        $region83: #{tpu_custom_call.1} parent=11 // pred_region
          %s887 = ssub.s32 6144, 6144
          %888 = vsyncadd [#allocation21], %s887
          %s889 = sshll.u32 [#allocation20], 4
          %s890 = int_to_ptr.vmem [resolvable:$true] %s889
          %895 = dma.hbm_to_vmem [thread:$0]  %s37, 6144, %s890, [#allocation21], 192, 192, 12
        $region84: #{tpu_custom_call.1} parent=11 // pred_fallthru
          _
        // Predicated region
        $region85: #{tpu_custom_call.1} parent=11 // pred_check
          %p896 = pneg %p504
        $region86: #{tpu_custom_call.1} parent=11 // pred_check_branch
          %898 = sbr.rel (%p896) target = $region88
        $region87: #{tpu_custom_call.1} parent=11 // pred_region
          _
        $region88: #{tpu_custom_call.1} parent=11 // pred_fallthru
          _
        // Predicated region
        $region89: #{tpu_custom_call.1} parent=11 // pred_check
          %p899 = pneg %p525
        $region90: #{tpu_custom_call.1} parent=11 // pred_check_branch
          %901 = sbr.rel (%p899) target = $region92
        $region91: #{tpu_custom_call.1} parent=11 // pred_region
          %s903 = ssub.s32 8192, 8192
          %904 = vsyncadd [#allocation21], %s903
          %s905 = sshll.u32 [#allocation22], 4
          %s906 = int_to_ptr.vmem [resolvable:$true] %s905
          %911 = dma.hbm_to_vmem [thread:$0]  %s41, 8192, %s906, [#allocation21], 256, 256, 16
        $region92: #{tpu_custom_call.1} parent=11 // pred_fallthru
          _
        // Predicated region
        $region93: #{tpu_custom_call.1} parent=11 // pred_check
          %p912 = pneg %p546
        $region94: #{tpu_custom_call.1} parent=11 // pred_check_branch
          %914 = sbr.rel (%p912) target = $region96
        $region95: #{tpu_custom_call.1} parent=11 // pred_region
          _
        $region96: #{tpu_custom_call.1} parent=11 // pred_fallthru
          _
        // Predicated region
        $region97: #{tpu_custom_call.1} parent=11 // pred_check
          %p915 = pneg %p567
        $region98: #{tpu_custom_call.1} parent=11 // pred_check_branch
          %917 = sbr.rel (%p915) target = $region100
        $region99: #{tpu_custom_call.1} parent=11 // pred_region
          %s919 = ssub.s32 4096, 4096
          %920 = vsyncadd [#allocation24], %s919
          %s921 = sshll.u32 [#allocation23], 4
          %s922 = int_to_ptr.vmem [resolvable:$true] %s921
          %927 = dma.hbm_to_vmem [thread:$0]  %s45, 4096, %s922, [#allocation24], 64, 64, 4
        $region100: #{tpu_custom_call.1} parent=11 // pred_fallthru
          _
        // Predicated region
        $region101: #{tpu_custom_call.1} parent=11 // pred_check
          %p928 = pneg %p588
        $region102: #{tpu_custom_call.1} parent=11 // pred_check_branch
          %930 = sbr.rel (%p928) target = $region104
        $region103: #{tpu_custom_call.1} parent=11 // pred_region
          _
        $region104: #{tpu_custom_call.1} parent=11 // pred_fallthru
          _
        // Predicated region
        $region105: #{tpu_custom_call.1} parent=11 // pred_check
          %p931 = pneg %p609
        $region106: #{tpu_custom_call.1} parent=11 // pred_check_branch
          %933 = sbr.rel (%p931) target = $region108
        $region107: #{tpu_custom_call.1} parent=11 // pred_region
          %s935 = ssub.s32 2048, 2048
          %936 = vsyncadd [#allocation24], %s935
          %s937 = sshll.u32 [#allocation25], 4
          %s938 = int_to_ptr.vmem [resolvable:$true] %s937
          %943 = dma.hbm_to_vmem [thread:$0]  %s49, 2048, %s938, [#allocation24], 64, 64, 4
        $region108: #{tpu_custom_call.1} parent=11 // pred_fallthru
          _
        // Predicated region
        $region109: #{tpu_custom_call.1} parent=11 // pred_check
          %p944 = pneg %p630
        $region110: #{tpu_custom_call.1} parent=11 // pred_check_branch
          %946 = sbr.rel (%p944) target = $region112
        $region111: #{tpu_custom_call.1} parent=11 // pred_region
          _
        $region112: #{tpu_custom_call.1} parent=11 // pred_fallthru
          _
        // Predicated region
        $region113: #{tpu_custom_call.1} parent=11 // pred_check
          %p947 = pneg %p651
        $region114: #{tpu_custom_call.1} parent=11 // pred_check_branch
          %949 = sbr.rel (%p947) target = $region116
        $region115: #{tpu_custom_call.1} parent=11 // pred_region
          _
        $region116: #{tpu_custom_call.1} parent=11 // pred_fallthru
          _
        // Predicated region
        $region117: #{tpu_custom_call.1} parent=11 // pred_check
          %p950 = pneg %p672
        $region118: #{tpu_custom_call.1} parent=11 // pred_check_branch
          %952 = sbr.rel (%p950) target = $region120
        $region119: #{tpu_custom_call.1} parent=11 // pred_region
          %s954 = ssub.s32 1024, 1024
          %955 = vsyncadd [#allocation27], %s954
          %s956 = sshll.u32 [#allocation26], 4
          %s957 = int_to_ptr.vmem [resolvable:$true] %s956
          %962 = dma.hbm_to_vmem [thread:$0]  %s55, 1024, %s957, [#allocation27], 64, 64, 4
        $region120: #{tpu_custom_call.1} parent=11 // pred_fallthru
          _
        // Predicated region
        $region121: #{tpu_custom_call.1} parent=11 // pred_check
          %p963 = pneg %p693
        $region122: #{tpu_custom_call.1} parent=11 // pred_check_branch
          %965 = sbr.rel (%p963) target = $region124
        $region123: #{tpu_custom_call.1} parent=11 // pred_region
          _
        $region124: #{tpu_custom_call.1} parent=11 // pred_fallthru
          _
      $region12: #{tpu_custom_call.1} parent=5 // pred_fallthru
        _
      %p966 = scmp.lt.s32.totalorder %s79, 2
      // Predicated region
      $region125: #{tpu_custom_call.1} parent=5 // pred_check
        %p967 = pneg %p966
      $region126: #{tpu_custom_call.1} parent=5 // pred_check_branch
        %969 = sbr.rel (%p967) target = $region128
      $region127: #{tpu_custom_call.1} parent=5 // pred_region
        // Predicated region
        $region129: #{tpu_custom_call.1} parent=127 // pred_check
          %p970 = pneg %p99
        $region130: #{tpu_custom_call.1} parent=127 // pred_check_branch
          %972 = sbr.rel (%p970) target = $region132
        $region131: #{tpu_custom_call.1} parent=127 // pred_region
          %s973 = sand.u32 %s89, 1
          %s974 = scalar_lea.sflag [#allocation3], %s973
          %s975 = sand.u32 %s89, 1
          %s976 = smul.addr %s975, 128
          %s977 = scalar_lea.vmem [#allocation2], %s976
          %s978 = smul.u32 32, %s79
          %s980 = ssub.s32 2048, 2048
          %981 = vsyncadd %s974, %s980
          %s982 = smul.addr %s978, 64
          %s983 = scalar_lea.hbm %s1, %s982
          %s984 = sshll.u32 %s977, 4
          %s985 = int_to_ptr.vmem [resolvable:$true] %s984
          %990 = dma.hbm_to_vmem [thread:$0]  %s983, 2048, %s985, %s974, 64, 64, 4
        $region132: #{tpu_custom_call.1} parent=127 // pred_fallthru
          _
      $region128: #{tpu_custom_call.1} parent=5 // pred_fallthru
        _
      %p991 = scmp.le.s32.totalorder 1, %s79
      %p992 = scmp.lt.s32.totalorder %s79, 3
      %p993 = pnand %p991, %p992
      %p994 = pneg %p993
      // Predicated region
      $region133: #{tpu_custom_call.1} parent=5 // pred_check
        _
      $region134: #{tpu_custom_call.1} parent=5 // pred_check_branch
        %996 = sbr.rel (%p993) target = $region136
      $region135: #{tpu_custom_call.1} parent=5 // pred_region
        %s997 = ssub.s32 %s79, 1
        %s998 = sand.u32 %s92, 1
        %s999 = scalar_lea.sflag [#allocation3], %s998
        %s1000 = sand.u32 %s92, 1
        %s1001 = smul.addr %s1000, 128
        %s1002 = scalar_lea.vmem [#allocation2], %s1001
        // Predicated region
        $region137: #{tpu_custom_call.1} parent=135 // pred_check
          %p1003 = pneg %p105
        $region138: #{tpu_custom_call.1} parent=135 // pred_check_branch
          %1005 = sbr.rel (%p1003) target = $region140
        $region139: #{tpu_custom_call.1} parent=135 // pred_region
          %1006 = dma.done %s999, 2048
        $region140: #{tpu_custom_call.1} parent=135 // pred_fallthru
          _
        // Predicated region
        $region141: #{tpu_custom_call.1} parent=135 // pred_check
          %p1007 = pneg %p126
        $region142: #{tpu_custom_call.1} parent=135 // pred_check_branch
          %1009 = sbr.rel (%p1007) target = $region144
        $region143: #{tpu_custom_call.1} parent=135 // pred_region
          %1010 = dma.done [#allocation6], 2048
        $region144: #{tpu_custom_call.1} parent=135 // pred_fallthru
          _
        // Predicated region
        $region145: #{tpu_custom_call.1} parent=135 // pred_check
          %p1011 = pneg %p147
        $region146: #{tpu_custom_call.1} parent=135 // pred_check_branch
          %1013 = sbr.rel (%p1011) target = $region148
        $region147: #{tpu_custom_call.1} parent=135 // pred_region
          %1014 = dma.done [#allocation6], 32
        $region148: #{tpu_custom_call.1} parent=135 // pred_fallthru
          _
        // Predicated region
        $region149: #{tpu_custom_call.1} parent=135 // pred_check
          %p1015 = pneg %p168
        $region150: #{tpu_custom_call.1} parent=135 // pred_check_branch
          %1017 = sbr.rel (%p1015) target = $region152
        $region151: #{tpu_custom_call.1} parent=135 // pred_region
          %1018 = dma.done [#allocation9], 4096
        $region152: #{tpu_custom_call.1} parent=135 // pred_fallthru
          _
        // Predicated region
        $region153: #{tpu_custom_call.1} parent=135 // pred_check
          %p1019 = pneg %p210
        $region154: #{tpu_custom_call.1} parent=135 // pred_check_branch
          %1021 = sbr.rel (%p1019) target = $region156
        $region155: #{tpu_custom_call.1} parent=135 // pred_region
          %1022 = dma.done [#allocation9], 4096
        $region156: #{tpu_custom_call.1} parent=135 // pred_fallthru
          _
        // Predicated region
        $region157: #{tpu_custom_call.1} parent=135 // pred_check
          %p1023 = pneg %p252
        $region158: #{tpu_custom_call.1} parent=135 // pred_check_branch
          %1025 = sbr.rel (%p1023) target = $region160
        $region159: #{tpu_custom_call.1} parent=135 // pred_region
          %1026 = dma.done [#allocation12], 4096
        $region160: #{tpu_custom_call.1} parent=135 // pred_fallthru
          _
        // Predicated region
        $region161: #{tpu_custom_call.1} parent=135 // pred_check
          %p1027 = pneg %p294
        $region162: #{tpu_custom_call.1} parent=135 // pred_check_branch
          %1029 = sbr.rel (%p1027) target = $region164
        $region163: #{tpu_custom_call.1} parent=135 // pred_region
          %1030 = dma.done [#allocation12], 4096
        $region164: #{tpu_custom_call.1} parent=135 // pred_fallthru
          _
        // Predicated region
        $region165: #{tpu_custom_call.1} parent=135 // pred_check
          %p1031 = pneg %p315
        $region166: #{tpu_custom_call.1} parent=135 // pred_check_branch
          %1033 = sbr.rel (%p1031) target = $region168
        $region167: #{tpu_custom_call.1} parent=135 // pred_region
          %1034 = dma.done [#allocation15], 2048
        $region168: #{tpu_custom_call.1} parent=135 // pred_fallthru
          _
        // Predicated region
        $region169: #{tpu_custom_call.1} parent=135 // pred_check
          %p1035 = pneg %p357
        $region170: #{tpu_custom_call.1} parent=135 // pred_check_branch
          %1037 = sbr.rel (%p1035) target = $region172
        $region171: #{tpu_custom_call.1} parent=135 // pred_region
          %1038 = dma.done [#allocation15], 4096
        $region172: #{tpu_custom_call.1} parent=135 // pred_fallthru
          _
        // Predicated region
        $region173: #{tpu_custom_call.1} parent=135 // pred_check
          %p1039 = pneg %p399
        $region174: #{tpu_custom_call.1} parent=135 // pred_check_branch
          %1041 = sbr.rel (%p1039) target = $region176
        $region175: #{tpu_custom_call.1} parent=135 // pred_region
          %1042 = dma.done [#allocation18], 4096
        $region176: #{tpu_custom_call.1} parent=135 // pred_fallthru
          _
        // Predicated region
        $region177: #{tpu_custom_call.1} parent=135 // pred_check
          %p1043 = pneg %p441
        $region178: #{tpu_custom_call.1} parent=135 // pred_check_branch
          %1045 = sbr.rel (%p1043) target = $region180
        $region179: #{tpu_custom_call.1} parent=135 // pred_region
          %1046 = dma.done [#allocation18], 4096
        $region180: #{tpu_custom_call.1} parent=135 // pred_fallthru
          _
        // Predicated region
        $region181: #{tpu_custom_call.1} parent=135 // pred_check
          %p1047 = pneg %p483
        $region182: #{tpu_custom_call.1} parent=135 // pred_check_branch
          %1049 = sbr.rel (%p1047) target = $region184
        $region183: #{tpu_custom_call.1} parent=135 // pred_region
          %1050 = dma.done [#allocation21], 6144
        $region184: #{tpu_custom_call.1} parent=135 // pred_fallthru
          _
        // Predicated region
        $region185: #{tpu_custom_call.1} parent=135 // pred_check
          %p1051 = pneg %p525
        $region186: #{tpu_custom_call.1} parent=135 // pred_check_branch
          %1053 = sbr.rel (%p1051) target = $region188
        $region187: #{tpu_custom_call.1} parent=135 // pred_region
          %1054 = dma.done [#allocation21], 8192
        $region188: #{tpu_custom_call.1} parent=135 // pred_fallthru
          _
        // Predicated region
        $region189: #{tpu_custom_call.1} parent=135 // pred_check
          %p1055 = pneg %p567
        $region190: #{tpu_custom_call.1} parent=135 // pred_check_branch
          %1057 = sbr.rel (%p1055) target = $region192
        $region191: #{tpu_custom_call.1} parent=135 // pred_region
          %1058 = dma.done [#allocation24], 4096
        $region192: #{tpu_custom_call.1} parent=135 // pred_fallthru
          _
        // Predicated region
        $region193: #{tpu_custom_call.1} parent=135 // pred_check
          %p1059 = pneg %p609
        $region194: #{tpu_custom_call.1} parent=135 // pred_check_branch
          %1061 = sbr.rel (%p1059) target = $region196
        $region195: #{tpu_custom_call.1} parent=135 // pred_region
          %1062 = dma.done [#allocation24], 2048
        $region196: #{tpu_custom_call.1} parent=135 // pred_fallthru
          _
        // Predicated region
        $region197: #{tpu_custom_call.1} parent=135 // pred_check
          %p1063 = pneg %p672
        $region198: #{tpu_custom_call.1} parent=135 // pred_check_branch
          %1065 = sbr.rel (%p1063) target = $region200
        $region199: #{tpu_custom_call.1} parent=135 // pred_region
          %1066 = dma.done [#allocation27], 1024
        $region200: #{tpu_custom_call.1} parent=135 // pred_fallthru
          _
        %s1067 = sand.u32 %s92, 1
        %s1068 = scalar_lea.sflag [#allocation3], %s1067
        %s1069 = sand.u32 %s92, 1
        %s1070 = smul.addr %s1069, 128
        %s1071 = scalar_lea.vmem [#allocation2], %s1070
        %p1072 = pneg %p105
        %p1073 = pneg %p102
        %p1074 = pneg %p126
        %p1075 = pneg %p123
        %p1076 = pneg %p147
        %p1077 = pneg %p144
        %p1078 = pneg %p168
        %p1079 = pneg %p165
        %p1080 = pneg %p189
        %p1081 = pneg %p186
        %p1082 = pneg %p210
        %p1083 = pneg %p207
        %p1084 = pneg %p231
        %p1085 = pneg %p228
        %p1086 = pneg %p252
        %p1087 = pneg %p249
        %p1088 = pneg %p273
        %p1089 = pneg %p270
        %p1090 = pneg %p294
        %p1091 = pneg %p291
        %p1092 = pneg %p315
        %p1093 = pneg %p312
        %p1094 = pneg %p336
        %p1095 = pneg %p333
        %p1096 = pneg %p357
        %p1097 = pneg %p354
        %p1098 = pneg %p378
        %p1099 = pneg %p375
        %p1100 = pneg %p399
        %p1101 = pneg %p396
        %p1102 = pneg %p420
        %p1103 = pneg %p417
        %p1104 = pneg %p441
        %p1105 = pneg %p438
        %p1106 = pneg %p462
        %p1107 = pneg %p459
        %p1108 = pneg %p483
        %p1109 = pneg %p480
        %p1110 = pneg %p504
        %p1111 = pneg %p501
        %p1112 = pneg %p525
        %p1113 = pneg %p522
        %p1114 = pneg %p546
        %p1115 = pneg %p543
        %p1116 = pneg %p567
        %p1117 = pneg %p564
        %p1118 = pneg %p588
        %p1119 = pneg %p585
        %p1120 = pneg %p609
        %p1121 = pneg %p606
        %p1122 = pneg %p630
        %p1123 = pneg %p627
        %p1124 = pneg %p651
        %p1125 = pneg %p648
        %p1126 = pneg %p672
        %p1127 = pneg %p669
        %p1128 = pneg %p693
        %p1129 = pneg %p690
        %p1130 = pneg %p719
        %p1131 = pneg %p716
        %s1132 = sand.u32 %s706, 1
        %s1133 = scalar_lea.sflag [#allocation4], %s1132
        %s1134 = sand.u32 %s706, 1
        %s1135 = smul.addr %s1134, 256
        %s1136 = scalar_lea.vmem [#allocation28], %s1135
        %s1137 = smul.u32 32, %s84
        %s1138 = smul.u32 32, %s84
        %v1140 = vld [vmem:[%s1002] sm:$0xf]
        %v1141 = vld [vmem:[%s1002 + $0x4] sm:$0xf]
        %v1142 = vld [vmem:[%s1002 + $0x8] sm:$0xf]
        %v1143 = vld [vmem:[%s1002 + $0xc] sm:$0xf]
        %v1144 = vld [vmem:[%s1002 + $0x10] sm:$0xf]
        %v1145 = vld [vmem:[%s1002 + $0x14] sm:$0xf]
        %v1146 = vld [vmem:[%s1002 + $0x18] sm:$0xf]
        %v1147 = vld [vmem:[%s1002 + $0x1c] sm:$0xf]
        %v1148 = vld [vmem:[%s1002 + $0x20] sm:$0xf]
        %v1149 = vld [vmem:[%s1002 + $0x24] sm:$0xf]
        %v1150 = vld [vmem:[%s1002 + $0x28] sm:$0xf]
        %v1151 = vld [vmem:[%s1002 + $0x2c] sm:$0xf]
        %v1152 = vld [vmem:[%s1002 + $0x30] sm:$0xf]
        %v1153 = vld [vmem:[%s1002 + $0x34] sm:$0xf]
        %v1154 = vld [vmem:[%s1002 + $0x38] sm:$0xf]
        %v1155 = vld [vmem:[%s1002 + $0x3c] sm:$0xf]
        %v1156 = vld [vmem:[%s1002 + $0x40] sm:$0xf]
        %v1157 = vld [vmem:[%s1002 + $0x44] sm:$0xf]
        %v1158 = vld [vmem:[%s1002 + $0x48] sm:$0xf]
        %v1159 = vld [vmem:[%s1002 + $0x4c] sm:$0xf]
        %v1160 = vld [vmem:[%s1002 + $0x50] sm:$0xf]
        %v1161 = vld [vmem:[%s1002 + $0x54] sm:$0xf]
        %v1162 = vld [vmem:[%s1002 + $0x58] sm:$0xf]
        %v1163 = vld [vmem:[%s1002 + $0x5c] sm:$0xf]
        %v1164 = vld [vmem:[%s1002 + $0x60] sm:$0xf]
        %v1165 = vld [vmem:[%s1002 + $0x64] sm:$0xf]
        %v1166 = vld [vmem:[%s1002 + $0x68] sm:$0xf]
        %v1167 = vld [vmem:[%s1002 + $0x6c] sm:$0xf]
        %v1168 = vld [vmem:[%s1002 + $0x70] sm:$0xf]
        %v1169 = vld [vmem:[%s1002 + $0x74] sm:$0xf]
        %v1170 = vld [vmem:[%s1002 + $0x78] sm:$0xf]
        %v1171 = vld [vmem:[%s1002 + $0x7c] sm:$0xf]
        %v1172 = vld [vmem:[#allocation5] sm:$0xff]
        %v1173 = vld [vmem:[#allocation5 + $0x8] sm:$0xff]
        %v1174 = vld [vmem:[#allocation5 + $0x10] sm:$0xff]
        %v1175 = vld [vmem:[#allocation5 + $0x18] sm:$0xff]
        %v1176 = vld [vmem:[#allocation5 + $0x20] sm:$0xff]
        %v1177 = vld [vmem:[#allocation5 + $0x28] sm:$0xff]
        %v1178 = vld [vmem:[#allocation5 + $0x30] sm:$0xff]
        %v1179 = vld [vmem:[#allocation5 + $0x38] sm:$0xff]
        %v1180 = vld [vmem:[#allocation5 + $0x40] sm:$0xff]
        %v1181 = vld [vmem:[#allocation5 + $0x48] sm:$0xff]
        %v1182 = vld [vmem:[#allocation5 + $0x50] sm:$0xff]
        %v1183 = vld [vmem:[#allocation5 + $0x58] sm:$0xff]
        %v1184 = vld [vmem:[#allocation5 + $0x60] sm:$0xff]
        %v1185 = vld [vmem:[#allocation5 + $0x68] sm:$0xff]
        %v1186 = vld [vmem:[#allocation5 + $0x70] sm:$0xff]
        %v1187 = vld [vmem:[#allocation5 + $0x78] sm:$0xff]
        %v1188 = vld [vmem:[#allocation7] sm:$0x3]
        %v1190 = vlaneseq
        %v1191 = vshrl.u32 %v1190, 7
        %v1192 = vsub.s32 0, %v1191
        %v1193 = vrot.slane %v1188, %v1192
        %v1194 = vlaneseq
        %v1195 = vshrl.u32 %v1194, 7
        %v1196 = vsub.s32 1, %v1195
        %v1197 = vrot.slane %v1188, %v1196
        %v1232 = vunpack.c.l.b16 %v1140
        %v1233 = vunpack.c.l.b16 %v1141
        %v1234 = vunpack.c.l.b16 %v1142
        %v1235 = vunpack.c.l.b16 %v1143
        %v1236 = vunpack.c.l.b16 %v1144
        %v1237 = vunpack.c.l.b16 %v1145
        %v1238 = vunpack.c.l.b16 %v1146
        %v1239 = vunpack.c.l.b16 %v1147
        %v1240 = vunpack.c.l.b16 %v1148
        %v1241 = vunpack.c.l.b16 %v1149
        %v1242 = vunpack.c.l.b16 %v1150
        %v1243 = vunpack.c.l.b16 %v1151
        %v1244 = vunpack.c.l.b16 %v1152
        %v1245 = vunpack.c.l.b16 %v1153
        %v1246 = vunpack.c.l.b16 %v1154
        %v1247 = vunpack.c.l.b16 %v1155
        %v1248 = vunpack.c.l.b16 %v1156
        %v1249 = vunpack.c.l.b16 %v1157
        %v1250 = vunpack.c.l.b16 %v1158
        %v1251 = vunpack.c.l.b16 %v1159
        %v1252 = vunpack.c.l.b16 %v1160
        %v1253 = vunpack.c.l.b16 %v1161
        %v1254 = vunpack.c.l.b16 %v1162
        %v1255 = vunpack.c.l.b16 %v1163
        %v1256 = vunpack.c.l.b16 %v1164
        %v1257 = vunpack.c.l.b16 %v1165
        %v1258 = vunpack.c.l.b16 %v1166
        %v1259 = vunpack.c.l.b16 %v1167
        %v1260 = vunpack.c.l.b16 %v1168
        %v1261 = vunpack.c.l.b16 %v1169
        %v1262 = vunpack.c.l.b16 %v1170
        %v1263 = vunpack.c.l.b16 %v1171
        %v1264 = vpack.c.b16 %v1233, %v1232
        %v1265 = vpack.c.b16 %v1235, %v1234
        %v1266 = vpack.c.b16 %v1237, %v1236
        %v1267 = vpack.c.b16 %v1239, %v1238
        %v1268 = vpack.c.b16 %v1241, %v1240
        %v1269 = vpack.c.b16 %v1243, %v1242
        %v1270 = vpack.c.b16 %v1245, %v1244
        %v1271 = vpack.c.b16 %v1247, %v1246
        %v1272 = vpack.c.b16 %v1249, %v1248
        %v1273 = vpack.c.b16 %v1251, %v1250
        %v1274 = vpack.c.b16 %v1253, %v1252
        %v1275 = vpack.c.b16 %v1255, %v1254
        %v1276 = vpack.c.b16 %v1257, %v1256
        %v1277 = vpack.c.b16 %v1259, %v1258
        %v1278 = vpack.c.b16 %v1261, %v1260
        %v1279 = vpack.c.b16 %v1263, %v1262
        %v1312 = vunpack.c.l.b16 %v1172
        %v1313 = vunpack.c.h.b16 %v1172
        %v1314 = vunpack.c.l.b16 %v1173
        %v1315 = vunpack.c.h.b16 %v1173
        %v1316 = vunpack.c.l.b16 %v1174
        %v1317 = vunpack.c.h.b16 %v1174
        %v1318 = vunpack.c.l.b16 %v1175
        %v1319 = vunpack.c.h.b16 %v1175
        %v1320 = vunpack.c.l.b16 %v1176
        %v1321 = vunpack.c.h.b16 %v1176
        %v1322 = vunpack.c.l.b16 %v1177
        %v1323 = vunpack.c.h.b16 %v1177
        %v1324 = vunpack.c.l.b16 %v1178
        %v1325 = vunpack.c.h.b16 %v1178
        %v1326 = vunpack.c.l.b16 %v1179
        %v1327 = vunpack.c.h.b16 %v1179
        %v1328 = vunpack.c.l.b16 %v1180
        %v1329 = vunpack.c.h.b16 %v1180
        %v1330 = vunpack.c.l.b16 %v1181
        %v1331 = vunpack.c.h.b16 %v1181
        %v1332 = vunpack.c.l.b16 %v1182
        %v1333 = vunpack.c.h.b16 %v1182
        %v1334 = vunpack.c.l.b16 %v1183
        %v1335 = vunpack.c.h.b16 %v1183
        %v1336 = vunpack.c.l.b16 %v1184
        %v1337 = vunpack.c.h.b16 %v1184
        %v1338 = vunpack.c.l.b16 %v1185
        %v1339 = vunpack.c.h.b16 %v1185
        %v1340 = vunpack.c.l.b16 %v1186
        %v1341 = vunpack.c.h.b16 %v1186
        %v1342 = vunpack.c.l.b16 %v1187
        %v1343 = vunpack.c.h.b16 %v1187
        %v1344 = vpack.c.b16 %v1314, %v1312
        %v1345 = vpack.c.b16 %v1315, %v1313
        %v1346 = vpack.c.b16 %v1318, %v1316
        %v1347 = vpack.c.b16 %v1319, %v1317
        %v1348 = vpack.c.b16 %v1322, %v1320
        %v1349 = vpack.c.b16 %v1323, %v1321
        %v1350 = vpack.c.b16 %v1326, %v1324
        %v1351 = vpack.c.b16 %v1327, %v1325
        %v1352 = vpack.c.b16 %v1330, %v1328
        %v1353 = vpack.c.b16 %v1331, %v1329
        %v1354 = vpack.c.b16 %v1334, %v1332
        %v1355 = vpack.c.b16 %v1335, %v1333
        %v1356 = vpack.c.b16 %v1338, %v1336
        %v1357 = vpack.c.b16 %v1339, %v1337
        %v1358 = vpack.c.b16 %v1342, %v1340
        %v1359 = vpack.c.b16 %v1343, %v1341
        %1376 = vmatprep.subr.bf16.mxu0 %v1345
        %1377 = vmatpush1.bf16.msra.mxu0 %v1344
        %1378 = vmatprep.subr.bf16.mxu0 %v1347
        %1379 = vmatpush1.bf16.msra.mxu0 %v1346
        %1380 = vmatprep.subr.bf16.mxu0 %v1349
        %1381 = vmatpush1.bf16.msra.mxu0 %v1348
        %1382 = vmatprep.subr.bf16.mxu0 %v1351
        %1383 = vmatpush1.bf16.msra.mxu0 %v1350
        %1384 = vmatprep.subr.bf16.mxu0 %v1353
        %1385 = vmatpush1.bf16.msra.mxu0 %v1352
        %1386 = vmatprep.subr.bf16.mxu0 %v1355
        %1387 = vmatpush1.bf16.msra.mxu0 %v1354
        %1388 = vmatprep.subr.bf16.mxu0 %v1357
        %1389 = vmatpush1.bf16.msra.mxu0 %v1356
        %1390 = vmatprep.subr.bf16.mxu0 %v1359
        %1391 = vmatpush1.bf16.msra.mxu0 %v1358
        %1392 = vmatprep.subr.bf16.mxu0 0
        %1393 = vmatpush1.bf16.msra.mxu0 0
        %1394 = vmatprep.subr.bf16.mxu0 0
        %1395 = vmatpush1.bf16.msra.mxu0 0
        %1396 = vmatprep.subr.bf16.mxu0 0
        %1397 = vmatpush1.bf16.msra.mxu0 0
        %1398 = vmatprep.subr.bf16.mxu0 0
        %1399 = vmatpush1.bf16.msra.mxu0 0
        %1400 = vmatprep.subr.bf16.mxu0 0
        %1401 = vmatpush1.bf16.msra.mxu0 0
        %1402 = vmatprep.subr.bf16.mxu0 0
        %1403 = vmatpush1.bf16.msra.mxu0 0
        %1404 = vmatprep.subr.bf16.mxu0 0
        %1405 = vmatpush1.bf16.msra.mxu0 0
        %1406 = vmatprep.subr.bf16.mxu0 0
        %1407 = vmatpush1.bf16.msra.mxu0 0
        %1408 = vmatprep.mubr.bf16.mxu0 0
        %1409 = vmatmul.mubr.bf16.gmra.mrb[0].mxu0 %v1264
        %v1410 = vpop.f32.mrb[0].mxu0
        %v1411 = vadd.f32 %v1193, %v1410
        %v1412 = vpop.f32.mrb[0].mxu0
        %v1413 = vadd.f32 %v1197, %v1412
        %v1414 = vpop.f32.mrb[0].mxu0
        %v1415 = vadd.f32 %v1193, %v1414
        %v1416 = vpop.f32.mrb[0].mxu0
        %v1417 = vadd.f32 %v1197, %v1416
        %1418 = vmatprep.mubr.bf16.mxu0 0
        %1419 = vmatmul.mubr.bf16.gmra.mrb[0].mxu0 %v1265
        %v1420 = vpop.f32.mrb[0].mxu0
        %v1421 = vadd.f32 %v1193, %v1420
        %v1422 = vpop.f32.mrb[0].mxu0
        %v1423 = vadd.f32 %v1197, %v1422
        %v1424 = vpop.f32.mrb[0].mxu0
        %v1425 = vadd.f32 %v1193, %v1424
        %v1426 = vpop.f32.mrb[0].mxu0
        %v1427 = vadd.f32 %v1197, %v1426
        %1428 = vmatprep.mubr.bf16.mxu0 0
        %1429 = vmatmul.mubr.bf16.gmra.mrb[0].mxu0 %v1266
        %v1430 = vpop.f32.mrb[0].mxu0
        %v1431 = vadd.f32 %v1193, %v1430
        %v1432 = vpop.f32.mrb[0].mxu0
        %v1433 = vadd.f32 %v1197, %v1432
        %v1434 = vpop.f32.mrb[0].mxu0
        %v1435 = vadd.f32 %v1193, %v1434
        %v1436 = vpop.f32.mrb[0].mxu0
        %v1437 = vadd.f32 %v1197, %v1436
        %1438 = vmatprep.mubr.bf16.mxu0 0
        %1439 = vmatmul.mubr.bf16.gmra.mrb[0].mxu0 %v1267
        %v1440 = vpop.f32.mrb[0].mxu0
        %v1441 = vadd.f32 %v1193, %v1440
        %v1442 = vpop.f32.mrb[0].mxu0
        %v1443 = vadd.f32 %v1197, %v1442
        %v1444 = vpop.f32.mrb[0].mxu0
        %v1445 = vadd.f32 %v1193, %v1444
        %v1446 = vpop.f32.mrb[0].mxu0
        %v1447 = vadd.f32 %v1197, %v1446
        %1448 = vmatprep.mubr.bf16.mxu0 0
        %1449 = vmatmul.mubr.bf16.gmra.mrb[0].mxu0 %v1268
        %v1450 = vpop.f32.mrb[0].mxu0
        %v1451 = vadd.f32 %v1193, %v1450
        %v1452 = vpop.f32.mrb[0].mxu0
        %v1453 = vadd.f32 %v1197, %v1452
        %v1454 = vpop.f32.mrb[0].mxu0
        %v1455 = vadd.f32 %v1193, %v1454
        %v1456 = vpop.f32.mrb[0].mxu0
        %v1457 = vadd.f32 %v1197, %v1456
        %1458 = vmatprep.mubr.bf16.mxu0 0
        %1459 = vmatmul.mubr.bf16.gmra.mrb[0].mxu0 %v1269
        %v1460 = vpop.f32.mrb[0].mxu0
        %v1461 = vadd.f32 %v1193, %v1460
        %v1462 = vpop.f32.mrb[0].mxu0
        %v1463 = vadd.f32 %v1197, %v1462
        %v1464 = vpop.f32.mrb[0].mxu0
        %v1465 = vadd.f32 %v1193, %v1464
        %v1466 = vpop.f32.mrb[0].mxu0
        %v1467 = vadd.f32 %v1197, %v1466
        %1468 = vmatprep.mubr.bf16.mxu0 0
        %1469 = vmatmul.mubr.bf16.gmra.mrb[0].mxu0 %v1270
        %v1470 = vpop.f32.mrb[0].mxu0
        %v1471 = vadd.f32 %v1193, %v1470
        %v1472 = vpop.f32.mrb[0].mxu0
        %v1473 = vadd.f32 %v1197, %v1472
        %v1474 = vpop.f32.mrb[0].mxu0
        %v1475 = vadd.f32 %v1193, %v1474
        %v1476 = vpop.f32.mrb[0].mxu0
        %v1477 = vadd.f32 %v1197, %v1476
        %1478 = vmatprep.mubr.bf16.mxu0 0
        %1479 = vmatmul.mubr.bf16.gmra.mrb[0].mxu0 %v1271
        %v1480 = vpop.f32.mrb[0].mxu0
        %v1481 = vadd.f32 %v1193, %v1480
        %v1482 = vpop.f32.mrb[0].mxu0
        %v1483 = vadd.f32 %v1197, %v1482
        %v1484 = vpop.f32.mrb[0].mxu0
        %v1485 = vadd.f32 %v1193, %v1484
        %v1486 = vpop.f32.mrb[0].mxu0
        %v1487 = vadd.f32 %v1197, %v1486
        %1488 = vmatprep.mubr.bf16.mxu0 0
        %1489 = vmatmul.mubr.bf16.gmra.mrb[0].mxu0 %v1272
        %v1490 = vpop.f32.mrb[0].mxu0
        %v1491 = vadd.f32 %v1193, %v1490
        %v1492 = vpop.f32.mrb[0].mxu0
        %v1493 = vadd.f32 %v1197, %v1492
        %v1494 = vpop.f32.mrb[0].mxu0
        %v1495 = vadd.f32 %v1193, %v1494
        %v1496 = vpop.f32.mrb[0].mxu0
        %v1497 = vadd.f32 %v1197, %v1496
        %1498 = vmatprep.mubr.bf16.mxu0 0
        %1499 = vmatmul.mubr.bf16.gmra.mrb[0].mxu0 %v1273
        %v1500 = vpop.f32.mrb[0].mxu0
        %v1501 = vadd.f32 %v1193, %v1500
        %v1502 = vpop.f32.mrb[0].mxu0
        %v1503 = vadd.f32 %v1197, %v1502
        %v1504 = vpop.f32.mrb[0].mxu0
        %v1505 = vadd.f32 %v1193, %v1504
        %v1506 = vpop.f32.mrb[0].mxu0
        %v1507 = vadd.f32 %v1197, %v1506
        %1508 = vmatprep.mubr.bf16.mxu0 0
        %1509 = vmatmul.mubr.bf16.gmra.mrb[0].mxu0 %v1274
        %v1510 = vpop.f32.mrb[0].mxu0
        %v1511 = vadd.f32 %v1193, %v1510
        %v1512 = vpop.f32.mrb[0].mxu0
        %v1513 = vadd.f32 %v1197, %v1512
        %v1514 = vpop.f32.mrb[0].mxu0
        %v1515 = vadd.f32 %v1193, %v1514
        %v1516 = vpop.f32.mrb[0].mxu0
        %v1517 = vadd.f32 %v1197, %v1516
        %1518 = vmatprep.mubr.bf16.mxu0 0
        %1519 = vmatmul.mubr.bf16.gmra.mrb[0].mxu0 %v1275
        %v1520 = vpop.f32.mrb[0].mxu0
        %v1521 = vadd.f32 %v1193, %v1520
        %v1522 = vpop.f32.mrb[0].mxu0
        %v1523 = vadd.f32 %v1197, %v1522
        %v1524 = vpop.f32.mrb[0].mxu0
        %v1525 = vadd.f32 %v1193, %v1524
        %v1526 = vpop.f32.mrb[0].mxu0
        %v1527 = vadd.f32 %v1197, %v1526
        %1528 = vmatprep.mubr.bf16.mxu0 0
        %1529 = vmatmul.mubr.bf16.gmra.mrb[0].mxu0 %v1276
        %v1530 = vpop.f32.mrb[0].mxu0
        %v1531 = vadd.f32 %v1193, %v1530
        %v1532 = vpop.f32.mrb[0].mxu0
        %v1533 = vadd.f32 %v1197, %v1532
        %v1534 = vpop.f32.mrb[0].mxu0
        %v1535 = vadd.f32 %v1193, %v1534
        %v1536 = vpop.f32.mrb[0].mxu0
        %v1537 = vadd.f32 %v1197, %v1536
        %1538 = vmatprep.mubr.bf16.mxu0 0
        %1539 = vmatmul.mubr.bf16.gmra.mrb[0].mxu0 %v1277
        %v1540 = vpop.f32.mrb[0].mxu0
        %v1541 = vadd.f32 %v1193, %v1540
        %v1542 = vpop.f32.mrb[0].mxu0
        %v1543 = vadd.f32 %v1197, %v1542
        %v1544 = vpop.f32.mrb[0].mxu0
        %v1545 = vadd.f32 %v1193, %v1544
        %v1546 = vpop.f32.mrb[0].mxu0
        %v1547 = vadd.f32 %v1197, %v1546
        %1548 = vmatprep.mubr.bf16.mxu0 0
        %1549 = vmatmul.mubr.bf16.gmra.mrb[0].mxu0 %v1278
        %v1550 = vpop.f32.mrb[0].mxu0
        %v1551 = vadd.f32 %v1193, %v1550
        %v1552 = vpop.f32.mrb[0].mxu0
        %v1553 = vadd.f32 %v1197, %v1552
        %v1554 = vpop.f32.mrb[0].mxu0
        %v1555 = vadd.f32 %v1193, %v1554
        %v1556 = vpop.f32.mrb[0].mxu0
        %v1557 = vadd.f32 %v1197, %v1556
        %1558 = vmatprep.mubr.bf16.mxu0 0
        %1559 = vmatmul.mubr.bf16.gmra.mrb[0].mxu0 %v1279
        %v1560 = vpop.f32.mrb[0].mxu0
        %v1561 = vadd.f32 %v1193, %v1560
        %v1562 = vpop.f32.mrb[0].mxu0
        %v1563 = vadd.f32 %v1197, %v1562
        %v1564 = vpop.f32.mrb[0].mxu0
        %v1565 = vadd.f32 %v1193, %v1564
        %v1566 = vpop.f32.mrb[0].mxu0
        %v1567 = vadd.f32 %v1197, %v1566
        %1568 = vdwg.mxu0
        %v1569 = vmax.f32 %v1411, 0.0
        %v1570 = vmax.f32 %v1413, 0.0
        %v1571 = vmax.f32 %v1415, 0.0
        %v1572 = vmax.f32 %v1417, 0.0
        %v1573 = vmax.f32 %v1421, 0.0
        %v1574 = vmax.f32 %v1423, 0.0
        %v1575 = vmax.f32 %v1425, 0.0
        %v1576 = vmax.f32 %v1427, 0.0
        %v1577 = vmax.f32 %v1431, 0.0
        %v1578 = vmax.f32 %v1433, 0.0
        %v1579 = vmax.f32 %v1435, 0.0
        %v1580 = vmax.f32 %v1437, 0.0
        %v1581 = vmax.f32 %v1441, 0.0
        %v1582 = vmax.f32 %v1443, 0.0
        %v1583 = vmax.f32 %v1445, 0.0
        %v1584 = vmax.f32 %v1447, 0.0
        %v1585 = vmax.f32 %v1451, 0.0
        %v1586 = vmax.f32 %v1453, 0.0
        %v1587 = vmax.f32 %v1455, 0.0
        %v1588 = vmax.f32 %v1457, 0.0
        %v1589 = vmax.f32 %v1461, 0.0
        %v1590 = vmax.f32 %v1463, 0.0
        %v1591 = vmax.f32 %v1465, 0.0
        %v1592 = vmax.f32 %v1467, 0.0
        %v1593 = vmax.f32 %v1471, 0.0
        %v1594 = vmax.f32 %v1473, 0.0
        %v1595 = vmax.f32 %v1475, 0.0
        %v1596 = vmax.f32 %v1477, 0.0
        %v1597 = vmax.f32 %v1481, 0.0
        %v1598 = vmax.f32 %v1483, 0.0
        %v1599 = vmax.f32 %v1485, 0.0
        %v1600 = vmax.f32 %v1487, 0.0
        %v1601 = vmax.f32 %v1491, 0.0
        %v1602 = vmax.f32 %v1493, 0.0
        %v1603 = vmax.f32 %v1495, 0.0
        %v1604 = vmax.f32 %v1497, 0.0
        %v1605 = vmax.f32 %v1501, 0.0
        %v1606 = vmax.f32 %v1503, 0.0
        %v1607 = vmax.f32 %v1505, 0.0
        %v1608 = vmax.f32 %v1507, 0.0
        %v1609 = vmax.f32 %v1511, 0.0
        %v1610 = vmax.f32 %v1513, 0.0
        %v1611 = vmax.f32 %v1515, 0.0
        %v1612 = vmax.f32 %v1517, 0.0
        %v1613 = vmax.f32 %v1521, 0.0
        %v1614 = vmax.f32 %v1523, 0.0
        %v1615 = vmax.f32 %v1525, 0.0
        %v1616 = vmax.f32 %v1527, 0.0
        %v1617 = vmax.f32 %v1531, 0.0
        %v1618 = vmax.f32 %v1533, 0.0
        %v1619 = vmax.f32 %v1535, 0.0
        %v1620 = vmax.f32 %v1537, 0.0
        %v1621 = vmax.f32 %v1541, 0.0
        %v1622 = vmax.f32 %v1543, 0.0
        %v1623 = vmax.f32 %v1545, 0.0
        %v1624 = vmax.f32 %v1547, 0.0
        %v1625 = vmax.f32 %v1551, 0.0
        %v1626 = vmax.f32 %v1553, 0.0
        %v1627 = vmax.f32 %v1555, 0.0
        %v1628 = vmax.f32 %v1557, 0.0
        %v1629 = vmax.f32 %v1561, 0.0
        %v1630 = vmax.f32 %v1563, 0.0
        %v1631 = vmax.f32 %v1565, 0.0
        %v1632 = vmax.f32 %v1567, 0.0
        %v1633 = vld [vmem:[#allocation8] sm:$0xff]
        %v1634 = vld [vmem:[#allocation8 + $0x8] sm:$0xff]
        %v1635 = vld [vmem:[#allocation8 + $0x10] sm:$0xff]
        %v1636 = vld [vmem:[#allocation8 + $0x18] sm:$0xff]
        %v1637 = vld [vmem:[#allocation8 + $0x20] sm:$0xff]
        %v1638 = vld [vmem:[#allocation8 + $0x28] sm:$0xff]
        %v1639 = vld [vmem:[#allocation8 + $0x30] sm:$0xff]
        %v1640 = vld [vmem:[#allocation8 + $0x38] sm:$0xff]
        %v1641 = vld [vmem:[#allocation8 + $0x40] sm:$0xff]
        %v1642 = vld [vmem:[#allocation8 + $0x48] sm:$0xff]
        %v1643 = vld [vmem:[#allocation8 + $0x50] sm:$0xff]
        %v1644 = vld [vmem:[#allocation8 + $0x58] sm:$0xff]
        %v1645 = vld [vmem:[#allocation8 + $0x60] sm:$0xff]
        %v1646 = vld [vmem:[#allocation8 + $0x68] sm:$0xff]
        %v1647 = vld [vmem:[#allocation8 + $0x70] sm:$0xff]
        %v1648 = vld [vmem:[#allocation8 + $0x78] sm:$0xff]
        %v1649 = vld [vmem:[#allocation8 + $0x80] sm:$0xff]
        %v1650 = vld [vmem:[#allocation8 + $0x88] sm:$0xff]
        %v1651 = vld [vmem:[#allocation8 + $0x90] sm:$0xff]
        %v1652 = vld [vmem:[#allocation8 + $0x98] sm:$0xff]
        %v1653 = vld [vmem:[#allocation8 + $0xa0] sm:$0xff]
        %v1654 = vld [vmem:[#allocation8 + $0xa8] sm:$0xff]
        %v1655 = vld [vmem:[#allocation8 + $0xb0] sm:$0xff]
        %v1656 = vld [vmem:[#allocation8 + $0xb8] sm:$0xff]
        %v1657 = vld [vmem:[#allocation8 + $0xc0] sm:$0xff]
        %v1658 = vld [vmem:[#allocation8 + $0xc8] sm:$0xff]
        %v1659 = vld [vmem:[#allocation8 + $0xd0] sm:$0xff]
        %v1660 = vld [vmem:[#allocation8 + $0xd8] sm:$0xff]
        %v1661 = vld [vmem:[#allocation8 + $0xe0] sm:$0xff]
        %v1662 = vld [vmem:[#allocation8 + $0xe8] sm:$0xff]
        %v1663 = vld [vmem:[#allocation8 + $0xf0] sm:$0xff]
        %v1664 = vld [vmem:[#allocation8 + $0xf8] sm:$0xff]
        %v1665 = vld [vmem:[%s9] sm:$0x3]
        %v1666 = vpack.c.bf16 %v1571, %v1569
        %v1667 = vpack.c.bf16 %v1572, %v1570
        %v1668 = vpack.c.bf16 %v1575, %v1573
        %v1669 = vpack.c.bf16 %v1576, %v1574
        %v1670 = vpack.c.bf16 %v1579, %v1577
        %v1671 = vpack.c.bf16 %v1580, %v1578
        %v1672 = vpack.c.bf16 %v1583, %v1581
        %v1673 = vpack.c.bf16 %v1584, %v1582
        %v1674 = vpack.c.bf16 %v1587, %v1585
        %v1675 = vpack.c.bf16 %v1588, %v1586
        %v1676 = vpack.c.bf16 %v1591, %v1589
        %v1677 = vpack.c.bf16 %v1592, %v1590
        %v1678 = vpack.c.bf16 %v1595, %v1593
        %v1679 = vpack.c.bf16 %v1596, %v1594
        %v1680 = vpack.c.bf16 %v1599, %v1597
        %v1681 = vpack.c.bf16 %v1600, %v1598
        %v1682 = vpack.c.bf16 %v1603, %v1601
        %v1683 = vpack.c.bf16 %v1604, %v1602
        %v1684 = vpack.c.bf16 %v1607, %v1605
        %v1685 = vpack.c.bf16 %v1608, %v1606
        %v1686 = vpack.c.bf16 %v1611, %v1609
        %v1687 = vpack.c.bf16 %v1612, %v1610
        %v1688 = vpack.c.bf16 %v1615, %v1613
        %v1689 = vpack.c.bf16 %v1616, %v1614
        %v1690 = vpack.c.bf16 %v1619, %v1617
        %v1691 = vpack.c.bf16 %v1620, %v1618
        %v1692 = vpack.c.bf16 %v1623, %v1621
        %v1693 = vpack.c.bf16 %v1624, %v1622
        %v1694 = vpack.c.bf16 %v1627, %v1625
        %v1695 = vpack.c.bf16 %v1628, %v1626
        %v1696 = vpack.c.bf16 %v1631, %v1629
        %v1697 = vpack.c.bf16 %v1632, %v1630
        %v1699 = vlaneseq
        %v1700 = vshrl.u32 %v1699, 7
        %v1701 = vsub.s32 0, %v1700
        %v1702 = vrot.slane %v1665, %v1701
        %v1703 = vlaneseq
        %v1704 = vshrl.u32 %v1703, 7
        %v1705 = vsub.s32 1, %v1704
        %v1706 = vrot.slane %v1665, %v1705
        %v1741 = vunpack.c.l.b16 %v1633
        %v1742 = vunpack.c.h.b16 %v1633
        %v1743 = vunpack.c.l.b16 %v1634
        %v1744 = vunpack.c.h.b16 %v1634
        %v1745 = vunpack.c.l.b16 %v1635
        %v1746 = vunpack.c.h.b16 %v1635
        %v1747 = vunpack.c.l.b16 %v1636
        %v1748 = vunpack.c.h.b16 %v1636
        %v1749 = vunpack.c.l.b16 %v1637
        %v1750 = vunpack.c.h.b16 %v1637
        %v1751 = vunpack.c.l.b16 %v1638
        %v1752 = vunpack.c.h.b16 %v1638
        %v1753 = vunpack.c.l.b16 %v1639
        %v1754 = vunpack.c.h.b16 %v1639
        %v1755 = vunpack.c.l.b16 %v1640
        %v1756 = vunpack.c.h.b16 %v1640
        %v1757 = vunpack.c.l.b16 %v1641
        %v1758 = vunpack.c.h.b16 %v1641
        %v1759 = vunpack.c.l.b16 %v1642
        %v1760 = vunpack.c.h.b16 %v1642
        %v1761 = vunpack.c.l.b16 %v1643
        %v1762 = vunpack.c.h.b16 %v1643
        %v1763 = vunpack.c.l.b16 %v1644
        %v1764 = vunpack.c.h.b16 %v1644
        %v1765 = vunpack.c.l.b16 %v1645
        %v1766 = vunpack.c.h.b16 %v1645
        %v1767 = vunpack.c.l.b16 %v1646
        %v1768 = vunpack.c.h.b16 %v1646
        %v1769 = vunpack.c.l.b16 %v1647
        %v1770 = vunpack.c.h.b16 %v1647
        %v1771 = vunpack.c.l.b16 %v1648
        %v1772 = vunpack.c.h.b16 %v1648
        %v1773 = vunpack.c.l.b16 %v1649
        %v1774 = vunpack.c.h.b16 %v1649
        %v1775 = vunpack.c.l.b16 %v1650
        %v1776 = vunpack.c.h.b16 %v1650
        %v1777 = vunpack.c.l.b16 %v1651
        %v1778 = vunpack.c.h.b16 %v1651
        %v1779 = vunpack.c.l.b16 %v1652
        %v1780 = vunpack.c.h.b16 %v1652
        %v1781 = vunpack.c.l.b16 %v1653
        %v1782 = vunpack.c.h.b16 %v1653
        %v1783 = vunpack.c.l.b16 %v1654
        %v1784 = vunpack.c.h.b16 %v1654
        %v1785 = vunpack.c.l.b16 %v1655
        %v1786 = vunpack.c.h.b16 %v1655
        %v1787 = vunpack.c.l.b16 %v1656
        %v1788 = vunpack.c.h.b16 %v1656
        %v1789 = vunpack.c.l.b16 %v1657
        %v1790 = vunpack.c.h.b16 %v1657
        %v1791 = vunpack.c.l.b16 %v1658
        %v1792 = vunpack.c.h.b16 %v1658
        %v1793 = vunpack.c.l.b16 %v1659
        %v1794 = vunpack.c.h.b16 %v1659
        %v1795 = vunpack.c.l.b16 %v1660
        %v1796 = vunpack.c.h.b16 %v1660
        %v1797 = vunpack.c.l.b16 %v1661
        %v1798 = vunpack.c.h.b16 %v1661
        %v1799 = vunpack.c.l.b16 %v1662
        %v1800 = vunpack.c.h.b16 %v1662
        %v1801 = vunpack.c.l.b16 %v1663
        %v1802 = vunpack.c.h.b16 %v1663
        %v1803 = vunpack.c.l.b16 %v1664
        %v1804 = vunpack.c.h.b16 %v1664
        %v1805 = vpack.c.b16 %v1743, %v1741
        %v1806 = vpack.c.b16 %v1744, %v1742
        %v1807 = vpack.c.b16 %v1747, %v1745
        %v1808 = vpack.c.b16 %v1748, %v1746
        %v1809 = vpack.c.b16 %v1751, %v1749
        %v1810 = vpack.c.b16 %v1752, %v1750
        %v1811 = vpack.c.b16 %v1755, %v1753
        %v1812 = vpack.c.b16 %v1756, %v1754
        %v1813 = vpack.c.b16 %v1759, %v1757
        %v1814 = vpack.c.b16 %v1760, %v1758
        %v1815 = vpack.c.b16 %v1763, %v1761
        %v1816 = vpack.c.b16 %v1764, %v1762
        %v1817 = vpack.c.b16 %v1767, %v1765
        %v1818 = vpack.c.b16 %v1768, %v1766
        %v1819 = vpack.c.b16 %v1771, %v1769
        %v1820 = vpack.c.b16 %v1772, %v1770
        %v1821 = vpack.c.b16 %v1775, %v1773
        %v1822 = vpack.c.b16 %v1776, %v1774
        %v1823 = vpack.c.b16 %v1779, %v1777
        %v1824 = vpack.c.b16 %v1780, %v1778
        %v1825 = vpack.c.b16 %v1783, %v1781
        %v1826 = vpack.c.b16 %v1784, %v1782
        %v1827 = vpack.c.b16 %v1787, %v1785
        %v1828 = vpack.c.b16 %v1788, %v1786
        %v1829 = vpack.c.b16 %v1791, %v1789
        %v1830 = vpack.c.b16 %v1792, %v1790
        %v1831 = vpack.c.b16 %v1795, %v1793
        %v1832 = vpack.c.b16 %v1796, %v1794
        %v1833 = vpack.c.b16 %v1799, %v1797
        %v1834 = vpack.c.b16 %v1800, %v1798
        %v1835 = vpack.c.b16 %v1803, %v1801
        %v1836 = vpack.c.b16 %v1804, %v1802
        %1869 = vmatprep.subr.bf16.mxu0 %v1806
        %1870 = vmatpush1.bf16.msra.mxu0 %v1805
        %1871 = vmatprep.subr.bf16.mxu0 %v1808
        %1872 = vmatpush1.bf16.msra.mxu0 %v1807
        %1873 = vmatprep.subr.bf16.mxu0 %v1810
        %1874 = vmatpush1.bf16.msra.mxu0 %v1809
        %1875 = vmatprep.subr.bf16.mxu0 %v1812
        %1876 = vmatpush1.bf16.msra.mxu0 %v1811
        %1877 = vmatprep.subr.bf16.mxu0 %v1814
        %1878 = vmatpush1.bf16.msra.mxu0 %v1813
        %1879 = vmatprep.subr.bf16.mxu0 %v1816
        %1880 = vmatpush1.bf16.msra.mxu0 %v1815
        %1881 = vmatprep.subr.bf16.mxu0 %v1818
        %1882 = vmatpush1.bf16.msra.mxu0 %v1817
        %1883 = vmatprep.subr.bf16.mxu0 %v1820
        %1884 = vmatpush1.bf16.msra.mxu0 %v1819
        %1885 = vmatprep.subr.bf16.mxu0 %v1822
        %1886 = vmatpush1.bf16.msra.mxu0 %v1821
        %1887 = vmatprep.subr.bf16.mxu0 %v1824
        %1888 = vmatpush1.bf16.msra.mxu0 %v1823
        %1889 = vmatprep.subr.bf16.mxu0 %v1826
        %1890 = vmatpush1.bf16.msra.mxu0 %v1825
        %1891 = vmatprep.subr.bf16.mxu0 %v1828
        %1892 = vmatpush1.bf16.msra.mxu0 %v1827
        %1893 = vmatprep.subr.bf16.mxu0 %v1830
        %1894 = vmatpush1.bf16.msra.mxu0 %v1829
        %1895 = vmatprep.subr.bf16.mxu0 %v1832
        %1896 = vmatpush1.bf16.msra.mxu0 %v1831
        %1897 = vmatprep.subr.bf16.mxu0 %v1834
        %1898 = vmatpush1.bf16.msra.mxu0 %v1833
        %1899 = vmatprep.subr.bf16.mxu0 %v1836
        %1900 = vmatpush1.bf16.msra.mxu0 %v1835
        %1901 = vmatprep.mubr.bf16.mxu0 %v1667
        %1902 = vmatmul.mubr.bf16.gmra.mrb[0].mxu0 %v1666
        %v1903 = vpop.f32.mrb[0].mxu0
        %v1904 = vadd.f32 %v1702, %v1903
        %v1905 = vpop.f32.mrb[0].mxu0
        %v1906 = vadd.f32 %v1706, %v1905
        %v1907 = vpop.f32.mrb[0].mxu0
        %v1908 = vadd.f32 %v1702, %v1907
        %v1909 = vpop.f32.mrb[0].mxu0
        %v1910 = vadd.f32 %v1706, %v1909
        %1911 = vmatprep.mubr.bf16.mxu0 %v1669
        %1912 = vmatmul.mubr.bf16.gmra.mrb[0].mxu0 %v1668
        %v1913 = vpop.f32.mrb[0].mxu0
        %v1914 = vadd.f32 %v1702, %v1913
        %v1915 = vpop.f32.mrb[0].mxu0
        %v1916 = vadd.f32 %v1706, %v1915
        %v1917 = vpop.f32.mrb[0].mxu0
        %v1918 = vadd.f32 %v1702, %v1917
        %v1919 = vpop.f32.mrb[0].mxu0
        %v1920 = vadd.f32 %v1706, %v1919
        %1921 = vmatprep.mubr.bf16.mxu0 %v1671
        %1922 = vmatmul.mubr.bf16.gmra.mrb[0].mxu0 %v1670
        %v1923 = vpop.f32.mrb[0].mxu0
        %v1924 = vadd.f32 %v1702, %v1923
        %v1925 = vpop.f32.mrb[0].mxu0
        %v1926 = vadd.f32 %v1706, %v1925
        %v1927 = vpop.f32.mrb[0].mxu0
        %v1928 = vadd.f32 %v1702, %v1927
        %v1929 = vpop.f32.mrb[0].mxu0
        %v1930 = vadd.f32 %v1706, %v1929
        %1931 = vmatprep.mubr.bf16.mxu0 %v1673
        %1932 = vmatmul.mubr.bf16.gmra.mrb[0].mxu0 %v1672
        %v1933 = vpop.f32.mrb[0].mxu0
        %v1934 = vadd.f32 %v1702, %v1933
        %v1935 = vpop.f32.mrb[0].mxu0
        %v1936 = vadd.f32 %v1706, %v1935
        %v1937 = vpop.f32.mrb[0].mxu0
        %v1938 = vadd.f32 %v1702, %v1937
        %v1939 = vpop.f32.mrb[0].mxu0
        %v1940 = vadd.f32 %v1706, %v1939
        %1941 = vmatprep.mubr.bf16.mxu0 %v1675
        %1942 = vmatmul.mubr.bf16.gmra.mrb[0].mxu0 %v1674
        %v1943 = vpop.f32.mrb[0].mxu0
        %v1944 = vadd.f32 %v1702, %v1943
        %v1945 = vpop.f32.mrb[0].mxu0
        %v1946 = vadd.f32 %v1706, %v1945
        %v1947 = vpop.f32.mrb[0].mxu0
        %v1948 = vadd.f32 %v1702, %v1947
        %v1949 = vpop.f32.mrb[0].mxu0
        %v1950 = vadd.f32 %v1706, %v1949
        %1951 = vmatprep.mubr.bf16.mxu0 %v1677
        %1952 = vmatmul.mubr.bf16.gmra.mrb[0].mxu0 %v1676
        %v1953 = vpop.f32.mrb[0].mxu0
        %v1954 = vadd.f32 %v1702, %v1953
        %v1955 = vpop.f32.mrb[0].mxu0
        %v1956 = vadd.f32 %v1706, %v1955
        %v1957 = vpop.f32.mrb[0].mxu0
        %v1958 = vadd.f32 %v1702, %v1957
        %v1959 = vpop.f32.mrb[0].mxu0
        %v1960 = vadd.f32 %v1706, %v1959
        %1961 = vmatprep.mubr.bf16.mxu0 %v1679
        %1962 = vmatmul.mubr.bf16.gmra.mrb[0].mxu0 %v1678
        %v1963 = vpop.f32.mrb[0].mxu0
        %v1964 = vadd.f32 %v1702, %v1963
        %v1965 = vpop.f32.mrb[0].mxu0
        %v1966 = vadd.f32 %v1706, %v1965
        %v1967 = vpop.f32.mrb[0].mxu0
        %v1968 = vadd.f32 %v1702, %v1967
        %v1969 = vpop.f32.mrb[0].mxu0
        %v1970 = vadd.f32 %v1706, %v1969
        %1971 = vmatprep.mubr.bf16.mxu0 %v1681
        %1972 = vmatmul.mubr.bf16.gmra.mrb[0].mxu0 %v1680
        %v1973 = vpop.f32.mrb[0].mxu0
        %v1974 = vadd.f32 %v1702, %v1973
        %v1975 = vpop.f32.mrb[0].mxu0
        %v1976 = vadd.f32 %v1706, %v1975
        %v1977 = vpop.f32.mrb[0].mxu0
        %v1978 = vadd.f32 %v1702, %v1977
        %v1979 = vpop.f32.mrb[0].mxu0
        %v1980 = vadd.f32 %v1706, %v1979
        %1981 = vmatprep.mubr.bf16.mxu0 %v1683
        %1982 = vmatmul.mubr.bf16.gmra.mrb[0].mxu0 %v1682
        %v1983 = vpop.f32.mrb[0].mxu0
        %v1984 = vadd.f32 %v1702, %v1983
        %v1985 = vpop.f32.mrb[0].mxu0
        %v1986 = vadd.f32 %v1706, %v1985
        %v1987 = vpop.f32.mrb[0].mxu0
        %v1988 = vadd.f32 %v1702, %v1987
        %v1989 = vpop.f32.mrb[0].mxu0
        %v1990 = vadd.f32 %v1706, %v1989
        %1991 = vmatprep.mubr.bf16.mxu0 %v1685
        %1992 = vmatmul.mubr.bf16.gmra.mrb[0].mxu0 %v1684
        %v1993 = vpop.f32.mrb[0].mxu0
        %v1994 = vadd.f32 %v1702, %v1993
        %v1995 = vpop.f32.mrb[0].mxu0
        %v1996 = vadd.f32 %v1706, %v1995
        %v1997 = vpop.f32.mrb[0].mxu0
        %v1998 = vadd.f32 %v1702, %v1997
        %v1999 = vpop.f32.mrb[0].mxu0
        %v2000 = vadd.f32 %v1706, %v1999
        %2001 = vmatprep.mubr.bf16.mxu0 %v1687
        %2002 = vmatmul.mubr.bf16.gmra.mrb[0].mxu0 %v1686
        %v2003 = vpop.f32.mrb[0].mxu0
        %v2004 = vadd.f32 %v1702, %v2003
        %v2005 = vpop.f32.mrb[0].mxu0
        %v2006 = vadd.f32 %v1706, %v2005
        %v2007 = vpop.f32.mrb[0].mxu0
        %v2008 = vadd.f32 %v1702, %v2007
        %v2009 = vpop.f32.mrb[0].mxu0
        %v2010 = vadd.f32 %v1706, %v2009
        %2011 = vmatprep.mubr.bf16.mxu0 %v1689
        %2012 = vmatmul.mubr.bf16.gmra.mrb[0].mxu0 %v1688
        %v2013 = vpop.f32.mrb[0].mxu0
        %v2014 = vadd.f32 %v1702, %v2013
        %v2015 = vpop.f32.mrb[0].mxu0
        %v2016 = vadd.f32 %v1706, %v2015
        %v2017 = vpop.f32.mrb[0].mxu0
        %v2018 = vadd.f32 %v1702, %v2017
        %v2019 = vpop.f32.mrb[0].mxu0
        %v2020 = vadd.f32 %v1706, %v2019
        %2021 = vmatprep.mubr.bf16.mxu0 %v1691
        %2022 = vmatmul.mubr.bf16.gmra.mrb[0].mxu0 %v1690
        %v2023 = vpop.f32.mrb[0].mxu0
        %v2024 = vadd.f32 %v1702, %v2023
        %v2025 = vpop.f32.mrb[0].mxu0
        %v2026 = vadd.f32 %v1706, %v2025
        %v2027 = vpop.f32.mrb[0].mxu0
        %v2028 = vadd.f32 %v1702, %v2027
        %v2029 = vpop.f32.mrb[0].mxu0
        %v2030 = vadd.f32 %v1706, %v2029
        %2031 = vmatprep.mubr.bf16.mxu0 %v1693
        %2032 = vmatmul.mubr.bf16.gmra.mrb[0].mxu0 %v1692
        %v2033 = vpop.f32.mrb[0].mxu0
        %v2034 = vadd.f32 %v1702, %v2033
        %v2035 = vpop.f32.mrb[0].mxu0
        %v2036 = vadd.f32 %v1706, %v2035
        %v2037 = vpop.f32.mrb[0].mxu0
        %v2038 = vadd.f32 %v1702, %v2037
        %v2039 = vpop.f32.mrb[0].mxu0
        %v2040 = vadd.f32 %v1706, %v2039
        %2041 = vmatprep.mubr.bf16.mxu0 %v1695
        %2042 = vmatmul.mubr.bf16.gmra.mrb[0].mxu0 %v1694
        %v2043 = vpop.f32.mrb[0].mxu0
        %v2044 = vadd.f32 %v1702, %v2043
        %v2045 = vpop.f32.mrb[0].mxu0
        %v2046 = vadd.f32 %v1706, %v2045
        %v2047 = vpop.f32.mrb[0].mxu0
        %v2048 = vadd.f32 %v1702, %v2047
        %v2049 = vpop.f32.mrb[0].mxu0
        %v2050 = vadd.f32 %v1706, %v2049
        %2051 = vmatprep.mubr.bf16.mxu0 %v1697
        %2052 = vmatmul.mubr.bf16.gmra.mrb[0].mxu0 %v1696
        %v2053 = vpop.f32.mrb[0].mxu0
        %v2054 = vadd.f32 %v1702, %v2053
        %v2055 = vpop.f32.mrb[0].mxu0
        %v2056 = vadd.f32 %v1706, %v2055
        %v2057 = vpop.f32.mrb[0].mxu0
        %v2058 = vadd.f32 %v1702, %v2057
        %v2059 = vpop.f32.mrb[0].mxu0
        %v2060 = vadd.f32 %v1706, %v2059
        %2061 = vdwg.mxu0
        %v2062 = vmax.f32 %v1904, 0.0
        %v2063 = vmax.f32 %v1906, 0.0
        %v2064 = vmax.f32 %v1908, 0.0
        %v2065 = vmax.f32 %v1910, 0.0
        %v2066 = vmax.f32 %v1914, 0.0
        %v2067 = vmax.f32 %v1916, 0.0
        %v2068 = vmax.f32 %v1918, 0.0
        %v2069 = vmax.f32 %v1920, 0.0
        %v2070 = vmax.f32 %v1924, 0.0
        %v2071 = vmax.f32 %v1926, 0.0
        %v2072 = vmax.f32 %v1928, 0.0
        %v2073 = vmax.f32 %v1930, 0.0
        %v2074 = vmax.f32 %v1934, 0.0
        %v2075 = vmax.f32 %v1936, 0.0
        %v2076 = vmax.f32 %v1938, 0.0
        %v2077 = vmax.f32 %v1940, 0.0
        %v2078 = vmax.f32 %v1944, 0.0
        %v2079 = vmax.f32 %v1946, 0.0
        %v2080 = vmax.f32 %v1948, 0.0
        %v2081 = vmax.f32 %v1950, 0.0
        %v2082 = vmax.f32 %v1954, 0.0
        %v2083 = vmax.f32 %v1956, 0.0
        %v2084 = vmax.f32 %v1958, 0.0
        %v2085 = vmax.f32 %v1960, 0.0
        %v2086 = vmax.f32 %v1964, 0.0
        %v2087 = vmax.f32 %v1966, 0.0
        %v2088 = vmax.f32 %v1968, 0.0
        %v2089 = vmax.f32 %v1970, 0.0
        %v2090 = vmax.f32 %v1974, 0.0
        %v2091 = vmax.f32 %v1976, 0.0
        %v2092 = vmax.f32 %v1978, 0.0
        %v2093 = vmax.f32 %v1980, 0.0
        %v2094 = vmax.f32 %v1984, 0.0
        %v2095 = vmax.f32 %v1986, 0.0
        %v2096 = vmax.f32 %v1988, 0.0
        %v2097 = vmax.f32 %v1990, 0.0
        %v2098 = vmax.f32 %v1994, 0.0
        %v2099 = vmax.f32 %v1996, 0.0
        %v2100 = vmax.f32 %v1998, 0.0
        %v2101 = vmax.f32 %v2000, 0.0
        %v2102 = vmax.f32 %v2004, 0.0
        %v2103 = vmax.f32 %v2006, 0.0
        %v2104 = vmax.f32 %v2008, 0.0
        %v2105 = vmax.f32 %v2010, 0.0
        %v2106 = vmax.f32 %v2014, 0.0
        %v2107 = vmax.f32 %v2016, 0.0
        %v2108 = vmax.f32 %v2018, 0.0
        %v2109 = vmax.f32 %v2020, 0.0
        %v2110 = vmax.f32 %v2024, 0.0
        %v2111 = vmax.f32 %v2026, 0.0
        %v2112 = vmax.f32 %v2028, 0.0
        %v2113 = vmax.f32 %v2030, 0.0
        %v2114 = vmax.f32 %v2034, 0.0
        %v2115 = vmax.f32 %v2036, 0.0
        %v2116 = vmax.f32 %v2038, 0.0
        %v2117 = vmax.f32 %v2040, 0.0
        %v2118 = vmax.f32 %v2044, 0.0
        %v2119 = vmax.f32 %v2046, 0.0
        %v2120 = vmax.f32 %v2048, 0.0
        %v2121 = vmax.f32 %v2050, 0.0
        %v2122 = vmax.f32 %v2054, 0.0
        %v2123 = vmax.f32 %v2056, 0.0
        %v2124 = vmax.f32 %v2058, 0.0
        %v2125 = vmax.f32 %v2060, 0.0
        %v2126 = vld [vmem:[#allocation10] sm:$0xff]
        %v2127 = vld [vmem:[#allocation10 + $0x8] sm:$0xff]
        %v2128 = vld [vmem:[#allocation10 + $0x10] sm:$0xff]
        %v2129 = vld [vmem:[#allocation10 + $0x18] sm:$0xff]
        %v2130 = vld [vmem:[#allocation10 + $0x20] sm:$0xff]
        %v2131 = vld [vmem:[#allocation10 + $0x28] sm:$0xff]
        %v2132 = vld [vmem:[#allocation10 + $0x30] sm:$0xff]
        %v2133 = vld [vmem:[#allocation10 + $0x38] sm:$0xff]
        %v2134 = vld [vmem:[#allocation10 + $0x40] sm:$0xff]
        %v2135 = vld [vmem:[#allocation10 + $0x48] sm:$0xff]
        %v2136 = vld [vmem:[#allocation10 + $0x50] sm:$0xff]
        %v2137 = vld [vmem:[#allocation10 + $0x58] sm:$0xff]
        %v2138 = vld [vmem:[#allocation10 + $0x60] sm:$0xff]
        %v2139 = vld [vmem:[#allocation10 + $0x68] sm:$0xff]
        %v2140 = vld [vmem:[#allocation10 + $0x70] sm:$0xff]
        %v2141 = vld [vmem:[#allocation10 + $0x78] sm:$0xff]
        %v2142 = vld [vmem:[#allocation10 + $0x80] sm:$0xff]
        %v2143 = vld [vmem:[#allocation10 + $0x88] sm:$0xff]
        %v2144 = vld [vmem:[#allocation10 + $0x90] sm:$0xff]
        %v2145 = vld [vmem:[#allocation10 + $0x98] sm:$0xff]
        %v2146 = vld [vmem:[#allocation10 + $0xa0] sm:$0xff]
        %v2147 = vld [vmem:[#allocation10 + $0xa8] sm:$0xff]
        %v2148 = vld [vmem:[#allocation10 + $0xb0] sm:$0xff]
        %v2149 = vld [vmem:[#allocation10 + $0xb8] sm:$0xff]
        %v2150 = vld [vmem:[#allocation10 + $0xc0] sm:$0xff]
        %v2151 = vld [vmem:[#allocation10 + $0xc8] sm:$0xff]
        %v2152 = vld [vmem:[#allocation10 + $0xd0] sm:$0xff]
        %v2153 = vld [vmem:[#allocation10 + $0xd8] sm:$0xff]
        %v2154 = vld [vmem:[#allocation10 + $0xe0] sm:$0xff]
        %v2155 = vld [vmem:[#allocation10 + $0xe8] sm:$0xff]
        %v2156 = vld [vmem:[#allocation10 + $0xf0] sm:$0xff]
        %v2157 = vld [vmem:[#allocation10 + $0xf8] sm:$0xff]
        %v2158 = vld [vmem:[%s13] sm:$0x3]
        %v2159 = vpack.c.bf16 %v2064, %v2062
        %v2160 = vpack.c.bf16 %v2065, %v2063
        %v2161 = vpack.c.bf16 %v2068, %v2066
        %v2162 = vpack.c.bf16 %v2069, %v2067
        %v2163 = vpack.c.bf16 %v2072, %v2070
        %v2164 = vpack.c.bf16 %v2073, %v2071
        %v2165 = vpack.c.bf16 %v2076, %v2074
        %v2166 = vpack.c.bf16 %v2077, %v2075
        %v2167 = vpack.c.bf16 %v2080, %v2078
        %v2168 = vpack.c.bf16 %v2081, %v2079
        %v2169 = vpack.c.bf16 %v2084, %v2082
        %v2170 = vpack.c.bf16 %v2085, %v2083
        %v2171 = vpack.c.bf16 %v2088, %v2086
        %v2172 = vpack.c.bf16 %v2089, %v2087
        %v2173 = vpack.c.bf16 %v2092, %v2090
        %v2174 = vpack.c.bf16 %v2093, %v2091
        %v2175 = vpack.c.bf16 %v2096, %v2094
        %v2176 = vpack.c.bf16 %v2097, %v2095
        %v2177 = vpack.c.bf16 %v2100, %v2098
        %v2178 = vpack.c.bf16 %v2101, %v2099
        %v2179 = vpack.c.bf16 %v2104, %v2102
        %v2180 = vpack.c.bf16 %v2105, %v2103
        %v2181 = vpack.c.bf16 %v2108, %v2106
        %v2182 = vpack.c.bf16 %v2109, %v2107
        %v2183 = vpack.c.bf16 %v2112, %v2110
        %v2184 = vpack.c.bf16 %v2113, %v2111
        %v2185 = vpack.c.bf16 %v2116, %v2114
        %v2186 = vpack.c.bf16 %v2117, %v2115
        %v2187 = vpack.c.bf16 %v2120, %v2118
        %v2188 = vpack.c.bf16 %v2121, %v2119
        %v2189 = vpack.c.bf16 %v2124, %v2122
        %v2190 = vpack.c.bf16 %v2125, %v2123
        %v2192 = vlaneseq
        %v2193 = vshrl.u32 %v2192, 7
        %v2194 = vsub.s32 0, %v2193
        %v2195 = vrot.slane %v2158, %v2194
        %v2196 = vlaneseq
        %v2197 = vshrl.u32 %v2196, 7
        %v2198 = vsub.s32 1, %v2197
        %v2199 = vrot.slane %v2158, %v2198
        %v2234 = vunpack.c.l.b16 %v2126
        %v2235 = vunpack.c.h.b16 %v2126
        %v2236 = vunpack.c.l.b16 %v2127
        %v2237 = vunpack.c.h.b16 %v2127
        %v2238 = vunpack.c.l.b16 %v2128
        %v2239 = vunpack.c.h.b16 %v2128
        %v2240 = vunpack.c.l.b16 %v2129
        %v2241 = vunpack.c.h.b16 %v2129
        %v2242 = vunpack.c.l.b16 %v2130
        %v2243 = vunpack.c.h.b16 %v2130
        %v2244 = vunpack.c.l.b16 %v2131
        %v2245 = vunpack.c.h.b16 %v2131
        %v2246 = vunpack.c.l.b16 %v2132
        %v2247 = vunpack.c.h.b16 %v2132
        %v2248 = vunpack.c.l.b16 %v2133
        %v2249 = vunpack.c.h.b16 %v2133
        %v2250 = vunpack.c.l.b16 %v2134
        %v2251 = vunpack.c.h.b16 %v2134
        %v2252 = vunpack.c.l.b16 %v2135
        %v2253 = vunpack.c.h.b16 %v2135
        %v2254 = vunpack.c.l.b16 %v2136
        %v2255 = vunpack.c.h.b16 %v2136
        %v2256 = vunpack.c.l.b16 %v2137
        %v2257 = vunpack.c.h.b16 %v2137
        %v2258 = vunpack.c.l.b16 %v2138
        %v2259 = vunpack.c.h.b16 %v2138
        %v2260 = vunpack.c.l.b16 %v2139
        %v2261 = vunpack.c.h.b16 %v2139
        %v2262 = vunpack.c.l.b16 %v2140
        %v2263 = vunpack.c.h.b16 %v2140
        %v2264 = vunpack.c.l.b16 %v2141
        %v2265 = vunpack.c.h.b16 %v2141
        %v2266 = vunpack.c.l.b16 %v2142
        %v2267 = vunpack.c.h.b16 %v2142
        %v2268 = vunpack.c.l.b16 %v2143
        %v2269 = vunpack.c.h.b16 %v2143
        %v2270 = vunpack.c.l.b16 %v2144
        %v2271 = vunpack.c.h.b16 %v2144
        %v2272 = vunpack.c.l.b16 %v2145
        %v2273 = vunpack.c.h.b16 %v2145
        %v2274 = vunpack.c.l.b16 %v2146
        %v2275 = vunpack.c.h.b16 %v2146
        %v2276 = vunpack.c.l.b16 %v2147
        %v2277 = vunpack.c.h.b16 %v2147
        %v2278 = vunpack.c.l.b16 %v2148
        %v2279 = vunpack.c.h.b16 %v2148
        %v2280 = vunpack.c.l.b16 %v2149
        %v2281 = vunpack.c.h.b16 %v2149
        %v2282 = vunpack.c.l.b16 %v2150
        %v2283 = vunpack.c.h.b16 %v2150
        %v2284 = vunpack.c.l.b16 %v2151
        %v2285 = vunpack.c.h.b16 %v2151
        %v2286 = vunpack.c.l.b16 %v2152
        %v2287 = vunpack.c.h.b16 %v2152
        %v2288 = vunpack.c.l.b16 %v2153
        %v2289 = vunpack.c.h.b16 %v2153
        %v2290 = vunpack.c.l.b16 %v2154
        %v2291 = vunpack.c.h.b16 %v2154
        %v2292 = vunpack.c.l.b16 %v2155
        %v2293 = vunpack.c.h.b16 %v2155
        %v2294 = vunpack.c.l.b16 %v2156
        %v2295 = vunpack.c.h.b16 %v2156
        %v2296 = vunpack.c.l.b16 %v2157
        %v2297 = vunpack.c.h.b16 %v2157
        %v2298 = vpack.c.b16 %v2236, %v2234
        %v2299 = vpack.c.b16 %v2237, %v2235
        %v2300 = vpack.c.b16 %v2240, %v2238
        %v2301 = vpack.c.b16 %v2241, %v2239
        %v2302 = vpack.c.b16 %v2244, %v2242
        %v2303 = vpack.c.b16 %v2245, %v2243
        %v2304 = vpack.c.b16 %v2248, %v2246
        %v2305 = vpack.c.b16 %v2249, %v2247
        %v2306 = vpack.c.b16 %v2252, %v2250
        %v2307 = vpack.c.b16 %v2253, %v2251
        %v2308 = vpack.c.b16 %v2256, %v2254
        %v2309 = vpack.c.b16 %v2257, %v2255
        %v2310 = vpack.c.b16 %v2260, %v2258
        %v2311 = vpack.c.b16 %v2261, %v2259
        %v2312 = vpack.c.b16 %v2264, %v2262
        %v2313 = vpack.c.b16 %v2265, %v2263
        %v2314 = vpack.c.b16 %v2268, %v2266
        %v2315 = vpack.c.b16 %v2269, %v2267
        %v2316 = vpack.c.b16 %v2272, %v2270
        %v2317 = vpack.c.b16 %v2273, %v2271
        %v2318 = vpack.c.b16 %v2276, %v2274
        %v2319 = vpack.c.b16 %v2277, %v2275
        %v2320 = vpack.c.b16 %v2280, %v2278
        %v2321 = vpack.c.b16 %v2281, %v2279
        %v2322 = vpack.c.b16 %v2284, %v2282
        %v2323 = vpack.c.b16 %v2285, %v2283
        %v2324 = vpack.c.b16 %v2288, %v2286
        %v2325 = vpack.c.b16 %v2289, %v2287
        %v2326 = vpack.c.b16 %v2292, %v2290
        %v2327 = vpack.c.b16 %v2293, %v2291
        %v2328 = vpack.c.b16 %v2296, %v2294
        %v2329 = vpack.c.b16 %v2297, %v2295
        %2362 = vmatprep.subr.bf16.mxu0 %v2299
        %2363 = vmatpush1.bf16.msra.mxu0 %v2298
        %2364 = vmatprep.subr.bf16.mxu0 %v2301
        %2365 = vmatpush1.bf16.msra.mxu0 %v2300
        %2366 = vmatprep.subr.bf16.mxu0 %v2303
        %2367 = vmatpush1.bf16.msra.mxu0 %v2302
        %2368 = vmatprep.subr.bf16.mxu0 %v2305
        %2369 = vmatpush1.bf16.msra.mxu0 %v2304
        %2370 = vmatprep.subr.bf16.mxu0 %v2307
        %2371 = vmatpush1.bf16.msra.mxu0 %v2306
        %2372 = vmatprep.subr.bf16.mxu0 %v2309
        %2373 = vmatpush1.bf16.msra.mxu0 %v2308
        %2374 = vmatprep.subr.bf16.mxu0 %v2311
        %2375 = vmatpush1.bf16.msra.mxu0 %v2310
        %2376 = vmatprep.subr.bf16.mxu0 %v2313
        %2377 = vmatpush1.bf16.msra.mxu0 %v2312
        %2378 = vmatprep.subr.bf16.mxu0 %v2315
        %2379 = vmatpush1.bf16.msra.mxu0 %v2314
        %2380 = vmatprep.subr.bf16.mxu0 %v2317
        %2381 = vmatpush1.bf16.msra.mxu0 %v2316
        %2382 = vmatprep.subr.bf16.mxu0 %v2319
        %2383 = vmatpush1.bf16.msra.mxu0 %v2318
        %2384 = vmatprep.subr.bf16.mxu0 %v2321
        %2385 = vmatpush1.bf16.msra.mxu0 %v2320
        %2386 = vmatprep.subr.bf16.mxu0 %v2323
        %2387 = vmatpush1.bf16.msra.mxu0 %v2322
        %2388 = vmatprep.subr.bf16.mxu0 %v2325
        %2389 = vmatpush1.bf16.msra.mxu0 %v2324
        %2390 = vmatprep.subr.bf16.mxu0 %v2327
        %2391 = vmatpush1.bf16.msra.mxu0 %v2326
        %2392 = vmatprep.subr.bf16.mxu0 %v2329
        %2393 = vmatpush1.bf16.msra.mxu0 %v2328
        %2394 = vmatprep.mubr.bf16.mxu0 %v2160
        %2395 = vmatmul.mubr.bf16.gmra.mrb[0].mxu0 %v2159
        %v2396 = vpop.f32.mrb[0].mxu0
        %v2397 = vadd.f32 %v2195, %v2396
        %v2398 = vpop.f32.mrb[0].mxu0
        %v2399 = vadd.f32 %v2199, %v2398
        %v2400 = vpop.f32.mrb[0].mxu0
        %v2401 = vadd.f32 %v2195, %v2400
        %v2402 = vpop.f32.mrb[0].mxu0
        %v2403 = vadd.f32 %v2199, %v2402
        %2404 = vmatprep.mubr.bf16.mxu0 %v2162
        %2405 = vmatmul.mubr.bf16.gmra.mrb[0].mxu0 %v2161
        %v2406 = vpop.f32.mrb[0].mxu0
        %v2407 = vadd.f32 %v2195, %v2406
        %v2408 = vpop.f32.mrb[0].mxu0
        %v2409 = vadd.f32 %v2199, %v2408
        %v2410 = vpop.f32.mrb[0].mxu0
        %v2411 = vadd.f32 %v2195, %v2410
        %v2412 = vpop.f32.mrb[0].mxu0
        %v2413 = vadd.f32 %v2199, %v2412
        %2414 = vmatprep.mubr.bf16.mxu0 %v2164
        %2415 = vmatmul.mubr.bf16.gmra.mrb[0].mxu0 %v2163
        %v2416 = vpop.f32.mrb[0].mxu0
        %v2417 = vadd.f32 %v2195, %v2416
        %v2418 = vpop.f32.mrb[0].mxu0
        %v2419 = vadd.f32 %v2199, %v2418
        %v2420 = vpop.f32.mrb[0].mxu0
        %v2421 = vadd.f32 %v2195, %v2420
        %v2422 = vpop.f32.mrb[0].mxu0
        %v2423 = vadd.f32 %v2199, %v2422
        %2424 = vmatprep.mubr.bf16.mxu0 %v2166
        %2425 = vmatmul.mubr.bf16.gmra.mrb[0].mxu0 %v2165
        %v2426 = vpop.f32.mrb[0].mxu0
        %v2427 = vadd.f32 %v2195, %v2426
        %v2428 = vpop.f32.mrb[0].mxu0
        %v2429 = vadd.f32 %v2199, %v2428
        %v2430 = vpop.f32.mrb[0].mxu0
        %v2431 = vadd.f32 %v2195, %v2430
        %v2432 = vpop.f32.mrb[0].mxu0
        %v2433 = vadd.f32 %v2199, %v2432
        %2434 = vmatprep.mubr.bf16.mxu0 %v2168
        %2435 = vmatmul.mubr.bf16.gmra.mrb[0].mxu0 %v2167
        %v2436 = vpop.f32.mrb[0].mxu0
        %v2437 = vadd.f32 %v2195, %v2436
        %v2438 = vpop.f32.mrb[0].mxu0
        %v2439 = vadd.f32 %v2199, %v2438
        %v2440 = vpop.f32.mrb[0].mxu0
        %v2441 = vadd.f32 %v2195, %v2440
        %v2442 = vpop.f32.mrb[0].mxu0
        %v2443 = vadd.f32 %v2199, %v2442
        %2444 = vmatprep.mubr.bf16.mxu0 %v2170
        %2445 = vmatmul.mubr.bf16.gmra.mrb[0].mxu0 %v2169
        %v2446 = vpop.f32.mrb[0].mxu0
        %v2447 = vadd.f32 %v2195, %v2446
        %v2448 = vpop.f32.mrb[0].mxu0
        %v2449 = vadd.f32 %v2199, %v2448
        %v2450 = vpop.f32.mrb[0].mxu0
        %v2451 = vadd.f32 %v2195, %v2450
        %v2452 = vpop.f32.mrb[0].mxu0
        %v2453 = vadd.f32 %v2199, %v2452
        %2454 = vmatprep.mubr.bf16.mxu0 %v2172
        %2455 = vmatmul.mubr.bf16.gmra.mrb[0].mxu0 %v2171
        %v2456 = vpop.f32.mrb[0].mxu0
        %v2457 = vadd.f32 %v2195, %v2456
        %v2458 = vpop.f32.mrb[0].mxu0
        %v2459 = vadd.f32 %v2199, %v2458
        %v2460 = vpop.f32.mrb[0].mxu0
        %v2461 = vadd.f32 %v2195, %v2460
        %v2462 = vpop.f32.mrb[0].mxu0
        %v2463 = vadd.f32 %v2199, %v2462
        %2464 = vmatprep.mubr.bf16.mxu0 %v2174
        %2465 = vmatmul.mubr.bf16.gmra.mrb[0].mxu0 %v2173
        %v2466 = vpop.f32.mrb[0].mxu0
        %v2467 = vadd.f32 %v2195, %v2466
        %v2468 = vpop.f32.mrb[0].mxu0
        %v2469 = vadd.f32 %v2199, %v2468
        %v2470 = vpop.f32.mrb[0].mxu0
        %v2471 = vadd.f32 %v2195, %v2470
        %v2472 = vpop.f32.mrb[0].mxu0
        %v2473 = vadd.f32 %v2199, %v2472
        %2474 = vmatprep.mubr.bf16.mxu0 %v2176
        %2475 = vmatmul.mubr.bf16.gmra.mrb[0].mxu0 %v2175
        %v2476 = vpop.f32.mrb[0].mxu0
        %v2477 = vadd.f32 %v2195, %v2476
        %v2478 = vpop.f32.mrb[0].mxu0
        %v2479 = vadd.f32 %v2199, %v2478
        %v2480 = vpop.f32.mrb[0].mxu0
        %v2481 = vadd.f32 %v2195, %v2480
        %v2482 = vpop.f32.mrb[0].mxu0
        %v2483 = vadd.f32 %v2199, %v2482
        %2484 = vmatprep.mubr.bf16.mxu0 %v2178
        %2485 = vmatmul.mubr.bf16.gmra.mrb[0].mxu0 %v2177
        %v2486 = vpop.f32.mrb[0].mxu0
        %v2487 = vadd.f32 %v2195, %v2486
        %v2488 = vpop.f32.mrb[0].mxu0
        %v2489 = vadd.f32 %v2199, %v2488
        %v2490 = vpop.f32.mrb[0].mxu0
        %v2491 = vadd.f32 %v2195, %v2490
        %v2492 = vpop.f32.mrb[0].mxu0
        %v2493 = vadd.f32 %v2199, %v2492
        %2494 = vmatprep.mubr.bf16.mxu0 %v2180
        %2495 = vmatmul.mubr.bf16.gmra.mrb[0].mxu0 %v2179
        %v2496 = vpop.f32.mrb[0].mxu0
        %v2497 = vadd.f32 %v2195, %v2496
        %v2498 = vpop.f32.mrb[0].mxu0
        %v2499 = vadd.f32 %v2199, %v2498
        %v2500 = vpop.f32.mrb[0].mxu0
        %v2501 = vadd.f32 %v2195, %v2500
        %v2502 = vpop.f32.mrb[0].mxu0
        %v2503 = vadd.f32 %v2199, %v2502
        %2504 = vmatprep.mubr.bf16.mxu0 %v2182
        %2505 = vmatmul.mubr.bf16.gmra.mrb[0].mxu0 %v2181
        %v2506 = vpop.f32.mrb[0].mxu0
        %v2507 = vadd.f32 %v2195, %v2506
        %v2508 = vpop.f32.mrb[0].mxu0
        %v2509 = vadd.f32 %v2199, %v2508
        %v2510 = vpop.f32.mrb[0].mxu0
        %v2511 = vadd.f32 %v2195, %v2510
        %v2512 = vpop.f32.mrb[0].mxu0
        %v2513 = vadd.f32 %v2199, %v2512
        %2514 = vmatprep.mubr.bf16.mxu0 %v2184
        %2515 = vmatmul.mubr.bf16.gmra.mrb[0].mxu0 %v2183
        %v2516 = vpop.f32.mrb[0].mxu0
        %v2517 = vadd.f32 %v2195, %v2516
        %v2518 = vpop.f32.mrb[0].mxu0
        %v2519 = vadd.f32 %v2199, %v2518
        %v2520 = vpop.f32.mrb[0].mxu0
        %v2521 = vadd.f32 %v2195, %v2520
        %v2522 = vpop.f32.mrb[0].mxu0
        %v2523 = vadd.f32 %v2199, %v2522
        %2524 = vmatprep.mubr.bf16.mxu0 %v2186
        %2525 = vmatmul.mubr.bf16.gmra.mrb[0].mxu0 %v2185
        %v2526 = vpop.f32.mrb[0].mxu0
        %v2527 = vadd.f32 %v2195, %v2526
        %v2528 = vpop.f32.mrb[0].mxu0
        %v2529 = vadd.f32 %v2199, %v2528
        %v2530 = vpop.f32.mrb[0].mxu0
        %v2531 = vadd.f32 %v2195, %v2530
        %v2532 = vpop.f32.mrb[0].mxu0
        %v2533 = vadd.f32 %v2199, %v2532
        %2534 = vmatprep.mubr.bf16.mxu0 %v2188
        %2535 = vmatmul.mubr.bf16.gmra.mrb[0].mxu0 %v2187
        %v2536 = vpop.f32.mrb[0].mxu0
        %v2537 = vadd.f32 %v2195, %v2536
        %v2538 = vpop.f32.mrb[0].mxu0
        %v2539 = vadd.f32 %v2199, %v2538
        %v2540 = vpop.f32.mrb[0].mxu0
        %v2541 = vadd.f32 %v2195, %v2540
        %v2542 = vpop.f32.mrb[0].mxu0
        %v2543 = vadd.f32 %v2199, %v2542
        %2544 = vmatprep.mubr.bf16.mxu0 %v2190
        %2545 = vmatmul.mubr.bf16.gmra.mrb[0].mxu0 %v2189
        %v2546 = vpop.f32.mrb[0].mxu0
        %v2547 = vadd.f32 %v2195, %v2546
        %v2548 = vpop.f32.mrb[0].mxu0
        %v2549 = vadd.f32 %v2199, %v2548
        %v2550 = vpop.f32.mrb[0].mxu0
        %v2551 = vadd.f32 %v2195, %v2550
        %v2552 = vpop.f32.mrb[0].mxu0
        %v2553 = vadd.f32 %v2199, %v2552
        %2554 = vdwg.mxu0
        %v2555 = vmax.f32 %v2397, 0.0
        %v2556 = vmax.f32 %v2399, 0.0
        %v2557 = vmax.f32 %v2401, 0.0
        %v2558 = vmax.f32 %v2403, 0.0
        %v2559 = vmax.f32 %v2407, 0.0
        %v2560 = vmax.f32 %v2409, 0.0
        %v2561 = vmax.f32 %v2411, 0.0
        %v2562 = vmax.f32 %v2413, 0.0
        %v2563 = vmax.f32 %v2417, 0.0
        %v2564 = vmax.f32 %v2419, 0.0
        %v2565 = vmax.f32 %v2421, 0.0
        %v2566 = vmax.f32 %v2423, 0.0
        %v2567 = vmax.f32 %v2427, 0.0
        %v2568 = vmax.f32 %v2429, 0.0
        %v2569 = vmax.f32 %v2431, 0.0
        %v2570 = vmax.f32 %v2433, 0.0
        %v2571 = vmax.f32 %v2437, 0.0
        %v2572 = vmax.f32 %v2439, 0.0
        %v2573 = vmax.f32 %v2441, 0.0
        %v2574 = vmax.f32 %v2443, 0.0
        %v2575 = vmax.f32 %v2447, 0.0
        %v2576 = vmax.f32 %v2449, 0.0
        %v2577 = vmax.f32 %v2451, 0.0
        %v2578 = vmax.f32 %v2453, 0.0
        %v2579 = vmax.f32 %v2457, 0.0
        %v2580 = vmax.f32 %v2459, 0.0
        %v2581 = vmax.f32 %v2461, 0.0
        %v2582 = vmax.f32 %v2463, 0.0
        %v2583 = vmax.f32 %v2467, 0.0
        %v2584 = vmax.f32 %v2469, 0.0
        %v2585 = vmax.f32 %v2471, 0.0
        %v2586 = vmax.f32 %v2473, 0.0
        %v2587 = vmax.f32 %v2477, 0.0
        %v2588 = vmax.f32 %v2479, 0.0
        %v2589 = vmax.f32 %v2481, 0.0
        %v2590 = vmax.f32 %v2483, 0.0
        %v2591 = vmax.f32 %v2487, 0.0
        %v2592 = vmax.f32 %v2489, 0.0
        %v2593 = vmax.f32 %v2491, 0.0
        %v2594 = vmax.f32 %v2493, 0.0
        %v2595 = vmax.f32 %v2497, 0.0
        %v2596 = vmax.f32 %v2499, 0.0
        %v2597 = vmax.f32 %v2501, 0.0
        %v2598 = vmax.f32 %v2503, 0.0
        %v2599 = vmax.f32 %v2507, 0.0
        %v2600 = vmax.f32 %v2509, 0.0
        %v2601 = vmax.f32 %v2511, 0.0
        %v2602 = vmax.f32 %v2513, 0.0
        %v2603 = vmax.f32 %v2517, 0.0
        %v2604 = vmax.f32 %v2519, 0.0
        %v2605 = vmax.f32 %v2521, 0.0
        %v2606 = vmax.f32 %v2523, 0.0
        %v2607 = vmax.f32 %v2527, 0.0
        %v2608 = vmax.f32 %v2529, 0.0
        %v2609 = vmax.f32 %v2531, 0.0
        %v2610 = vmax.f32 %v2533, 0.0
        %v2611 = vmax.f32 %v2537, 0.0
        %v2612 = vmax.f32 %v2539, 0.0
        %v2613 = vmax.f32 %v2541, 0.0
        %v2614 = vmax.f32 %v2543, 0.0
        %v2615 = vmax.f32 %v2547, 0.0
        %v2616 = vmax.f32 %v2549, 0.0
        %v2617 = vmax.f32 %v2551, 0.0
        %v2618 = vmax.f32 %v2553, 0.0
        %v2619 = vld [vmem:[#allocation11] sm:$0xff]
        %v2620 = vld [vmem:[#allocation11 + $0x8] sm:$0xff]
        %v2621 = vld [vmem:[#allocation11 + $0x10] sm:$0xff]
        %v2622 = vld [vmem:[#allocation11 + $0x18] sm:$0xff]
        %v2623 = vld [vmem:[#allocation11 + $0x20] sm:$0xff]
        %v2624 = vld [vmem:[#allocation11 + $0x28] sm:$0xff]
        %v2625 = vld [vmem:[#allocation11 + $0x30] sm:$0xff]
        %v2626 = vld [vmem:[#allocation11 + $0x38] sm:$0xff]
        %v2627 = vld [vmem:[#allocation11 + $0x40] sm:$0xff]
        %v2628 = vld [vmem:[#allocation11 + $0x48] sm:$0xff]
        %v2629 = vld [vmem:[#allocation11 + $0x50] sm:$0xff]
        %v2630 = vld [vmem:[#allocation11 + $0x58] sm:$0xff]
        %v2631 = vld [vmem:[#allocation11 + $0x60] sm:$0xff]
        %v2632 = vld [vmem:[#allocation11 + $0x68] sm:$0xff]
        %v2633 = vld [vmem:[#allocation11 + $0x70] sm:$0xff]
        %v2634 = vld [vmem:[#allocation11 + $0x78] sm:$0xff]
        %v2635 = vld [vmem:[#allocation11 + $0x80] sm:$0xff]
        %v2636 = vld [vmem:[#allocation11 + $0x88] sm:$0xff]
        %v2637 = vld [vmem:[#allocation11 + $0x90] sm:$0xff]
        %v2638 = vld [vmem:[#allocation11 + $0x98] sm:$0xff]
        %v2639 = vld [vmem:[#allocation11 + $0xa0] sm:$0xff]
        %v2640 = vld [vmem:[#allocation11 + $0xa8] sm:$0xff]
        %v2641 = vld [vmem:[#allocation11 + $0xb0] sm:$0xff]
        %v2642 = vld [vmem:[#allocation11 + $0xb8] sm:$0xff]
        %v2643 = vld [vmem:[#allocation11 + $0xc0] sm:$0xff]
        %v2644 = vld [vmem:[#allocation11 + $0xc8] sm:$0xff]
        %v2645 = vld [vmem:[#allocation11 + $0xd0] sm:$0xff]
        %v2646 = vld [vmem:[#allocation11 + $0xd8] sm:$0xff]
        %v2647 = vld [vmem:[#allocation11 + $0xe0] sm:$0xff]
        %v2648 = vld [vmem:[#allocation11 + $0xe8] sm:$0xff]
        %v2649 = vld [vmem:[#allocation11 + $0xf0] sm:$0xff]
        %v2650 = vld [vmem:[#allocation11 + $0xf8] sm:$0xff]
        %v2651 = vld [vmem:[%s17] sm:$0x3]
        %v2652 = vpack.c.bf16 %v2557, %v2555
        %v2653 = vpack.c.bf16 %v2558, %v2556
        %v2654 = vpack.c.bf16 %v2561, %v2559
        %v2655 = vpack.c.bf16 %v2562, %v2560
        %v2656 = vpack.c.bf16 %v2565, %v2563
        %v2657 = vpack.c.bf16 %v2566, %v2564
        %v2658 = vpack.c.bf16 %v2569, %v2567
        %v2659 = vpack.c.bf16 %v2570, %v2568
        %v2660 = vpack.c.bf16 %v2573, %v2571
        %v2661 = vpack.c.bf16 %v2574, %v2572
        %v2662 = vpack.c.bf16 %v2577, %v2575
        %v2663 = vpack.c.bf16 %v2578, %v2576
        %v2664 = vpack.c.bf16 %v2581, %v2579
        %v2665 = vpack.c.bf16 %v2582, %v2580
        %v2666 = vpack.c.bf16 %v2585, %v2583
        %v2667 = vpack.c.bf16 %v2586, %v2584
        %v2668 = vpack.c.bf16 %v2589, %v2587
        %v2669 = vpack.c.bf16 %v2590, %v2588
        %v2670 = vpack.c.bf16 %v2593, %v2591
        %v2671 = vpack.c.bf16 %v2594, %v2592
        %v2672 = vpack.c.bf16 %v2597, %v2595
        %v2673 = vpack.c.bf16 %v2598, %v2596
        %v2674 = vpack.c.bf16 %v2601, %v2599
        %v2675 = vpack.c.bf16 %v2602, %v2600
        %v2676 = vpack.c.bf16 %v2605, %v2603
        %v2677 = vpack.c.bf16 %v2606, %v2604
        %v2678 = vpack.c.bf16 %v2609, %v2607
        %v2679 = vpack.c.bf16 %v2610, %v2608
        %v2680 = vpack.c.bf16 %v2613, %v2611
        %v2681 = vpack.c.bf16 %v2614, %v2612
        %v2682 = vpack.c.bf16 %v2617, %v2615
        %v2683 = vpack.c.bf16 %v2618, %v2616
        %v2685 = vlaneseq
        %v2686 = vshrl.u32 %v2685, 7
        %v2687 = vsub.s32 0, %v2686
        %v2688 = vrot.slane %v2651, %v2687
        %v2689 = vlaneseq
        %v2690 = vshrl.u32 %v2689, 7
        %v2691 = vsub.s32 1, %v2690
        %v2692 = vrot.slane %v2651, %v2691
        %v2727 = vunpack.c.l.b16 %v2619
        %v2728 = vunpack.c.h.b16 %v2619
        %v2729 = vunpack.c.l.b16 %v2620
        %v2730 = vunpack.c.h.b16 %v2620
        %v2731 = vunpack.c.l.b16 %v2621
        %v2732 = vunpack.c.h.b16 %v2621
        %v2733 = vunpack.c.l.b16 %v2622
        %v2734 = vunpack.c.h.b16 %v2622
        %v2735 = vunpack.c.l.b16 %v2623
        %v2736 = vunpack.c.h.b16 %v2623
        %v2737 = vunpack.c.l.b16 %v2624
        %v2738 = vunpack.c.h.b16 %v2624
        %v2739 = vunpack.c.l.b16 %v2625
        %v2740 = vunpack.c.h.b16 %v2625
        %v2741 = vunpack.c.l.b16 %v2626
        %v2742 = vunpack.c.h.b16 %v2626
        %v2743 = vunpack.c.l.b16 %v2627
        %v2744 = vunpack.c.h.b16 %v2627
        %v2745 = vunpack.c.l.b16 %v2628
        %v2746 = vunpack.c.h.b16 %v2628
        %v2747 = vunpack.c.l.b16 %v2629
        %v2748 = vunpack.c.h.b16 %v2629
        %v2749 = vunpack.c.l.b16 %v2630
        %v2750 = vunpack.c.h.b16 %v2630
        %v2751 = vunpack.c.l.b16 %v2631
        %v2752 = vunpack.c.h.b16 %v2631
        %v2753 = vunpack.c.l.b16 %v2632
        %v2754 = vunpack.c.h.b16 %v2632
        %v2755 = vunpack.c.l.b16 %v2633
        %v2756 = vunpack.c.h.b16 %v2633
        %v2757 = vunpack.c.l.b16 %v2634
        %v2758 = vunpack.c.h.b16 %v2634
        %v2759 = vunpack.c.l.b16 %v2635
        %v2760 = vunpack.c.h.b16 %v2635
        %v2761 = vunpack.c.l.b16 %v2636
        %v2762 = vunpack.c.h.b16 %v2636
        %v2763 = vunpack.c.l.b16 %v2637
        %v2764 = vunpack.c.h.b16 %v2637
        %v2765 = vunpack.c.l.b16 %v2638
        %v2766 = vunpack.c.h.b16 %v2638
        %v2767 = vunpack.c.l.b16 %v2639
        %v2768 = vunpack.c.h.b16 %v2639
        %v2769 = vunpack.c.l.b16 %v2640
        %v2770 = vunpack.c.h.b16 %v2640
        %v2771 = vunpack.c.l.b16 %v2641
        %v2772 = vunpack.c.h.b16 %v2641
        %v2773 = vunpack.c.l.b16 %v2642
        %v2774 = vunpack.c.h.b16 %v2642
        %v2775 = vunpack.c.l.b16 %v2643
        %v2776 = vunpack.c.h.b16 %v2643
        %v2777 = vunpack.c.l.b16 %v2644
        %v2778 = vunpack.c.h.b16 %v2644
        %v2779 = vunpack.c.l.b16 %v2645
        %v2780 = vunpack.c.h.b16 %v2645
        %v2781 = vunpack.c.l.b16 %v2646
        %v2782 = vunpack.c.h.b16 %v2646
        %v2783 = vunpack.c.l.b16 %v2647
        %v2784 = vunpack.c.h.b16 %v2647
        %v2785 = vunpack.c.l.b16 %v2648
        %v2786 = vunpack.c.h.b16 %v2648
        %v2787 = vunpack.c.l.b16 %v2649
        %v2788 = vunpack.c.h.b16 %v2649
        %v2789 = vunpack.c.l.b16 %v2650
        %v2790 = vunpack.c.h.b16 %v2650
        %v2791 = vpack.c.b16 %v2729, %v2727
        %v2792 = vpack.c.b16 %v2730, %v2728
        %v2793 = vpack.c.b16 %v2733, %v2731
        %v2794 = vpack.c.b16 %v2734, %v2732
        %v2795 = vpack.c.b16 %v2737, %v2735
        %v2796 = vpack.c.b16 %v2738, %v2736
        %v2797 = vpack.c.b16 %v2741, %v2739
        %v2798 = vpack.c.b16 %v2742, %v2740
        %v2799 = vpack.c.b16 %v2745, %v2743
        %v2800 = vpack.c.b16 %v2746, %v2744
        %v2801 = vpack.c.b16 %v2749, %v2747
        %v2802 = vpack.c.b16 %v2750, %v2748
        %v2803 = vpack.c.b16 %v2753, %v2751
        %v2804 = vpack.c.b16 %v2754, %v2752
        %v2805 = vpack.c.b16 %v2757, %v2755
        %v2806 = vpack.c.b16 %v2758, %v2756
        %v2807 = vpack.c.b16 %v2761, %v2759
        %v2808 = vpack.c.b16 %v2762, %v2760
        %v2809 = vpack.c.b16 %v2765, %v2763
        %v2810 = vpack.c.b16 %v2766, %v2764
        %v2811 = vpack.c.b16 %v2769, %v2767
        %v2812 = vpack.c.b16 %v2770, %v2768
        %v2813 = vpack.c.b16 %v2773, %v2771
        %v2814 = vpack.c.b16 %v2774, %v2772
        %v2815 = vpack.c.b16 %v2777, %v2775
        %v2816 = vpack.c.b16 %v2778, %v2776
        %v2817 = vpack.c.b16 %v2781, %v2779
        %v2818 = vpack.c.b16 %v2782, %v2780
        %v2819 = vpack.c.b16 %v2785, %v2783
        %v2820 = vpack.c.b16 %v2786, %v2784
        %v2821 = vpack.c.b16 %v2789, %v2787
        %v2822 = vpack.c.b16 %v2790, %v2788
        %2855 = vmatprep.subr.bf16.mxu0 %v2792
        %2856 = vmatpush1.bf16.msra.mxu0 %v2791
        %2857 = vmatprep.subr.bf16.mxu0 %v2794
        %2858 = vmatpush1.bf16.msra.mxu0 %v2793
        %2859 = vmatprep.subr.bf16.mxu0 %v2796
        %2860 = vmatpush1.bf16.msra.mxu0 %v2795
        %2861 = vmatprep.subr.bf16.mxu0 %v2798
        %2862 = vmatpush1.bf16.msra.mxu0 %v2797
        %2863 = vmatprep.subr.bf16.mxu0 %v2800
        %2864 = vmatpush1.bf16.msra.mxu0 %v2799
        %2865 = vmatprep.subr.bf16.mxu0 %v2802
        %2866 = vmatpush1.bf16.msra.mxu0 %v2801
        %2867 = vmatprep.subr.bf16.mxu0 %v2804
        %2868 = vmatpush1.bf16.msra.mxu0 %v2803
        %2869 = vmatprep.subr.bf16.mxu0 %v2806
        %2870 = vmatpush1.bf16.msra.mxu0 %v2805
        %2871 = vmatprep.subr.bf16.mxu0 %v2808
        %2872 = vmatpush1.bf16.msra.mxu0 %v2807
        %2873 = vmatprep.subr.bf16.mxu0 %v2810
        %2874 = vmatpush1.bf16.msra.mxu0 %v2809
        %2875 = vmatprep.subr.bf16.mxu0 %v2812
        %2876 = vmatpush1.bf16.msra.mxu0 %v2811
        %2877 = vmatprep.subr.bf16.mxu0 %v2814
        %2878 = vmatpush1.bf16.msra.mxu0 %v2813
        %2879 = vmatprep.subr.bf16.mxu0 %v2816
        %2880 = vmatpush1.bf16.msra.mxu0 %v2815
        %2881 = vmatprep.subr.bf16.mxu0 %v2818
        %2882 = vmatpush1.bf16.msra.mxu0 %v2817
        %2883 = vmatprep.subr.bf16.mxu0 %v2820
        %2884 = vmatpush1.bf16.msra.mxu0 %v2819
        %2885 = vmatprep.subr.bf16.mxu0 %v2822
        %2886 = vmatpush1.bf16.msra.mxu0 %v2821
        %2887 = vmatprep.mubr.bf16.mxu0 %v2653
        %2888 = vmatmul.mubr.bf16.gmra.mrb[0].mxu0 %v2652
        %v2889 = vpop.f32.mrb[0].mxu0
        %v2890 = vadd.f32 %v2688, %v2889
        %v2891 = vpop.f32.mrb[0].mxu0
        %v2892 = vadd.f32 %v2692, %v2891
        %v2893 = vpop.f32.mrb[0].mxu0
        %v2894 = vadd.f32 %v2688, %v2893
        %v2895 = vpop.f32.mrb[0].mxu0
        %v2896 = vadd.f32 %v2692, %v2895
        %2897 = vmatprep.mubr.bf16.mxu0 %v2655
        %2898 = vmatmul.mubr.bf16.gmra.mrb[0].mxu0 %v2654
        %v2899 = vpop.f32.mrb[0].mxu0
        %v2900 = vadd.f32 %v2688, %v2899
        %v2901 = vpop.f32.mrb[0].mxu0
        %v2902 = vadd.f32 %v2692, %v2901
        %v2903 = vpop.f32.mrb[0].mxu0
        %v2904 = vadd.f32 %v2688, %v2903
        %v2905 = vpop.f32.mrb[0].mxu0
        %v2906 = vadd.f32 %v2692, %v2905
        %2907 = vmatprep.mubr.bf16.mxu0 %v2657
        %2908 = vmatmul.mubr.bf16.gmra.mrb[0].mxu0 %v2656
        %v2909 = vpop.f32.mrb[0].mxu0
        %v2910 = vadd.f32 %v2688, %v2909
        %v2911 = vpop.f32.mrb[0].mxu0
        %v2912 = vadd.f32 %v2692, %v2911
        %v2913 = vpop.f32.mrb[0].mxu0
        %v2914 = vadd.f32 %v2688, %v2913
        %v2915 = vpop.f32.mrb[0].mxu0
        %v2916 = vadd.f32 %v2692, %v2915
        %2917 = vmatprep.mubr.bf16.mxu0 %v2659
        %2918 = vmatmul.mubr.bf16.gmra.mrb[0].mxu0 %v2658
        %v2919 = vpop.f32.mrb[0].mxu0
        %v2920 = vadd.f32 %v2688, %v2919
        %v2921 = vpop.f32.mrb[0].mxu0
        %v2922 = vadd.f32 %v2692, %v2921
        %v2923 = vpop.f32.mrb[0].mxu0
        %v2924 = vadd.f32 %v2688, %v2923
        %v2925 = vpop.f32.mrb[0].mxu0
        %v2926 = vadd.f32 %v2692, %v2925
        %2927 = vmatprep.mubr.bf16.mxu0 %v2661
        %2928 = vmatmul.mubr.bf16.gmra.mrb[0].mxu0 %v2660
        %v2929 = vpop.f32.mrb[0].mxu0
        %v2930 = vadd.f32 %v2688, %v2929
        %v2931 = vpop.f32.mrb[0].mxu0
        %v2932 = vadd.f32 %v2692, %v2931
        %v2933 = vpop.f32.mrb[0].mxu0
        %v2934 = vadd.f32 %v2688, %v2933
        %v2935 = vpop.f32.mrb[0].mxu0
        %v2936 = vadd.f32 %v2692, %v2935
        %2937 = vmatprep.mubr.bf16.mxu0 %v2663
        %2938 = vmatmul.mubr.bf16.gmra.mrb[0].mxu0 %v2662
        %v2939 = vpop.f32.mrb[0].mxu0
        %v2940 = vadd.f32 %v2688, %v2939
        %v2941 = vpop.f32.mrb[0].mxu0
        %v2942 = vadd.f32 %v2692, %v2941
        %v2943 = vpop.f32.mrb[0].mxu0
        %v2944 = vadd.f32 %v2688, %v2943
        %v2945 = vpop.f32.mrb[0].mxu0
        %v2946 = vadd.f32 %v2692, %v2945
        %2947 = vmatprep.mubr.bf16.mxu0 %v2665
        %2948 = vmatmul.mubr.bf16.gmra.mrb[0].mxu0 %v2664
        %v2949 = vpop.f32.mrb[0].mxu0
        %v2950 = vadd.f32 %v2688, %v2949
        %v2951 = vpop.f32.mrb[0].mxu0
        %v2952 = vadd.f32 %v2692, %v2951
        %v2953 = vpop.f32.mrb[0].mxu0
        %v2954 = vadd.f32 %v2688, %v2953
        %v2955 = vpop.f32.mrb[0].mxu0
        %v2956 = vadd.f32 %v2692, %v2955
        %2957 = vmatprep.mubr.bf16.mxu0 %v2667
        %2958 = vmatmul.mubr.bf16.gmra.mrb[0].mxu0 %v2666
        %v2959 = vpop.f32.mrb[0].mxu0
        %v2960 = vadd.f32 %v2688, %v2959
        %v2961 = vpop.f32.mrb[0].mxu0
        %v2962 = vadd.f32 %v2692, %v2961
        %v2963 = vpop.f32.mrb[0].mxu0
        %v2964 = vadd.f32 %v2688, %v2963
        %v2965 = vpop.f32.mrb[0].mxu0
        %v2966 = vadd.f32 %v2692, %v2965
        %2967 = vmatprep.mubr.bf16.mxu0 %v2669
        %2968 = vmatmul.mubr.bf16.gmra.mrb[0].mxu0 %v2668
        %v2969 = vpop.f32.mrb[0].mxu0
        %v2970 = vadd.f32 %v2688, %v2969
        %v2971 = vpop.f32.mrb[0].mxu0
        %v2972 = vadd.f32 %v2692, %v2971
        %v2973 = vpop.f32.mrb[0].mxu0
        %v2974 = vadd.f32 %v2688, %v2973
        %v2975 = vpop.f32.mrb[0].mxu0
        %v2976 = vadd.f32 %v2692, %v2975
        %2977 = vmatprep.mubr.bf16.mxu0 %v2671
        %2978 = vmatmul.mubr.bf16.gmra.mrb[0].mxu0 %v2670
        %v2979 = vpop.f32.mrb[0].mxu0
        %v2980 = vadd.f32 %v2688, %v2979
        %v2981 = vpop.f32.mrb[0].mxu0
        %v2982 = vadd.f32 %v2692, %v2981
        %v2983 = vpop.f32.mrb[0].mxu0
        %v2984 = vadd.f32 %v2688, %v2983
        %v2985 = vpop.f32.mrb[0].mxu0
        %v2986 = vadd.f32 %v2692, %v2985
        %2987 = vmatprep.mubr.bf16.mxu0 %v2673
        %2988 = vmatmul.mubr.bf16.gmra.mrb[0].mxu0 %v2672
        %v2989 = vpop.f32.mrb[0].mxu0
        %v2990 = vadd.f32 %v2688, %v2989
        %v2991 = vpop.f32.mrb[0].mxu0
        %v2992 = vadd.f32 %v2692, %v2991
        %v2993 = vpop.f32.mrb[0].mxu0
        %v2994 = vadd.f32 %v2688, %v2993
        %v2995 = vpop.f32.mrb[0].mxu0
        %v2996 = vadd.f32 %v2692, %v2995
        %2997 = vmatprep.mubr.bf16.mxu0 %v2675
        %2998 = vmatmul.mubr.bf16.gmra.mrb[0].mxu0 %v2674
        %v2999 = vpop.f32.mrb[0].mxu0
        %v3000 = vadd.f32 %v2688, %v2999
        %v3001 = vpop.f32.mrb[0].mxu0
        %v3002 = vadd.f32 %v2692, %v3001
        %v3003 = vpop.f32.mrb[0].mxu0
        %v3004 = vadd.f32 %v2688, %v3003
        %v3005 = vpop.f32.mrb[0].mxu0
        %v3006 = vadd.f32 %v2692, %v3005
        %3007 = vmatprep.mubr.bf16.mxu0 %v2677
        %3008 = vmatmul.mubr.bf16.gmra.mrb[0].mxu0 %v2676
        %v3009 = vpop.f32.mrb[0].mxu0
        %v3010 = vadd.f32 %v2688, %v3009
        %v3011 = vpop.f32.mrb[0].mxu0
        %v3012 = vadd.f32 %v2692, %v3011
        %v3013 = vpop.f32.mrb[0].mxu0
        %v3014 = vadd.f32 %v2688, %v3013
        %v3015 = vpop.f32.mrb[0].mxu0
        %v3016 = vadd.f32 %v2692, %v3015
        %3017 = vmatprep.mubr.bf16.mxu0 %v2679
        %3018 = vmatmul.mubr.bf16.gmra.mrb[0].mxu0 %v2678
        %v3019 = vpop.f32.mrb[0].mxu0
        %v3020 = vadd.f32 %v2688, %v3019
        %v3021 = vpop.f32.mrb[0].mxu0
        %v3022 = vadd.f32 %v2692, %v3021
        %v3023 = vpop.f32.mrb[0].mxu0
        %v3024 = vadd.f32 %v2688, %v3023
        %v3025 = vpop.f32.mrb[0].mxu0
        %v3026 = vadd.f32 %v2692, %v3025
        %3027 = vmatprep.mubr.bf16.mxu0 %v2681
        %3028 = vmatmul.mubr.bf16.gmra.mrb[0].mxu0 %v2680
        %v3029 = vpop.f32.mrb[0].mxu0
        %v3030 = vadd.f32 %v2688, %v3029
        %v3031 = vpop.f32.mrb[0].mxu0
        %v3032 = vadd.f32 %v2692, %v3031
        %v3033 = vpop.f32.mrb[0].mxu0
        %v3034 = vadd.f32 %v2688, %v3033
        %v3035 = vpop.f32.mrb[0].mxu0
        %v3036 = vadd.f32 %v2692, %v3035
        %3037 = vmatprep.mubr.bf16.mxu0 %v2683
        %3038 = vmatmul.mubr.bf16.gmra.mrb[0].mxu0 %v2682
        %v3039 = vpop.f32.mrb[0].mxu0
        %v3040 = vadd.f32 %v2688, %v3039
        %v3041 = vpop.f32.mrb[0].mxu0
        %v3042 = vadd.f32 %v2692, %v3041
        %v3043 = vpop.f32.mrb[0].mxu0
        %v3044 = vadd.f32 %v2688, %v3043
        %v3045 = vpop.f32.mrb[0].mxu0
        %v3046 = vadd.f32 %v2692, %v3045
        %3047 = vdwg.mxu0
        %v3048 = vmax.f32 %v2890, 0.0
        %v3049 = vmax.f32 %v2892, 0.0
        %v3050 = vmax.f32 %v2894, 0.0
        %v3051 = vmax.f32 %v2896, 0.0
        %v3052 = vmax.f32 %v2900, 0.0
        %v3053 = vmax.f32 %v2902, 0.0
        %v3054 = vmax.f32 %v2904, 0.0
        %v3055 = vmax.f32 %v2906, 0.0
        %v3056 = vmax.f32 %v2910, 0.0
        %v3057 = vmax.f32 %v2912, 0.0
        %v3058 = vmax.f32 %v2914, 0.0
        %v3059 = vmax.f32 %v2916, 0.0
        %v3060 = vmax.f32 %v2920, 0.0
        %v3061 = vmax.f32 %v2922, 0.0
        %v3062 = vmax.f32 %v2924, 0.0
        %v3063 = vmax.f32 %v2926, 0.0
        %v3064 = vmax.f32 %v2930, 0.0
        %v3065 = vmax.f32 %v2932, 0.0
        %v3066 = vmax.f32 %v2934, 0.0
        %v3067 = vmax.f32 %v2936, 0.0
        %v3068 = vmax.f32 %v2940, 0.0
        %v3069 = vmax.f32 %v2942, 0.0
        %v3070 = vmax.f32 %v2944, 0.0
        %v3071 = vmax.f32 %v2946, 0.0
        %v3072 = vmax.f32 %v2950, 0.0
        %v3073 = vmax.f32 %v2952, 0.0
        %v3074 = vmax.f32 %v2954, 0.0
        %v3075 = vmax.f32 %v2956, 0.0
        %v3076 = vmax.f32 %v2960, 0.0
        %v3077 = vmax.f32 %v2962, 0.0
        %v3078 = vmax.f32 %v2964, 0.0
        %v3079 = vmax.f32 %v2966, 0.0
        %v3080 = vmax.f32 %v2970, 0.0
        %v3081 = vmax.f32 %v2972, 0.0
        %v3082 = vmax.f32 %v2974, 0.0
        %v3083 = vmax.f32 %v2976, 0.0
        %v3084 = vmax.f32 %v2980, 0.0
        %v3085 = vmax.f32 %v2982, 0.0
        %v3086 = vmax.f32 %v2984, 0.0
        %v3087 = vmax.f32 %v2986, 0.0
        %v3088 = vmax.f32 %v2990, 0.0
        %v3089 = vmax.f32 %v2992, 0.0
        %v3090 = vmax.f32 %v2994, 0.0
        %v3091 = vmax.f32 %v2996, 0.0
        %v3092 = vmax.f32 %v3000, 0.0
        %v3093 = vmax.f32 %v3002, 0.0
        %v3094 = vmax.f32 %v3004, 0.0
        %v3095 = vmax.f32 %v3006, 0.0
        %v3096 = vmax.f32 %v3010, 0.0
        %v3097 = vmax.f32 %v3012, 0.0
        %v3098 = vmax.f32 %v3014, 0.0
        %v3099 = vmax.f32 %v3016, 0.0
        %v3100 = vmax.f32 %v3020, 0.0
        %v3101 = vmax.f32 %v3022, 0.0
        %v3102 = vmax.f32 %v3024, 0.0
        %v3103 = vmax.f32 %v3026, 0.0
        %v3104 = vmax.f32 %v3030, 0.0
        %v3105 = vmax.f32 %v3032, 0.0
        %v3106 = vmax.f32 %v3034, 0.0
        %v3107 = vmax.f32 %v3036, 0.0
        %v3108 = vmax.f32 %v3040, 0.0
        %v3109 = vmax.f32 %v3042, 0.0
        %v3110 = vmax.f32 %v3044, 0.0
        %v3111 = vmax.f32 %v3046, 0.0
        %v3112 = vld [vmem:[#allocation13] sm:$0xff]
        %v3113 = vld [vmem:[#allocation13 + $0x8] sm:$0xff]
        %v3114 = vld [vmem:[#allocation13 + $0x10] sm:$0xff]
        %v3115 = vld [vmem:[#allocation13 + $0x18] sm:$0xff]
        %v3116 = vld [vmem:[#allocation13 + $0x20] sm:$0xff]
        %v3117 = vld [vmem:[#allocation13 + $0x28] sm:$0xff]
        %v3118 = vld [vmem:[#allocation13 + $0x30] sm:$0xff]
        %v3119 = vld [vmem:[#allocation13 + $0x38] sm:$0xff]
        %v3120 = vld [vmem:[#allocation13 + $0x40] sm:$0xff]
        %v3121 = vld [vmem:[#allocation13 + $0x48] sm:$0xff]
        %v3122 = vld [vmem:[#allocation13 + $0x50] sm:$0xff]
        %v3123 = vld [vmem:[#allocation13 + $0x58] sm:$0xff]
        %v3124 = vld [vmem:[#allocation13 + $0x60] sm:$0xff]
        %v3125 = vld [vmem:[#allocation13 + $0x68] sm:$0xff]
        %v3126 = vld [vmem:[#allocation13 + $0x70] sm:$0xff]
        %v3127 = vld [vmem:[#allocation13 + $0x78] sm:$0xff]
        %v3128 = vld [vmem:[#allocation13 + $0x80] sm:$0xff]
        %v3129 = vld [vmem:[#allocation13 + $0x88] sm:$0xff]
        %v3130 = vld [vmem:[#allocation13 + $0x90] sm:$0xff]
        %v3131 = vld [vmem:[#allocation13 + $0x98] sm:$0xff]
        %v3132 = vld [vmem:[#allocation13 + $0xa0] sm:$0xff]
        %v3133 = vld [vmem:[#allocation13 + $0xa8] sm:$0xff]
        %v3134 = vld [vmem:[#allocation13 + $0xb0] sm:$0xff]
        %v3135 = vld [vmem:[#allocation13 + $0xb8] sm:$0xff]
        %v3136 = vld [vmem:[#allocation13 + $0xc0] sm:$0xff]
        %v3137 = vld [vmem:[#allocation13 + $0xc8] sm:$0xff]
        %v3138 = vld [vmem:[#allocation13 + $0xd0] sm:$0xff]
        %v3139 = vld [vmem:[#allocation13 + $0xd8] sm:$0xff]
        %v3140 = vld [vmem:[#allocation13 + $0xe0] sm:$0xff]
        %v3141 = vld [vmem:[#allocation13 + $0xe8] sm:$0xff]
        %v3142 = vld [vmem:[#allocation13 + $0xf0] sm:$0xff]
        %v3143 = vld [vmem:[#allocation13 + $0xf8] sm:$0xff]
        %v3144 = vld [vmem:[#allocation14] sm:$0xff]
        %v3145 = vld [vmem:[#allocation14 + $0x8] sm:$0xff]
        %v3146 = vld [vmem:[#allocation14 + $0x10] sm:$0xff]
        %v3147 = vld [vmem:[#allocation14 + $0x18] sm:$0xff]
        %v3148 = vld [vmem:[#allocation14 + $0x20] sm:$0xff]
        %v3149 = vld [vmem:[#allocation14 + $0x28] sm:$0xff]
        %v3150 = vld [vmem:[#allocation14 + $0x30] sm:$0xff]
        %v3151 = vld [vmem:[#allocation14 + $0x38] sm:$0xff]
        %v3152 = vld [vmem:[#allocation14 + $0x40] sm:$0xff]
        %v3153 = vld [vmem:[#allocation14 + $0x48] sm:$0xff]
        %v3154 = vld [vmem:[#allocation14 + $0x50] sm:$0xff]
        %v3155 = vld [vmem:[#allocation14 + $0x58] sm:$0xff]
        %v3156 = vld [vmem:[#allocation14 + $0x60] sm:$0xff]
        %v3157 = vld [vmem:[#allocation14 + $0x68] sm:$0xff]
        %v3158 = vld [vmem:[#allocation14 + $0x70] sm:$0xff]
        %v3159 = vld [vmem:[#allocation14 + $0x78] sm:$0xff]
        %v3160 = vld [vmem:[%s23] sm:$0x3]
        %v3161 = vpack.c.bf16 %v3050, %v3048
        %v3162 = vpack.c.bf16 %v3051, %v3049
        %v3163 = vpack.c.bf16 %v3054, %v3052
        %v3164 = vpack.c.bf16 %v3055, %v3053
        %v3165 = vpack.c.bf16 %v3058, %v3056
        %v3166 = vpack.c.bf16 %v3059, %v3057
        %v3167 = vpack.c.bf16 %v3062, %v3060
        %v3168 = vpack.c.bf16 %v3063, %v3061
        %v3169 = vpack.c.bf16 %v3066, %v3064
        %v3170 = vpack.c.bf16 %v3067, %v3065
        %v3171 = vpack.c.bf16 %v3070, %v3068
        %v3172 = vpack.c.bf16 %v3071, %v3069
        %v3173 = vpack.c.bf16 %v3074, %v3072
        %v3174 = vpack.c.bf16 %v3075, %v3073
        %v3175 = vpack.c.bf16 %v3078, %v3076
        %v3176 = vpack.c.bf16 %v3079, %v3077
        %v3177 = vpack.c.bf16 %v3082, %v3080
        %v3178 = vpack.c.bf16 %v3083, %v3081
        %v3179 = vpack.c.bf16 %v3086, %v3084
        %v3180 = vpack.c.bf16 %v3087, %v3085
        %v3181 = vpack.c.bf16 %v3090, %v3088
        %v3182 = vpack.c.bf16 %v3091, %v3089
        %v3183 = vpack.c.bf16 %v3094, %v3092
        %v3184 = vpack.c.bf16 %v3095, %v3093
        %v3185 = vpack.c.bf16 %v3098, %v3096
        %v3186 = vpack.c.bf16 %v3099, %v3097
        %v3187 = vpack.c.bf16 %v3102, %v3100
        %v3188 = vpack.c.bf16 %v3103, %v3101
        %v3189 = vpack.c.bf16 %v3106, %v3104
        %v3190 = vpack.c.bf16 %v3107, %v3105
        %v3191 = vpack.c.bf16 %v3110, %v3108
        %v3192 = vpack.c.bf16 %v3111, %v3109
        %v3209 = vunpack.c.l.b16 %v3144
        %v3210 = vunpack.c.h.b16 %v3144
        %v3211 = vunpack.c.l.b16 %v3145
        %v3212 = vunpack.c.h.b16 %v3145
        %v3213 = vunpack.c.l.b16 %v3146
        %v3214 = vunpack.c.h.b16 %v3146
        %v3215 = vunpack.c.l.b16 %v3147
        %v3216 = vunpack.c.h.b16 %v3147
        %v3217 = vunpack.c.l.b16 %v3148
        %v3218 = vunpack.c.h.b16 %v3148
        %v3219 = vunpack.c.l.b16 %v3149
        %v3220 = vunpack.c.h.b16 %v3149
        %v3221 = vunpack.c.l.b16 %v3150
        %v3222 = vunpack.c.h.b16 %v3150
        %v3223 = vunpack.c.l.b16 %v3151
        %v3224 = vunpack.c.h.b16 %v3151
        %v3225 = vunpack.c.l.b16 %v3152
        %v3226 = vunpack.c.h.b16 %v3152
        %v3227 = vunpack.c.l.b16 %v3153
        %v3228 = vunpack.c.h.b16 %v3153
        %v3229 = vunpack.c.l.b16 %v3154
        %v3230 = vunpack.c.h.b16 %v3154
        %v3231 = vunpack.c.l.b16 %v3155
        %v3232 = vunpack.c.h.b16 %v3155
        %v3233 = vunpack.c.l.b16 %v3156
        %v3234 = vunpack.c.h.b16 %v3156
        %v3235 = vunpack.c.l.b16 %v3157
        %v3236 = vunpack.c.h.b16 %v3157
        %v3237 = vunpack.c.l.b16 %v3158
        %v3238 = vunpack.c.h.b16 %v3158
        %v3239 = vunpack.c.l.b16 %v3159
        %v3240 = vunpack.c.h.b16 %v3159
        %v3241 = vpack.c.b16 %v3211, %v3209
        %v3242 = vpack.c.b16 %v3212, %v3210
        %v3243 = vpack.c.b16 %v3215, %v3213
        %v3244 = vpack.c.b16 %v3216, %v3214
        %v3245 = vpack.c.b16 %v3219, %v3217
        %v3246 = vpack.c.b16 %v3220, %v3218
        %v3247 = vpack.c.b16 %v3223, %v3221
        %v3248 = vpack.c.b16 %v3224, %v3222
        %v3249 = vpack.c.b16 %v3227, %v3225
        %v3250 = vpack.c.b16 %v3228, %v3226
        %v3251 = vpack.c.b16 %v3231, %v3229
        %v3252 = vpack.c.b16 %v3232, %v3230
        %v3253 = vpack.c.b16 %v3235, %v3233
        %v3254 = vpack.c.b16 %v3236, %v3234
        %v3255 = vpack.c.b16 %v3239, %v3237
        %v3256 = vpack.c.b16 %v3240, %v3238
        %3273 = vmatprep.subr.bf16.mxu0 %v3242
        %3274 = vmatpush1.bf16.msra.mxu0 %v3241
        %3275 = vmatprep.subr.bf16.mxu0 %v3244
        %3276 = vmatpush1.bf16.msra.mxu0 %v3243
        %3277 = vmatprep.subr.bf16.mxu0 %v3246
        %3278 = vmatpush1.bf16.msra.mxu0 %v3245
        %3279 = vmatprep.subr.bf16.mxu0 %v3248
        %3280 = vmatpush1.bf16.msra.mxu0 %v3247
        %3281 = vmatprep.subr.bf16.mxu0 %v3250
        %3282 = vmatpush1.bf16.msra.mxu0 %v3249
        %3283 = vmatprep.subr.bf16.mxu0 %v3252
        %3284 = vmatpush1.bf16.msra.mxu0 %v3251
        %3285 = vmatprep.subr.bf16.mxu0 %v3254
        %3286 = vmatpush1.bf16.msra.mxu0 %v3253
        %3287 = vmatprep.subr.bf16.mxu0 %v3256
        %3288 = vmatpush1.bf16.msra.mxu0 %v3255
        %3289 = vmatprep.subr.bf16.mxu0 0
        %3290 = vmatpush1.bf16.msra.mxu0 0
        %3291 = vmatprep.subr.bf16.mxu0 0
        %3292 = vmatpush1.bf16.msra.mxu0 0
        %3293 = vmatprep.subr.bf16.mxu0 0
        %3294 = vmatpush1.bf16.msra.mxu0 0
        %3295 = vmatprep.subr.bf16.mxu0 0
        %3296 = vmatpush1.bf16.msra.mxu0 0
        %3297 = vmatprep.subr.bf16.mxu0 0
        %3298 = vmatpush1.bf16.msra.mxu0 0
        %3299 = vmatprep.subr.bf16.mxu0 0
        %3300 = vmatpush1.bf16.msra.mxu0 0
        %3301 = vmatprep.subr.bf16.mxu0 0
        %3302 = vmatpush1.bf16.msra.mxu0 0
        %3303 = vmatprep.subr.bf16.mxu0 0
        %3304 = vmatpush1.bf16.msra.mxu0 0
        %3305 = vmatprep.mubr.bf16.mxu0 0
        %3306 = vmatmul.mubr.bf16.gmra.mrb[0].mxu0 %v1264
        %v3307 = vpop.f32.mrb[0].mxu0
        %v3308 = vadd.f32 0.0, %v3307
        %v3309 = vpop.f32.mrb[0].mxu0
        %v3310 = vadd.f32 0.0, %v3309
        %v3311 = vpop.f32.mrb[0].mxu0
        %v3312 = vadd.f32 0.0, %v3311
        %v3313 = vpop.f32.mrb[0].mxu0
        %v3314 = vadd.f32 0.0, %v3313
        %3315 = vmatprep.mubr.bf16.mxu0 0
        %3316 = vmatmul.mubr.bf16.gmra.mrb[0].mxu0 %v1265
        %v3317 = vpop.f32.mrb[0].mxu0
        %v3318 = vadd.f32 0.0, %v3317
        %v3319 = vpop.f32.mrb[0].mxu0
        %v3320 = vadd.f32 0.0, %v3319
        %v3321 = vpop.f32.mrb[0].mxu0
        %v3322 = vadd.f32 0.0, %v3321
        %v3323 = vpop.f32.mrb[0].mxu0
        %v3324 = vadd.f32 0.0, %v3323
        %3325 = vmatprep.mubr.bf16.mxu0 0
        %3326 = vmatmul.mubr.bf16.gmra.mrb[0].mxu0 %v1266
        %v3327 = vpop.f32.mrb[0].mxu0
        %v3328 = vadd.f32 0.0, %v3327
        %v3329 = vpop.f32.mrb[0].mxu0
        %v3330 = vadd.f32 0.0, %v3329
        %v3331 = vpop.f32.mrb[0].mxu0
        %v3332 = vadd.f32 0.0, %v3331
        %v3333 = vpop.f32.mrb[0].mxu0
        %v3334 = vadd.f32 0.0, %v3333
        %3335 = vmatprep.mubr.bf16.mxu0 0
        %3336 = vmatmul.mubr.bf16.gmra.mrb[0].mxu0 %v1267
        %v3337 = vpop.f32.mrb[0].mxu0
        %v3338 = vadd.f32 0.0, %v3337
        %v3339 = vpop.f32.mrb[0].mxu0
        %v3340 = vadd.f32 0.0, %v3339
        %v3341 = vpop.f32.mrb[0].mxu0
        %v3342 = vadd.f32 0.0, %v3341
        %v3343 = vpop.f32.mrb[0].mxu0
        %v3344 = vadd.f32 0.0, %v3343
        %3345 = vmatprep.mubr.bf16.mxu0 0
        %3346 = vmatmul.mubr.bf16.gmra.mrb[0].mxu0 %v1268
        %v3347 = vpop.f32.mrb[0].mxu0
        %v3348 = vadd.f32 0.0, %v3347
        %v3349 = vpop.f32.mrb[0].mxu0
        %v3350 = vadd.f32 0.0, %v3349
        %v3351 = vpop.f32.mrb[0].mxu0
        %v3352 = vadd.f32 0.0, %v3351
        %v3353 = vpop.f32.mrb[0].mxu0
        %v3354 = vadd.f32 0.0, %v3353
        %3355 = vmatprep.mubr.bf16.mxu0 0
        %3356 = vmatmul.mubr.bf16.gmra.mrb[0].mxu0 %v1269
        %v3357 = vpop.f32.mrb[0].mxu0
        %v3358 = vadd.f32 0.0, %v3357
        %v3359 = vpop.f32.mrb[0].mxu0
        %v3360 = vadd.f32 0.0, %v3359
        %v3361 = vpop.f32.mrb[0].mxu0
        %v3362 = vadd.f32 0.0, %v3361
        %v3363 = vpop.f32.mrb[0].mxu0
        %v3364 = vadd.f32 0.0, %v3363
        %3365 = vmatprep.mubr.bf16.mxu0 0
        %3366 = vmatmul.mubr.bf16.gmra.mrb[0].mxu0 %v1270
        %v3367 = vpop.f32.mrb[0].mxu0
        %v3368 = vadd.f32 0.0, %v3367
        %v3369 = vpop.f32.mrb[0].mxu0
        %v3370 = vadd.f32 0.0, %v3369
        %v3371 = vpop.f32.mrb[0].mxu0
        %v3372 = vadd.f32 0.0, %v3371
        %v3373 = vpop.f32.mrb[0].mxu0
        %v3374 = vadd.f32 0.0, %v3373
        %3375 = vmatprep.mubr.bf16.mxu0 0
        %3376 = vmatmul.mubr.bf16.gmra.mrb[0].mxu0 %v1271
        %v3377 = vpop.f32.mrb[0].mxu0
        %v3378 = vadd.f32 0.0, %v3377
        %v3379 = vpop.f32.mrb[0].mxu0
        %v3380 = vadd.f32 0.0, %v3379
        %v3381 = vpop.f32.mrb[0].mxu0
        %v3382 = vadd.f32 0.0, %v3381
        %v3383 = vpop.f32.mrb[0].mxu0
        %v3384 = vadd.f32 0.0, %v3383
        %3385 = vmatprep.mubr.bf16.mxu0 0
        %3386 = vmatmul.mubr.bf16.gmra.mrb[0].mxu0 %v1272
        %v3387 = vpop.f32.mrb[0].mxu0
        %v3388 = vadd.f32 0.0, %v3387
        %v3389 = vpop.f32.mrb[0].mxu0
        %v3390 = vadd.f32 0.0, %v3389
        %v3391 = vpop.f32.mrb[0].mxu0
        %v3392 = vadd.f32 0.0, %v3391
        %v3393 = vpop.f32.mrb[0].mxu0
        %v3394 = vadd.f32 0.0, %v3393
        %3395 = vmatprep.mubr.bf16.mxu0 0
        %3396 = vmatmul.mubr.bf16.gmra.mrb[0].mxu0 %v1273
        %v3397 = vpop.f32.mrb[0].mxu0
        %v3398 = vadd.f32 0.0, %v3397
        %v3399 = vpop.f32.mrb[0].mxu0
        %v3400 = vadd.f32 0.0, %v3399
        %v3401 = vpop.f32.mrb[0].mxu0
        %v3402 = vadd.f32 0.0, %v3401
        %v3403 = vpop.f32.mrb[0].mxu0
        %v3404 = vadd.f32 0.0, %v3403
        %3405 = vmatprep.mubr.bf16.mxu0 0
        %3406 = vmatmul.mubr.bf16.gmra.mrb[0].mxu0 %v1274
        %v3407 = vpop.f32.mrb[0].mxu0
        %v3408 = vadd.f32 0.0, %v3407
        %v3409 = vpop.f32.mrb[0].mxu0
        %v3410 = vadd.f32 0.0, %v3409
        %v3411 = vpop.f32.mrb[0].mxu0
        %v3412 = vadd.f32 0.0, %v3411
        %v3413 = vpop.f32.mrb[0].mxu0
        %v3414 = vadd.f32 0.0, %v3413
        %3415 = vmatprep.mubr.bf16.mxu0 0
        %3416 = vmatmul.mubr.bf16.gmra.mrb[0].mxu0 %v1275
        %v3417 = vpop.f32.mrb[0].mxu0
        %v3418 = vadd.f32 0.0, %v3417
        %v3419 = vpop.f32.mrb[0].mxu0
        %v3420 = vadd.f32 0.0, %v3419
        %v3421 = vpop.f32.mrb[0].mxu0
        %v3422 = vadd.f32 0.0, %v3421
        %v3423 = vpop.f32.mrb[0].mxu0
        %v3424 = vadd.f32 0.0, %v3423
        %3425 = vmatprep.mubr.bf16.mxu0 0
        %3426 = vmatmul.mubr.bf16.gmra.mrb[0].mxu0 %v1276
        %v3427 = vpop.f32.mrb[0].mxu0
        %v3428 = vadd.f32 0.0, %v3427
        %v3429 = vpop.f32.mrb[0].mxu0
        %v3430 = vadd.f32 0.0, %v3429
        %v3431 = vpop.f32.mrb[0].mxu0
        %v3432 = vadd.f32 0.0, %v3431
        %v3433 = vpop.f32.mrb[0].mxu0
        %v3434 = vadd.f32 0.0, %v3433
        %3435 = vmatprep.mubr.bf16.mxu0 0
        %3436 = vmatmul.mubr.bf16.gmra.mrb[0].mxu0 %v1277
        %v3437 = vpop.f32.mrb[0].mxu0
        %v3438 = vadd.f32 0.0, %v3437
        %v3439 = vpop.f32.mrb[0].mxu0
        %v3440 = vadd.f32 0.0, %v3439
        %v3441 = vpop.f32.mrb[0].mxu0
        %v3442 = vadd.f32 0.0, %v3441
        %v3443 = vpop.f32.mrb[0].mxu0
        %v3444 = vadd.f32 0.0, %v3443
        %3445 = vmatprep.mubr.bf16.mxu0 0
        %3446 = vmatmul.mubr.bf16.gmra.mrb[0].mxu0 %v1278
        %v3447 = vpop.f32.mrb[0].mxu0
        %v3448 = vadd.f32 0.0, %v3447
        %v3449 = vpop.f32.mrb[0].mxu0
        %v3450 = vadd.f32 0.0, %v3449
        %v3451 = vpop.f32.mrb[0].mxu0
        %v3452 = vadd.f32 0.0, %v3451
        %v3453 = vpop.f32.mrb[0].mxu0
        %v3454 = vadd.f32 0.0, %v3453
        %3455 = vmatprep.mubr.bf16.mxu0 0
        %3456 = vmatmul.mubr.bf16.gmra.mrb[0].mxu0 %v1279
        %v3457 = vpop.f32.mrb[0].mxu0
        %v3458 = vadd.f32 0.0, %v3457
        %v3459 = vpop.f32.mrb[0].mxu0
        %v3460 = vadd.f32 0.0, %v3459
        %v3461 = vpop.f32.mrb[0].mxu0
        %v3462 = vadd.f32 0.0, %v3461
        %v3463 = vpop.f32.mrb[0].mxu0
        %v3464 = vadd.f32 0.0, %v3463
        %3465 = vdwg.mxu0
        %v3498 = vunpack.c.l.b16 %v3112
        %v3499 = vunpack.c.h.b16 %v3112
        %v3500 = vunpack.c.l.b16 %v3113
        %v3501 = vunpack.c.h.b16 %v3113
        %v3502 = vunpack.c.l.b16 %v3114
        %v3503 = vunpack.c.h.b16 %v3114
        %v3504 = vunpack.c.l.b16 %v3115
        %v3505 = vunpack.c.h.b16 %v3115
        %v3506 = vunpack.c.l.b16 %v3116
        %v3507 = vunpack.c.h.b16 %v3116
        %v3508 = vunpack.c.l.b16 %v3117
        %v3509 = vunpack.c.h.b16 %v3117
        %v3510 = vunpack.c.l.b16 %v3118
        %v3511 = vunpack.c.h.b16 %v3118
        %v3512 = vunpack.c.l.b16 %v3119
        %v3513 = vunpack.c.h.b16 %v3119
        %v3514 = vunpack.c.l.b16 %v3120
        %v3515 = vunpack.c.h.b16 %v3120
        %v3516 = vunpack.c.l.b16 %v3121
        %v3517 = vunpack.c.h.b16 %v3121
        %v3518 = vunpack.c.l.b16 %v3122
        %v3519 = vunpack.c.h.b16 %v3122
        %v3520 = vunpack.c.l.b16 %v3123
        %v3521 = vunpack.c.h.b16 %v3123
        %v3522 = vunpack.c.l.b16 %v3124
        %v3523 = vunpack.c.h.b16 %v3124
        %v3524 = vunpack.c.l.b16 %v3125
        %v3525 = vunpack.c.h.b16 %v3125
        %v3526 = vunpack.c.l.b16 %v3126
        %v3527 = vunpack.c.h.b16 %v3126
        %v3528 = vunpack.c.l.b16 %v3127
        %v3529 = vunpack.c.h.b16 %v3127
        %v3530 = vunpack.c.l.b16 %v3128
        %v3531 = vunpack.c.h.b16 %v3128
        %v3532 = vunpack.c.l.b16 %v3129
        %v3533 = vunpack.c.h.b16 %v3129
        %v3534 = vunpack.c.l.b16 %v3130
        %v3535 = vunpack.c.h.b16 %v3130
        %v3536 = vunpack.c.l.b16 %v3131
        %v3537 = vunpack.c.h.b16 %v3131
        %v3538 = vunpack.c.l.b16 %v3132
        %v3539 = vunpack.c.h.b16 %v3132
        %v3540 = vunpack.c.l.b16 %v3133
        %v3541 = vunpack.c.h.b16 %v3133
        %v3542 = vunpack.c.l.b16 %v3134
        %v3543 = vunpack.c.h.b16 %v3134
        %v3544 = vunpack.c.l.b16 %v3135
        %v3545 = vunpack.c.h.b16 %v3135
        %v3546 = vunpack.c.l.b16 %v3136
        %v3547 = vunpack.c.h.b16 %v3136
        %v3548 = vunpack.c.l.b16 %v3137
        %v3549 = vunpack.c.h.b16 %v3137
        %v3550 = vunpack.c.l.b16 %v3138
        %v3551 = vunpack.c.h.b16 %v3138
        %v3552 = vunpack.c.l.b16 %v3139
        %v3553 = vunpack.c.h.b16 %v3139
        %v3554 = vunpack.c.l.b16 %v3140
        %v3555 = vunpack.c.h.b16 %v3140
        %v3556 = vunpack.c.l.b16 %v3141
        %v3557 = vunpack.c.h.b16 %v3141
        %v3558 = vunpack.c.l.b16 %v3142
        %v3559 = vunpack.c.h.b16 %v3142
        %v3560 = vunpack.c.l.b16 %v3143
        %v3561 = vunpack.c.h.b16 %v3143
        %v3562 = vpack.c.b16 %v3500, %v3498
        %v3563 = vpack.c.b16 %v3501, %v3499
        %v3564 = vpack.c.b16 %v3504, %v3502
        %v3565 = vpack.c.b16 %v3505, %v3503
        %v3566 = vpack.c.b16 %v3508, %v3506
        %v3567 = vpack.c.b16 %v3509, %v3507
        %v3568 = vpack.c.b16 %v3512, %v3510
        %v3569 = vpack.c.b16 %v3513, %v3511
        %v3570 = vpack.c.b16 %v3516, %v3514
        %v3571 = vpack.c.b16 %v3517, %v3515
        %v3572 = vpack.c.b16 %v3520, %v3518
        %v3573 = vpack.c.b16 %v3521, %v3519
        %v3574 = vpack.c.b16 %v3524, %v3522
        %v3575 = vpack.c.b16 %v3525, %v3523
        %v3576 = vpack.c.b16 %v3528, %v3526
        %v3577 = vpack.c.b16 %v3529, %v3527
        %v3578 = vpack.c.b16 %v3532, %v3530
        %v3579 = vpack.c.b16 %v3533, %v3531
        %v3580 = vpack.c.b16 %v3536, %v3534
        %v3581 = vpack.c.b16 %v3537, %v3535
        %v3582 = vpack.c.b16 %v3540, %v3538
        %v3583 = vpack.c.b16 %v3541, %v3539
        %v3584 = vpack.c.b16 %v3544, %v3542
        %v3585 = vpack.c.b16 %v3545, %v3543
        %v3586 = vpack.c.b16 %v3548, %v3546
        %v3587 = vpack.c.b16 %v3549, %v3547
        %v3588 = vpack.c.b16 %v3552, %v3550
        %v3589 = vpack.c.b16 %v3553, %v3551
        %v3590 = vpack.c.b16 %v3556, %v3554
        %v3591 = vpack.c.b16 %v3557, %v3555
        %v3592 = vpack.c.b16 %v3560, %v3558
        %v3593 = vpack.c.b16 %v3561, %v3559
        %3626 = vmatprep.subr.bf16.mxu0 %v3563
        %3627 = vmatpush1.bf16.msra.mxu0 %v3562
        %3628 = vmatprep.subr.bf16.mxu0 %v3565
        %3629 = vmatpush1.bf16.msra.mxu0 %v3564
        %3630 = vmatprep.subr.bf16.mxu0 %v3567
        %3631 = vmatpush1.bf16.msra.mxu0 %v3566
        %3632 = vmatprep.subr.bf16.mxu0 %v3569
        %3633 = vmatpush1.bf16.msra.mxu0 %v3568
        %3634 = vmatprep.subr.bf16.mxu0 %v3571
        %3635 = vmatpush1.bf16.msra.mxu0 %v3570
        %3636 = vmatprep.subr.bf16.mxu0 %v3573
        %3637 = vmatpush1.bf16.msra.mxu0 %v3572
        %3638 = vmatprep.subr.bf16.mxu0 %v3575
        %3639 = vmatpush1.bf16.msra.mxu0 %v3574
        %3640 = vmatprep.subr.bf16.mxu0 %v3577
        %3641 = vmatpush1.bf16.msra.mxu0 %v3576
        %3642 = vmatprep.subr.bf16.mxu0 %v3579
        %3643 = vmatpush1.bf16.msra.mxu0 %v3578
        %3644 = vmatprep.subr.bf16.mxu0 %v3581
        %3645 = vmatpush1.bf16.msra.mxu0 %v3580
        %3646 = vmatprep.subr.bf16.mxu0 %v3583
        %3647 = vmatpush1.bf16.msra.mxu0 %v3582
        %3648 = vmatprep.subr.bf16.mxu0 %v3585
        %3649 = vmatpush1.bf16.msra.mxu0 %v3584
        %3650 = vmatprep.subr.bf16.mxu0 %v3587
        %3651 = vmatpush1.bf16.msra.mxu0 %v3586
        %3652 = vmatprep.subr.bf16.mxu0 %v3589
        %3653 = vmatpush1.bf16.msra.mxu0 %v3588
        %3654 = vmatprep.subr.bf16.mxu0 %v3591
        %3655 = vmatpush1.bf16.msra.mxu0 %v3590
        %3656 = vmatprep.subr.bf16.mxu0 %v3593
        %3657 = vmatpush1.bf16.msra.mxu0 %v3592
        %3658 = vmatprep.mubr.bf16.mxu0 %v3162
        %3659 = vmatmul.mubr.bf16.gmra.mrb[0].mxu0 %v3161
        %v3660 = vpop.f32.mrb[0].mxu0
        %v3661 = vadd.f32 %v3308, %v3660
        %v3662 = vpop.f32.mrb[0].mxu0
        %v3663 = vadd.f32 %v3310, %v3662
        %v3664 = vpop.f32.mrb[0].mxu0
        %v3665 = vadd.f32 %v3312, %v3664
        %v3666 = vpop.f32.mrb[0].mxu0
        %v3667 = vadd.f32 %v3314, %v3666
        %3668 = vmatprep.mubr.bf16.mxu0 %v3164
        %3669 = vmatmul.mubr.bf16.gmra.mrb[0].mxu0 %v3163
        %v3670 = vpop.f32.mrb[0].mxu0
        %v3671 = vadd.f32 %v3318, %v3670
        %v3672 = vpop.f32.mrb[0].mxu0
        %v3673 = vadd.f32 %v3320, %v3672
        %v3674 = vpop.f32.mrb[0].mxu0
        %v3675 = vadd.f32 %v3322, %v3674
        %v3676 = vpop.f32.mrb[0].mxu0
        %v3677 = vadd.f32 %v3324, %v3676
        %3678 = vmatprep.mubr.bf16.mxu0 %v3166
        %3679 = vmatmul.mubr.bf16.gmra.mrb[0].mxu0 %v3165
        %v3680 = vpop.f32.mrb[0].mxu0
        %v3681 = vadd.f32 %v3328, %v3680
        %v3682 = vpop.f32.mrb[0].mxu0
        %v3683 = vadd.f32 %v3330, %v3682
        %v3684 = vpop.f32.mrb[0].mxu0
        %v3685 = vadd.f32 %v3332, %v3684
        %v3686 = vpop.f32.mrb[0].mxu0
        %v3687 = vadd.f32 %v3334, %v3686
        %3688 = vmatprep.mubr.bf16.mxu0 %v3168
        %3689 = vmatmul.mubr.bf16.gmra.mrb[0].mxu0 %v3167
        %v3690 = vpop.f32.mrb[0].mxu0
        %v3691 = vadd.f32 %v3338, %v3690
        %v3692 = vpop.f32.mrb[0].mxu0
        %v3693 = vadd.f32 %v3340, %v3692
        %v3694 = vpop.f32.mrb[0].mxu0
        %v3695 = vadd.f32 %v3342, %v3694
        %v3696 = vpop.f32.mrb[0].mxu0
        %v3697 = vadd.f32 %v3344, %v3696
        %3698 = vmatprep.mubr.bf16.mxu0 %v3170
        %3699 = vmatmul.mubr.bf16.gmra.mrb[0].mxu0 %v3169
        %v3700 = vpop.f32.mrb[0].mxu0
        %v3701 = vadd.f32 %v3348, %v3700
        %v3702 = vpop.f32.mrb[0].mxu0
        %v3703 = vadd.f32 %v3350, %v3702
        %v3704 = vpop.f32.mrb[0].mxu0
        %v3705 = vadd.f32 %v3352, %v3704
        %v3706 = vpop.f32.mrb[0].mxu0
        %v3707 = vadd.f32 %v3354, %v3706
        %3708 = vmatprep.mubr.bf16.mxu0 %v3172
        %3709 = vmatmul.mubr.bf16.gmra.mrb[0].mxu0 %v3171
        %v3710 = vpop.f32.mrb[0].mxu0
        %v3711 = vadd.f32 %v3358, %v3710
        %v3712 = vpop.f32.mrb[0].mxu0
        %v3713 = vadd.f32 %v3360, %v3712
        %v3714 = vpop.f32.mrb[0].mxu0
        %v3715 = vadd.f32 %v3362, %v3714
        %v3716 = vpop.f32.mrb[0].mxu0
        %v3717 = vadd.f32 %v3364, %v3716
        %3718 = vmatprep.mubr.bf16.mxu0 %v3174
        %3719 = vmatmul.mubr.bf16.gmra.mrb[0].mxu0 %v3173
        %v3720 = vpop.f32.mrb[0].mxu0
        %v3721 = vadd.f32 %v3368, %v3720
        %v3722 = vpop.f32.mrb[0].mxu0
        %v3723 = vadd.f32 %v3370, %v3722
        %v3724 = vpop.f32.mrb[0].mxu0
        %v3725 = vadd.f32 %v3372, %v3724
        %v3726 = vpop.f32.mrb[0].mxu0
        %v3727 = vadd.f32 %v3374, %v3726
        %3728 = vmatprep.mubr.bf16.mxu0 %v3176
        %3729 = vmatmul.mubr.bf16.gmra.mrb[0].mxu0 %v3175
        %v3730 = vpop.f32.mrb[0].mxu0
        %v3731 = vadd.f32 %v3378, %v3730
        %v3732 = vpop.f32.mrb[0].mxu0
        %v3733 = vadd.f32 %v3380, %v3732
        %v3734 = vpop.f32.mrb[0].mxu0
        %v3735 = vadd.f32 %v3382, %v3734
        %v3736 = vpop.f32.mrb[0].mxu0
        %v3737 = vadd.f32 %v3384, %v3736
        %3738 = vmatprep.mubr.bf16.mxu0 %v3178
        %3739 = vmatmul.mubr.bf16.gmra.mrb[0].mxu0 %v3177
        %v3740 = vpop.f32.mrb[0].mxu0
        %v3741 = vadd.f32 %v3388, %v3740
        %v3742 = vpop.f32.mrb[0].mxu0
        %v3743 = vadd.f32 %v3390, %v3742
        %v3744 = vpop.f32.mrb[0].mxu0
        %v3745 = vadd.f32 %v3392, %v3744
        %v3746 = vpop.f32.mrb[0].mxu0
        %v3747 = vadd.f32 %v3394, %v3746
        %3748 = vmatprep.mubr.bf16.mxu0 %v3180
        %3749 = vmatmul.mubr.bf16.gmra.mrb[0].mxu0 %v3179
        %v3750 = vpop.f32.mrb[0].mxu0
        %v3751 = vadd.f32 %v3398, %v3750
        %v3752 = vpop.f32.mrb[0].mxu0
        %v3753 = vadd.f32 %v3400, %v3752
        %v3754 = vpop.f32.mrb[0].mxu0
        %v3755 = vadd.f32 %v3402, %v3754
        %v3756 = vpop.f32.mrb[0].mxu0
        %v3757 = vadd.f32 %v3404, %v3756
        %3758 = vmatprep.mubr.bf16.mxu0 %v3182
        %3759 = vmatmul.mubr.bf16.gmra.mrb[0].mxu0 %v3181
        %v3760 = vpop.f32.mrb[0].mxu0
        %v3761 = vadd.f32 %v3408, %v3760
        %v3762 = vpop.f32.mrb[0].mxu0
        %v3763 = vadd.f32 %v3410, %v3762
        %v3764 = vpop.f32.mrb[0].mxu0
        %v3765 = vadd.f32 %v3412, %v3764
        %v3766 = vpop.f32.mrb[0].mxu0
        %v3767 = vadd.f32 %v3414, %v3766
        %3768 = vmatprep.mubr.bf16.mxu0 %v3184
        %3769 = vmatmul.mubr.bf16.gmra.mrb[0].mxu0 %v3183
        %v3770 = vpop.f32.mrb[0].mxu0
        %v3771 = vadd.f32 %v3418, %v3770
        %v3772 = vpop.f32.mrb[0].mxu0
        %v3773 = vadd.f32 %v3420, %v3772
        %v3774 = vpop.f32.mrb[0].mxu0
        %v3775 = vadd.f32 %v3422, %v3774
        %v3776 = vpop.f32.mrb[0].mxu0
        %v3777 = vadd.f32 %v3424, %v3776
        %3778 = vmatprep.mubr.bf16.mxu0 %v3186
        %3779 = vmatmul.mubr.bf16.gmra.mrb[0].mxu0 %v3185
        %v3780 = vpop.f32.mrb[0].mxu0
        %v3781 = vadd.f32 %v3428, %v3780
        %v3782 = vpop.f32.mrb[0].mxu0
        %v3783 = vadd.f32 %v3430, %v3782
        %v3784 = vpop.f32.mrb[0].mxu0
        %v3785 = vadd.f32 %v3432, %v3784
        %v3786 = vpop.f32.mrb[0].mxu0
        %v3787 = vadd.f32 %v3434, %v3786
        %3788 = vmatprep.mubr.bf16.mxu0 %v3188
        %3789 = vmatmul.mubr.bf16.gmra.mrb[0].mxu0 %v3187
        %v3790 = vpop.f32.mrb[0].mxu0
        %v3791 = vadd.f32 %v3438, %v3790
        %v3792 = vpop.f32.mrb[0].mxu0
        %v3793 = vadd.f32 %v3440, %v3792
        %v3794 = vpop.f32.mrb[0].mxu0
        %v3795 = vadd.f32 %v3442, %v3794
        %v3796 = vpop.f32.mrb[0].mxu0
        %v3797 = vadd.f32 %v3444, %v3796
        %3798 = vmatprep.mubr.bf16.mxu0 %v3190
        %3799 = vmatmul.mubr.bf16.gmra.mrb[0].mxu0 %v3189
        %v3800 = vpop.f32.mrb[0].mxu0
        %v3801 = vadd.f32 %v3448, %v3800
        %v3802 = vpop.f32.mrb[0].mxu0
        %v3803 = vadd.f32 %v3450, %v3802
        %v3804 = vpop.f32.mrb[0].mxu0
        %v3805 = vadd.f32 %v3452, %v3804
        %v3806 = vpop.f32.mrb[0].mxu0
        %v3807 = vadd.f32 %v3454, %v3806
        %3808 = vmatprep.mubr.bf16.mxu0 %v3192
        %3809 = vmatmul.mubr.bf16.gmra.mrb[0].mxu0 %v3191
        %v3810 = vpop.f32.mrb[0].mxu0
        %v3811 = vadd.f32 %v3458, %v3810
        %v3812 = vpop.f32.mrb[0].mxu0
        %v3813 = vadd.f32 %v3460, %v3812
        %v3814 = vpop.f32.mrb[0].mxu0
        %v3815 = vadd.f32 %v3462, %v3814
        %v3816 = vpop.f32.mrb[0].mxu0
        %v3817 = vadd.f32 %v3464, %v3816
        %3818 = vdwg.mxu0
        %v3820 = vlaneseq
        %v3821 = vshrl.u32 %v3820, 7
        %v3822 = vsub.s32 0, %v3821
        %v3823 = vrot.slane %v3160, %v3822
        %v3824 = vlaneseq
        %v3825 = vshrl.u32 %v3824, 7
        %v3826 = vsub.s32 1, %v3825
        %v3827 = vrot.slane %v3160, %v3826
        %v3830 = vadd.f32 %v3661, %v3823
        %v3831 = vadd.f32 %v3663, %v3827
        %v3832 = vadd.f32 %v3665, %v3823
        %v3833 = vadd.f32 %v3667, %v3827
        %v3834 = vadd.f32 %v3671, %v3823
        %v3835 = vadd.f32 %v3673, %v3827
        %v3836 = vadd.f32 %v3675, %v3823
        %v3837 = vadd.f32 %v3677, %v3827
        %v3838 = vadd.f32 %v3681, %v3823
        %v3839 = vadd.f32 %v3683, %v3827
        %v3840 = vadd.f32 %v3685, %v3823
        %v3841 = vadd.f32 %v3687, %v3827
        %v3842 = vadd.f32 %v3691, %v3823
        %v3843 = vadd.f32 %v3693, %v3827
        %v3844 = vadd.f32 %v3695, %v3823
        %v3845 = vadd.f32 %v3697, %v3827
        %v3846 = vadd.f32 %v3701, %v3823
        %v3847 = vadd.f32 %v3703, %v3827
        %v3848 = vadd.f32 %v3705, %v3823
        %v3849 = vadd.f32 %v3707, %v3827
        %v3850 = vadd.f32 %v3711, %v3823
        %v3851 = vadd.f32 %v3713, %v3827
        %v3852 = vadd.f32 %v3715, %v3823
        %v3853 = vadd.f32 %v3717, %v3827
        %v3854 = vadd.f32 %v3721, %v3823
        %v3855 = vadd.f32 %v3723, %v3827
        %v3856 = vadd.f32 %v3725, %v3823
        %v3857 = vadd.f32 %v3727, %v3827
        %v3858 = vadd.f32 %v3731, %v3823
        %v3859 = vadd.f32 %v3733, %v3827
        %v3860 = vadd.f32 %v3735, %v3823
        %v3861 = vadd.f32 %v3737, %v3827
        %v3862 = vadd.f32 %v3741, %v3823
        %v3863 = vadd.f32 %v3743, %v3827
        %v3864 = vadd.f32 %v3745, %v3823
        %v3865 = vadd.f32 %v3747, %v3827
        %v3866 = vadd.f32 %v3751, %v3823
        %v3867 = vadd.f32 %v3753, %v3827
        %v3868 = vadd.f32 %v3755, %v3823
        %v3869 = vadd.f32 %v3757, %v3827
        %v3870 = vadd.f32 %v3761, %v3823
        %v3871 = vadd.f32 %v3763, %v3827
        %v3872 = vadd.f32 %v3765, %v3823
        %v3873 = vadd.f32 %v3767, %v3827
        %v3874 = vadd.f32 %v3771, %v3823
        %v3875 = vadd.f32 %v3773, %v3827
        %v3876 = vadd.f32 %v3775, %v3823
        %v3877 = vadd.f32 %v3777, %v3827
        %v3878 = vadd.f32 %v3781, %v3823
        %v3879 = vadd.f32 %v3783, %v3827
        %v3880 = vadd.f32 %v3785, %v3823
        %v3881 = vadd.f32 %v3787, %v3827
        %v3882 = vadd.f32 %v3791, %v3823
        %v3883 = vadd.f32 %v3793, %v3827
        %v3884 = vadd.f32 %v3795, %v3823
        %v3885 = vadd.f32 %v3797, %v3827
        %v3886 = vadd.f32 %v3801, %v3823
        %v3887 = vadd.f32 %v3803, %v3827
        %v3888 = vadd.f32 %v3805, %v3823
        %v3889 = vadd.f32 %v3807, %v3827
        %v3890 = vadd.f32 %v3811, %v3823
        %v3891 = vadd.f32 %v3813, %v3827
        %v3892 = vadd.f32 %v3815, %v3823
        %v3893 = vadd.f32 %v3817, %v3827
        %v3894 = vmax.f32 %v3830, 0.0
        %v3895 = vmax.f32 %v3831, 0.0
        %v3896 = vmax.f32 %v3832, 0.0
        %v3897 = vmax.f32 %v3833, 0.0
        %v3898 = vmax.f32 %v3834, 0.0
        %v3899 = vmax.f32 %v3835, 0.0
        %v3900 = vmax.f32 %v3836, 0.0
        %v3901 = vmax.f32 %v3837, 0.0
        %v3902 = vmax.f32 %v3838, 0.0
        %v3903 = vmax.f32 %v3839, 0.0
        %v3904 = vmax.f32 %v3840, 0.0
        %v3905 = vmax.f32 %v3841, 0.0
        %v3906 = vmax.f32 %v3842, 0.0
        %v3907 = vmax.f32 %v3843, 0.0
        %v3908 = vmax.f32 %v3844, 0.0
        %v3909 = vmax.f32 %v3845, 0.0
        %v3910 = vmax.f32 %v3846, 0.0
        %v3911 = vmax.f32 %v3847, 0.0
        %v3912 = vmax.f32 %v3848, 0.0
        %v3913 = vmax.f32 %v3849, 0.0
        %v3914 = vmax.f32 %v3850, 0.0
        %v3915 = vmax.f32 %v3851, 0.0
        %v3916 = vmax.f32 %v3852, 0.0
        %v3917 = vmax.f32 %v3853, 0.0
        %v3918 = vmax.f32 %v3854, 0.0
        %v3919 = vmax.f32 %v3855, 0.0
        %v3920 = vmax.f32 %v3856, 0.0
        %v3921 = vmax.f32 %v3857, 0.0
        %v3922 = vmax.f32 %v3858, 0.0
        %v3923 = vmax.f32 %v3859, 0.0
        %v3924 = vmax.f32 %v3860, 0.0
        %v3925 = vmax.f32 %v3861, 0.0
        %v3926 = vmax.f32 %v3862, 0.0
        %v3927 = vmax.f32 %v3863, 0.0
        %v3928 = vmax.f32 %v3864, 0.0
        %v3929 = vmax.f32 %v3865, 0.0
        %v3930 = vmax.f32 %v3866, 0.0
        %v3931 = vmax.f32 %v3867, 0.0
        %v3932 = vmax.f32 %v3868, 0.0
        %v3933 = vmax.f32 %v3869, 0.0
        %v3934 = vmax.f32 %v3870, 0.0
        %v3935 = vmax.f32 %v3871, 0.0
        %v3936 = vmax.f32 %v3872, 0.0
        %v3937 = vmax.f32 %v3873, 0.0
        %v3938 = vmax.f32 %v3874, 0.0
        %v3939 = vmax.f32 %v3875, 0.0
        %v3940 = vmax.f32 %v3876, 0.0
        %v3941 = vmax.f32 %v3877, 0.0
        %v3942 = vmax.f32 %v3878, 0.0
        %v3943 = vmax.f32 %v3879, 0.0
        %v3944 = vmax.f32 %v3880, 0.0
        %v3945 = vmax.f32 %v3881, 0.0
        %v3946 = vmax.f32 %v3882, 0.0
        %v3947 = vmax.f32 %v3883, 0.0
        %v3948 = vmax.f32 %v3884, 0.0
        %v3949 = vmax.f32 %v3885, 0.0
        %v3950 = vmax.f32 %v3886, 0.0
        %v3951 = vmax.f32 %v3887, 0.0
        %v3952 = vmax.f32 %v3888, 0.0
        %v3953 = vmax.f32 %v3889, 0.0
        %v3954 = vmax.f32 %v3890, 0.0
        %v3955 = vmax.f32 %v3891, 0.0
        %v3956 = vmax.f32 %v3892, 0.0
        %v3957 = vmax.f32 %v3893, 0.0
        %v3958 = vld [vmem:[#allocation16] sm:$0xff]
        %v3959 = vld [vmem:[#allocation16 + $0x8] sm:$0xff]
        %v3960 = vld [vmem:[#allocation16 + $0x10] sm:$0xff]
        %v3961 = vld [vmem:[#allocation16 + $0x18] sm:$0xff]
        %v3962 = vld [vmem:[#allocation16 + $0x20] sm:$0xff]
        %v3963 = vld [vmem:[#allocation16 + $0x28] sm:$0xff]
        %v3964 = vld [vmem:[#allocation16 + $0x30] sm:$0xff]
        %v3965 = vld [vmem:[#allocation16 + $0x38] sm:$0xff]
        %v3966 = vld [vmem:[#allocation16 + $0x40] sm:$0xff]
        %v3967 = vld [vmem:[#allocation16 + $0x48] sm:$0xff]
        %v3968 = vld [vmem:[#allocation16 + $0x50] sm:$0xff]
        %v3969 = vld [vmem:[#allocation16 + $0x58] sm:$0xff]
        %v3970 = vld [vmem:[#allocation16 + $0x60] sm:$0xff]
        %v3971 = vld [vmem:[#allocation16 + $0x68] sm:$0xff]
        %v3972 = vld [vmem:[#allocation16 + $0x70] sm:$0xff]
        %v3973 = vld [vmem:[#allocation16 + $0x78] sm:$0xff]
        %v3974 = vld [vmem:[#allocation16 + $0x80] sm:$0xff]
        %v3975 = vld [vmem:[#allocation16 + $0x88] sm:$0xff]
        %v3976 = vld [vmem:[#allocation16 + $0x90] sm:$0xff]
        %v3977 = vld [vmem:[#allocation16 + $0x98] sm:$0xff]
        %v3978 = vld [vmem:[#allocation16 + $0xa0] sm:$0xff]
        %v3979 = vld [vmem:[#allocation16 + $0xa8] sm:$0xff]
        %v3980 = vld [vmem:[#allocation16 + $0xb0] sm:$0xff]
        %v3981 = vld [vmem:[#allocation16 + $0xb8] sm:$0xff]
        %v3982 = vld [vmem:[#allocation16 + $0xc0] sm:$0xff]
        %v3983 = vld [vmem:[#allocation16 + $0xc8] sm:$0xff]
        %v3984 = vld [vmem:[#allocation16 + $0xd0] sm:$0xff]
        %v3985 = vld [vmem:[#allocation16 + $0xd8] sm:$0xff]
        %v3986 = vld [vmem:[#allocation16 + $0xe0] sm:$0xff]
        %v3987 = vld [vmem:[#allocation16 + $0xe8] sm:$0xff]
        %v3988 = vld [vmem:[#allocation16 + $0xf0] sm:$0xff]
        %v3989 = vld [vmem:[#allocation16 + $0xf8] sm:$0xff]
        %v3990 = vld [vmem:[%s27] sm:$0x3]
        %v3991 = vpack.c.bf16 %v3896, %v3894
        %v3992 = vpack.c.bf16 %v3897, %v3895
        %v3993 = vpack.c.bf16 %v3900, %v3898
        %v3994 = vpack.c.bf16 %v3901, %v3899
        %v3995 = vpack.c.bf16 %v3904, %v3902
        %v3996 = vpack.c.bf16 %v3905, %v3903
        %v3997 = vpack.c.bf16 %v3908, %v3906
        %v3998 = vpack.c.bf16 %v3909, %v3907
        %v3999 = vpack.c.bf16 %v3912, %v3910
        %v4000 = vpack.c.bf16 %v3913, %v3911
        %v4001 = vpack.c.bf16 %v3916, %v3914
        %v4002 = vpack.c.bf16 %v3917, %v3915
        %v4003 = vpack.c.bf16 %v3920, %v3918
        %v4004 = vpack.c.bf16 %v3921, %v3919
        %v4005 = vpack.c.bf16 %v3924, %v3922
        %v4006 = vpack.c.bf16 %v3925, %v3923
        %v4007 = vpack.c.bf16 %v3928, %v3926
        %v4008 = vpack.c.bf16 %v3929, %v3927
        %v4009 = vpack.c.bf16 %v3932, %v3930
        %v4010 = vpack.c.bf16 %v3933, %v3931
        %v4011 = vpack.c.bf16 %v3936, %v3934
        %v4012 = vpack.c.bf16 %v3937, %v3935
        %v4013 = vpack.c.bf16 %v3940, %v3938
        %v4014 = vpack.c.bf16 %v3941, %v3939
        %v4015 = vpack.c.bf16 %v3944, %v3942
        %v4016 = vpack.c.bf16 %v3945, %v3943
        %v4017 = vpack.c.bf16 %v3948, %v3946
        %v4018 = vpack.c.bf16 %v3949, %v3947
        %v4019 = vpack.c.bf16 %v3952, %v3950
        %v4020 = vpack.c.bf16 %v3953, %v3951
        %v4021 = vpack.c.bf16 %v3956, %v3954
        %v4022 = vpack.c.bf16 %v3957, %v3955
        %v4024 = vlaneseq
        %v4025 = vshrl.u32 %v4024, 7
        %v4026 = vsub.s32 0, %v4025
        %v4027 = vrot.slane %v3990, %v4026
        %v4028 = vlaneseq
        %v4029 = vshrl.u32 %v4028, 7
        %v4030 = vsub.s32 1, %v4029
        %v4031 = vrot.slane %v3990, %v4030
        %v4066 = vunpack.c.l.b16 %v3958
        %v4067 = vunpack.c.h.b16 %v3958
        %v4068 = vunpack.c.l.b16 %v3959
        %v4069 = vunpack.c.h.b16 %v3959
        %v4070 = vunpack.c.l.b16 %v3960
        %v4071 = vunpack.c.h.b16 %v3960
        %v4072 = vunpack.c.l.b16 %v3961
        %v4073 = vunpack.c.h.b16 %v3961
        %v4074 = vunpack.c.l.b16 %v3962
        %v4075 = vunpack.c.h.b16 %v3962
        %v4076 = vunpack.c.l.b16 %v3963
        %v4077 = vunpack.c.h.b16 %v3963
        %v4078 = vunpack.c.l.b16 %v3964
        %v4079 = vunpack.c.h.b16 %v3964
        %v4080 = vunpack.c.l.b16 %v3965
        %v4081 = vunpack.c.h.b16 %v3965
        %v4082 = vunpack.c.l.b16 %v3966
        %v4083 = vunpack.c.h.b16 %v3966
        %v4084 = vunpack.c.l.b16 %v3967
        %v4085 = vunpack.c.h.b16 %v3967
        %v4086 = vunpack.c.l.b16 %v3968
        %v4087 = vunpack.c.h.b16 %v3968
        %v4088 = vunpack.c.l.b16 %v3969
        %v4089 = vunpack.c.h.b16 %v3969
        %v4090 = vunpack.c.l.b16 %v3970
        %v4091 = vunpack.c.h.b16 %v3970
        %v4092 = vunpack.c.l.b16 %v3971
        %v4093 = vunpack.c.h.b16 %v3971
        %v4094 = vunpack.c.l.b16 %v3972
        %v4095 = vunpack.c.h.b16 %v3972
        %v4096 = vunpack.c.l.b16 %v3973
        %v4097 = vunpack.c.h.b16 %v3973
        %v4098 = vunpack.c.l.b16 %v3974
        %v4099 = vunpack.c.h.b16 %v3974
        %v4100 = vunpack.c.l.b16 %v3975
        %v4101 = vunpack.c.h.b16 %v3975
        %v4102 = vunpack.c.l.b16 %v3976
        %v4103 = vunpack.c.h.b16 %v3976
        %v4104 = vunpack.c.l.b16 %v3977
        %v4105 = vunpack.c.h.b16 %v3977
        %v4106 = vunpack.c.l.b16 %v3978
        %v4107 = vunpack.c.h.b16 %v3978
        %v4108 = vunpack.c.l.b16 %v3979
        %v4109 = vunpack.c.h.b16 %v3979
        %v4110 = vunpack.c.l.b16 %v3980
        %v4111 = vunpack.c.h.b16 %v3980
        %v4112 = vunpack.c.l.b16 %v3981
        %v4113 = vunpack.c.h.b16 %v3981
        %v4114 = vunpack.c.l.b16 %v3982
        %v4115 = vunpack.c.h.b16 %v3982
        %v4116 = vunpack.c.l.b16 %v3983
        %v4117 = vunpack.c.h.b16 %v3983
        %v4118 = vunpack.c.l.b16 %v3984
        %v4119 = vunpack.c.h.b16 %v3984
        %v4120 = vunpack.c.l.b16 %v3985
        %v4121 = vunpack.c.h.b16 %v3985
        %v4122 = vunpack.c.l.b16 %v3986
        %v4123 = vunpack.c.h.b16 %v3986
        %v4124 = vunpack.c.l.b16 %v3987
        %v4125 = vunpack.c.h.b16 %v3987
        %v4126 = vunpack.c.l.b16 %v3988
        %v4127 = vunpack.c.h.b16 %v3988
        %v4128 = vunpack.c.l.b16 %v3989
        %v4129 = vunpack.c.h.b16 %v3989
        %v4130 = vpack.c.b16 %v4068, %v4066
        %v4131 = vpack.c.b16 %v4069, %v4067
        %v4132 = vpack.c.b16 %v4072, %v4070
        %v4133 = vpack.c.b16 %v4073, %v4071
        %v4134 = vpack.c.b16 %v4076, %v4074
        %v4135 = vpack.c.b16 %v4077, %v4075
        %v4136 = vpack.c.b16 %v4080, %v4078
        %v4137 = vpack.c.b16 %v4081, %v4079
        %v4138 = vpack.c.b16 %v4084, %v4082
        %v4139 = vpack.c.b16 %v4085, %v4083
        %v4140 = vpack.c.b16 %v4088, %v4086
        %v4141 = vpack.c.b16 %v4089, %v4087
        %v4142 = vpack.c.b16 %v4092, %v4090
        %v4143 = vpack.c.b16 %v4093, %v4091
        %v4144 = vpack.c.b16 %v4096, %v4094
        %v4145 = vpack.c.b16 %v4097, %v4095
        %v4146 = vpack.c.b16 %v4100, %v4098
        %v4147 = vpack.c.b16 %v4101, %v4099
        %v4148 = vpack.c.b16 %v4104, %v4102
        %v4149 = vpack.c.b16 %v4105, %v4103
        %v4150 = vpack.c.b16 %v4108, %v4106
        %v4151 = vpack.c.b16 %v4109, %v4107
        %v4152 = vpack.c.b16 %v4112, %v4110
        %v4153 = vpack.c.b16 %v4113, %v4111
        %v4154 = vpack.c.b16 %v4116, %v4114
        %v4155 = vpack.c.b16 %v4117, %v4115
        %v4156 = vpack.c.b16 %v4120, %v4118
        %v4157 = vpack.c.b16 %v4121, %v4119
        %v4158 = vpack.c.b16 %v4124, %v4122
        %v4159 = vpack.c.b16 %v4125, %v4123
        %v4160 = vpack.c.b16 %v4128, %v4126
        %v4161 = vpack.c.b16 %v4129, %v4127
        %4194 = vmatprep.subr.bf16.mxu0 %v4131
        %4195 = vmatpush1.bf16.msra.mxu0 %v4130
        %4196 = vmatprep.subr.bf16.mxu0 %v4133
        %4197 = vmatpush1.bf16.msra.mxu0 %v4132
        %4198 = vmatprep.subr.bf16.mxu0 %v4135
        %4199 = vmatpush1.bf16.msra.mxu0 %v4134
        %4200 = vmatprep.subr.bf16.mxu0 %v4137
        %4201 = vmatpush1.bf16.msra.mxu0 %v4136
        %4202 = vmatprep.subr.bf16.mxu0 %v4139
        %4203 = vmatpush1.bf16.msra.mxu0 %v4138
        %4204 = vmatprep.subr.bf16.mxu0 %v4141
        %4205 = vmatpush1.bf16.msra.mxu0 %v4140
        %4206 = vmatprep.subr.bf16.mxu0 %v4143
        %4207 = vmatpush1.bf16.msra.mxu0 %v4142
        %4208 = vmatprep.subr.bf16.mxu0 %v4145
        %4209 = vmatpush1.bf16.msra.mxu0 %v4144
        %4210 = vmatprep.subr.bf16.mxu0 %v4147
        %4211 = vmatpush1.bf16.msra.mxu0 %v4146
        %4212 = vmatprep.subr.bf16.mxu0 %v4149
        %4213 = vmatpush1.bf16.msra.mxu0 %v4148
        %4214 = vmatprep.subr.bf16.mxu0 %v4151
        %4215 = vmatpush1.bf16.msra.mxu0 %v4150
        %4216 = vmatprep.subr.bf16.mxu0 %v4153
        %4217 = vmatpush1.bf16.msra.mxu0 %v4152
        %4218 = vmatprep.subr.bf16.mxu0 %v4155
        %4219 = vmatpush1.bf16.msra.mxu0 %v4154
        %4220 = vmatprep.subr.bf16.mxu0 %v4157
        %4221 = vmatpush1.bf16.msra.mxu0 %v4156
        %4222 = vmatprep.subr.bf16.mxu0 %v4159
        %4223 = vmatpush1.bf16.msra.mxu0 %v4158
        %4224 = vmatprep.subr.bf16.mxu0 %v4161
        %4225 = vmatpush1.bf16.msra.mxu0 %v4160
        %4226 = vmatprep.mubr.bf16.mxu0 %v3992
        %4227 = vmatmul.mubr.bf16.gmra.mrb[0].mxu0 %v3991
        %v4228 = vpop.f32.mrb[0].mxu0
        %v4229 = vadd.f32 %v4027, %v4228
        %v4230 = vpop.f32.mrb[0].mxu0
        %v4231 = vadd.f32 %v4031, %v4230
        %v4232 = vpop.f32.mrb[0].mxu0
        %v4233 = vadd.f32 %v4027, %v4232
        %v4234 = vpop.f32.mrb[0].mxu0
        %v4235 = vadd.f32 %v4031, %v4234
        %4236 = vmatprep.mubr.bf16.mxu0 %v3994
        %4237 = vmatmul.mubr.bf16.gmra.mrb[0].mxu0 %v3993
        %v4238 = vpop.f32.mrb[0].mxu0
        %v4239 = vadd.f32 %v4027, %v4238
        %v4240 = vpop.f32.mrb[0].mxu0
        %v4241 = vadd.f32 %v4031, %v4240
        %v4242 = vpop.f32.mrb[0].mxu0
        %v4243 = vadd.f32 %v4027, %v4242
        %v4244 = vpop.f32.mrb[0].mxu0
        %v4245 = vadd.f32 %v4031, %v4244
        %4246 = vmatprep.mubr.bf16.mxu0 %v3996
        %4247 = vmatmul.mubr.bf16.gmra.mrb[0].mxu0 %v3995
        %v4248 = vpop.f32.mrb[0].mxu0
        %v4249 = vadd.f32 %v4027, %v4248
        %v4250 = vpop.f32.mrb[0].mxu0
        %v4251 = vadd.f32 %v4031, %v4250
        %v4252 = vpop.f32.mrb[0].mxu0
        %v4253 = vadd.f32 %v4027, %v4252
        %v4254 = vpop.f32.mrb[0].mxu0
        %v4255 = vadd.f32 %v4031, %v4254
        %4256 = vmatprep.mubr.bf16.mxu0 %v3998
        %4257 = vmatmul.mubr.bf16.gmra.mrb[0].mxu0 %v3997
        %v4258 = vpop.f32.mrb[0].mxu0
        %v4259 = vadd.f32 %v4027, %v4258
        %v4260 = vpop.f32.mrb[0].mxu0
        %v4261 = vadd.f32 %v4031, %v4260
        %v4262 = vpop.f32.mrb[0].mxu0
        %v4263 = vadd.f32 %v4027, %v4262
        %v4264 = vpop.f32.mrb[0].mxu0
        %v4265 = vadd.f32 %v4031, %v4264
        %4266 = vmatprep.mubr.bf16.mxu0 %v4000
        %4267 = vmatmul.mubr.bf16.gmra.mrb[0].mxu0 %v3999
        %v4268 = vpop.f32.mrb[0].mxu0
        %v4269 = vadd.f32 %v4027, %v4268
        %v4270 = vpop.f32.mrb[0].mxu0
        %v4271 = vadd.f32 %v4031, %v4270
        %v4272 = vpop.f32.mrb[0].mxu0
        %v4273 = vadd.f32 %v4027, %v4272
        %v4274 = vpop.f32.mrb[0].mxu0
        %v4275 = vadd.f32 %v4031, %v4274
        %4276 = vmatprep.mubr.bf16.mxu0 %v4002
        %4277 = vmatmul.mubr.bf16.gmra.mrb[0].mxu0 %v4001
        %v4278 = vpop.f32.mrb[0].mxu0
        %v4279 = vadd.f32 %v4027, %v4278
        %v4280 = vpop.f32.mrb[0].mxu0
        %v4281 = vadd.f32 %v4031, %v4280
        %v4282 = vpop.f32.mrb[0].mxu0
        %v4283 = vadd.f32 %v4027, %v4282
        %v4284 = vpop.f32.mrb[0].mxu0
        %v4285 = vadd.f32 %v4031, %v4284
        %4286 = vmatprep.mubr.bf16.mxu0 %v4004
        %4287 = vmatmul.mubr.bf16.gmra.mrb[0].mxu0 %v4003
        %v4288 = vpop.f32.mrb[0].mxu0
        %v4289 = vadd.f32 %v4027, %v4288
        %v4290 = vpop.f32.mrb[0].mxu0
        %v4291 = vadd.f32 %v4031, %v4290
        %v4292 = vpop.f32.mrb[0].mxu0
        %v4293 = vadd.f32 %v4027, %v4292
        %v4294 = vpop.f32.mrb[0].mxu0
        %v4295 = vadd.f32 %v4031, %v4294
        %4296 = vmatprep.mubr.bf16.mxu0 %v4006
        %4297 = vmatmul.mubr.bf16.gmra.mrb[0].mxu0 %v4005
        %v4298 = vpop.f32.mrb[0].mxu0
        %v4299 = vadd.f32 %v4027, %v4298
        %v4300 = vpop.f32.mrb[0].mxu0
        %v4301 = vadd.f32 %v4031, %v4300
        %v4302 = vpop.f32.mrb[0].mxu0
        %v4303 = vadd.f32 %v4027, %v4302
        %v4304 = vpop.f32.mrb[0].mxu0
        %v4305 = vadd.f32 %v4031, %v4304
        %4306 = vmatprep.mubr.bf16.mxu0 %v4008
        %4307 = vmatmul.mubr.bf16.gmra.mrb[0].mxu0 %v4007
        %v4308 = vpop.f32.mrb[0].mxu0
        %v4309 = vadd.f32 %v4027, %v4308
        %v4310 = vpop.f32.mrb[0].mxu0
        %v4311 = vadd.f32 %v4031, %v4310
        %v4312 = vpop.f32.mrb[0].mxu0
        %v4313 = vadd.f32 %v4027, %v4312
        %v4314 = vpop.f32.mrb[0].mxu0
        %v4315 = vadd.f32 %v4031, %v4314
        %4316 = vmatprep.mubr.bf16.mxu0 %v4010
        %4317 = vmatmul.mubr.bf16.gmra.mrb[0].mxu0 %v4009
        %v4318 = vpop.f32.mrb[0].mxu0
        %v4319 = vadd.f32 %v4027, %v4318
        %v4320 = vpop.f32.mrb[0].mxu0
        %v4321 = vadd.f32 %v4031, %v4320
        %v4322 = vpop.f32.mrb[0].mxu0
        %v4323 = vadd.f32 %v4027, %v4322
        %v4324 = vpop.f32.mrb[0].mxu0
        %v4325 = vadd.f32 %v4031, %v4324
        %4326 = vmatprep.mubr.bf16.mxu0 %v4012
        %4327 = vmatmul.mubr.bf16.gmra.mrb[0].mxu0 %v4011
        %v4328 = vpop.f32.mrb[0].mxu0
        %v4329 = vadd.f32 %v4027, %v4328
        %v4330 = vpop.f32.mrb[0].mxu0
        %v4331 = vadd.f32 %v4031, %v4330
        %v4332 = vpop.f32.mrb[0].mxu0
        %v4333 = vadd.f32 %v4027, %v4332
        %v4334 = vpop.f32.mrb[0].mxu0
        %v4335 = vadd.f32 %v4031, %v4334
        %4336 = vmatprep.mubr.bf16.mxu0 %v4014
        %4337 = vmatmul.mubr.bf16.gmra.mrb[0].mxu0 %v4013
        %v4338 = vpop.f32.mrb[0].mxu0
        %v4339 = vadd.f32 %v4027, %v4338
        %v4340 = vpop.f32.mrb[0].mxu0
        %v4341 = vadd.f32 %v4031, %v4340
        %v4342 = vpop.f32.mrb[0].mxu0
        %v4343 = vadd.f32 %v4027, %v4342
        %v4344 = vpop.f32.mrb[0].mxu0
        %v4345 = vadd.f32 %v4031, %v4344
        %4346 = vmatprep.mubr.bf16.mxu0 %v4016
        %4347 = vmatmul.mubr.bf16.gmra.mrb[0].mxu0 %v4015
        %v4348 = vpop.f32.mrb[0].mxu0
        %v4349 = vadd.f32 %v4027, %v4348
        %v4350 = vpop.f32.mrb[0].mxu0
        %v4351 = vadd.f32 %v4031, %v4350
        %v4352 = vpop.f32.mrb[0].mxu0
        %v4353 = vadd.f32 %v4027, %v4352
        %v4354 = vpop.f32.mrb[0].mxu0
        %v4355 = vadd.f32 %v4031, %v4354
        %4356 = vmatprep.mubr.bf16.mxu0 %v4018
        %4357 = vmatmul.mubr.bf16.gmra.mrb[0].mxu0 %v4017
        %v4358 = vpop.f32.mrb[0].mxu0
        %v4359 = vadd.f32 %v4027, %v4358
        %v4360 = vpop.f32.mrb[0].mxu0
        %v4361 = vadd.f32 %v4031, %v4360
        %v4362 = vpop.f32.mrb[0].mxu0
        %v4363 = vadd.f32 %v4027, %v4362
        %v4364 = vpop.f32.mrb[0].mxu0
        %v4365 = vadd.f32 %v4031, %v4364
        %4366 = vmatprep.mubr.bf16.mxu0 %v4020
        %4367 = vmatmul.mubr.bf16.gmra.mrb[0].mxu0 %v4019
        %v4368 = vpop.f32.mrb[0].mxu0
        %v4369 = vadd.f32 %v4027, %v4368
        %v4370 = vpop.f32.mrb[0].mxu0
        %v4371 = vadd.f32 %v4031, %v4370
        %v4372 = vpop.f32.mrb[0].mxu0
        %v4373 = vadd.f32 %v4027, %v4372
        %v4374 = vpop.f32.mrb[0].mxu0
        %v4375 = vadd.f32 %v4031, %v4374
        %4376 = vmatprep.mubr.bf16.mxu0 %v4022
        %4377 = vmatmul.mubr.bf16.gmra.mrb[0].mxu0 %v4021
        %v4378 = vpop.f32.mrb[0].mxu0
        %v4379 = vadd.f32 %v4027, %v4378
        %v4380 = vpop.f32.mrb[0].mxu0
        %v4381 = vadd.f32 %v4031, %v4380
        %v4382 = vpop.f32.mrb[0].mxu0
        %v4383 = vadd.f32 %v4027, %v4382
        %v4384 = vpop.f32.mrb[0].mxu0
        %v4385 = vadd.f32 %v4031, %v4384
        %4386 = vdwg.mxu0
        %v4387 = vmax.f32 %v4229, 0.0
        %v4388 = vmax.f32 %v4231, 0.0
        %v4389 = vmax.f32 %v4233, 0.0
        %v4390 = vmax.f32 %v4235, 0.0
        %v4391 = vmax.f32 %v4239, 0.0
        %v4392 = vmax.f32 %v4241, 0.0
        %v4393 = vmax.f32 %v4243, 0.0
        %v4394 = vmax.f32 %v4245, 0.0
        %v4395 = vmax.f32 %v4249, 0.0
        %v4396 = vmax.f32 %v4251, 0.0
        %v4397 = vmax.f32 %v4253, 0.0
        %v4398 = vmax.f32 %v4255, 0.0
        %v4399 = vmax.f32 %v4259, 0.0
        %v4400 = vmax.f32 %v4261, 0.0
        %v4401 = vmax.f32 %v4263, 0.0
        %v4402 = vmax.f32 %v4265, 0.0
        %v4403 = vmax.f32 %v4269, 0.0
        %v4404 = vmax.f32 %v4271, 0.0
        %v4405 = vmax.f32 %v4273, 0.0
        %v4406 = vmax.f32 %v4275, 0.0
        %v4407 = vmax.f32 %v4279, 0.0
        %v4408 = vmax.f32 %v4281, 0.0
        %v4409 = vmax.f32 %v4283, 0.0
        %v4410 = vmax.f32 %v4285, 0.0
        %v4411 = vmax.f32 %v4289, 0.0
        %v4412 = vmax.f32 %v4291, 0.0
        %v4413 = vmax.f32 %v4293, 0.0
        %v4414 = vmax.f32 %v4295, 0.0
        %v4415 = vmax.f32 %v4299, 0.0
        %v4416 = vmax.f32 %v4301, 0.0
        %v4417 = vmax.f32 %v4303, 0.0
        %v4418 = vmax.f32 %v4305, 0.0
        %v4419 = vmax.f32 %v4309, 0.0
        %v4420 = vmax.f32 %v4311, 0.0
        %v4421 = vmax.f32 %v4313, 0.0
        %v4422 = vmax.f32 %v4315, 0.0
        %v4423 = vmax.f32 %v4319, 0.0
        %v4424 = vmax.f32 %v4321, 0.0
        %v4425 = vmax.f32 %v4323, 0.0
        %v4426 = vmax.f32 %v4325, 0.0
        %v4427 = vmax.f32 %v4329, 0.0
        %v4428 = vmax.f32 %v4331, 0.0
        %v4429 = vmax.f32 %v4333, 0.0
        %v4430 = vmax.f32 %v4335, 0.0
        %v4431 = vmax.f32 %v4339, 0.0
        %v4432 = vmax.f32 %v4341, 0.0
        %v4433 = vmax.f32 %v4343, 0.0
        %v4434 = vmax.f32 %v4345, 0.0
        %v4435 = vmax.f32 %v4349, 0.0
        %v4436 = vmax.f32 %v4351, 0.0
        %v4437 = vmax.f32 %v4353, 0.0
        %v4438 = vmax.f32 %v4355, 0.0
        %v4439 = vmax.f32 %v4359, 0.0
        %v4440 = vmax.f32 %v4361, 0.0
        %v4441 = vmax.f32 %v4363, 0.0
        %v4442 = vmax.f32 %v4365, 0.0
        %v4443 = vmax.f32 %v4369, 0.0
        %v4444 = vmax.f32 %v4371, 0.0
        %v4445 = vmax.f32 %v4373, 0.0
        %v4446 = vmax.f32 %v4375, 0.0
        %v4447 = vmax.f32 %v4379, 0.0
        %v4448 = vmax.f32 %v4381, 0.0
        %v4449 = vmax.f32 %v4383, 0.0
        %v4450 = vmax.f32 %v4385, 0.0
        %v4451 = vld [vmem:[#allocation17] sm:$0xff]
        %v4452 = vld [vmem:[#allocation17 + $0x8] sm:$0xff]
        %v4453 = vld [vmem:[#allocation17 + $0x10] sm:$0xff]
        %v4454 = vld [vmem:[#allocation17 + $0x18] sm:$0xff]
        %v4455 = vld [vmem:[#allocation17 + $0x20] sm:$0xff]
        %v4456 = vld [vmem:[#allocation17 + $0x28] sm:$0xff]
        %v4457 = vld [vmem:[#allocation17 + $0x30] sm:$0xff]
        %v4458 = vld [vmem:[#allocation17 + $0x38] sm:$0xff]
        %v4459 = vld [vmem:[#allocation17 + $0x40] sm:$0xff]
        %v4460 = vld [vmem:[#allocation17 + $0x48] sm:$0xff]
        %v4461 = vld [vmem:[#allocation17 + $0x50] sm:$0xff]
        %v4462 = vld [vmem:[#allocation17 + $0x58] sm:$0xff]
        %v4463 = vld [vmem:[#allocation17 + $0x60] sm:$0xff]
        %v4464 = vld [vmem:[#allocation17 + $0x68] sm:$0xff]
        %v4465 = vld [vmem:[#allocation17 + $0x70] sm:$0xff]
        %v4466 = vld [vmem:[#allocation17 + $0x78] sm:$0xff]
        %v4467 = vld [vmem:[#allocation17 + $0x80] sm:$0xff]
        %v4468 = vld [vmem:[#allocation17 + $0x88] sm:$0xff]
        %v4469 = vld [vmem:[#allocation17 + $0x90] sm:$0xff]
        %v4470 = vld [vmem:[#allocation17 + $0x98] sm:$0xff]
        %v4471 = vld [vmem:[#allocation17 + $0xa0] sm:$0xff]
        %v4472 = vld [vmem:[#allocation17 + $0xa8] sm:$0xff]
        %v4473 = vld [vmem:[#allocation17 + $0xb0] sm:$0xff]
        %v4474 = vld [vmem:[#allocation17 + $0xb8] sm:$0xff]
        %v4475 = vld [vmem:[#allocation17 + $0xc0] sm:$0xff]
        %v4476 = vld [vmem:[#allocation17 + $0xc8] sm:$0xff]
        %v4477 = vld [vmem:[#allocation17 + $0xd0] sm:$0xff]
        %v4478 = vld [vmem:[#allocation17 + $0xd8] sm:$0xff]
        %v4479 = vld [vmem:[#allocation17 + $0xe0] sm:$0xff]
        %v4480 = vld [vmem:[#allocation17 + $0xe8] sm:$0xff]
        %v4481 = vld [vmem:[#allocation17 + $0xf0] sm:$0xff]
        %v4482 = vld [vmem:[#allocation17 + $0xf8] sm:$0xff]
        %v4483 = vld [vmem:[%s31] sm:$0x3]
        %v4484 = vpack.c.bf16 %v4389, %v4387
        %v4485 = vpack.c.bf16 %v4390, %v4388
        %v4486 = vpack.c.bf16 %v4393, %v4391
        %v4487 = vpack.c.bf16 %v4394, %v4392
        %v4488 = vpack.c.bf16 %v4397, %v4395
        %v4489 = vpack.c.bf16 %v4398, %v4396
        %v4490 = vpack.c.bf16 %v4401, %v4399
        %v4491 = vpack.c.bf16 %v4402, %v4400
        %v4492 = vpack.c.bf16 %v4405, %v4403
        %v4493 = vpack.c.bf16 %v4406, %v4404
        %v4494 = vpack.c.bf16 %v4409, %v4407
        %v4495 = vpack.c.bf16 %v4410, %v4408
        %v4496 = vpack.c.bf16 %v4413, %v4411
        %v4497 = vpack.c.bf16 %v4414, %v4412
        %v4498 = vpack.c.bf16 %v4417, %v4415
        %v4499 = vpack.c.bf16 %v4418, %v4416
        %v4500 = vpack.c.bf16 %v4421, %v4419
        %v4501 = vpack.c.bf16 %v4422, %v4420
        %v4502 = vpack.c.bf16 %v4425, %v4423
        %v4503 = vpack.c.bf16 %v4426, %v4424
        %v4504 = vpack.c.bf16 %v4429, %v4427
        %v4505 = vpack.c.bf16 %v4430, %v4428
        %v4506 = vpack.c.bf16 %v4433, %v4431
        %v4507 = vpack.c.bf16 %v4434, %v4432
        %v4508 = vpack.c.bf16 %v4437, %v4435
        %v4509 = vpack.c.bf16 %v4438, %v4436
        %v4510 = vpack.c.bf16 %v4441, %v4439
        %v4511 = vpack.c.bf16 %v4442, %v4440
        %v4512 = vpack.c.bf16 %v4445, %v4443
        %v4513 = vpack.c.bf16 %v4446, %v4444
        %v4514 = vpack.c.bf16 %v4449, %v4447
        %v4515 = vpack.c.bf16 %v4450, %v4448
        %v4517 = vlaneseq
        %v4518 = vshrl.u32 %v4517, 7
        %v4519 = vsub.s32 0, %v4518
        %v4520 = vrot.slane %v4483, %v4519
        %v4521 = vlaneseq
        %v4522 = vshrl.u32 %v4521, 7
        %v4523 = vsub.s32 1, %v4522
        %v4524 = vrot.slane %v4483, %v4523
        %v4559 = vunpack.c.l.b16 %v4451
        %v4560 = vunpack.c.h.b16 %v4451
        %v4561 = vunpack.c.l.b16 %v4452
        %v4562 = vunpack.c.h.b16 %v4452
        %v4563 = vunpack.c.l.b16 %v4453
        %v4564 = vunpack.c.h.b16 %v4453
        %v4565 = vunpack.c.l.b16 %v4454
        %v4566 = vunpack.c.h.b16 %v4454
        %v4567 = vunpack.c.l.b16 %v4455
        %v4568 = vunpack.c.h.b16 %v4455
        %v4569 = vunpack.c.l.b16 %v4456
        %v4570 = vunpack.c.h.b16 %v4456
        %v4571 = vunpack.c.l.b16 %v4457
        %v4572 = vunpack.c.h.b16 %v4457
        %v4573 = vunpack.c.l.b16 %v4458
        %v4574 = vunpack.c.h.b16 %v4458
        %v4575 = vunpack.c.l.b16 %v4459
        %v4576 = vunpack.c.h.b16 %v4459
        %v4577 = vunpack.c.l.b16 %v4460
        %v4578 = vunpack.c.h.b16 %v4460
        %v4579 = vunpack.c.l.b16 %v4461
        %v4580 = vunpack.c.h.b16 %v4461
        %v4581 = vunpack.c.l.b16 %v4462
        %v4582 = vunpack.c.h.b16 %v4462
        %v4583 = vunpack.c.l.b16 %v4463
        %v4584 = vunpack.c.h.b16 %v4463
        %v4585 = vunpack.c.l.b16 %v4464
        %v4586 = vunpack.c.h.b16 %v4464
        %v4587 = vunpack.c.l.b16 %v4465
        %v4588 = vunpack.c.h.b16 %v4465
        %v4589 = vunpack.c.l.b16 %v4466
        %v4590 = vunpack.c.h.b16 %v4466
        %v4591 = vunpack.c.l.b16 %v4467
        %v4592 = vunpack.c.h.b16 %v4467
        %v4593 = vunpack.c.l.b16 %v4468
        %v4594 = vunpack.c.h.b16 %v4468
        %v4595 = vunpack.c.l.b16 %v4469
        %v4596 = vunpack.c.h.b16 %v4469
        %v4597 = vunpack.c.l.b16 %v4470
        %v4598 = vunpack.c.h.b16 %v4470
        %v4599 = vunpack.c.l.b16 %v4471
        %v4600 = vunpack.c.h.b16 %v4471
        %v4601 = vunpack.c.l.b16 %v4472
        %v4602 = vunpack.c.h.b16 %v4472
        %v4603 = vunpack.c.l.b16 %v4473
        %v4604 = vunpack.c.h.b16 %v4473
        %v4605 = vunpack.c.l.b16 %v4474
        %v4606 = vunpack.c.h.b16 %v4474
        %v4607 = vunpack.c.l.b16 %v4475
        %v4608 = vunpack.c.h.b16 %v4475
        %v4609 = vunpack.c.l.b16 %v4476
        %v4610 = vunpack.c.h.b16 %v4476
        %v4611 = vunpack.c.l.b16 %v4477
        %v4612 = vunpack.c.h.b16 %v4477
        %v4613 = vunpack.c.l.b16 %v4478
        %v4614 = vunpack.c.h.b16 %v4478
        %v4615 = vunpack.c.l.b16 %v4479
        %v4616 = vunpack.c.h.b16 %v4479
        %v4617 = vunpack.c.l.b16 %v4480
        %v4618 = vunpack.c.h.b16 %v4480
        %v4619 = vunpack.c.l.b16 %v4481
        %v4620 = vunpack.c.h.b16 %v4481
        %v4621 = vunpack.c.l.b16 %v4482
        %v4622 = vunpack.c.h.b16 %v4482
        %v4623 = vpack.c.b16 %v4561, %v4559
        %v4624 = vpack.c.b16 %v4562, %v4560
        %v4625 = vpack.c.b16 %v4565, %v4563
        %v4626 = vpack.c.b16 %v4566, %v4564
        %v4627 = vpack.c.b16 %v4569, %v4567
        %v4628 = vpack.c.b16 %v4570, %v4568
        %v4629 = vpack.c.b16 %v4573, %v4571
        %v4630 = vpack.c.b16 %v4574, %v4572
        %v4631 = vpack.c.b16 %v4577, %v4575
        %v4632 = vpack.c.b16 %v4578, %v4576
        %v4633 = vpack.c.b16 %v4581, %v4579
        %v4634 = vpack.c.b16 %v4582, %v4580
        %v4635 = vpack.c.b16 %v4585, %v4583
        %v4636 = vpack.c.b16 %v4586, %v4584
        %v4637 = vpack.c.b16 %v4589, %v4587
        %v4638 = vpack.c.b16 %v4590, %v4588
        %v4639 = vpack.c.b16 %v4593, %v4591
        %v4640 = vpack.c.b16 %v4594, %v4592
        %v4641 = vpack.c.b16 %v4597, %v4595
        %v4642 = vpack.c.b16 %v4598, %v4596
        %v4643 = vpack.c.b16 %v4601, %v4599
        %v4644 = vpack.c.b16 %v4602, %v4600
        %v4645 = vpack.c.b16 %v4605, %v4603
        %v4646 = vpack.c.b16 %v4606, %v4604
        %v4647 = vpack.c.b16 %v4609, %v4607
        %v4648 = vpack.c.b16 %v4610, %v4608
        %v4649 = vpack.c.b16 %v4613, %v4611
        %v4650 = vpack.c.b16 %v4614, %v4612
        %v4651 = vpack.c.b16 %v4617, %v4615
        %v4652 = vpack.c.b16 %v4618, %v4616
        %v4653 = vpack.c.b16 %v4621, %v4619
        %v4654 = vpack.c.b16 %v4622, %v4620
        %4687 = vmatprep.subr.bf16.mxu0 %v4624
        %4688 = vmatpush1.bf16.msra.mxu0 %v4623
        %4689 = vmatprep.subr.bf16.mxu0 %v4626
        %4690 = vmatpush1.bf16.msra.mxu0 %v4625
        %4691 = vmatprep.subr.bf16.mxu0 %v4628
        %4692 = vmatpush1.bf16.msra.mxu0 %v4627
        %4693 = vmatprep.subr.bf16.mxu0 %v4630
        %4694 = vmatpush1.bf16.msra.mxu0 %v4629
        %4695 = vmatprep.subr.bf16.mxu0 %v4632
        %4696 = vmatpush1.bf16.msra.mxu0 %v4631
        %4697 = vmatprep.subr.bf16.mxu0 %v4634
        %4698 = vmatpush1.bf16.msra.mxu0 %v4633
        %4699 = vmatprep.subr.bf16.mxu0 %v4636
        %4700 = vmatpush1.bf16.msra.mxu0 %v4635
        %4701 = vmatprep.subr.bf16.mxu0 %v4638
        %4702 = vmatpush1.bf16.msra.mxu0 %v4637
        %4703 = vmatprep.subr.bf16.mxu0 %v4640
        %4704 = vmatpush1.bf16.msra.mxu0 %v4639
        %4705 = vmatprep.subr.bf16.mxu0 %v4642
        %4706 = vmatpush1.bf16.msra.mxu0 %v4641
        %4707 = vmatprep.subr.bf16.mxu0 %v4644
        %4708 = vmatpush1.bf16.msra.mxu0 %v4643
        %4709 = vmatprep.subr.bf16.mxu0 %v4646
        %4710 = vmatpush1.bf16.msra.mxu0 %v4645
        %4711 = vmatprep.subr.bf16.mxu0 %v4648
        %4712 = vmatpush1.bf16.msra.mxu0 %v4647
        %4713 = vmatprep.subr.bf16.mxu0 %v4650
        %4714 = vmatpush1.bf16.msra.mxu0 %v4649
        %4715 = vmatprep.subr.bf16.mxu0 %v4652
        %4716 = vmatpush1.bf16.msra.mxu0 %v4651
        %4717 = vmatprep.subr.bf16.mxu0 %v4654
        %4718 = vmatpush1.bf16.msra.mxu0 %v4653
        %4719 = vmatprep.mubr.bf16.mxu0 %v4485
        %4720 = vmatmul.mubr.bf16.gmra.mrb[0].mxu0 %v4484
        %v4721 = vpop.f32.mrb[0].mxu0
        %v4722 = vadd.f32 %v4520, %v4721
        %v4723 = vpop.f32.mrb[0].mxu0
        %v4724 = vadd.f32 %v4524, %v4723
        %v4725 = vpop.f32.mrb[0].mxu0
        %v4726 = vadd.f32 %v4520, %v4725
        %v4727 = vpop.f32.mrb[0].mxu0
        %v4728 = vadd.f32 %v4524, %v4727
        %4729 = vmatprep.mubr.bf16.mxu0 %v4487
        %4730 = vmatmul.mubr.bf16.gmra.mrb[0].mxu0 %v4486
        %v4731 = vpop.f32.mrb[0].mxu0
        %v4732 = vadd.f32 %v4520, %v4731
        %v4733 = vpop.f32.mrb[0].mxu0
        %v4734 = vadd.f32 %v4524, %v4733
        %v4735 = vpop.f32.mrb[0].mxu0
        %v4736 = vadd.f32 %v4520, %v4735
        %v4737 = vpop.f32.mrb[0].mxu0
        %v4738 = vadd.f32 %v4524, %v4737
        %4739 = vmatprep.mubr.bf16.mxu0 %v4489
        %4740 = vmatmul.mubr.bf16.gmra.mrb[0].mxu0 %v4488
        %v4741 = vpop.f32.mrb[0].mxu0
        %v4742 = vadd.f32 %v4520, %v4741
        %v4743 = vpop.f32.mrb[0].mxu0
        %v4744 = vadd.f32 %v4524, %v4743
        %v4745 = vpop.f32.mrb[0].mxu0
        %v4746 = vadd.f32 %v4520, %v4745
        %v4747 = vpop.f32.mrb[0].mxu0
        %v4748 = vadd.f32 %v4524, %v4747
        %4749 = vmatprep.mubr.bf16.mxu0 %v4491
        %4750 = vmatmul.mubr.bf16.gmra.mrb[0].mxu0 %v4490
        %v4751 = vpop.f32.mrb[0].mxu0
        %v4752 = vadd.f32 %v4520, %v4751
        %v4753 = vpop.f32.mrb[0].mxu0
        %v4754 = vadd.f32 %v4524, %v4753
        %v4755 = vpop.f32.mrb[0].mxu0
        %v4756 = vadd.f32 %v4520, %v4755
        %v4757 = vpop.f32.mrb[0].mxu0
        %v4758 = vadd.f32 %v4524, %v4757
        %4759 = vmatprep.mubr.bf16.mxu0 %v4493
        %4760 = vmatmul.mubr.bf16.gmra.mrb[0].mxu0 %v4492
        %v4761 = vpop.f32.mrb[0].mxu0
        %v4762 = vadd.f32 %v4520, %v4761
        %v4763 = vpop.f32.mrb[0].mxu0
        %v4764 = vadd.f32 %v4524, %v4763
        %v4765 = vpop.f32.mrb[0].mxu0
        %v4766 = vadd.f32 %v4520, %v4765
        %v4767 = vpop.f32.mrb[0].mxu0
        %v4768 = vadd.f32 %v4524, %v4767
        %4769 = vmatprep.mubr.bf16.mxu0 %v4495
        %4770 = vmatmul.mubr.bf16.gmra.mrb[0].mxu0 %v4494
        %v4771 = vpop.f32.mrb[0].mxu0
        %v4772 = vadd.f32 %v4520, %v4771
        %v4773 = vpop.f32.mrb[0].mxu0
        %v4774 = vadd.f32 %v4524, %v4773
        %v4775 = vpop.f32.mrb[0].mxu0
        %v4776 = vadd.f32 %v4520, %v4775
        %v4777 = vpop.f32.mrb[0].mxu0
        %v4778 = vadd.f32 %v4524, %v4777
        %4779 = vmatprep.mubr.bf16.mxu0 %v4497
        %4780 = vmatmul.mubr.bf16.gmra.mrb[0].mxu0 %v4496
        %v4781 = vpop.f32.mrb[0].mxu0
        %v4782 = vadd.f32 %v4520, %v4781
        %v4783 = vpop.f32.mrb[0].mxu0
        %v4784 = vadd.f32 %v4524, %v4783
        %v4785 = vpop.f32.mrb[0].mxu0
        %v4786 = vadd.f32 %v4520, %v4785
        %v4787 = vpop.f32.mrb[0].mxu0
        %v4788 = vadd.f32 %v4524, %v4787
        %4789 = vmatprep.mubr.bf16.mxu0 %v4499
        %4790 = vmatmul.mubr.bf16.gmra.mrb[0].mxu0 %v4498
        %v4791 = vpop.f32.mrb[0].mxu0
        %v4792 = vadd.f32 %v4520, %v4791
        %v4793 = vpop.f32.mrb[0].mxu0
        %v4794 = vadd.f32 %v4524, %v4793
        %v4795 = vpop.f32.mrb[0].mxu0
        %v4796 = vadd.f32 %v4520, %v4795
        %v4797 = vpop.f32.mrb[0].mxu0
        %v4798 = vadd.f32 %v4524, %v4797
        %4799 = vmatprep.mubr.bf16.mxu0 %v4501
        %4800 = vmatmul.mubr.bf16.gmra.mrb[0].mxu0 %v4500
        %v4801 = vpop.f32.mrb[0].mxu0
        %v4802 = vadd.f32 %v4520, %v4801
        %v4803 = vpop.f32.mrb[0].mxu0
        %v4804 = vadd.f32 %v4524, %v4803
        %v4805 = vpop.f32.mrb[0].mxu0
        %v4806 = vadd.f32 %v4520, %v4805
        %v4807 = vpop.f32.mrb[0].mxu0
        %v4808 = vadd.f32 %v4524, %v4807
        %4809 = vmatprep.mubr.bf16.mxu0 %v4503
        %4810 = vmatmul.mubr.bf16.gmra.mrb[0].mxu0 %v4502
        %v4811 = vpop.f32.mrb[0].mxu0
        %v4812 = vadd.f32 %v4520, %v4811
        %v4813 = vpop.f32.mrb[0].mxu0
        %v4814 = vadd.f32 %v4524, %v4813
        %v4815 = vpop.f32.mrb[0].mxu0
        %v4816 = vadd.f32 %v4520, %v4815
        %v4817 = vpop.f32.mrb[0].mxu0
        %v4818 = vadd.f32 %v4524, %v4817
        %4819 = vmatprep.mubr.bf16.mxu0 %v4505
        %4820 = vmatmul.mubr.bf16.gmra.mrb[0].mxu0 %v4504
        %v4821 = vpop.f32.mrb[0].mxu0
        %v4822 = vadd.f32 %v4520, %v4821
        %v4823 = vpop.f32.mrb[0].mxu0
        %v4824 = vadd.f32 %v4524, %v4823
        %v4825 = vpop.f32.mrb[0].mxu0
        %v4826 = vadd.f32 %v4520, %v4825
        %v4827 = vpop.f32.mrb[0].mxu0
        %v4828 = vadd.f32 %v4524, %v4827
        %4829 = vmatprep.mubr.bf16.mxu0 %v4507
        %4830 = vmatmul.mubr.bf16.gmra.mrb[0].mxu0 %v4506
        %v4831 = vpop.f32.mrb[0].mxu0
        %v4832 = vadd.f32 %v4520, %v4831
        %v4833 = vpop.f32.mrb[0].mxu0
        %v4834 = vadd.f32 %v4524, %v4833
        %v4835 = vpop.f32.mrb[0].mxu0
        %v4836 = vadd.f32 %v4520, %v4835
        %v4837 = vpop.f32.mrb[0].mxu0
        %v4838 = vadd.f32 %v4524, %v4837
        %4839 = vmatprep.mubr.bf16.mxu0 %v4509
        %4840 = vmatmul.mubr.bf16.gmra.mrb[0].mxu0 %v4508
        %v4841 = vpop.f32.mrb[0].mxu0
        %v4842 = vadd.f32 %v4520, %v4841
        %v4843 = vpop.f32.mrb[0].mxu0
        %v4844 = vadd.f32 %v4524, %v4843
        %v4845 = vpop.f32.mrb[0].mxu0
        %v4846 = vadd.f32 %v4520, %v4845
        %v4847 = vpop.f32.mrb[0].mxu0
        %v4848 = vadd.f32 %v4524, %v4847
        %4849 = vmatprep.mubr.bf16.mxu0 %v4511
        %4850 = vmatmul.mubr.bf16.gmra.mrb[0].mxu0 %v4510
        %v4851 = vpop.f32.mrb[0].mxu0
        %v4852 = vadd.f32 %v4520, %v4851
        %v4853 = vpop.f32.mrb[0].mxu0
        %v4854 = vadd.f32 %v4524, %v4853
        %v4855 = vpop.f32.mrb[0].mxu0
        %v4856 = vadd.f32 %v4520, %v4855
        %v4857 = vpop.f32.mrb[0].mxu0
        %v4858 = vadd.f32 %v4524, %v4857
        %4859 = vmatprep.mubr.bf16.mxu0 %v4513
        %4860 = vmatmul.mubr.bf16.gmra.mrb[0].mxu0 %v4512
        %v4861 = vpop.f32.mrb[0].mxu0
        %v4862 = vadd.f32 %v4520, %v4861
        %v4863 = vpop.f32.mrb[0].mxu0
        %v4864 = vadd.f32 %v4524, %v4863
        %v4865 = vpop.f32.mrb[0].mxu0
        %v4866 = vadd.f32 %v4520, %v4865
        %v4867 = vpop.f32.mrb[0].mxu0
        %v4868 = vadd.f32 %v4524, %v4867
        %4869 = vmatprep.mubr.bf16.mxu0 %v4515
        %4870 = vmatmul.mubr.bf16.gmra.mrb[0].mxu0 %v4514
        %v4871 = vpop.f32.mrb[0].mxu0
        %v4872 = vadd.f32 %v4520, %v4871
        %v4873 = vpop.f32.mrb[0].mxu0
        %v4874 = vadd.f32 %v4524, %v4873
        %v4875 = vpop.f32.mrb[0].mxu0
        %v4876 = vadd.f32 %v4520, %v4875
        %v4877 = vpop.f32.mrb[0].mxu0
        %v4878 = vadd.f32 %v4524, %v4877
        %4879 = vdwg.mxu0
        %v4880 = vmax.f32 %v4722, 0.0
        %v4881 = vmax.f32 %v4724, 0.0
        %v4882 = vmax.f32 %v4726, 0.0
        %v4883 = vmax.f32 %v4728, 0.0
        %v4884 = vmax.f32 %v4732, 0.0
        %v4885 = vmax.f32 %v4734, 0.0
        %v4886 = vmax.f32 %v4736, 0.0
        %v4887 = vmax.f32 %v4738, 0.0
        %v4888 = vmax.f32 %v4742, 0.0
        %v4889 = vmax.f32 %v4744, 0.0
        %v4890 = vmax.f32 %v4746, 0.0
        %v4891 = vmax.f32 %v4748, 0.0
        %v4892 = vmax.f32 %v4752, 0.0
        %v4893 = vmax.f32 %v4754, 0.0
        %v4894 = vmax.f32 %v4756, 0.0
        %v4895 = vmax.f32 %v4758, 0.0
        %v4896 = vmax.f32 %v4762, 0.0
        %v4897 = vmax.f32 %v4764, 0.0
        %v4898 = vmax.f32 %v4766, 0.0
        %v4899 = vmax.f32 %v4768, 0.0
        %v4900 = vmax.f32 %v4772, 0.0
        %v4901 = vmax.f32 %v4774, 0.0
        %v4902 = vmax.f32 %v4776, 0.0
        %v4903 = vmax.f32 %v4778, 0.0
        %v4904 = vmax.f32 %v4782, 0.0
        %v4905 = vmax.f32 %v4784, 0.0
        %v4906 = vmax.f32 %v4786, 0.0
        %v4907 = vmax.f32 %v4788, 0.0
        %v4908 = vmax.f32 %v4792, 0.0
        %v4909 = vmax.f32 %v4794, 0.0
        %v4910 = vmax.f32 %v4796, 0.0
        %v4911 = vmax.f32 %v4798, 0.0
        %v4912 = vmax.f32 %v4802, 0.0
        %v4913 = vmax.f32 %v4804, 0.0
        %v4914 = vmax.f32 %v4806, 0.0
        %v4915 = vmax.f32 %v4808, 0.0
        %v4916 = vmax.f32 %v4812, 0.0
        %v4917 = vmax.f32 %v4814, 0.0
        %v4918 = vmax.f32 %v4816, 0.0
        %v4919 = vmax.f32 %v4818, 0.0
        %v4920 = vmax.f32 %v4822, 0.0
        %v4921 = vmax.f32 %v4824, 0.0
        %v4922 = vmax.f32 %v4826, 0.0
        %v4923 = vmax.f32 %v4828, 0.0
        %v4924 = vmax.f32 %v4832, 0.0
        %v4925 = vmax.f32 %v4834, 0.0
        %v4926 = vmax.f32 %v4836, 0.0
        %v4927 = vmax.f32 %v4838, 0.0
        %v4928 = vmax.f32 %v4842, 0.0
        %v4929 = vmax.f32 %v4844, 0.0
        %v4930 = vmax.f32 %v4846, 0.0
        %v4931 = vmax.f32 %v4848, 0.0
        %v4932 = vmax.f32 %v4852, 0.0
        %v4933 = vmax.f32 %v4854, 0.0
        %v4934 = vmax.f32 %v4856, 0.0
        %v4935 = vmax.f32 %v4858, 0.0
        %v4936 = vmax.f32 %v4862, 0.0
        %v4937 = vmax.f32 %v4864, 0.0
        %v4938 = vmax.f32 %v4866, 0.0
        %v4939 = vmax.f32 %v4868, 0.0
        %v4940 = vmax.f32 %v4872, 0.0
        %v4941 = vmax.f32 %v4874, 0.0
        %v4942 = vmax.f32 %v4876, 0.0
        %v4943 = vmax.f32 %v4878, 0.0
        %v4944 = vld [vmem:[#allocation19] sm:$0xff]
        %v4945 = vld [vmem:[#allocation19 + $0x8] sm:$0xff]
        %v4946 = vld [vmem:[#allocation19 + $0x10] sm:$0xff]
        %v4947 = vld [vmem:[#allocation19 + $0x18] sm:$0xff]
        %v4948 = vld [vmem:[#allocation19 + $0x20] sm:$0xff]
        %v4949 = vld [vmem:[#allocation19 + $0x28] sm:$0xff]
        %v4950 = vld [vmem:[#allocation19 + $0x30] sm:$0xff]
        %v4951 = vld [vmem:[#allocation19 + $0x38] sm:$0xff]
        %v4952 = vld [vmem:[#allocation19 + $0x40] sm:$0xff]
        %v4953 = vld [vmem:[#allocation19 + $0x48] sm:$0xff]
        %v4954 = vld [vmem:[#allocation19 + $0x50] sm:$0xff]
        %v4955 = vld [vmem:[#allocation19 + $0x58] sm:$0xff]
        %v4956 = vld [vmem:[#allocation19 + $0x60] sm:$0xff]
        %v4957 = vld [vmem:[#allocation19 + $0x68] sm:$0xff]
        %v4958 = vld [vmem:[#allocation19 + $0x70] sm:$0xff]
        %v4959 = vld [vmem:[#allocation19 + $0x78] sm:$0xff]
        %v4960 = vld [vmem:[#allocation19 + $0x80] sm:$0xff]
        %v4961 = vld [vmem:[#allocation19 + $0x88] sm:$0xff]
        %v4962 = vld [vmem:[#allocation19 + $0x90] sm:$0xff]
        %v4963 = vld [vmem:[#allocation19 + $0x98] sm:$0xff]
        %v4964 = vld [vmem:[#allocation19 + $0xa0] sm:$0xff]
        %v4965 = vld [vmem:[#allocation19 + $0xa8] sm:$0xff]
        %v4966 = vld [vmem:[#allocation19 + $0xb0] sm:$0xff]
        %v4967 = vld [vmem:[#allocation19 + $0xb8] sm:$0xff]
        %v4968 = vld [vmem:[#allocation19 + $0xc0] sm:$0xff]
        %v4969 = vld [vmem:[#allocation19 + $0xc8] sm:$0xff]
        %v4970 = vld [vmem:[#allocation19 + $0xd0] sm:$0xff]
        %v4971 = vld [vmem:[#allocation19 + $0xd8] sm:$0xff]
        %v4972 = vld [vmem:[#allocation19 + $0xe0] sm:$0xff]
        %v4973 = vld [vmem:[#allocation19 + $0xe8] sm:$0xff]
        %v4974 = vld [vmem:[#allocation19 + $0xf0] sm:$0xff]
        %v4975 = vld [vmem:[#allocation19 + $0xf8] sm:$0xff]
        %v4976 = vld [vmem:[%s35] sm:$0x3]
        %v4977 = vpack.c.bf16 %v4882, %v4880
        %v4978 = vpack.c.bf16 %v4883, %v4881
        %v4979 = vpack.c.bf16 %v4886, %v4884
        %v4980 = vpack.c.bf16 %v4887, %v4885
        %v4981 = vpack.c.bf16 %v4890, %v4888
        %v4982 = vpack.c.bf16 %v4891, %v4889
        %v4983 = vpack.c.bf16 %v4894, %v4892
        %v4984 = vpack.c.bf16 %v4895, %v4893
        %v4985 = vpack.c.bf16 %v4898, %v4896
        %v4986 = vpack.c.bf16 %v4899, %v4897
        %v4987 = vpack.c.bf16 %v4902, %v4900
        %v4988 = vpack.c.bf16 %v4903, %v4901
        %v4989 = vpack.c.bf16 %v4906, %v4904
        %v4990 = vpack.c.bf16 %v4907, %v4905
        %v4991 = vpack.c.bf16 %v4910, %v4908
        %v4992 = vpack.c.bf16 %v4911, %v4909
        %v4993 = vpack.c.bf16 %v4914, %v4912
        %v4994 = vpack.c.bf16 %v4915, %v4913
        %v4995 = vpack.c.bf16 %v4918, %v4916
        %v4996 = vpack.c.bf16 %v4919, %v4917
        %v4997 = vpack.c.bf16 %v4922, %v4920
        %v4998 = vpack.c.bf16 %v4923, %v4921
        %v4999 = vpack.c.bf16 %v4926, %v4924
        %v5000 = vpack.c.bf16 %v4927, %v4925
        %v5001 = vpack.c.bf16 %v4930, %v4928
        %v5002 = vpack.c.bf16 %v4931, %v4929
        %v5003 = vpack.c.bf16 %v4934, %v4932
        %v5004 = vpack.c.bf16 %v4935, %v4933
        %v5005 = vpack.c.bf16 %v4938, %v4936
        %v5006 = vpack.c.bf16 %v4939, %v4937
        %v5007 = vpack.c.bf16 %v4942, %v4940
        %v5008 = vpack.c.bf16 %v4943, %v4941
        %v5010 = vlaneseq
        %v5011 = vshrl.u32 %v5010, 7
        %v5012 = vsub.s32 0, %v5011
        %v5013 = vrot.slane %v4976, %v5012
        %v5014 = vlaneseq
        %v5015 = vshrl.u32 %v5014, 7
        %v5016 = vsub.s32 1, %v5015
        %v5017 = vrot.slane %v4976, %v5016
        %v5052 = vunpack.c.l.b16 %v4944
        %v5053 = vunpack.c.h.b16 %v4944
        %v5054 = vunpack.c.l.b16 %v4945
        %v5055 = vunpack.c.h.b16 %v4945
        %v5056 = vunpack.c.l.b16 %v4946
        %v5057 = vunpack.c.h.b16 %v4946
        %v5058 = vunpack.c.l.b16 %v4947
        %v5059 = vunpack.c.h.b16 %v4947
        %v5060 = vunpack.c.l.b16 %v4948
        %v5061 = vunpack.c.h.b16 %v4948
        %v5062 = vunpack.c.l.b16 %v4949
        %v5063 = vunpack.c.h.b16 %v4949
        %v5064 = vunpack.c.l.b16 %v4950
        %v5065 = vunpack.c.h.b16 %v4950
        %v5066 = vunpack.c.l.b16 %v4951
        %v5067 = vunpack.c.h.b16 %v4951
        %v5068 = vunpack.c.l.b16 %v4952
        %v5069 = vunpack.c.h.b16 %v4952
        %v5070 = vunpack.c.l.b16 %v4953
        %v5071 = vunpack.c.h.b16 %v4953
        %v5072 = vunpack.c.l.b16 %v4954
        %v5073 = vunpack.c.h.b16 %v4954
        %v5074 = vunpack.c.l.b16 %v4955
        %v5075 = vunpack.c.h.b16 %v4955
        %v5076 = vunpack.c.l.b16 %v4956
        %v5077 = vunpack.c.h.b16 %v4956
        %v5078 = vunpack.c.l.b16 %v4957
        %v5079 = vunpack.c.h.b16 %v4957
        %v5080 = vunpack.c.l.b16 %v4958
        %v5081 = vunpack.c.h.b16 %v4958
        %v5082 = vunpack.c.l.b16 %v4959
        %v5083 = vunpack.c.h.b16 %v4959
        %v5084 = vunpack.c.l.b16 %v4960
        %v5085 = vunpack.c.h.b16 %v4960
        %v5086 = vunpack.c.l.b16 %v4961
        %v5087 = vunpack.c.h.b16 %v4961
        %v5088 = vunpack.c.l.b16 %v4962
        %v5089 = vunpack.c.h.b16 %v4962
        %v5090 = vunpack.c.l.b16 %v4963
        %v5091 = vunpack.c.h.b16 %v4963
        %v5092 = vunpack.c.l.b16 %v4964
        %v5093 = vunpack.c.h.b16 %v4964
        %v5094 = vunpack.c.l.b16 %v4965
        %v5095 = vunpack.c.h.b16 %v4965
        %v5096 = vunpack.c.l.b16 %v4966
        %v5097 = vunpack.c.h.b16 %v4966
        %v5098 = vunpack.c.l.b16 %v4967
        %v5099 = vunpack.c.h.b16 %v4967
        %v5100 = vunpack.c.l.b16 %v4968
        %v5101 = vunpack.c.h.b16 %v4968
        %v5102 = vunpack.c.l.b16 %v4969
        %v5103 = vunpack.c.h.b16 %v4969
        %v5104 = vunpack.c.l.b16 %v4970
        %v5105 = vunpack.c.h.b16 %v4970
        %v5106 = vunpack.c.l.b16 %v4971
        %v5107 = vunpack.c.h.b16 %v4971
        %v5108 = vunpack.c.l.b16 %v4972
        %v5109 = vunpack.c.h.b16 %v4972
        %v5110 = vunpack.c.l.b16 %v4973
        %v5111 = vunpack.c.h.b16 %v4973
        %v5112 = vunpack.c.l.b16 %v4974
        %v5113 = vunpack.c.h.b16 %v4974
        %v5114 = vunpack.c.l.b16 %v4975
        %v5115 = vunpack.c.h.b16 %v4975
        %v5116 = vpack.c.b16 %v5054, %v5052
        %v5117 = vpack.c.b16 %v5055, %v5053
        %v5118 = vpack.c.b16 %v5058, %v5056
        %v5119 = vpack.c.b16 %v5059, %v5057
        %v5120 = vpack.c.b16 %v5062, %v5060
        %v5121 = vpack.c.b16 %v5063, %v5061
        %v5122 = vpack.c.b16 %v5066, %v5064
        %v5123 = vpack.c.b16 %v5067, %v5065
        %v5124 = vpack.c.b16 %v5070, %v5068
        %v5125 = vpack.c.b16 %v5071, %v5069
        %v5126 = vpack.c.b16 %v5074, %v5072
        %v5127 = vpack.c.b16 %v5075, %v5073
        %v5128 = vpack.c.b16 %v5078, %v5076
        %v5129 = vpack.c.b16 %v5079, %v5077
        %v5130 = vpack.c.b16 %v5082, %v5080
        %v5131 = vpack.c.b16 %v5083, %v5081
        %v5132 = vpack.c.b16 %v5086, %v5084
        %v5133 = vpack.c.b16 %v5087, %v5085
        %v5134 = vpack.c.b16 %v5090, %v5088
        %v5135 = vpack.c.b16 %v5091, %v5089
        %v5136 = vpack.c.b16 %v5094, %v5092
        %v5137 = vpack.c.b16 %v5095, %v5093
        %v5138 = vpack.c.b16 %v5098, %v5096
        %v5139 = vpack.c.b16 %v5099, %v5097
        %v5140 = vpack.c.b16 %v5102, %v5100
        %v5141 = vpack.c.b16 %v5103, %v5101
        %v5142 = vpack.c.b16 %v5106, %v5104
        %v5143 = vpack.c.b16 %v5107, %v5105
        %v5144 = vpack.c.b16 %v5110, %v5108
        %v5145 = vpack.c.b16 %v5111, %v5109
        %v5146 = vpack.c.b16 %v5114, %v5112
        %v5147 = vpack.c.b16 %v5115, %v5113
        %5180 = vmatprep.subr.bf16.mxu0 %v5117
        %5181 = vmatpush1.bf16.msra.mxu0 %v5116
        %5182 = vmatprep.subr.bf16.mxu0 %v5119
        %5183 = vmatpush1.bf16.msra.mxu0 %v5118
        %5184 = vmatprep.subr.bf16.mxu0 %v5121
        %5185 = vmatpush1.bf16.msra.mxu0 %v5120
        %5186 = vmatprep.subr.bf16.mxu0 %v5123
        %5187 = vmatpush1.bf16.msra.mxu0 %v5122
        %5188 = vmatprep.subr.bf16.mxu0 %v5125
        %5189 = vmatpush1.bf16.msra.mxu0 %v5124
        %5190 = vmatprep.subr.bf16.mxu0 %v5127
        %5191 = vmatpush1.bf16.msra.mxu0 %v5126
        %5192 = vmatprep.subr.bf16.mxu0 %v5129
        %5193 = vmatpush1.bf16.msra.mxu0 %v5128
        %5194 = vmatprep.subr.bf16.mxu0 %v5131
        %5195 = vmatpush1.bf16.msra.mxu0 %v5130
        %5196 = vmatprep.subr.bf16.mxu0 %v5133
        %5197 = vmatpush1.bf16.msra.mxu0 %v5132
        %5198 = vmatprep.subr.bf16.mxu0 %v5135
        %5199 = vmatpush1.bf16.msra.mxu0 %v5134
        %5200 = vmatprep.subr.bf16.mxu0 %v5137
        %5201 = vmatpush1.bf16.msra.mxu0 %v5136
        %5202 = vmatprep.subr.bf16.mxu0 %v5139
        %5203 = vmatpush1.bf16.msra.mxu0 %v5138
        %5204 = vmatprep.subr.bf16.mxu0 %v5141
        %5205 = vmatpush1.bf16.msra.mxu0 %v5140
        %5206 = vmatprep.subr.bf16.mxu0 %v5143
        %5207 = vmatpush1.bf16.msra.mxu0 %v5142
        %5208 = vmatprep.subr.bf16.mxu0 %v5145
        %5209 = vmatpush1.bf16.msra.mxu0 %v5144
        %5210 = vmatprep.subr.bf16.mxu0 %v5147
        %5211 = vmatpush1.bf16.msra.mxu0 %v5146
        %5212 = vmatprep.mubr.bf16.mxu0 %v4978
        %5213 = vmatmul.mubr.bf16.gmra.mrb[0].mxu0 %v4977
        %v5214 = vpop.f32.mrb[0].mxu0
        %v5215 = vadd.f32 %v5013, %v5214
        %v5216 = vpop.f32.mrb[0].mxu0
        %v5217 = vadd.f32 %v5017, %v5216
        %v5218 = vpop.f32.mrb[0].mxu0
        %v5219 = vadd.f32 %v5013, %v5218
        %v5220 = vpop.f32.mrb[0].mxu0
        %v5221 = vadd.f32 %v5017, %v5220
        %5222 = vmatprep.mubr.bf16.mxu0 %v4980
        %5223 = vmatmul.mubr.bf16.gmra.mrb[0].mxu0 %v4979
        %v5224 = vpop.f32.mrb[0].mxu0
        %v5225 = vadd.f32 %v5013, %v5224
        %v5226 = vpop.f32.mrb[0].mxu0
        %v5227 = vadd.f32 %v5017, %v5226
        %v5228 = vpop.f32.mrb[0].mxu0
        %v5229 = vadd.f32 %v5013, %v5228
        %v5230 = vpop.f32.mrb[0].mxu0
        %v5231 = vadd.f32 %v5017, %v5230
        %5232 = vmatprep.mubr.bf16.mxu0 %v4982
        %5233 = vmatmul.mubr.bf16.gmra.mrb[0].mxu0 %v4981
        %v5234 = vpop.f32.mrb[0].mxu0
        %v5235 = vadd.f32 %v5013, %v5234
        %v5236 = vpop.f32.mrb[0].mxu0
        %v5237 = vadd.f32 %v5017, %v5236
        %v5238 = vpop.f32.mrb[0].mxu0
        %v5239 = vadd.f32 %v5013, %v5238
        %v5240 = vpop.f32.mrb[0].mxu0
        %v5241 = vadd.f32 %v5017, %v5240
        %5242 = vmatprep.mubr.bf16.mxu0 %v4984
        %5243 = vmatmul.mubr.bf16.gmra.mrb[0].mxu0 %v4983
        %v5244 = vpop.f32.mrb[0].mxu0
        %v5245 = vadd.f32 %v5013, %v5244
        %v5246 = vpop.f32.mrb[0].mxu0
        %v5247 = vadd.f32 %v5017, %v5246
        %v5248 = vpop.f32.mrb[0].mxu0
        %v5249 = vadd.f32 %v5013, %v5248
        %v5250 = vpop.f32.mrb[0].mxu0
        %v5251 = vadd.f32 %v5017, %v5250
        %5252 = vmatprep.mubr.bf16.mxu0 %v4986
        %5253 = vmatmul.mubr.bf16.gmra.mrb[0].mxu0 %v4985
        %v5254 = vpop.f32.mrb[0].mxu0
        %v5255 = vadd.f32 %v5013, %v5254
        %v5256 = vpop.f32.mrb[0].mxu0
        %v5257 = vadd.f32 %v5017, %v5256
        %v5258 = vpop.f32.mrb[0].mxu0
        %v5259 = vadd.f32 %v5013, %v5258
        %v5260 = vpop.f32.mrb[0].mxu0
        %v5261 = vadd.f32 %v5017, %v5260
        %5262 = vmatprep.mubr.bf16.mxu0 %v4988
        %5263 = vmatmul.mubr.bf16.gmra.mrb[0].mxu0 %v4987
        %v5264 = vpop.f32.mrb[0].mxu0
        %v5265 = vadd.f32 %v5013, %v5264
        %v5266 = vpop.f32.mrb[0].mxu0
        %v5267 = vadd.f32 %v5017, %v5266
        %v5268 = vpop.f32.mrb[0].mxu0
        %v5269 = vadd.f32 %v5013, %v5268
        %v5270 = vpop.f32.mrb[0].mxu0
        %v5271 = vadd.f32 %v5017, %v5270
        %5272 = vmatprep.mubr.bf16.mxu0 %v4990
        %5273 = vmatmul.mubr.bf16.gmra.mrb[0].mxu0 %v4989
        %v5274 = vpop.f32.mrb[0].mxu0
        %v5275 = vadd.f32 %v5013, %v5274
        %v5276 = vpop.f32.mrb[0].mxu0
        %v5277 = vadd.f32 %v5017, %v5276
        %v5278 = vpop.f32.mrb[0].mxu0
        %v5279 = vadd.f32 %v5013, %v5278
        %v5280 = vpop.f32.mrb[0].mxu0
        %v5281 = vadd.f32 %v5017, %v5280
        %5282 = vmatprep.mubr.bf16.mxu0 %v4992
        %5283 = vmatmul.mubr.bf16.gmra.mrb[0].mxu0 %v4991
        %v5284 = vpop.f32.mrb[0].mxu0
        %v5285 = vadd.f32 %v5013, %v5284
        %v5286 = vpop.f32.mrb[0].mxu0
        %v5287 = vadd.f32 %v5017, %v5286
        %v5288 = vpop.f32.mrb[0].mxu0
        %v5289 = vadd.f32 %v5013, %v5288
        %v5290 = vpop.f32.mrb[0].mxu0
        %v5291 = vadd.f32 %v5017, %v5290
        %5292 = vmatprep.mubr.bf16.mxu0 %v4994
        %5293 = vmatmul.mubr.bf16.gmra.mrb[0].mxu0 %v4993
        %v5294 = vpop.f32.mrb[0].mxu0
        %v5295 = vadd.f32 %v5013, %v5294
        %v5296 = vpop.f32.mrb[0].mxu0
        %v5297 = vadd.f32 %v5017, %v5296
        %v5298 = vpop.f32.mrb[0].mxu0
        %v5299 = vadd.f32 %v5013, %v5298
        %v5300 = vpop.f32.mrb[0].mxu0
        %v5301 = vadd.f32 %v5017, %v5300
        %5302 = vmatprep.mubr.bf16.mxu0 %v4996
        %5303 = vmatmul.mubr.bf16.gmra.mrb[0].mxu0 %v4995
        %v5304 = vpop.f32.mrb[0].mxu0
        %v5305 = vadd.f32 %v5013, %v5304
        %v5306 = vpop.f32.mrb[0].mxu0
        %v5307 = vadd.f32 %v5017, %v5306
        %v5308 = vpop.f32.mrb[0].mxu0
        %v5309 = vadd.f32 %v5013, %v5308
        %v5310 = vpop.f32.mrb[0].mxu0
        %v5311 = vadd.f32 %v5017, %v5310
        %5312 = vmatprep.mubr.bf16.mxu0 %v4998
        %5313 = vmatmul.mubr.bf16.gmra.mrb[0].mxu0 %v4997
        %v5314 = vpop.f32.mrb[0].mxu0
        %v5315 = vadd.f32 %v5013, %v5314
        %v5316 = vpop.f32.mrb[0].mxu0
        %v5317 = vadd.f32 %v5017, %v5316
        %v5318 = vpop.f32.mrb[0].mxu0
        %v5319 = vadd.f32 %v5013, %v5318
        %v5320 = vpop.f32.mrb[0].mxu0
        %v5321 = vadd.f32 %v5017, %v5320
        %5322 = vmatprep.mubr.bf16.mxu0 %v5000
        %5323 = vmatmul.mubr.bf16.gmra.mrb[0].mxu0 %v4999
        %v5324 = vpop.f32.mrb[0].mxu0
        %v5325 = vadd.f32 %v5013, %v5324
        %v5326 = vpop.f32.mrb[0].mxu0
        %v5327 = vadd.f32 %v5017, %v5326
        %v5328 = vpop.f32.mrb[0].mxu0
        %v5329 = vadd.f32 %v5013, %v5328
        %v5330 = vpop.f32.mrb[0].mxu0
        %v5331 = vadd.f32 %v5017, %v5330
        %5332 = vmatprep.mubr.bf16.mxu0 %v5002
        %5333 = vmatmul.mubr.bf16.gmra.mrb[0].mxu0 %v5001
        %v5334 = vpop.f32.mrb[0].mxu0
        %v5335 = vadd.f32 %v5013, %v5334
        %v5336 = vpop.f32.mrb[0].mxu0
        %v5337 = vadd.f32 %v5017, %v5336
        %v5338 = vpop.f32.mrb[0].mxu0
        %v5339 = vadd.f32 %v5013, %v5338
        %v5340 = vpop.f32.mrb[0].mxu0
        %v5341 = vadd.f32 %v5017, %v5340
        %5342 = vmatprep.mubr.bf16.mxu0 %v5004
        %5343 = vmatmul.mubr.bf16.gmra.mrb[0].mxu0 %v5003
        %v5344 = vpop.f32.mrb[0].mxu0
        %v5345 = vadd.f32 %v5013, %v5344
        %v5346 = vpop.f32.mrb[0].mxu0
        %v5347 = vadd.f32 %v5017, %v5346
        %v5348 = vpop.f32.mrb[0].mxu0
        %v5349 = vadd.f32 %v5013, %v5348
        %v5350 = vpop.f32.mrb[0].mxu0
        %v5351 = vadd.f32 %v5017, %v5350
        %5352 = vmatprep.mubr.bf16.mxu0 %v5006
        %5353 = vmatmul.mubr.bf16.gmra.mrb[0].mxu0 %v5005
        %v5354 = vpop.f32.mrb[0].mxu0
        %v5355 = vadd.f32 %v5013, %v5354
        %v5356 = vpop.f32.mrb[0].mxu0
        %v5357 = vadd.f32 %v5017, %v5356
        %v5358 = vpop.f32.mrb[0].mxu0
        %v5359 = vadd.f32 %v5013, %v5358
        %v5360 = vpop.f32.mrb[0].mxu0
        %v5361 = vadd.f32 %v5017, %v5360
        %5362 = vmatprep.mubr.bf16.mxu0 %v5008
        %5363 = vmatmul.mubr.bf16.gmra.mrb[0].mxu0 %v5007
        %v5364 = vpop.f32.mrb[0].mxu0
        %v5365 = vadd.f32 %v5013, %v5364
        %v5366 = vpop.f32.mrb[0].mxu0
        %v5367 = vadd.f32 %v5017, %v5366
        %v5368 = vpop.f32.mrb[0].mxu0
        %v5369 = vadd.f32 %v5013, %v5368
        %v5370 = vpop.f32.mrb[0].mxu0
        %v5371 = vadd.f32 %v5017, %v5370
        %5372 = vdwg.mxu0
        %v5373 = vmax.f32 %v5215, 0.0
        %v5374 = vmax.f32 %v5217, 0.0
        %v5375 = vmax.f32 %v5219, 0.0
        %v5376 = vmax.f32 %v5221, 0.0
        %v5377 = vmax.f32 %v5225, 0.0
        %v5378 = vmax.f32 %v5227, 0.0
        %v5379 = vmax.f32 %v5229, 0.0
        %v5380 = vmax.f32 %v5231, 0.0
        %v5381 = vmax.f32 %v5235, 0.0
        %v5382 = vmax.f32 %v5237, 0.0
        %v5383 = vmax.f32 %v5239, 0.0
        %v5384 = vmax.f32 %v5241, 0.0
        %v5385 = vmax.f32 %v5245, 0.0
        %v5386 = vmax.f32 %v5247, 0.0
        %v5387 = vmax.f32 %v5249, 0.0
        %v5388 = vmax.f32 %v5251, 0.0
        %v5389 = vmax.f32 %v5255, 0.0
        %v5390 = vmax.f32 %v5257, 0.0
        %v5391 = vmax.f32 %v5259, 0.0
        %v5392 = vmax.f32 %v5261, 0.0
        %v5393 = vmax.f32 %v5265, 0.0
        %v5394 = vmax.f32 %v5267, 0.0
        %v5395 = vmax.f32 %v5269, 0.0
        %v5396 = vmax.f32 %v5271, 0.0
        %v5397 = vmax.f32 %v5275, 0.0
        %v5398 = vmax.f32 %v5277, 0.0
        %v5399 = vmax.f32 %v5279, 0.0
        %v5400 = vmax.f32 %v5281, 0.0
        %v5401 = vmax.f32 %v5285, 0.0
        %v5402 = vmax.f32 %v5287, 0.0
        %v5403 = vmax.f32 %v5289, 0.0
        %v5404 = vmax.f32 %v5291, 0.0
        %v5405 = vmax.f32 %v5295, 0.0
        %v5406 = vmax.f32 %v5297, 0.0
        %v5407 = vmax.f32 %v5299, 0.0
        %v5408 = vmax.f32 %v5301, 0.0
        %v5409 = vmax.f32 %v5305, 0.0
        %v5410 = vmax.f32 %v5307, 0.0
        %v5411 = vmax.f32 %v5309, 0.0
        %v5412 = vmax.f32 %v5311, 0.0
        %v5413 = vmax.f32 %v5315, 0.0
        %v5414 = vmax.f32 %v5317, 0.0
        %v5415 = vmax.f32 %v5319, 0.0
        %v5416 = vmax.f32 %v5321, 0.0
        %v5417 = vmax.f32 %v5325, 0.0
        %v5418 = vmax.f32 %v5327, 0.0
        %v5419 = vmax.f32 %v5329, 0.0
        %v5420 = vmax.f32 %v5331, 0.0
        %v5421 = vmax.f32 %v5335, 0.0
        %v5422 = vmax.f32 %v5337, 0.0
        %v5423 = vmax.f32 %v5339, 0.0
        %v5424 = vmax.f32 %v5341, 0.0
        %v5425 = vmax.f32 %v5345, 0.0
        %v5426 = vmax.f32 %v5347, 0.0
        %v5427 = vmax.f32 %v5349, 0.0
        %v5428 = vmax.f32 %v5351, 0.0
        %v5429 = vmax.f32 %v5355, 0.0
        %v5430 = vmax.f32 %v5357, 0.0
        %v5431 = vmax.f32 %v5359, 0.0
        %v5432 = vmax.f32 %v5361, 0.0
        %v5433 = vmax.f32 %v5365, 0.0
        %v5434 = vmax.f32 %v5367, 0.0
        %v5435 = vmax.f32 %v5369, 0.0
        %v5436 = vmax.f32 %v5371, 0.0
        %v5437 = vpack.c.bf16 %v5375, %v5373
        %v5438 = vpack.c.bf16 %v5376, %v5374
        %v5439 = vpack.c.bf16 %v5379, %v5377
        %v5440 = vpack.c.bf16 %v5380, %v5378
        %v5441 = vpack.c.bf16 %v5383, %v5381
        %v5442 = vpack.c.bf16 %v5384, %v5382
        %v5443 = vpack.c.bf16 %v5387, %v5385
        %v5444 = vpack.c.bf16 %v5388, %v5386
        %v5445 = vpack.c.bf16 %v5391, %v5389
        %v5446 = vpack.c.bf16 %v5392, %v5390
        %v5447 = vpack.c.bf16 %v5395, %v5393
        %v5448 = vpack.c.bf16 %v5396, %v5394
        %v5449 = vpack.c.bf16 %v5399, %v5397
        %v5450 = vpack.c.bf16 %v5400, %v5398
        %v5451 = vpack.c.bf16 %v5403, %v5401
        %v5452 = vpack.c.bf16 %v5404, %v5402
        %v5453 = vpack.c.bf16 %v5407, %v5405
        %v5454 = vpack.c.bf16 %v5408, %v5406
        %v5455 = vpack.c.bf16 %v5411, %v5409
        %v5456 = vpack.c.bf16 %v5412, %v5410
        %v5457 = vpack.c.bf16 %v5415, %v5413
        %v5458 = vpack.c.bf16 %v5416, %v5414
        %v5459 = vpack.c.bf16 %v5419, %v5417
        %v5460 = vpack.c.bf16 %v5420, %v5418
        %v5461 = vpack.c.bf16 %v5423, %v5421
        %v5462 = vpack.c.bf16 %v5424, %v5422
        %v5463 = vpack.c.bf16 %v5427, %v5425
        %v5464 = vpack.c.bf16 %v5428, %v5426
        %v5465 = vpack.c.bf16 %v5431, %v5429
        %v5466 = vpack.c.bf16 %v5432, %v5430
        %v5467 = vpack.c.bf16 %v5435, %v5433
        %v5468 = vpack.c.bf16 %v5436, %v5434
        %v5469 = vld [vmem:[#allocation20] sm:$0xff]
        %v5470 = vld [vmem:[#allocation20 + $0x8] sm:$0xf]
        %v5471 = vld [vmem:[#allocation20 + $0xc] sm:$0xff]
        %v5472 = vld [vmem:[#allocation20 + $0x14] sm:$0xf]
        %v5473 = vld [vmem:[#allocation20 + $0x18] sm:$0xff]
        %v5474 = vld [vmem:[#allocation20 + $0x20] sm:$0xf]
        %v5475 = vld [vmem:[#allocation20 + $0x24] sm:$0xff]
        %v5476 = vld [vmem:[#allocation20 + $0x2c] sm:$0xf]
        %v5477 = vld [vmem:[#allocation20 + $0x30] sm:$0xff]
        %v5478 = vld [vmem:[#allocation20 + $0x38] sm:$0xf]
        %v5479 = vld [vmem:[#allocation20 + $0x3c] sm:$0xff]
        %v5480 = vld [vmem:[#allocation20 + $0x44] sm:$0xf]
        %v5481 = vld [vmem:[#allocation20 + $0x48] sm:$0xff]
        %v5482 = vld [vmem:[#allocation20 + $0x50] sm:$0xf]
        %v5483 = vld [vmem:[#allocation20 + $0x54] sm:$0xff]
        %v5484 = vld [vmem:[#allocation20 + $0x5c] sm:$0xf]
        %v5485 = vld [vmem:[#allocation20 + $0x60] sm:$0xff]
        %v5486 = vld [vmem:[#allocation20 + $0x68] sm:$0xf]
        %v5487 = vld [vmem:[#allocation20 + $0x6c] sm:$0xff]
        %v5488 = vld [vmem:[#allocation20 + $0x74] sm:$0xf]
        %v5489 = vld [vmem:[#allocation20 + $0x78] sm:$0xff]
        %v5490 = vld [vmem:[#allocation20 + $0x80] sm:$0xf]
        %v5491 = vld [vmem:[#allocation20 + $0x84] sm:$0xff]
        %v5492 = vld [vmem:[#allocation20 + $0x8c] sm:$0xf]
        %v5493 = vld [vmem:[#allocation20 + $0x90] sm:$0xff]
        %v5494 = vld [vmem:[#allocation20 + $0x98] sm:$0xf]
        %v5495 = vld [vmem:[#allocation20 + $0x9c] sm:$0xff]
        %v5496 = vld [vmem:[#allocation20 + $0xa4] sm:$0xf]
        %v5497 = vld [vmem:[#allocation20 + $0xa8] sm:$0xff]
        %v5498 = vld [vmem:[#allocation20 + $0xb0] sm:$0xf]
        %v5499 = vld [vmem:[#allocation20 + $0xb4] sm:$0xff]
        %v5500 = vld [vmem:[#allocation20 + $0xbc] sm:$0xf]
        %v5501 = vld [vmem:[#allocation20 + $0xc0] sm:$0xff]
        %v5502 = vld [vmem:[#allocation20 + $0xc8] sm:$0xf]
        %v5503 = vld [vmem:[#allocation20 + $0xcc] sm:$0xff]
        %v5504 = vld [vmem:[#allocation20 + $0xd4] sm:$0xf]
        %v5505 = vld [vmem:[#allocation20 + $0xd8] sm:$0xff]
        %v5506 = vld [vmem:[#allocation20 + $0xe0] sm:$0xf]
        %v5507 = vld [vmem:[#allocation20 + $0xe4] sm:$0xff]
        %v5508 = vld [vmem:[#allocation20 + $0xec] sm:$0xf]
        %v5509 = vld [vmem:[#allocation20 + $0xf0] sm:$0xff]
        %v5510 = vld [vmem:[#allocation20 + $0xf8] sm:$0xf]
        %v5511 = vld [vmem:[#allocation20 + $0xfc] sm:$0xff]
        %v5512 = vld [vmem:[#allocation20 + $0x104] sm:$0xf]
        %v5513 = vld [vmem:[#allocation20 + $0x108] sm:$0xff]
        %v5514 = vld [vmem:[#allocation20 + $0x110] sm:$0xf]
        %v5515 = vld [vmem:[#allocation20 + $0x114] sm:$0xff]
        %v5516 = vld [vmem:[#allocation20 + $0x11c] sm:$0xf]
        %v5517 = vld [vmem:[#allocation20 + $0x120] sm:$0xff]
        %v5518 = vld [vmem:[#allocation20 + $0x128] sm:$0xf]
        %v5519 = vld [vmem:[#allocation20 + $0x12c] sm:$0xff]
        %v5520 = vld [vmem:[#allocation20 + $0x134] sm:$0xf]
        %v5521 = vld [vmem:[#allocation20 + $0x138] sm:$0xff]
        %v5522 = vld [vmem:[#allocation20 + $0x140] sm:$0xf]
        %v5523 = vld [vmem:[#allocation20 + $0x144] sm:$0xff]
        %v5524 = vld [vmem:[#allocation20 + $0x14c] sm:$0xf]
        %v5525 = vld [vmem:[#allocation20 + $0x150] sm:$0xff]
        %v5526 = vld [vmem:[#allocation20 + $0x158] sm:$0xf]
        %v5527 = vld [vmem:[#allocation20 + $0x15c] sm:$0xff]
        %v5528 = vld [vmem:[#allocation20 + $0x164] sm:$0xf]
        %v5529 = vld [vmem:[#allocation20 + $0x168] sm:$0xff]
        %v5530 = vld [vmem:[#allocation20 + $0x170] sm:$0xf]
        %v5531 = vld [vmem:[#allocation20 + $0x174] sm:$0xff]
        %v5532 = vld [vmem:[#allocation20 + $0x17c] sm:$0xf]
        %v5533 = vld [vmem:[%s39] sm:$0x7]
        %v5535 = vlaneseq
        %v5536 = vshrl.u32 %v5535, 7
        %v5537 = vsub.s32 0, %v5536
        %v5538 = vrot.slane %v5533, %v5537
        %v5539 = vlaneseq
        %v5540 = vshrl.u32 %v5539, 7
        %v5541 = vsub.s32 1, %v5540
        %v5542 = vrot.slane %v5533, %v5541
        %v5543 = vlaneseq
        %v5544 = vshrl.u32 %v5543, 7
        %v5545 = vsub.s32 2, %v5544
        %v5546 = vrot.slane %v5533, %v5545
        %v5614 = vunpack.c.l.b16 %v5469
        %v5615 = vunpack.c.h.b16 %v5469
        %v5616 = vunpack.c.l.b16 %v5470
        %v5617 = vunpack.c.l.b16 %v5471
        %v5618 = vunpack.c.h.b16 %v5471
        %v5619 = vunpack.c.l.b16 %v5472
        %v5620 = vunpack.c.l.b16 %v5473
        %v5621 = vunpack.c.h.b16 %v5473
        %v5622 = vunpack.c.l.b16 %v5474
        %v5623 = vunpack.c.l.b16 %v5475
        %v5624 = vunpack.c.h.b16 %v5475
        %v5625 = vunpack.c.l.b16 %v5476
        %v5626 = vunpack.c.l.b16 %v5477
        %v5627 = vunpack.c.h.b16 %v5477
        %v5628 = vunpack.c.l.b16 %v5478
        %v5629 = vunpack.c.l.b16 %v5479
        %v5630 = vunpack.c.h.b16 %v5479
        %v5631 = vunpack.c.l.b16 %v5480
        %v5632 = vunpack.c.l.b16 %v5481
        %v5633 = vunpack.c.h.b16 %v5481
        %v5634 = vunpack.c.l.b16 %v5482
        %v5635 = vunpack.c.l.b16 %v5483
        %v5636 = vunpack.c.h.b16 %v5483
        %v5637 = vunpack.c.l.b16 %v5484
        %v5638 = vunpack.c.l.b16 %v5485
        %v5639 = vunpack.c.h.b16 %v5485
        %v5640 = vunpack.c.l.b16 %v5486
        %v5641 = vunpack.c.l.b16 %v5487
        %v5642 = vunpack.c.h.b16 %v5487
        %v5643 = vunpack.c.l.b16 %v5488
        %v5644 = vunpack.c.l.b16 %v5489
        %v5645 = vunpack.c.h.b16 %v5489
        %v5646 = vunpack.c.l.b16 %v5490
        %v5647 = vunpack.c.l.b16 %v5491
        %v5648 = vunpack.c.h.b16 %v5491
        %v5649 = vunpack.c.l.b16 %v5492
        %v5650 = vunpack.c.l.b16 %v5493
        %v5651 = vunpack.c.h.b16 %v5493
        %v5652 = vunpack.c.l.b16 %v5494
        %v5653 = vunpack.c.l.b16 %v5495
        %v5654 = vunpack.c.h.b16 %v5495
        %v5655 = vunpack.c.l.b16 %v5496
        %v5656 = vunpack.c.l.b16 %v5497
        %v5657 = vunpack.c.h.b16 %v5497
        %v5658 = vunpack.c.l.b16 %v5498
        %v5659 = vunpack.c.l.b16 %v5499
        %v5660 = vunpack.c.h.b16 %v5499
        %v5661 = vunpack.c.l.b16 %v5500
        %v5662 = vunpack.c.l.b16 %v5501
        %v5663 = vunpack.c.h.b16 %v5501
        %v5664 = vunpack.c.l.b16 %v5502
        %v5665 = vunpack.c.l.b16 %v5503
        %v5666 = vunpack.c.h.b16 %v5503
        %v5667 = vunpack.c.l.b16 %v5504
        %v5668 = vunpack.c.l.b16 %v5505
        %v5669 = vunpack.c.h.b16 %v5505
        %v5670 = vunpack.c.l.b16 %v5506
        %v5671 = vunpack.c.l.b16 %v5507
        %v5672 = vunpack.c.h.b16 %v5507
        %v5673 = vunpack.c.l.b16 %v5508
        %v5674 = vunpack.c.l.b16 %v5509
        %v5675 = vunpack.c.h.b16 %v5509
        %v5676 = vunpack.c.l.b16 %v5510
        %v5677 = vunpack.c.l.b16 %v5511
        %v5678 = vunpack.c.h.b16 %v5511
        %v5679 = vunpack.c.l.b16 %v5512
        %v5680 = vunpack.c.l.b16 %v5513
        %v5681 = vunpack.c.h.b16 %v5513
        %v5682 = vunpack.c.l.b16 %v5514
        %v5683 = vunpack.c.l.b16 %v5515
        %v5684 = vunpack.c.h.b16 %v5515
        %v5685 = vunpack.c.l.b16 %v5516
        %v5686 = vunpack.c.l.b16 %v5517
        %v5687 = vunpack.c.h.b16 %v5517
        %v5688 = vunpack.c.l.b16 %v5518
        %v5689 = vunpack.c.l.b16 %v5519
        %v5690 = vunpack.c.h.b16 %v5519
        %v5691 = vunpack.c.l.b16 %v5520
        %v5692 = vunpack.c.l.b16 %v5521
        %v5693 = vunpack.c.h.b16 %v5521
        %v5694 = vunpack.c.l.b16 %v5522
        %v5695 = vunpack.c.l.b16 %v5523
        %v5696 = vunpack.c.h.b16 %v5523
        %v5697 = vunpack.c.l.b16 %v5524
        %v5698 = vunpack.c.l.b16 %v5525
        %v5699 = vunpack.c.h.b16 %v5525
        %v5700 = vunpack.c.l.b16 %v5526
        %v5701 = vunpack.c.l.b16 %v5527
        %v5702 = vunpack.c.h.b16 %v5527
        %v5703 = vunpack.c.l.b16 %v5528
        %v5704 = vunpack.c.l.b16 %v5529
        %v5705 = vunpack.c.h.b16 %v5529
        %v5706 = vunpack.c.l.b16 %v5530
        %v5707 = vunpack.c.l.b16 %v5531
        %v5708 = vunpack.c.h.b16 %v5531
        %v5709 = vunpack.c.l.b16 %v5532
        %v5710 = vpack.c.b16 %v5617, %v5614
        %v5711 = vpack.c.b16 %v5618, %v5615
        %v5712 = vpack.c.b16 %v5619, %v5616
        %v5713 = vpack.c.b16 %v5623, %v5620
        %v5714 = vpack.c.b16 %v5624, %v5621
        %v5715 = vpack.c.b16 %v5625, %v5622
        %v5716 = vpack.c.b16 %v5629, %v5626
        %v5717 = vpack.c.b16 %v5630, %v5627
        %v5718 = vpack.c.b16 %v5631, %v5628
        %v5719 = vpack.c.b16 %v5635, %v5632
        %v5720 = vpack.c.b16 %v5636, %v5633
        %v5721 = vpack.c.b16 %v5637, %v5634
        %v5722 = vpack.c.b16 %v5641, %v5638
        %v5723 = vpack.c.b16 %v5642, %v5639
        %v5724 = vpack.c.b16 %v5643, %v5640
        %v5725 = vpack.c.b16 %v5647, %v5644
        %v5726 = vpack.c.b16 %v5648, %v5645
        %v5727 = vpack.c.b16 %v5649, %v5646
        %v5728 = vpack.c.b16 %v5653, %v5650
        %v5729 = vpack.c.b16 %v5654, %v5651
        %v5730 = vpack.c.b16 %v5655, %v5652
        %v5731 = vpack.c.b16 %v5659, %v5656
        %v5732 = vpack.c.b16 %v5660, %v5657
        %v5733 = vpack.c.b16 %v5661, %v5658
        %v5734 = vpack.c.b16 %v5665, %v5662
        %v5735 = vpack.c.b16 %v5666, %v5663
        %v5736 = vpack.c.b16 %v5667, %v5664
        %v5737 = vpack.c.b16 %v5671, %v5668
        %v5738 = vpack.c.b16 %v5672, %v5669
        %v5739 = vpack.c.b16 %v5673, %v5670
        %v5740 = vpack.c.b16 %v5677, %v5674
        %v5741 = vpack.c.b16 %v5678, %v5675
        %v5742 = vpack.c.b16 %v5679, %v5676
        %v5743 = vpack.c.b16 %v5683, %v5680
        %v5744 = vpack.c.b16 %v5684, %v5681
        %v5745 = vpack.c.b16 %v5685, %v5682
        %v5746 = vpack.c.b16 %v5689, %v5686
        %v5747 = vpack.c.b16 %v5690, %v5687
        %v5748 = vpack.c.b16 %v5691, %v5688
        %v5749 = vpack.c.b16 %v5695, %v5692
        %v5750 = vpack.c.b16 %v5696, %v5693
        %v5751 = vpack.c.b16 %v5697, %v5694
        %v5752 = vpack.c.b16 %v5701, %v5698
        %v5753 = vpack.c.b16 %v5702, %v5699
        %v5754 = vpack.c.b16 %v5703, %v5700
        %v5755 = vpack.c.b16 %v5707, %v5704
        %v5756 = vpack.c.b16 %v5708, %v5705
        %v5757 = vpack.c.b16 %v5709, %v5706
        %5806 = vmatprep.subr.bf16.mxu0 %v5711
        %5807 = vmatpush1.bf16.msra.mxu0 %v5710
        %5808 = vmatprep.subr.bf16.mxu0 %v5714
        %5809 = vmatpush1.bf16.msra.mxu0 %v5713
        %5810 = vmatprep.subr.bf16.mxu0 %v5717
        %5811 = vmatpush1.bf16.msra.mxu0 %v5716
        %5812 = vmatprep.subr.bf16.mxu0 %v5720
        %5813 = vmatpush1.bf16.msra.mxu0 %v5719
        %5814 = vmatprep.subr.bf16.mxu0 %v5723
        %5815 = vmatpush1.bf16.msra.mxu0 %v5722
        %5816 = vmatprep.subr.bf16.mxu0 %v5726
        %5817 = vmatpush1.bf16.msra.mxu0 %v5725
        %5818 = vmatprep.subr.bf16.mxu0 %v5729
        %5819 = vmatpush1.bf16.msra.mxu0 %v5728
        %5820 = vmatprep.subr.bf16.mxu0 %v5732
        %5821 = vmatpush1.bf16.msra.mxu0 %v5731
        %5822 = vmatprep.subr.bf16.mxu0 %v5735
        %5823 = vmatpush1.bf16.msra.mxu0 %v5734
        %5824 = vmatprep.subr.bf16.mxu0 %v5738
        %5825 = vmatpush1.bf16.msra.mxu0 %v5737
        %5826 = vmatprep.subr.bf16.mxu0 %v5741
        %5827 = vmatpush1.bf16.msra.mxu0 %v5740
        %5828 = vmatprep.subr.bf16.mxu0 %v5744
        %5829 = vmatpush1.bf16.msra.mxu0 %v5743
        %5830 = vmatprep.subr.bf16.mxu0 %v5747
        %5831 = vmatpush1.bf16.msra.mxu0 %v5746
        %5832 = vmatprep.subr.bf16.mxu0 %v5750
        %5833 = vmatpush1.bf16.msra.mxu0 %v5749
        %5834 = vmatprep.subr.bf16.mxu0 %v5753
        %5835 = vmatpush1.bf16.msra.mxu0 %v5752
        %5836 = vmatprep.subr.bf16.mxu0 %v5756
        %5837 = vmatpush1.bf16.msra.mxu0 %v5755
        %5838 = vmatprep.mubr.bf16.mxu0 %v5438
        %5839 = vmatmul.mubr.bf16.gmra.mrb[0].mxu0 %v5437
        %v5840 = vpop.f32.mrb[0].mxu0
        %v5841 = vadd.f32 %v5538, %v5840
        %v5842 = vpop.f32.mrb[0].mxu0
        %v5843 = vadd.f32 %v5542, %v5842
        %v5844 = vpop.f32.mrb[0].mxu0
        %v5845 = vadd.f32 %v5538, %v5844
        %v5846 = vpop.f32.mrb[0].mxu0
        %v5847 = vadd.f32 %v5542, %v5846
        %5848 = vmatprep.mubr.bf16.mxu0 %v5440
        %5849 = vmatmul.mubr.bf16.gmra.mrb[0].mxu0 %v5439
        %v5850 = vpop.f32.mrb[0].mxu0
        %v5851 = vadd.f32 %v5538, %v5850
        %v5852 = vpop.f32.mrb[0].mxu0
        %v5853 = vadd.f32 %v5542, %v5852
        %v5854 = vpop.f32.mrb[0].mxu0
        %v5855 = vadd.f32 %v5538, %v5854
        %v5856 = vpop.f32.mrb[0].mxu0
        %v5857 = vadd.f32 %v5542, %v5856
        %5858 = vmatprep.mubr.bf16.mxu0 %v5442
        %5859 = vmatmul.mubr.bf16.gmra.mrb[0].mxu0 %v5441
        %v5860 = vpop.f32.mrb[0].mxu0
        %v5861 = vadd.f32 %v5538, %v5860
        %v5862 = vpop.f32.mrb[0].mxu0
        %v5863 = vadd.f32 %v5542, %v5862
        %v5864 = vpop.f32.mrb[0].mxu0
        %v5865 = vadd.f32 %v5538, %v5864
        %v5866 = vpop.f32.mrb[0].mxu0
        %v5867 = vadd.f32 %v5542, %v5866
        %5868 = vmatprep.mubr.bf16.mxu0 %v5444
        %5869 = vmatmul.mubr.bf16.gmra.mrb[0].mxu0 %v5443
        %v5870 = vpop.f32.mrb[0].mxu0
        %v5871 = vadd.f32 %v5538, %v5870
        %v5872 = vpop.f32.mrb[0].mxu0
        %v5873 = vadd.f32 %v5542, %v5872
        %v5874 = vpop.f32.mrb[0].mxu0
        %v5875 = vadd.f32 %v5538, %v5874
        %v5876 = vpop.f32.mrb[0].mxu0
        %v5877 = vadd.f32 %v5542, %v5876
        %5878 = vmatprep.mubr.bf16.mxu0 %v5446
        %5879 = vmatmul.mubr.bf16.gmra.mrb[0].mxu0 %v5445
        %v5880 = vpop.f32.mrb[0].mxu0
        %v5881 = vadd.f32 %v5538, %v5880
        %v5882 = vpop.f32.mrb[0].mxu0
        %v5883 = vadd.f32 %v5542, %v5882
        %v5884 = vpop.f32.mrb[0].mxu0
        %v5885 = vadd.f32 %v5538, %v5884
        %v5886 = vpop.f32.mrb[0].mxu0
        %v5887 = vadd.f32 %v5542, %v5886
        %5888 = vmatprep.mubr.bf16.mxu0 %v5448
        %5889 = vmatmul.mubr.bf16.gmra.mrb[0].mxu0 %v5447
        %v5890 = vpop.f32.mrb[0].mxu0
        %v5891 = vadd.f32 %v5538, %v5890
        %v5892 = vpop.f32.mrb[0].mxu0
        %v5893 = vadd.f32 %v5542, %v5892
        %v5894 = vpop.f32.mrb[0].mxu0
        %v5895 = vadd.f32 %v5538, %v5894
        %v5896 = vpop.f32.mrb[0].mxu0
        %v5897 = vadd.f32 %v5542, %v5896
        %5898 = vmatprep.mubr.bf16.mxu0 %v5450
        %5899 = vmatmul.mubr.bf16.gmra.mrb[0].mxu0 %v5449
        %v5900 = vpop.f32.mrb[0].mxu0
        %v5901 = vadd.f32 %v5538, %v5900
        %v5902 = vpop.f32.mrb[0].mxu0
        %v5903 = vadd.f32 %v5542, %v5902
        %v5904 = vpop.f32.mrb[0].mxu0
        %v5905 = vadd.f32 %v5538, %v5904
        %v5906 = vpop.f32.mrb[0].mxu0
        %v5907 = vadd.f32 %v5542, %v5906
        %5908 = vmatprep.mubr.bf16.mxu0 %v5452
        %5909 = vmatmul.mubr.bf16.gmra.mrb[0].mxu0 %v5451
        %v5910 = vpop.f32.mrb[0].mxu0
        %v5911 = vadd.f32 %v5538, %v5910
        %v5912 = vpop.f32.mrb[0].mxu0
        %v5913 = vadd.f32 %v5542, %v5912
        %v5914 = vpop.f32.mrb[0].mxu0
        %v5915 = vadd.f32 %v5538, %v5914
        %v5916 = vpop.f32.mrb[0].mxu0
        %v5917 = vadd.f32 %v5542, %v5916
        %5918 = vmatprep.mubr.bf16.mxu0 %v5454
        %5919 = vmatmul.mubr.bf16.gmra.mrb[0].mxu0 %v5453
        %v5920 = vpop.f32.mrb[0].mxu0
        %v5921 = vadd.f32 %v5538, %v5920
        %v5922 = vpop.f32.mrb[0].mxu0
        %v5923 = vadd.f32 %v5542, %v5922
        %v5924 = vpop.f32.mrb[0].mxu0
        %v5925 = vadd.f32 %v5538, %v5924
        %v5926 = vpop.f32.mrb[0].mxu0
        %v5927 = vadd.f32 %v5542, %v5926
        %5928 = vmatprep.mubr.bf16.mxu0 %v5456
        %5929 = vmatmul.mubr.bf16.gmra.mrb[0].mxu0 %v5455
        %v5930 = vpop.f32.mrb[0].mxu0
        %v5931 = vadd.f32 %v5538, %v5930
        %v5932 = vpop.f32.mrb[0].mxu0
        %v5933 = vadd.f32 %v5542, %v5932
        %v5934 = vpop.f32.mrb[0].mxu0
        %v5935 = vadd.f32 %v5538, %v5934
        %v5936 = vpop.f32.mrb[0].mxu0
        %v5937 = vadd.f32 %v5542, %v5936
        %5938 = vmatprep.mubr.bf16.mxu0 %v5458
        %5939 = vmatmul.mubr.bf16.gmra.mrb[0].mxu0 %v5457
        %v5940 = vpop.f32.mrb[0].mxu0
        %v5941 = vadd.f32 %v5538, %v5940
        %v5942 = vpop.f32.mrb[0].mxu0
        %v5943 = vadd.f32 %v5542, %v5942
        %v5944 = vpop.f32.mrb[0].mxu0
        %v5945 = vadd.f32 %v5538, %v5944
        %v5946 = vpop.f32.mrb[0].mxu0
        %v5947 = vadd.f32 %v5542, %v5946
        %5948 = vmatprep.mubr.bf16.mxu0 %v5460
        %5949 = vmatmul.mubr.bf16.gmra.mrb[0].mxu0 %v5459
        %v5950 = vpop.f32.mrb[0].mxu0
        %v5951 = vadd.f32 %v5538, %v5950
        %v5952 = vpop.f32.mrb[0].mxu0
        %v5953 = vadd.f32 %v5542, %v5952
        %v5954 = vpop.f32.mrb[0].mxu0
        %v5955 = vadd.f32 %v5538, %v5954
        %v5956 = vpop.f32.mrb[0].mxu0
        %v5957 = vadd.f32 %v5542, %v5956
        %5958 = vmatprep.mubr.bf16.mxu0 %v5462
        %5959 = vmatmul.mubr.bf16.gmra.mrb[0].mxu0 %v5461
        %v5960 = vpop.f32.mrb[0].mxu0
        %v5961 = vadd.f32 %v5538, %v5960
        %v5962 = vpop.f32.mrb[0].mxu0
        %v5963 = vadd.f32 %v5542, %v5962
        %v5964 = vpop.f32.mrb[0].mxu0
        %v5965 = vadd.f32 %v5538, %v5964
        %v5966 = vpop.f32.mrb[0].mxu0
        %v5967 = vadd.f32 %v5542, %v5966
        %5968 = vmatprep.mubr.bf16.mxu0 %v5464
        %5969 = vmatmul.mubr.bf16.gmra.mrb[0].mxu0 %v5463
        %v5970 = vpop.f32.mrb[0].mxu0
        %v5971 = vadd.f32 %v5538, %v5970
        %v5972 = vpop.f32.mrb[0].mxu0
        %v5973 = vadd.f32 %v5542, %v5972
        %v5974 = vpop.f32.mrb[0].mxu0
        %v5975 = vadd.f32 %v5538, %v5974
        %v5976 = vpop.f32.mrb[0].mxu0
        %v5977 = vadd.f32 %v5542, %v5976
        %5978 = vmatprep.mubr.bf16.mxu0 %v5466
        %5979 = vmatmul.mubr.bf16.gmra.mrb[0].mxu0 %v5465
        %v5980 = vpop.f32.mrb[0].mxu0
        %v5981 = vadd.f32 %v5538, %v5980
        %v5982 = vpop.f32.mrb[0].mxu0
        %v5983 = vadd.f32 %v5542, %v5982
        %v5984 = vpop.f32.mrb[0].mxu0
        %v5985 = vadd.f32 %v5538, %v5984
        %v5986 = vpop.f32.mrb[0].mxu0
        %v5987 = vadd.f32 %v5542, %v5986
        %5988 = vmatprep.mubr.bf16.mxu0 %v5468
        %5989 = vmatmul.mubr.bf16.gmra.mrb[0].mxu0 %v5467
        %v5990 = vpop.f32.mrb[0].mxu0
        %v5991 = vadd.f32 %v5538, %v5990
        %v5992 = vpop.f32.mrb[0].mxu0
        %v5993 = vadd.f32 %v5542, %v5992
        %v5994 = vpop.f32.mrb[0].mxu0
        %v5995 = vadd.f32 %v5538, %v5994
        %v5996 = vpop.f32.mrb[0].mxu0
        %v5997 = vadd.f32 %v5542, %v5996
        %5998 = vdwg.mxu0
        %5999 = vmatprep.subr.bf16.mxu0 0
        %6000 = vmatpush1.bf16.msra.mxu0 %v5712
        %6001 = vmatprep.subr.bf16.mxu0 0
        %6002 = vmatpush1.bf16.msra.mxu0 %v5715
        %6003 = vmatprep.subr.bf16.mxu0 0
        %6004 = vmatpush1.bf16.msra.mxu0 %v5718
        %6005 = vmatprep.subr.bf16.mxu0 0
        %6006 = vmatpush1.bf16.msra.mxu0 %v5721
        %6007 = vmatprep.subr.bf16.mxu0 0
        %6008 = vmatpush1.bf16.msra.mxu0 %v5724
        %6009 = vmatprep.subr.bf16.mxu0 0
        %6010 = vmatpush1.bf16.msra.mxu0 %v5727
        %6011 = vmatprep.subr.bf16.mxu0 0
        %6012 = vmatpush1.bf16.msra.mxu0 %v5730
        %6013 = vmatprep.subr.bf16.mxu0 0
        %6014 = vmatpush1.bf16.msra.mxu0 %v5733
        %6015 = vmatprep.subr.bf16.mxu0 0
        %6016 = vmatpush1.bf16.msra.mxu0 %v5736
        %6017 = vmatprep.subr.bf16.mxu0 0
        %6018 = vmatpush1.bf16.msra.mxu0 %v5739
        %6019 = vmatprep.subr.bf16.mxu0 0
        %6020 = vmatpush1.bf16.msra.mxu0 %v5742
        %6021 = vmatprep.subr.bf16.mxu0 0
        %6022 = vmatpush1.bf16.msra.mxu0 %v5745
        %6023 = vmatprep.subr.bf16.mxu0 0
        %6024 = vmatpush1.bf16.msra.mxu0 %v5748
        %6025 = vmatprep.subr.bf16.mxu0 0
        %6026 = vmatpush1.bf16.msra.mxu0 %v5751
        %6027 = vmatprep.subr.bf16.mxu0 0
        %6028 = vmatpush1.bf16.msra.mxu0 %v5754
        %6029 = vmatprep.subr.bf16.mxu0 0
        %6030 = vmatpush1.bf16.msra.mxu0 %v5757
        %6031 = vmatprep.mubr.bf16.mxu0 %v5438
        %6032 = vmatmul.mubr.bf16.gmra.mrb[0].mxu0 %v5437
        %v6033 = vpop.f32.mrb[0].mxu0
        %v6034 = vadd.f32 %v5546, %v6033
        %v6035 = vpop.f32.mrb[0].mxu0
        %v6036 = vpop.f32.mrb[0].mxu0
        %v6037 = vadd.f32 %v5546, %v6036
        %v6038 = vpop.f32.mrb[0].mxu0
        %6039 = vmatprep.mubr.bf16.mxu0 %v5440
        %6040 = vmatmul.mubr.bf16.gmra.mrb[0].mxu0 %v5439
        %v6041 = vpop.f32.mrb[0].mxu0
        %v6042 = vadd.f32 %v5546, %v6041
        %v6043 = vpop.f32.mrb[0].mxu0
        %v6044 = vpop.f32.mrb[0].mxu0
        %v6045 = vadd.f32 %v5546, %v6044
        %v6046 = vpop.f32.mrb[0].mxu0
        %6047 = vmatprep.mubr.bf16.mxu0 %v5442
        %6048 = vmatmul.mubr.bf16.gmra.mrb[0].mxu0 %v5441
        %v6049 = vpop.f32.mrb[0].mxu0
        %v6050 = vadd.f32 %v5546, %v6049
        %v6051 = vpop.f32.mrb[0].mxu0
        %v6052 = vpop.f32.mrb[0].mxu0
        %v6053 = vadd.f32 %v5546, %v6052
        %v6054 = vpop.f32.mrb[0].mxu0
        %6055 = vmatprep.mubr.bf16.mxu0 %v5444
        %6056 = vmatmul.mubr.bf16.gmra.mrb[0].mxu0 %v5443
        %v6057 = vpop.f32.mrb[0].mxu0
        %v6058 = vadd.f32 %v5546, %v6057
        %v6059 = vpop.f32.mrb[0].mxu0
        %v6060 = vpop.f32.mrb[0].mxu0
        %v6061 = vadd.f32 %v5546, %v6060
        %v6062 = vpop.f32.mrb[0].mxu0
        %6063 = vmatprep.mubr.bf16.mxu0 %v5446
        %6064 = vmatmul.mubr.bf16.gmra.mrb[0].mxu0 %v5445
        %v6065 = vpop.f32.mrb[0].mxu0
        %v6066 = vadd.f32 %v5546, %v6065
        %v6067 = vpop.f32.mrb[0].mxu0
        %v6068 = vpop.f32.mrb[0].mxu0
        %v6069 = vadd.f32 %v5546, %v6068
        %v6070 = vpop.f32.mrb[0].mxu0
        %6071 = vmatprep.mubr.bf16.mxu0 %v5448
        %6072 = vmatmul.mubr.bf16.gmra.mrb[0].mxu0 %v5447
        %v6073 = vpop.f32.mrb[0].mxu0
        %v6074 = vadd.f32 %v5546, %v6073
        %v6075 = vpop.f32.mrb[0].mxu0
        %v6076 = vpop.f32.mrb[0].mxu0
        %v6077 = vadd.f32 %v5546, %v6076
        %v6078 = vpop.f32.mrb[0].mxu0
        %6079 = vmatprep.mubr.bf16.mxu0 %v5450
        %6080 = vmatmul.mubr.bf16.gmra.mrb[0].mxu0 %v5449
        %v6081 = vpop.f32.mrb[0].mxu0
        %v6082 = vadd.f32 %v5546, %v6081
        %v6083 = vpop.f32.mrb[0].mxu0
        %v6084 = vpop.f32.mrb[0].mxu0
        %v6085 = vadd.f32 %v5546, %v6084
        %v6086 = vpop.f32.mrb[0].mxu0
        %6087 = vmatprep.mubr.bf16.mxu0 %v5452
        %6088 = vmatmul.mubr.bf16.gmra.mrb[0].mxu0 %v5451
        %v6089 = vpop.f32.mrb[0].mxu0
        %v6090 = vadd.f32 %v5546, %v6089
        %v6091 = vpop.f32.mrb[0].mxu0
        %v6092 = vpop.f32.mrb[0].mxu0
        %v6093 = vadd.f32 %v5546, %v6092
        %v6094 = vpop.f32.mrb[0].mxu0
        %6095 = vmatprep.mubr.bf16.mxu0 %v5454
        %6096 = vmatmul.mubr.bf16.gmra.mrb[0].mxu0 %v5453
        %v6097 = vpop.f32.mrb[0].mxu0
        %v6098 = vadd.f32 %v5546, %v6097
        %v6099 = vpop.f32.mrb[0].mxu0
        %v6100 = vpop.f32.mrb[0].mxu0
        %v6101 = vadd.f32 %v5546, %v6100
        %v6102 = vpop.f32.mrb[0].mxu0
        %6103 = vmatprep.mubr.bf16.mxu0 %v5456
        %6104 = vmatmul.mubr.bf16.gmra.mrb[0].mxu0 %v5455
        %v6105 = vpop.f32.mrb[0].mxu0
        %v6106 = vadd.f32 %v5546, %v6105
        %v6107 = vpop.f32.mrb[0].mxu0
        %v6108 = vpop.f32.mrb[0].mxu0
        %v6109 = vadd.f32 %v5546, %v6108
        %v6110 = vpop.f32.mrb[0].mxu0
        %6111 = vmatprep.mubr.bf16.mxu0 %v5458
        %6112 = vmatmul.mubr.bf16.gmra.mrb[0].mxu0 %v5457
        %v6113 = vpop.f32.mrb[0].mxu0
        %v6114 = vadd.f32 %v5546, %v6113
        %v6115 = vpop.f32.mrb[0].mxu0
        %v6116 = vpop.f32.mrb[0].mxu0
        %v6117 = vadd.f32 %v5546, %v6116
        %v6118 = vpop.f32.mrb[0].mxu0
        %6119 = vmatprep.mubr.bf16.mxu0 %v5460
        %6120 = vmatmul.mubr.bf16.gmra.mrb[0].mxu0 %v5459
        %v6121 = vpop.f32.mrb[0].mxu0
        %v6122 = vadd.f32 %v5546, %v6121
        %v6123 = vpop.f32.mrb[0].mxu0
        %v6124 = vpop.f32.mrb[0].mxu0
        %v6125 = vadd.f32 %v5546, %v6124
        %v6126 = vpop.f32.mrb[0].mxu0
        %6127 = vmatprep.mubr.bf16.mxu0 %v5462
        %6128 = vmatmul.mubr.bf16.gmra.mrb[0].mxu0 %v5461
        %v6129 = vpop.f32.mrb[0].mxu0
        %v6130 = vadd.f32 %v5546, %v6129
        %v6131 = vpop.f32.mrb[0].mxu0
        %v6132 = vpop.f32.mrb[0].mxu0
        %v6133 = vadd.f32 %v5546, %v6132
        %v6134 = vpop.f32.mrb[0].mxu0
        %6135 = vmatprep.mubr.bf16.mxu0 %v5464
        %6136 = vmatmul.mubr.bf16.gmra.mrb[0].mxu0 %v5463
        %v6137 = vpop.f32.mrb[0].mxu0
        %v6138 = vadd.f32 %v5546, %v6137
        %v6139 = vpop.f32.mrb[0].mxu0
        %v6140 = vpop.f32.mrb[0].mxu0
        %v6141 = vadd.f32 %v5546, %v6140
        %v6142 = vpop.f32.mrb[0].mxu0
        %6143 = vmatprep.mubr.bf16.mxu0 %v5466
        %6144 = vmatmul.mubr.bf16.gmra.mrb[0].mxu0 %v5465
        %v6145 = vpop.f32.mrb[0].mxu0
        %v6146 = vadd.f32 %v5546, %v6145
        %v6147 = vpop.f32.mrb[0].mxu0
        %v6148 = vpop.f32.mrb[0].mxu0
        %v6149 = vadd.f32 %v5546, %v6148
        %v6150 = vpop.f32.mrb[0].mxu0
        %6151 = vmatprep.mubr.bf16.mxu0 %v5468
        %6152 = vmatmul.mubr.bf16.gmra.mrb[0].mxu0 %v5467
        %v6153 = vpop.f32.mrb[0].mxu0
        %v6154 = vadd.f32 %v5546, %v6153
        %v6155 = vpop.f32.mrb[0].mxu0
        %v6156 = vpop.f32.mrb[0].mxu0
        %v6157 = vadd.f32 %v5546, %v6156
        %v6158 = vpop.f32.mrb[0].mxu0
        %6159 = vdwg.mxu0
        %v6160 = vpack.c.bf16 %v5845, %v5841
        %v6161 = vpack.c.bf16 %v5847, %v5843
        %v6162 = vpack.c.bf16 %v5855, %v5851
        %v6163 = vpack.c.bf16 %v5857, %v5853
        %v6164 = vpack.c.bf16 %v5865, %v5861
        %v6165 = vpack.c.bf16 %v5867, %v5863
        %v6166 = vpack.c.bf16 %v5875, %v5871
        %v6167 = vpack.c.bf16 %v5877, %v5873
        %v6168 = vpack.c.bf16 %v5885, %v5881
        %v6169 = vpack.c.bf16 %v5887, %v5883
        %v6170 = vpack.c.bf16 %v5895, %v5891
        %v6171 = vpack.c.bf16 %v5897, %v5893
        %v6172 = vpack.c.bf16 %v5905, %v5901
        %v6173 = vpack.c.bf16 %v5907, %v5903
        %v6174 = vpack.c.bf16 %v5915, %v5911
        %v6175 = vpack.c.bf16 %v5917, %v5913
        %v6176 = vpack.c.bf16 %v5925, %v5921
        %v6177 = vpack.c.bf16 %v5927, %v5923
        %v6178 = vpack.c.bf16 %v5935, %v5931
        %v6179 = vpack.c.bf16 %v5937, %v5933
        %v6180 = vpack.c.bf16 %v5945, %v5941
        %v6181 = vpack.c.bf16 %v5947, %v5943
        %v6182 = vpack.c.bf16 %v5955, %v5951
        %v6183 = vpack.c.bf16 %v5957, %v5953
        %v6184 = vpack.c.bf16 %v5965, %v5961
        %v6185 = vpack.c.bf16 %v5967, %v5963
        %v6186 = vpack.c.bf16 %v5975, %v5971
        %v6187 = vpack.c.bf16 %v5977, %v5973
        %v6188 = vpack.c.bf16 %v5985, %v5981
        %v6189 = vpack.c.bf16 %v5987, %v5983
        %v6190 = vpack.c.bf16 %v5995, %v5991
        %v6191 = vpack.c.bf16 %v5997, %v5993
        %v6192 = vld [vmem:[#allocation22] sm:$0xff]
        %v6193 = vld [vmem:[#allocation22 + $0x8] sm:$0xff]
        %v6194 = vld [vmem:[#allocation22 + $0x10] sm:$0xff]
        %v6195 = vld [vmem:[#allocation22 + $0x18] sm:$0xff]
        %v6196 = vld [vmem:[#allocation22 + $0x20] sm:$0xff]
        %v6197 = vld [vmem:[#allocation22 + $0x28] sm:$0xff]
        %v6198 = vld [vmem:[#allocation22 + $0x30] sm:$0xff]
        %v6199 = vld [vmem:[#allocation22 + $0x38] sm:$0xff]
        %v6200 = vld [vmem:[#allocation22 + $0x40] sm:$0xff]
        %v6201 = vld [vmem:[#allocation22 + $0x48] sm:$0xff]
        %v6202 = vld [vmem:[#allocation22 + $0x50] sm:$0xff]
        %v6203 = vld [vmem:[#allocation22 + $0x58] sm:$0xff]
        %v6204 = vld [vmem:[#allocation22 + $0x60] sm:$0xff]
        %v6205 = vld [vmem:[#allocation22 + $0x68] sm:$0xff]
        %v6206 = vld [vmem:[#allocation22 + $0x70] sm:$0xff]
        %v6207 = vld [vmem:[#allocation22 + $0x78] sm:$0xff]
        %v6208 = vld [vmem:[#allocation22 + $0x80] sm:$0xff]
        %v6209 = vld [vmem:[#allocation22 + $0x88] sm:$0xff]
        %v6210 = vld [vmem:[#allocation22 + $0x90] sm:$0xff]
        %v6211 = vld [vmem:[#allocation22 + $0x98] sm:$0xff]
        %v6212 = vld [vmem:[#allocation22 + $0xa0] sm:$0xff]
        %v6213 = vld [vmem:[#allocation22 + $0xa8] sm:$0xff]
        %v6214 = vld [vmem:[#allocation22 + $0xb0] sm:$0xff]
        %v6215 = vld [vmem:[#allocation22 + $0xb8] sm:$0xff]
        %v6216 = vld [vmem:[#allocation22 + $0xc0] sm:$0xff]
        %v6217 = vld [vmem:[#allocation22 + $0xc8] sm:$0xff]
        %v6218 = vld [vmem:[#allocation22 + $0xd0] sm:$0xff]
        %v6219 = vld [vmem:[#allocation22 + $0xd8] sm:$0xff]
        %v6220 = vld [vmem:[#allocation22 + $0xe0] sm:$0xff]
        %v6221 = vld [vmem:[#allocation22 + $0xe8] sm:$0xff]
        %v6222 = vld [vmem:[#allocation22 + $0xf0] sm:$0xff]
        %v6223 = vld [vmem:[#allocation22 + $0xf8] sm:$0xff]
        %v6224 = vld [vmem:[#allocation22 + $0x100] sm:$0xff]
        %v6225 = vld [vmem:[#allocation22 + $0x108] sm:$0xff]
        %v6226 = vld [vmem:[#allocation22 + $0x110] sm:$0xff]
        %v6227 = vld [vmem:[#allocation22 + $0x118] sm:$0xff]
        %v6228 = vld [vmem:[#allocation22 + $0x120] sm:$0xff]
        %v6229 = vld [vmem:[#allocation22 + $0x128] sm:$0xff]
        %v6230 = vld [vmem:[#allocation22 + $0x130] sm:$0xff]
        %v6231 = vld [vmem:[#allocation22 + $0x138] sm:$0xff]
        %v6232 = vld [vmem:[#allocation22 + $0x140] sm:$0xff]
        %v6233 = vld [vmem:[#allocation22 + $0x148] sm:$0xff]
        %v6234 = vld [vmem:[#allocation22 + $0x150] sm:$0xff]
        %v6235 = vld [vmem:[#allocation22 + $0x158] sm:$0xff]
        %v6236 = vld [vmem:[#allocation22 + $0x160] sm:$0xff]
        %v6237 = vld [vmem:[#allocation22 + $0x168] sm:$0xff]
        %v6238 = vld [vmem:[#allocation22 + $0x170] sm:$0xff]
        %v6239 = vld [vmem:[#allocation22 + $0x178] sm:$0xff]
        %v6240 = vld [vmem:[#allocation22 + $0x180] sm:$0xff]
        %v6241 = vld [vmem:[#allocation22 + $0x188] sm:$0xff]
        %v6242 = vld [vmem:[#allocation22 + $0x190] sm:$0xff]
        %v6243 = vld [vmem:[#allocation22 + $0x198] sm:$0xff]
        %v6244 = vld [vmem:[#allocation22 + $0x1a0] sm:$0xff]
        %v6245 = vld [vmem:[#allocation22 + $0x1a8] sm:$0xff]
        %v6246 = vld [vmem:[#allocation22 + $0x1b0] sm:$0xff]
        %v6247 = vld [vmem:[#allocation22 + $0x1b8] sm:$0xff]
        %v6248 = vld [vmem:[#allocation22 + $0x1c0] sm:$0xff]
        %v6249 = vld [vmem:[#allocation22 + $0x1c8] sm:$0xff]
        %v6250 = vld [vmem:[#allocation22 + $0x1d0] sm:$0xff]
        %v6251 = vld [vmem:[#allocation22 + $0x1d8] sm:$0xff]
        %v6252 = vld [vmem:[#allocation22 + $0x1e0] sm:$0xff]
        %v6253 = vld [vmem:[#allocation22 + $0x1e8] sm:$0xff]
        %v6254 = vld [vmem:[#allocation22 + $0x1f0] sm:$0xff]
        %v6255 = vld [vmem:[#allocation22 + $0x1f8] sm:$0xff]
        %v6256 = vld [vmem:[%s43] sm:$0xf]
        %v6257 = vld [vmem:[#allocation23] sm:$0xf]
        %v6258 = vld [vmem:[#allocation23 + $0x4] sm:$0xf]
        %v6259 = vld [vmem:[#allocation23 + $0x8] sm:$0xf]
        %v6260 = vld [vmem:[#allocation23 + $0xc] sm:$0xf]
        %v6261 = vld [vmem:[#allocation23 + $0x10] sm:$0xf]
        %v6262 = vld [vmem:[#allocation23 + $0x14] sm:$0xf]
        %v6263 = vld [vmem:[#allocation23 + $0x18] sm:$0xf]
        %v6264 = vld [vmem:[#allocation23 + $0x1c] sm:$0xf]
        %v6265 = vld [vmem:[#allocation23 + $0x20] sm:$0xf]
        %v6266 = vld [vmem:[#allocation23 + $0x24] sm:$0xf]
        %v6267 = vld [vmem:[#allocation23 + $0x28] sm:$0xf]
        %v6268 = vld [vmem:[#allocation23 + $0x2c] sm:$0xf]
        %v6269 = vld [vmem:[#allocation23 + $0x30] sm:$0xf]
        %v6270 = vld [vmem:[#allocation23 + $0x34] sm:$0xf]
        %v6271 = vld [vmem:[#allocation23 + $0x38] sm:$0xf]
        %v6272 = vld [vmem:[#allocation23 + $0x3c] sm:$0xf]
        %v6273 = vld [vmem:[#allocation23 + $0x40] sm:$0xf]
        %v6274 = vld [vmem:[#allocation23 + $0x44] sm:$0xf]
        %v6275 = vld [vmem:[#allocation23 + $0x48] sm:$0xf]
        %v6276 = vld [vmem:[#allocation23 + $0x4c] sm:$0xf]
        %v6277 = vld [vmem:[#allocation23 + $0x50] sm:$0xf]
        %v6278 = vld [vmem:[#allocation23 + $0x54] sm:$0xf]
        %v6279 = vld [vmem:[#allocation23 + $0x58] sm:$0xf]
        %v6280 = vld [vmem:[#allocation23 + $0x5c] sm:$0xf]
        %v6281 = vld [vmem:[#allocation23 + $0x60] sm:$0xf]
        %v6282 = vld [vmem:[#allocation23 + $0x64] sm:$0xf]
        %v6283 = vld [vmem:[#allocation23 + $0x68] sm:$0xf]
        %v6284 = vld [vmem:[#allocation23 + $0x6c] sm:$0xf]
        %v6285 = vld [vmem:[#allocation23 + $0x70] sm:$0xf]
        %v6286 = vld [vmem:[#allocation23 + $0x74] sm:$0xf]
        %v6287 = vld [vmem:[#allocation23 + $0x78] sm:$0xf]
        %v6288 = vld [vmem:[#allocation23 + $0x7c] sm:$0xf]
        %v6289 = vld [vmem:[#allocation23 + $0x80] sm:$0xf]
        %v6290 = vld [vmem:[#allocation23 + $0x84] sm:$0xf]
        %v6291 = vld [vmem:[#allocation23 + $0x88] sm:$0xf]
        %v6292 = vld [vmem:[#allocation23 + $0x8c] sm:$0xf]
        %v6293 = vld [vmem:[#allocation23 + $0x90] sm:$0xf]
        %v6294 = vld [vmem:[#allocation23 + $0x94] sm:$0xf]
        %v6295 = vld [vmem:[#allocation23 + $0x98] sm:$0xf]
        %v6296 = vld [vmem:[#allocation23 + $0x9c] sm:$0xf]
        %v6297 = vld [vmem:[#allocation23 + $0xa0] sm:$0xf]
        %v6298 = vld [vmem:[#allocation23 + $0xa4] sm:$0xf]
        %v6299 = vld [vmem:[#allocation23 + $0xa8] sm:$0xf]
        %v6300 = vld [vmem:[#allocation23 + $0xac] sm:$0xf]
        %v6301 = vld [vmem:[#allocation23 + $0xb0] sm:$0xf]
        %v6302 = vld [vmem:[#allocation23 + $0xb4] sm:$0xf]
        %v6303 = vld [vmem:[#allocation23 + $0xb8] sm:$0xf]
        %v6304 = vld [vmem:[#allocation23 + $0xbc] sm:$0xf]
        %v6305 = vld [vmem:[#allocation23 + $0xc0] sm:$0xf]
        %v6306 = vld [vmem:[#allocation23 + $0xc4] sm:$0xf]
        %v6307 = vld [vmem:[#allocation23 + $0xc8] sm:$0xf]
        %v6308 = vld [vmem:[#allocation23 + $0xcc] sm:$0xf]
        %v6309 = vld [vmem:[#allocation23 + $0xd0] sm:$0xf]
        %v6310 = vld [vmem:[#allocation23 + $0xd4] sm:$0xf]
        %v6311 = vld [vmem:[#allocation23 + $0xd8] sm:$0xf]
        %v6312 = vld [vmem:[#allocation23 + $0xdc] sm:$0xf]
        %v6313 = vld [vmem:[#allocation23 + $0xe0] sm:$0xf]
        %v6314 = vld [vmem:[#allocation23 + $0xe4] sm:$0xf]
        %v6315 = vld [vmem:[#allocation23 + $0xe8] sm:$0xf]
        %v6316 = vld [vmem:[#allocation23 + $0xec] sm:$0xf]
        %v6317 = vld [vmem:[#allocation23 + $0xf0] sm:$0xf]
        %v6318 = vld [vmem:[#allocation23 + $0xf4] sm:$0xf]
        %v6319 = vld [vmem:[#allocation23 + $0xf8] sm:$0xf]
        %v6320 = vld [vmem:[#allocation23 + $0xfc] sm:$0xf]
        %v6321 = vld [vmem:[%s47] sm:$0x1]
        %v6323 = vlaneseq
        %v6324 = vshrl.u32 %v6323, 7
        %v6325 = vsub.s32 0, %v6324
        %v6326 = vrot.slane %v6256, %v6325
        %v6327 = vlaneseq
        %v6328 = vshrl.u32 %v6327, 7
        %v6329 = vsub.s32 1, %v6328
        %v6330 = vrot.slane %v6256, %v6329
        %v6331 = vlaneseq
        %v6332 = vshrl.u32 %v6331, 7
        %v6333 = vsub.s32 2, %v6332
        %v6334 = vrot.slane %v6256, %v6333
        %v6335 = vlaneseq
        %v6336 = vshrl.u32 %v6335, 7
        %v6337 = vsub.s32 3, %v6336
        %v6338 = vrot.slane %v6256, %v6337
        %v6407 = vunpack.c.l.b16 %v6192
        %v6408 = vunpack.c.h.b16 %v6192
        %v6409 = vunpack.c.l.b16 %v6193
        %v6410 = vunpack.c.h.b16 %v6193
        %v6411 = vunpack.c.l.b16 %v6194
        %v6412 = vunpack.c.h.b16 %v6194
        %v6413 = vunpack.c.l.b16 %v6195
        %v6414 = vunpack.c.h.b16 %v6195
        %v6415 = vunpack.c.l.b16 %v6196
        %v6416 = vunpack.c.h.b16 %v6196
        %v6417 = vunpack.c.l.b16 %v6197
        %v6418 = vunpack.c.h.b16 %v6197
        %v6419 = vunpack.c.l.b16 %v6198
        %v6420 = vunpack.c.h.b16 %v6198
        %v6421 = vunpack.c.l.b16 %v6199
        %v6422 = vunpack.c.h.b16 %v6199
        %v6423 = vunpack.c.l.b16 %v6200
        %v6424 = vunpack.c.h.b16 %v6200
        %v6425 = vunpack.c.l.b16 %v6201
        %v6426 = vunpack.c.h.b16 %v6201
        %v6427 = vunpack.c.l.b16 %v6202
        %v6428 = vunpack.c.h.b16 %v6202
        %v6429 = vunpack.c.l.b16 %v6203
        %v6430 = vunpack.c.h.b16 %v6203
        %v6431 = vunpack.c.l.b16 %v6204
        %v6432 = vunpack.c.h.b16 %v6204
        %v6433 = vunpack.c.l.b16 %v6205
        %v6434 = vunpack.c.h.b16 %v6205
        %v6435 = vunpack.c.l.b16 %v6206
        %v6436 = vunpack.c.h.b16 %v6206
        %v6437 = vunpack.c.l.b16 %v6207
        %v6438 = vunpack.c.h.b16 %v6207
        %v6439 = vunpack.c.l.b16 %v6208
        %v6440 = vunpack.c.h.b16 %v6208
        %v6441 = vunpack.c.l.b16 %v6209
        %v6442 = vunpack.c.h.b16 %v6209
        %v6443 = vunpack.c.l.b16 %v6210
        %v6444 = vunpack.c.h.b16 %v6210
        %v6445 = vunpack.c.l.b16 %v6211
        %v6446 = vunpack.c.h.b16 %v6211
        %v6447 = vunpack.c.l.b16 %v6212
        %v6448 = vunpack.c.h.b16 %v6212
        %v6449 = vunpack.c.l.b16 %v6213
        %v6450 = vunpack.c.h.b16 %v6213
        %v6451 = vunpack.c.l.b16 %v6214
        %v6452 = vunpack.c.h.b16 %v6214
        %v6453 = vunpack.c.l.b16 %v6215
        %v6454 = vunpack.c.h.b16 %v6215
        %v6455 = vunpack.c.l.b16 %v6216
        %v6456 = vunpack.c.h.b16 %v6216
        %v6457 = vunpack.c.l.b16 %v6217
        %v6458 = vunpack.c.h.b16 %v6217
        %v6459 = vunpack.c.l.b16 %v6218
        %v6460 = vunpack.c.h.b16 %v6218
        %v6461 = vunpack.c.l.b16 %v6219
        %v6462 = vunpack.c.h.b16 %v6219
        %v6463 = vunpack.c.l.b16 %v6220
        %v6464 = vunpack.c.h.b16 %v6220
        %v6465 = vunpack.c.l.b16 %v6221
        %v6466 = vunpack.c.h.b16 %v6221
        %v6467 = vunpack.c.l.b16 %v6222
        %v6468 = vunpack.c.h.b16 %v6222
        %v6469 = vunpack.c.l.b16 %v6223
        %v6470 = vunpack.c.h.b16 %v6223
        %v6471 = vunpack.c.l.b16 %v6224
        %v6472 = vunpack.c.h.b16 %v6224
        %v6473 = vunpack.c.l.b16 %v6225
        %v6474 = vunpack.c.h.b16 %v6225
        %v6475 = vunpack.c.l.b16 %v6226
        %v6476 = vunpack.c.h.b16 %v6226
        %v6477 = vunpack.c.l.b16 %v6227
        %v6478 = vunpack.c.h.b16 %v6227
        %v6479 = vunpack.c.l.b16 %v6228
        %v6480 = vunpack.c.h.b16 %v6228
        %v6481 = vunpack.c.l.b16 %v6229
        %v6482 = vunpack.c.h.b16 %v6229
        %v6483 = vunpack.c.l.b16 %v6230
        %v6484 = vunpack.c.h.b16 %v6230
        %v6485 = vunpack.c.l.b16 %v6231
        %v6486 = vunpack.c.h.b16 %v6231
        %v6487 = vunpack.c.l.b16 %v6232
        %v6488 = vunpack.c.h.b16 %v6232
        %v6489 = vunpack.c.l.b16 %v6233
        %v6490 = vunpack.c.h.b16 %v6233
        %v6491 = vunpack.c.l.b16 %v6234
        %v6492 = vunpack.c.h.b16 %v6234
        %v6493 = vunpack.c.l.b16 %v6235
        %v6494 = vunpack.c.h.b16 %v6235
        %v6495 = vunpack.c.l.b16 %v6236
        %v6496 = vunpack.c.h.b16 %v6236
        %v6497 = vunpack.c.l.b16 %v6237
        %v6498 = vunpack.c.h.b16 %v6237
        %v6499 = vunpack.c.l.b16 %v6238
        %v6500 = vunpack.c.h.b16 %v6238
        %v6501 = vunpack.c.l.b16 %v6239
        %v6502 = vunpack.c.h.b16 %v6239
        %v6503 = vunpack.c.l.b16 %v6240
        %v6504 = vunpack.c.h.b16 %v6240
        %v6505 = vunpack.c.l.b16 %v6241
        %v6506 = vunpack.c.h.b16 %v6241
        %v6507 = vunpack.c.l.b16 %v6242
        %v6508 = vunpack.c.h.b16 %v6242
        %v6509 = vunpack.c.l.b16 %v6243
        %v6510 = vunpack.c.h.b16 %v6243
        %v6511 = vunpack.c.l.b16 %v6244
        %v6512 = vunpack.c.h.b16 %v6244
        %v6513 = vunpack.c.l.b16 %v6245
        %v6514 = vunpack.c.h.b16 %v6245
        %v6515 = vunpack.c.l.b16 %v6246
        %v6516 = vunpack.c.h.b16 %v6246
        %v6517 = vunpack.c.l.b16 %v6247
        %v6518 = vunpack.c.h.b16 %v6247
        %v6519 = vunpack.c.l.b16 %v6248
        %v6520 = vunpack.c.h.b16 %v6248
        %v6521 = vunpack.c.l.b16 %v6249
        %v6522 = vunpack.c.h.b16 %v6249
        %v6523 = vunpack.c.l.b16 %v6250
        %v6524 = vunpack.c.h.b16 %v6250
        %v6525 = vunpack.c.l.b16 %v6251
        %v6526 = vunpack.c.h.b16 %v6251
        %v6527 = vunpack.c.l.b16 %v6252
        %v6528 = vunpack.c.h.b16 %v6252
        %v6529 = vunpack.c.l.b16 %v6253
        %v6530 = vunpack.c.h.b16 %v6253
        %v6531 = vunpack.c.l.b16 %v6254
        %v6532 = vunpack.c.h.b16 %v6254
        %v6533 = vunpack.c.l.b16 %v6255
        %v6534 = vunpack.c.h.b16 %v6255
        %v6535 = vpack.c.b16 %v6411, %v6407
        %v6536 = vpack.c.b16 %v6412, %v6408
        %v6537 = vpack.c.b16 %v6413, %v6409
        %v6538 = vpack.c.b16 %v6414, %v6410
        %v6539 = vpack.c.b16 %v6419, %v6415
        %v6540 = vpack.c.b16 %v6420, %v6416
        %v6541 = vpack.c.b16 %v6421, %v6417
        %v6542 = vpack.c.b16 %v6422, %v6418
        %v6543 = vpack.c.b16 %v6427, %v6423
        %v6544 = vpack.c.b16 %v6428, %v6424
        %v6545 = vpack.c.b16 %v6429, %v6425
        %v6546 = vpack.c.b16 %v6430, %v6426
        %v6547 = vpack.c.b16 %v6435, %v6431
        %v6548 = vpack.c.b16 %v6436, %v6432
        %v6549 = vpack.c.b16 %v6437, %v6433
        %v6550 = vpack.c.b16 %v6438, %v6434
        %v6551 = vpack.c.b16 %v6443, %v6439
        %v6552 = vpack.c.b16 %v6444, %v6440
        %v6553 = vpack.c.b16 %v6445, %v6441
        %v6554 = vpack.c.b16 %v6446, %v6442
        %v6555 = vpack.c.b16 %v6451, %v6447
        %v6556 = vpack.c.b16 %v6452, %v6448
        %v6557 = vpack.c.b16 %v6453, %v6449
        %v6558 = vpack.c.b16 %v6454, %v6450
        %v6559 = vpack.c.b16 %v6459, %v6455
        %v6560 = vpack.c.b16 %v6460, %v6456
        %v6561 = vpack.c.b16 %v6461, %v6457
        %v6562 = vpack.c.b16 %v6462, %v6458
        %v6563 = vpack.c.b16 %v6467, %v6463
        %v6564 = vpack.c.b16 %v6468, %v6464
        %v6565 = vpack.c.b16 %v6469, %v6465
        %v6566 = vpack.c.b16 %v6470, %v6466
        %v6567 = vpack.c.b16 %v6475, %v6471
        %v6568 = vpack.c.b16 %v6476, %v6472
        %v6569 = vpack.c.b16 %v6477, %v6473
        %v6570 = vpack.c.b16 %v6478, %v6474
        %v6571 = vpack.c.b16 %v6483, %v6479
        %v6572 = vpack.c.b16 %v6484, %v6480
        %v6573 = vpack.c.b16 %v6485, %v6481
        %v6574 = vpack.c.b16 %v6486, %v6482
        %v6575 = vpack.c.b16 %v6491, %v6487
        %v6576 = vpack.c.b16 %v6492, %v6488
        %v6577 = vpack.c.b16 %v6493, %v6489
        %v6578 = vpack.c.b16 %v6494, %v6490
        %v6579 = vpack.c.b16 %v6499, %v6495
        %v6580 = vpack.c.b16 %v6500, %v6496
        %v6581 = vpack.c.b16 %v6501, %v6497
        %v6582 = vpack.c.b16 %v6502, %v6498
        %v6583 = vpack.c.b16 %v6507, %v6503
        %v6584 = vpack.c.b16 %v6508, %v6504
        %v6585 = vpack.c.b16 %v6509, %v6505
        %v6586 = vpack.c.b16 %v6510, %v6506
        %v6587 = vpack.c.b16 %v6515, %v6511
        %v6588 = vpack.c.b16 %v6516, %v6512
        %v6589 = vpack.c.b16 %v6517, %v6513
        %v6590 = vpack.c.b16 %v6518, %v6514
        %v6591 = vpack.c.b16 %v6523, %v6519
        %v6592 = vpack.c.b16 %v6524, %v6520
        %v6593 = vpack.c.b16 %v6525, %v6521
        %v6594 = vpack.c.b16 %v6526, %v6522
        %v6595 = vpack.c.b16 %v6531, %v6527
        %v6596 = vpack.c.b16 %v6532, %v6528
        %v6597 = vpack.c.b16 %v6533, %v6529
        %v6598 = vpack.c.b16 %v6534, %v6530
        %6663 = vmatprep.subr.bf16.mxu0 %v6536
        %6664 = vmatpush1.bf16.msra.mxu0 %v6535
        %6665 = vmatprep.subr.bf16.mxu0 %v6540
        %6666 = vmatpush1.bf16.msra.mxu0 %v6539
        %6667 = vmatprep.subr.bf16.mxu0 %v6544
        %6668 = vmatpush1.bf16.msra.mxu0 %v6543
        %6669 = vmatprep.subr.bf16.mxu0 %v6548
        %6670 = vmatpush1.bf16.msra.mxu0 %v6547
        %6671 = vmatprep.subr.bf16.mxu0 %v6552
        %6672 = vmatpush1.bf16.msra.mxu0 %v6551
        %6673 = vmatprep.subr.bf16.mxu0 %v6556
        %6674 = vmatpush1.bf16.msra.mxu0 %v6555
        %6675 = vmatprep.subr.bf16.mxu0 %v6560
        %6676 = vmatpush1.bf16.msra.mxu0 %v6559
        %6677 = vmatprep.subr.bf16.mxu0 %v6564
        %6678 = vmatpush1.bf16.msra.mxu0 %v6563
        %6679 = vmatprep.subr.bf16.mxu0 %v6568
        %6680 = vmatpush1.bf16.msra.mxu0 %v6567
        %6681 = vmatprep.subr.bf16.mxu0 %v6572
        %6682 = vmatpush1.bf16.msra.mxu0 %v6571
        %6683 = vmatprep.subr.bf16.mxu0 %v6576
        %6684 = vmatpush1.bf16.msra.mxu0 %v6575
        %6685 = vmatprep.subr.bf16.mxu0 %v6580
        %6686 = vmatpush1.bf16.msra.mxu0 %v6579
        %6687 = vmatprep.subr.bf16.mxu0 %v6584
        %6688 = vmatpush1.bf16.msra.mxu0 %v6583
        %6689 = vmatprep.subr.bf16.mxu0 %v6588
        %6690 = vmatpush1.bf16.msra.mxu0 %v6587
        %6691 = vmatprep.subr.bf16.mxu0 %v6592
        %6692 = vmatpush1.bf16.msra.mxu0 %v6591
        %6693 = vmatprep.subr.bf16.mxu0 %v6596
        %6694 = vmatpush1.bf16.msra.mxu0 %v6595
        %6695 = vmatprep.mubr.bf16.mxu0 %v6161
        %6696 = vmatmul.mubr.bf16.gmra.mrb[0].mxu0 %v6160
        %v6697 = vpop.f32.mrb[0].mxu0
        %v6698 = vadd.f32 %v6326, %v6697
        %v6699 = vpop.f32.mrb[0].mxu0
        %v6700 = vadd.f32 %v6330, %v6699
        %v6701 = vpop.f32.mrb[0].mxu0
        %v6702 = vadd.f32 %v6326, %v6701
        %v6703 = vpop.f32.mrb[0].mxu0
        %v6704 = vadd.f32 %v6330, %v6703
        %6705 = vmatprep.mubr.bf16.mxu0 %v6163
        %6706 = vmatmul.mubr.bf16.gmra.mrb[0].mxu0 %v6162
        %v6707 = vpop.f32.mrb[0].mxu0
        %v6708 = vadd.f32 %v6326, %v6707
        %v6709 = vpop.f32.mrb[0].mxu0
        %v6710 = vadd.f32 %v6330, %v6709
        %v6711 = vpop.f32.mrb[0].mxu0
        %v6712 = vadd.f32 %v6326, %v6711
        %v6713 = vpop.f32.mrb[0].mxu0
        %v6714 = vadd.f32 %v6330, %v6713
        %6715 = vmatprep.mubr.bf16.mxu0 %v6165
        %6716 = vmatmul.mubr.bf16.gmra.mrb[0].mxu0 %v6164
        %v6717 = vpop.f32.mrb[0].mxu0
        %v6718 = vadd.f32 %v6326, %v6717
        %v6719 = vpop.f32.mrb[0].mxu0
        %v6720 = vadd.f32 %v6330, %v6719
        %v6721 = vpop.f32.mrb[0].mxu0
        %v6722 = vadd.f32 %v6326, %v6721
        %v6723 = vpop.f32.mrb[0].mxu0
        %v6724 = vadd.f32 %v6330, %v6723
        %6725 = vmatprep.mubr.bf16.mxu0 %v6167
        %6726 = vmatmul.mubr.bf16.gmra.mrb[0].mxu0 %v6166
        %v6727 = vpop.f32.mrb[0].mxu0
        %v6728 = vadd.f32 %v6326, %v6727
        %v6729 = vpop.f32.mrb[0].mxu0
        %v6730 = vadd.f32 %v6330, %v6729
        %v6731 = vpop.f32.mrb[0].mxu0
        %v6732 = vadd.f32 %v6326, %v6731
        %v6733 = vpop.f32.mrb[0].mxu0
        %v6734 = vadd.f32 %v6330, %v6733
        %6735 = vmatprep.mubr.bf16.mxu0 %v6169
        %6736 = vmatmul.mubr.bf16.gmra.mrb[0].mxu0 %v6168
        %v6737 = vpop.f32.mrb[0].mxu0
        %v6738 = vadd.f32 %v6326, %v6737
        %v6739 = vpop.f32.mrb[0].mxu0
        %v6740 = vadd.f32 %v6330, %v6739
        %v6741 = vpop.f32.mrb[0].mxu0
        %v6742 = vadd.f32 %v6326, %v6741
        %v6743 = vpop.f32.mrb[0].mxu0
        %v6744 = vadd.f32 %v6330, %v6743
        %6745 = vmatprep.mubr.bf16.mxu0 %v6171
        %6746 = vmatmul.mubr.bf16.gmra.mrb[0].mxu0 %v6170
        %v6747 = vpop.f32.mrb[0].mxu0
        %v6748 = vadd.f32 %v6326, %v6747
        %v6749 = vpop.f32.mrb[0].mxu0
        %v6750 = vadd.f32 %v6330, %v6749
        %v6751 = vpop.f32.mrb[0].mxu0
        %v6752 = vadd.f32 %v6326, %v6751
        %v6753 = vpop.f32.mrb[0].mxu0
        %v6754 = vadd.f32 %v6330, %v6753
        %6755 = vmatprep.mubr.bf16.mxu0 %v6173
        %6756 = vmatmul.mubr.bf16.gmra.mrb[0].mxu0 %v6172
        %v6757 = vpop.f32.mrb[0].mxu0
        %v6758 = vadd.f32 %v6326, %v6757
        %v6759 = vpop.f32.mrb[0].mxu0
        %v6760 = vadd.f32 %v6330, %v6759
        %v6761 = vpop.f32.mrb[0].mxu0
        %v6762 = vadd.f32 %v6326, %v6761
        %v6763 = vpop.f32.mrb[0].mxu0
        %v6764 = vadd.f32 %v6330, %v6763
        %6765 = vmatprep.mubr.bf16.mxu0 %v6175
        %6766 = vmatmul.mubr.bf16.gmra.mrb[0].mxu0 %v6174
        %v6767 = vpop.f32.mrb[0].mxu0
        %v6768 = vadd.f32 %v6326, %v6767
        %v6769 = vpop.f32.mrb[0].mxu0
        %v6770 = vadd.f32 %v6330, %v6769
        %v6771 = vpop.f32.mrb[0].mxu0
        %v6772 = vadd.f32 %v6326, %v6771
        %v6773 = vpop.f32.mrb[0].mxu0
        %v6774 = vadd.f32 %v6330, %v6773
        %6775 = vmatprep.mubr.bf16.mxu0 %v6177
        %6776 = vmatmul.mubr.bf16.gmra.mrb[0].mxu0 %v6176
        %v6777 = vpop.f32.mrb[0].mxu0
        %v6778 = vadd.f32 %v6326, %v6777
        %v6779 = vpop.f32.mrb[0].mxu0
        %v6780 = vadd.f32 %v6330, %v6779
        %v6781 = vpop.f32.mrb[0].mxu0
        %v6782 = vadd.f32 %v6326, %v6781
        %v6783 = vpop.f32.mrb[0].mxu0
        %v6784 = vadd.f32 %v6330, %v6783
        %6785 = vmatprep.mubr.bf16.mxu0 %v6179
        %6786 = vmatmul.mubr.bf16.gmra.mrb[0].mxu0 %v6178
        %v6787 = vpop.f32.mrb[0].mxu0
        %v6788 = vadd.f32 %v6326, %v6787
        %v6789 = vpop.f32.mrb[0].mxu0
        %v6790 = vadd.f32 %v6330, %v6789
        %v6791 = vpop.f32.mrb[0].mxu0
        %v6792 = vadd.f32 %v6326, %v6791
        %v6793 = vpop.f32.mrb[0].mxu0
        %v6794 = vadd.f32 %v6330, %v6793
        %6795 = vmatprep.mubr.bf16.mxu0 %v6181
        %6796 = vmatmul.mubr.bf16.gmra.mrb[0].mxu0 %v6180
        %v6797 = vpop.f32.mrb[0].mxu0
        %v6798 = vadd.f32 %v6326, %v6797
        %v6799 = vpop.f32.mrb[0].mxu0
        %v6800 = vadd.f32 %v6330, %v6799
        %v6801 = vpop.f32.mrb[0].mxu0
        %v6802 = vadd.f32 %v6326, %v6801
        %v6803 = vpop.f32.mrb[0].mxu0
        %v6804 = vadd.f32 %v6330, %v6803
        %6805 = vmatprep.mubr.bf16.mxu0 %v6183
        %6806 = vmatmul.mubr.bf16.gmra.mrb[0].mxu0 %v6182
        %v6807 = vpop.f32.mrb[0].mxu0
        %v6808 = vadd.f32 %v6326, %v6807
        %v6809 = vpop.f32.mrb[0].mxu0
        %v6810 = vadd.f32 %v6330, %v6809
        %v6811 = vpop.f32.mrb[0].mxu0
        %v6812 = vadd.f32 %v6326, %v6811
        %v6813 = vpop.f32.mrb[0].mxu0
        %v6814 = vadd.f32 %v6330, %v6813
        %6815 = vmatprep.mubr.bf16.mxu0 %v6185
        %6816 = vmatmul.mubr.bf16.gmra.mrb[0].mxu0 %v6184
        %v6817 = vpop.f32.mrb[0].mxu0
        %v6818 = vadd.f32 %v6326, %v6817
        %v6819 = vpop.f32.mrb[0].mxu0
        %v6820 = vadd.f32 %v6330, %v6819
        %v6821 = vpop.f32.mrb[0].mxu0
        %v6822 = vadd.f32 %v6326, %v6821
        %v6823 = vpop.f32.mrb[0].mxu0
        %v6824 = vadd.f32 %v6330, %v6823
        %6825 = vmatprep.mubr.bf16.mxu0 %v6187
        %6826 = vmatmul.mubr.bf16.gmra.mrb[0].mxu0 %v6186
        %v6827 = vpop.f32.mrb[0].mxu0
        %v6828 = vadd.f32 %v6326, %v6827
        %v6829 = vpop.f32.mrb[0].mxu0
        %v6830 = vadd.f32 %v6330, %v6829
        %v6831 = vpop.f32.mrb[0].mxu0
        %v6832 = vadd.f32 %v6326, %v6831
        %v6833 = vpop.f32.mrb[0].mxu0
        %v6834 = vadd.f32 %v6330, %v6833
        %6835 = vmatprep.mubr.bf16.mxu0 %v6189
        %6836 = vmatmul.mubr.bf16.gmra.mrb[0].mxu0 %v6188
        %v6837 = vpop.f32.mrb[0].mxu0
        %v6838 = vadd.f32 %v6326, %v6837
        %v6839 = vpop.f32.mrb[0].mxu0
        %v6840 = vadd.f32 %v6330, %v6839
        %v6841 = vpop.f32.mrb[0].mxu0
        %v6842 = vadd.f32 %v6326, %v6841
        %v6843 = vpop.f32.mrb[0].mxu0
        %v6844 = vadd.f32 %v6330, %v6843
        %6845 = vmatprep.mubr.bf16.mxu0 %v6191
        %6846 = vmatmul.mubr.bf16.gmra.mrb[0].mxu0 %v6190
        %v6847 = vpop.f32.mrb[0].mxu0
        %v6848 = vadd.f32 %v6326, %v6847
        %v6849 = vpop.f32.mrb[0].mxu0
        %v6850 = vadd.f32 %v6330, %v6849
        %v6851 = vpop.f32.mrb[0].mxu0
        %v6852 = vadd.f32 %v6326, %v6851
        %v6853 = vpop.f32.mrb[0].mxu0
        %v6854 = vadd.f32 %v6330, %v6853
        %6855 = vdwg.mxu0
        %6856 = vmatprep.subr.bf16.mxu0 %v6538
        %6857 = vmatpush1.bf16.msra.mxu0 %v6537
        %6858 = vmatprep.subr.bf16.mxu0 %v6542
        %6859 = vmatpush1.bf16.msra.mxu0 %v6541
        %6860 = vmatprep.subr.bf16.mxu0 %v6546
        %6861 = vmatpush1.bf16.msra.mxu0 %v6545
        %6862 = vmatprep.subr.bf16.mxu0 %v6550
        %6863 = vmatpush1.bf16.msra.mxu0 %v6549
        %6864 = vmatprep.subr.bf16.mxu0 %v6554
        %6865 = vmatpush1.bf16.msra.mxu0 %v6553
        %6866 = vmatprep.subr.bf16.mxu0 %v6558
        %6867 = vmatpush1.bf16.msra.mxu0 %v6557
        %6868 = vmatprep.subr.bf16.mxu0 %v6562
        %6869 = vmatpush1.bf16.msra.mxu0 %v6561
        %6870 = vmatprep.subr.bf16.mxu0 %v6566
        %6871 = vmatpush1.bf16.msra.mxu0 %v6565
        %6872 = vmatprep.subr.bf16.mxu0 %v6570
        %6873 = vmatpush1.bf16.msra.mxu0 %v6569
        %6874 = vmatprep.subr.bf16.mxu0 %v6574
        %6875 = vmatpush1.bf16.msra.mxu0 %v6573
        %6876 = vmatprep.subr.bf16.mxu0 %v6578
        %6877 = vmatpush1.bf16.msra.mxu0 %v6577
        %6878 = vmatprep.subr.bf16.mxu0 %v6582
        %6879 = vmatpush1.bf16.msra.mxu0 %v6581
        %6880 = vmatprep.subr.bf16.mxu0 %v6586
        %6881 = vmatpush1.bf16.msra.mxu0 %v6585
        %6882 = vmatprep.subr.bf16.mxu0 %v6590
        %6883 = vmatpush1.bf16.msra.mxu0 %v6589
        %6884 = vmatprep.subr.bf16.mxu0 %v6594
        %6885 = vmatpush1.bf16.msra.mxu0 %v6593
        %6886 = vmatprep.subr.bf16.mxu0 %v6598
        %6887 = vmatpush1.bf16.msra.mxu0 %v6597
        %6888 = vmatprep.mubr.bf16.mxu0 %v6161
        %6889 = vmatmul.mubr.bf16.gmra.mrb[0].mxu0 %v6160
        %v6890 = vpop.f32.mrb[0].mxu0
        %v6891 = vadd.f32 %v6334, %v6890
        %v6892 = vpop.f32.mrb[0].mxu0
        %v6893 = vadd.f32 %v6338, %v6892
        %v6894 = vpop.f32.mrb[0].mxu0
        %v6895 = vadd.f32 %v6334, %v6894
        %v6896 = vpop.f32.mrb[0].mxu0
        %v6897 = vadd.f32 %v6338, %v6896
        %6898 = vmatprep.mubr.bf16.mxu0 %v6163
        %6899 = vmatmul.mubr.bf16.gmra.mrb[0].mxu0 %v6162
        %v6900 = vpop.f32.mrb[0].mxu0
        %v6901 = vadd.f32 %v6334, %v6900
        %v6902 = vpop.f32.mrb[0].mxu0
        %v6903 = vadd.f32 %v6338, %v6902
        %v6904 = vpop.f32.mrb[0].mxu0
        %v6905 = vadd.f32 %v6334, %v6904
        %v6906 = vpop.f32.mrb[0].mxu0
        %v6907 = vadd.f32 %v6338, %v6906
        %6908 = vmatprep.mubr.bf16.mxu0 %v6165
        %6909 = vmatmul.mubr.bf16.gmra.mrb[0].mxu0 %v6164
        %v6910 = vpop.f32.mrb[0].mxu0
        %v6911 = vadd.f32 %v6334, %v6910
        %v6912 = vpop.f32.mrb[0].mxu0
        %v6913 = vadd.f32 %v6338, %v6912
        %v6914 = vpop.f32.mrb[0].mxu0
        %v6915 = vadd.f32 %v6334, %v6914
        %v6916 = vpop.f32.mrb[0].mxu0
        %v6917 = vadd.f32 %v6338, %v6916
        %6918 = vmatprep.mubr.bf16.mxu0 %v6167
        %6919 = vmatmul.mubr.bf16.gmra.mrb[0].mxu0 %v6166
        %v6920 = vpop.f32.mrb[0].mxu0
        %v6921 = vadd.f32 %v6334, %v6920
        %v6922 = vpop.f32.mrb[0].mxu0
        %v6923 = vadd.f32 %v6338, %v6922
        %v6924 = vpop.f32.mrb[0].mxu0
        %v6925 = vadd.f32 %v6334, %v6924
        %v6926 = vpop.f32.mrb[0].mxu0
        %v6927 = vadd.f32 %v6338, %v6926
        %6928 = vmatprep.mubr.bf16.mxu0 %v6169
        %6929 = vmatmul.mubr.bf16.gmra.mrb[0].mxu0 %v6168
        %v6930 = vpop.f32.mrb[0].mxu0
        %v6931 = vadd.f32 %v6334, %v6930
        %v6932 = vpop.f32.mrb[0].mxu0
        %v6933 = vadd.f32 %v6338, %v6932
        %v6934 = vpop.f32.mrb[0].mxu0
        %v6935 = vadd.f32 %v6334, %v6934
        %v6936 = vpop.f32.mrb[0].mxu0
        %v6937 = vadd.f32 %v6338, %v6936
        %6938 = vmatprep.mubr.bf16.mxu0 %v6171
        %6939 = vmatmul.mubr.bf16.gmra.mrb[0].mxu0 %v6170
        %v6940 = vpop.f32.mrb[0].mxu0
        %v6941 = vadd.f32 %v6334, %v6940
        %v6942 = vpop.f32.mrb[0].mxu0
        %v6943 = vadd.f32 %v6338, %v6942
        %v6944 = vpop.f32.mrb[0].mxu0
        %v6945 = vadd.f32 %v6334, %v6944
        %v6946 = vpop.f32.mrb[0].mxu0
        %v6947 = vadd.f32 %v6338, %v6946
        %6948 = vmatprep.mubr.bf16.mxu0 %v6173
        %6949 = vmatmul.mubr.bf16.gmra.mrb[0].mxu0 %v6172
        %v6950 = vpop.f32.mrb[0].mxu0
        %v6951 = vadd.f32 %v6334, %v6950
        %v6952 = vpop.f32.mrb[0].mxu0
        %v6953 = vadd.f32 %v6338, %v6952
        %v6954 = vpop.f32.mrb[0].mxu0
        %v6955 = vadd.f32 %v6334, %v6954
        %v6956 = vpop.f32.mrb[0].mxu0
        %v6957 = vadd.f32 %v6338, %v6956
        %6958 = vmatprep.mubr.bf16.mxu0 %v6175
        %6959 = vmatmul.mubr.bf16.gmra.mrb[0].mxu0 %v6174
        %v6960 = vpop.f32.mrb[0].mxu0
        %v6961 = vadd.f32 %v6334, %v6960
        %v6962 = vpop.f32.mrb[0].mxu0
        %v6963 = vadd.f32 %v6338, %v6962
        %v6964 = vpop.f32.mrb[0].mxu0
        %v6965 = vadd.f32 %v6334, %v6964
        %v6966 = vpop.f32.mrb[0].mxu0
        %v6967 = vadd.f32 %v6338, %v6966
        %6968 = vmatprep.mubr.bf16.mxu0 %v6177
        %6969 = vmatmul.mubr.bf16.gmra.mrb[0].mxu0 %v6176
        %v6970 = vpop.f32.mrb[0].mxu0
        %v6971 = vadd.f32 %v6334, %v6970
        %v6972 = vpop.f32.mrb[0].mxu0
        %v6973 = vadd.f32 %v6338, %v6972
        %v6974 = vpop.f32.mrb[0].mxu0
        %v6975 = vadd.f32 %v6334, %v6974
        %v6976 = vpop.f32.mrb[0].mxu0
        %v6977 = vadd.f32 %v6338, %v6976
        %6978 = vmatprep.mubr.bf16.mxu0 %v6179
        %6979 = vmatmul.mubr.bf16.gmra.mrb[0].mxu0 %v6178
        %v6980 = vpop.f32.mrb[0].mxu0
        %v6981 = vadd.f32 %v6334, %v6980
        %v6982 = vpop.f32.mrb[0].mxu0
        %v6983 = vadd.f32 %v6338, %v6982
        %v6984 = vpop.f32.mrb[0].mxu0
        %v6985 = vadd.f32 %v6334, %v6984
        %v6986 = vpop.f32.mrb[0].mxu0
        %v6987 = vadd.f32 %v6338, %v6986
        %6988 = vmatprep.mubr.bf16.mxu0 %v6181
        %6989 = vmatmul.mubr.bf16.gmra.mrb[0].mxu0 %v6180
        %v6990 = vpop.f32.mrb[0].mxu0
        %v6991 = vadd.f32 %v6334, %v6990
        %v6992 = vpop.f32.mrb[0].mxu0
        %v6993 = vadd.f32 %v6338, %v6992
        %v6994 = vpop.f32.mrb[0].mxu0
        %v6995 = vadd.f32 %v6334, %v6994
        %v6996 = vpop.f32.mrb[0].mxu0
        %v6997 = vadd.f32 %v6338, %v6996
        %6998 = vmatprep.mubr.bf16.mxu0 %v6183
        %6999 = vmatmul.mubr.bf16.gmra.mrb[0].mxu0 %v6182
        %v7000 = vpop.f32.mrb[0].mxu0
        %v7001 = vadd.f32 %v6334, %v7000
        %v7002 = vpop.f32.mrb[0].mxu0
        %v7003 = vadd.f32 %v6338, %v7002
        %v7004 = vpop.f32.mrb[0].mxu0
        %v7005 = vadd.f32 %v6334, %v7004
        %v7006 = vpop.f32.mrb[0].mxu0
        %v7007 = vadd.f32 %v6338, %v7006
        %7008 = vmatprep.mubr.bf16.mxu0 %v6185
        %7009 = vmatmul.mubr.bf16.gmra.mrb[0].mxu0 %v6184
        %v7010 = vpop.f32.mrb[0].mxu0
        %v7011 = vadd.f32 %v6334, %v7010
        %v7012 = vpop.f32.mrb[0].mxu0
        %v7013 = vadd.f32 %v6338, %v7012
        %v7014 = vpop.f32.mrb[0].mxu0
        %v7015 = vadd.f32 %v6334, %v7014
        %v7016 = vpop.f32.mrb[0].mxu0
        %v7017 = vadd.f32 %v6338, %v7016
        %7018 = vmatprep.mubr.bf16.mxu0 %v6187
        %7019 = vmatmul.mubr.bf16.gmra.mrb[0].mxu0 %v6186
        %v7020 = vpop.f32.mrb[0].mxu0
        %v7021 = vadd.f32 %v6334, %v7020
        %v7022 = vpop.f32.mrb[0].mxu0
        %v7023 = vadd.f32 %v6338, %v7022
        %v7024 = vpop.f32.mrb[0].mxu0
        %v7025 = vadd.f32 %v6334, %v7024
        %v7026 = vpop.f32.mrb[0].mxu0
        %v7027 = vadd.f32 %v6338, %v7026
        %7028 = vmatprep.mubr.bf16.mxu0 %v6189
        %7029 = vmatmul.mubr.bf16.gmra.mrb[0].mxu0 %v6188
        %v7030 = vpop.f32.mrb[0].mxu0
        %v7031 = vadd.f32 %v6334, %v7030
        %v7032 = vpop.f32.mrb[0].mxu0
        %v7033 = vadd.f32 %v6338, %v7032
        %v7034 = vpop.f32.mrb[0].mxu0
        %v7035 = vadd.f32 %v6334, %v7034
        %v7036 = vpop.f32.mrb[0].mxu0
        %v7037 = vadd.f32 %v6338, %v7036
        %7038 = vmatprep.mubr.bf16.mxu0 %v6191
        %7039 = vmatmul.mubr.bf16.gmra.mrb[0].mxu0 %v6190
        %v7040 = vpop.f32.mrb[0].mxu0
        %v7041 = vadd.f32 %v6334, %v7040
        %v7042 = vpop.f32.mrb[0].mxu0
        %v7043 = vadd.f32 %v6338, %v7042
        %v7044 = vpop.f32.mrb[0].mxu0
        %v7045 = vadd.f32 %v6334, %v7044
        %v7046 = vpop.f32.mrb[0].mxu0
        %v7047 = vadd.f32 %v6338, %v7046
        %7048 = vdwg.mxu0
        %v7049 = vpack.c.bf16 %v6702, %v6698
        %v7050 = vpack.c.bf16 %v6704, %v6700
        %v7051 = vpack.c.bf16 %v6895, %v6891
        %v7052 = vpack.c.bf16 %v6897, %v6893
        %v7053 = vpack.c.bf16 %v6712, %v6708
        %v7054 = vpack.c.bf16 %v6714, %v6710
        %v7055 = vpack.c.bf16 %v6905, %v6901
        %v7056 = vpack.c.bf16 %v6907, %v6903
        %v7057 = vpack.c.bf16 %v6722, %v6718
        %v7058 = vpack.c.bf16 %v6724, %v6720
        %v7059 = vpack.c.bf16 %v6915, %v6911
        %v7060 = vpack.c.bf16 %v6917, %v6913
        %v7061 = vpack.c.bf16 %v6732, %v6728
        %v7062 = vpack.c.bf16 %v6734, %v6730
        %v7063 = vpack.c.bf16 %v6925, %v6921
        %v7064 = vpack.c.bf16 %v6927, %v6923
        %v7065 = vpack.c.bf16 %v6742, %v6738
        %v7066 = vpack.c.bf16 %v6744, %v6740
        %v7067 = vpack.c.bf16 %v6935, %v6931
        %v7068 = vpack.c.bf16 %v6937, %v6933
        %v7069 = vpack.c.bf16 %v6752, %v6748
        %v7070 = vpack.c.bf16 %v6754, %v6750
        %v7071 = vpack.c.bf16 %v6945, %v6941
        %v7072 = vpack.c.bf16 %v6947, %v6943
        %v7073 = vpack.c.bf16 %v6762, %v6758
        %v7074 = vpack.c.bf16 %v6764, %v6760
        %v7075 = vpack.c.bf16 %v6955, %v6951
        %v7076 = vpack.c.bf16 %v6957, %v6953
        %v7077 = vpack.c.bf16 %v6772, %v6768
        %v7078 = vpack.c.bf16 %v6774, %v6770
        %v7079 = vpack.c.bf16 %v6965, %v6961
        %v7080 = vpack.c.bf16 %v6967, %v6963
        %v7081 = vpack.c.bf16 %v6782, %v6778
        %v7082 = vpack.c.bf16 %v6784, %v6780
        %v7083 = vpack.c.bf16 %v6975, %v6971
        %v7084 = vpack.c.bf16 %v6977, %v6973
        %v7085 = vpack.c.bf16 %v6792, %v6788
        %v7086 = vpack.c.bf16 %v6794, %v6790
        %v7087 = vpack.c.bf16 %v6985, %v6981
        %v7088 = vpack.c.bf16 %v6987, %v6983
        %v7089 = vpack.c.bf16 %v6802, %v6798
        %v7090 = vpack.c.bf16 %v6804, %v6800
        %v7091 = vpack.c.bf16 %v6995, %v6991
        %v7092 = vpack.c.bf16 %v6997, %v6993
        %v7093 = vpack.c.bf16 %v6812, %v6808
        %v7094 = vpack.c.bf16 %v6814, %v6810
        %v7095 = vpack.c.bf16 %v7005, %v7001
        %v7096 = vpack.c.bf16 %v7007, %v7003
        %v7097 = vpack.c.bf16 %v6822, %v6818
        %v7098 = vpack.c.bf16 %v6824, %v6820
        %v7099 = vpack.c.bf16 %v7015, %v7011
        %v7100 = vpack.c.bf16 %v7017, %v7013
        %v7101 = vpack.c.bf16 %v6832, %v6828
        %v7102 = vpack.c.bf16 %v6834, %v6830
        %v7103 = vpack.c.bf16 %v7025, %v7021
        %v7104 = vpack.c.bf16 %v7027, %v7023
        %v7105 = vpack.c.bf16 %v6842, %v6838
        %v7106 = vpack.c.bf16 %v6844, %v6840
        %v7107 = vpack.c.bf16 %v7035, %v7031
        %v7108 = vpack.c.bf16 %v7037, %v7033
        %v7109 = vpack.c.bf16 %v6852, %v6848
        %v7110 = vpack.c.bf16 %v6854, %v6850
        %v7111 = vpack.c.bf16 %v7045, %v7041
        %v7112 = vpack.c.bf16 %v7047, %v7043
        %v7114 = vlaneseq
        %v7115 = vshrl.u32 %v7114, 7
        %v7116 = vsub.s32 0, %v7115
        %v7117 = vrot.slane %v6321, %v7116
        %v7183 = vunpack.c.l.b16 %v6257
        %v7184 = vunpack.c.l.b16 %v6258
        %v7185 = vunpack.c.l.b16 %v6259
        %v7186 = vunpack.c.l.b16 %v6260
        %v7187 = vunpack.c.l.b16 %v6261
        %v7188 = vunpack.c.l.b16 %v6262
        %v7189 = vunpack.c.l.b16 %v6263
        %v7190 = vunpack.c.l.b16 %v6264
        %v7191 = vunpack.c.l.b16 %v6265
        %v7192 = vunpack.c.l.b16 %v6266
        %v7193 = vunpack.c.l.b16 %v6267
        %v7194 = vunpack.c.l.b16 %v6268
        %v7195 = vunpack.c.l.b16 %v6269
        %v7196 = vunpack.c.l.b16 %v6270
        %v7197 = vunpack.c.l.b16 %v6271
        %v7198 = vunpack.c.l.b16 %v6272
        %v7199 = vunpack.c.l.b16 %v6273
        %v7200 = vunpack.c.l.b16 %v6274
        %v7201 = vunpack.c.l.b16 %v6275
        %v7202 = vunpack.c.l.b16 %v6276
        %v7203 = vunpack.c.l.b16 %v6277
        %v7204 = vunpack.c.l.b16 %v6278
        %v7205 = vunpack.c.l.b16 %v6279
        %v7206 = vunpack.c.l.b16 %v6280
        %v7207 = vunpack.c.l.b16 %v6281
        %v7208 = vunpack.c.l.b16 %v6282
        %v7209 = vunpack.c.l.b16 %v6283
        %v7210 = vunpack.c.l.b16 %v6284
        %v7211 = vunpack.c.l.b16 %v6285
        %v7212 = vunpack.c.l.b16 %v6286
        %v7213 = vunpack.c.l.b16 %v6287
        %v7214 = vunpack.c.l.b16 %v6288
        %v7215 = vunpack.c.l.b16 %v6289
        %v7216 = vunpack.c.l.b16 %v6290
        %v7217 = vunpack.c.l.b16 %v6291
        %v7218 = vunpack.c.l.b16 %v6292
        %v7219 = vunpack.c.l.b16 %v6293
        %v7220 = vunpack.c.l.b16 %v6294
        %v7221 = vunpack.c.l.b16 %v6295
        %v7222 = vunpack.c.l.b16 %v6296
        %v7223 = vunpack.c.l.b16 %v6297
        %v7224 = vunpack.c.l.b16 %v6298
        %v7225 = vunpack.c.l.b16 %v6299
        %v7226 = vunpack.c.l.b16 %v6300
        %v7227 = vunpack.c.l.b16 %v6301
        %v7228 = vunpack.c.l.b16 %v6302
        %v7229 = vunpack.c.l.b16 %v6303
        %v7230 = vunpack.c.l.b16 %v6304
        %v7231 = vunpack.c.l.b16 %v6305
        %v7232 = vunpack.c.l.b16 %v6306
        %v7233 = vunpack.c.l.b16 %v6307
        %v7234 = vunpack.c.l.b16 %v6308
        %v7235 = vunpack.c.l.b16 %v6309
        %v7236 = vunpack.c.l.b16 %v6310
        %v7237 = vunpack.c.l.b16 %v6311
        %v7238 = vunpack.c.l.b16 %v6312
        %v7239 = vunpack.c.l.b16 %v6313
        %v7240 = vunpack.c.l.b16 %v6314
        %v7241 = vunpack.c.l.b16 %v6315
        %v7242 = vunpack.c.l.b16 %v6316
        %v7243 = vunpack.c.l.b16 %v6317
        %v7244 = vunpack.c.l.b16 %v6318
        %v7245 = vunpack.c.l.b16 %v6319
        %v7246 = vunpack.c.l.b16 %v6320
        %v7247 = vpack.c.b16 %v7184, %v7183
        %v7248 = vpack.c.b16 %v7186, %v7185
        %v7249 = vpack.c.b16 %v7188, %v7187
        %v7250 = vpack.c.b16 %v7190, %v7189
        %v7251 = vpack.c.b16 %v7192, %v7191
        %v7252 = vpack.c.b16 %v7194, %v7193
        %v7253 = vpack.c.b16 %v7196, %v7195
        %v7254 = vpack.c.b16 %v7198, %v7197
        %v7255 = vpack.c.b16 %v7200, %v7199
        %v7256 = vpack.c.b16 %v7202, %v7201
        %v7257 = vpack.c.b16 %v7204, %v7203
        %v7258 = vpack.c.b16 %v7206, %v7205
        %v7259 = vpack.c.b16 %v7208, %v7207
        %v7260 = vpack.c.b16 %v7210, %v7209
        %v7261 = vpack.c.b16 %v7212, %v7211
        %v7262 = vpack.c.b16 %v7214, %v7213
        %v7263 = vpack.c.b16 %v7216, %v7215
        %v7264 = vpack.c.b16 %v7218, %v7217
        %v7265 = vpack.c.b16 %v7220, %v7219
        %v7266 = vpack.c.b16 %v7222, %v7221
        %v7267 = vpack.c.b16 %v7224, %v7223
        %v7268 = vpack.c.b16 %v7226, %v7225
        %v7269 = vpack.c.b16 %v7228, %v7227
        %v7270 = vpack.c.b16 %v7230, %v7229
        %v7271 = vpack.c.b16 %v7232, %v7231
        %v7272 = vpack.c.b16 %v7234, %v7233
        %v7273 = vpack.c.b16 %v7236, %v7235
        %v7274 = vpack.c.b16 %v7238, %v7237
        %v7275 = vpack.c.b16 %v7240, %v7239
        %v7276 = vpack.c.b16 %v7242, %v7241
        %v7277 = vpack.c.b16 %v7244, %v7243
        %v7278 = vpack.c.b16 %v7246, %v7245
        %7311 = vmatprep.subr.bf16.mxu0 0
        %7312 = vmatpush1.bf16.msra.mxu0 %v7247
        %7313 = vmatprep.subr.bf16.mxu0 0
        %7314 = vmatpush1.bf16.msra.mxu0 %v7248
        %7315 = vmatprep.subr.bf16.mxu0 0
        %7316 = vmatpush1.bf16.msra.mxu0 %v7249
        %7317 = vmatprep.subr.bf16.mxu0 0
        %7318 = vmatpush1.bf16.msra.mxu0 %v7250
        %7319 = vmatprep.subr.bf16.mxu0 0
        %7320 = vmatpush1.bf16.msra.mxu0 %v7251
        %7321 = vmatprep.subr.bf16.mxu0 0
        %7322 = vmatpush1.bf16.msra.mxu0 %v7252
        %7323 = vmatprep.subr.bf16.mxu0 0
        %7324 = vmatpush1.bf16.msra.mxu0 %v7253
        %7325 = vmatprep.subr.bf16.mxu0 0
        %7326 = vmatpush1.bf16.msra.mxu0 %v7254
        %7327 = vmatprep.subr.bf16.mxu0 0
        %7328 = vmatpush1.bf16.msra.mxu0 %v7255
        %7329 = vmatprep.subr.bf16.mxu0 0
        %7330 = vmatpush1.bf16.msra.mxu0 %v7256
        %7331 = vmatprep.subr.bf16.mxu0 0
        %7332 = vmatpush1.bf16.msra.mxu0 %v7257
        %7333 = vmatprep.subr.bf16.mxu0 0
        %7334 = vmatpush1.bf16.msra.mxu0 %v7258
        %7335 = vmatprep.subr.bf16.mxu0 0
        %7336 = vmatpush1.bf16.msra.mxu0 %v7259
        %7337 = vmatprep.subr.bf16.mxu0 0
        %7338 = vmatpush1.bf16.msra.mxu0 %v7260
        %7339 = vmatprep.subr.bf16.mxu0 0
        %7340 = vmatpush1.bf16.msra.mxu0 %v7261
        %7341 = vmatprep.subr.bf16.mxu0 0
        %7342 = vmatpush1.bf16.msra.mxu0 %v7262
        %7343 = vmatprep.mubr.bf16.mxu0 %v7050
        %7344 = vmatmul.mubr.bf16.gmra.mrb[0].mxu0 %v7049
        %v7345 = vpop.f32.mrb[0].mxu0
        %v7346 = vadd.f32 %v7117, %v7345
        %v7347 = vpop.f32.mrb[0].mxu0
        %v7348 = vpop.f32.mrb[0].mxu0
        %v7349 = vadd.f32 %v7117, %v7348
        %v7350 = vpop.f32.mrb[0].mxu0
        %7351 = vmatprep.mubr.bf16.mxu0 %v7054
        %7352 = vmatmul.mubr.bf16.gmra.mrb[0].mxu0 %v7053
        %v7353 = vpop.f32.mrb[0].mxu0
        %v7354 = vadd.f32 %v7117, %v7353
        %v7355 = vpop.f32.mrb[0].mxu0
        %v7356 = vpop.f32.mrb[0].mxu0
        %v7357 = vadd.f32 %v7117, %v7356
        %v7358 = vpop.f32.mrb[0].mxu0
        %7359 = vmatprep.mubr.bf16.mxu0 %v7058
        %7360 = vmatmul.mubr.bf16.gmra.mrb[0].mxu0 %v7057
        %v7361 = vpop.f32.mrb[0].mxu0
        %v7362 = vadd.f32 %v7117, %v7361
        %v7363 = vpop.f32.mrb[0].mxu0
        %v7364 = vpop.f32.mrb[0].mxu0
        %v7365 = vadd.f32 %v7117, %v7364
        %v7366 = vpop.f32.mrb[0].mxu0
        %7367 = vmatprep.mubr.bf16.mxu0 %v7062
        %7368 = vmatmul.mubr.bf16.gmra.mrb[0].mxu0 %v7061
        %v7369 = vpop.f32.mrb[0].mxu0
        %v7370 = vadd.f32 %v7117, %v7369
        %v7371 = vpop.f32.mrb[0].mxu0
        %v7372 = vpop.f32.mrb[0].mxu0
        %v7373 = vadd.f32 %v7117, %v7372
        %v7374 = vpop.f32.mrb[0].mxu0
        %7375 = vmatprep.mubr.bf16.mxu0 %v7066
        %7376 = vmatmul.mubr.bf16.gmra.mrb[0].mxu0 %v7065
        %v7377 = vpop.f32.mrb[0].mxu0
        %v7378 = vadd.f32 %v7117, %v7377
        %v7379 = vpop.f32.mrb[0].mxu0
        %v7380 = vpop.f32.mrb[0].mxu0
        %v7381 = vadd.f32 %v7117, %v7380
        %v7382 = vpop.f32.mrb[0].mxu0
        %7383 = vmatprep.mubr.bf16.mxu0 %v7070
        %7384 = vmatmul.mubr.bf16.gmra.mrb[0].mxu0 %v7069
        %v7385 = vpop.f32.mrb[0].mxu0
        %v7386 = vadd.f32 %v7117, %v7385
        %v7387 = vpop.f32.mrb[0].mxu0
        %v7388 = vpop.f32.mrb[0].mxu0
        %v7389 = vadd.f32 %v7117, %v7388
        %v7390 = vpop.f32.mrb[0].mxu0
        %7391 = vmatprep.mubr.bf16.mxu0 %v7074
        %7392 = vmatmul.mubr.bf16.gmra.mrb[0].mxu0 %v7073
        %v7393 = vpop.f32.mrb[0].mxu0
        %v7394 = vadd.f32 %v7117, %v7393
        %v7395 = vpop.f32.mrb[0].mxu0
        %v7396 = vpop.f32.mrb[0].mxu0
        %v7397 = vadd.f32 %v7117, %v7396
        %v7398 = vpop.f32.mrb[0].mxu0
        %7399 = vmatprep.mubr.bf16.mxu0 %v7078
        %7400 = vmatmul.mubr.bf16.gmra.mrb[0].mxu0 %v7077
        %v7401 = vpop.f32.mrb[0].mxu0
        %v7402 = vadd.f32 %v7117, %v7401
        %v7403 = vpop.f32.mrb[0].mxu0
        %v7404 = vpop.f32.mrb[0].mxu0
        %v7405 = vadd.f32 %v7117, %v7404
        %v7406 = vpop.f32.mrb[0].mxu0
        %7407 = vmatprep.mubr.bf16.mxu0 %v7082
        %7408 = vmatmul.mubr.bf16.gmra.mrb[0].mxu0 %v7081
        %v7409 = vpop.f32.mrb[0].mxu0
        %v7410 = vadd.f32 %v7117, %v7409
        %v7411 = vpop.f32.mrb[0].mxu0
        %v7412 = vpop.f32.mrb[0].mxu0
        %v7413 = vadd.f32 %v7117, %v7412
        %v7414 = vpop.f32.mrb[0].mxu0
        %7415 = vmatprep.mubr.bf16.mxu0 %v7086
        %7416 = vmatmul.mubr.bf16.gmra.mrb[0].mxu0 %v7085
        %v7417 = vpop.f32.mrb[0].mxu0
        %v7418 = vadd.f32 %v7117, %v7417
        %v7419 = vpop.f32.mrb[0].mxu0
        %v7420 = vpop.f32.mrb[0].mxu0
        %v7421 = vadd.f32 %v7117, %v7420
        %v7422 = vpop.f32.mrb[0].mxu0
        %7423 = vmatprep.mubr.bf16.mxu0 %v7090
        %7424 = vmatmul.mubr.bf16.gmra.mrb[0].mxu0 %v7089
        %v7425 = vpop.f32.mrb[0].mxu0
        %v7426 = vadd.f32 %v7117, %v7425
        %v7427 = vpop.f32.mrb[0].mxu0
        %v7428 = vpop.f32.mrb[0].mxu0
        %v7429 = vadd.f32 %v7117, %v7428
        %v7430 = vpop.f32.mrb[0].mxu0
        %7431 = vmatprep.mubr.bf16.mxu0 %v7094
        %7432 = vmatmul.mubr.bf16.gmra.mrb[0].mxu0 %v7093
        %v7433 = vpop.f32.mrb[0].mxu0
        %v7434 = vadd.f32 %v7117, %v7433
        %v7435 = vpop.f32.mrb[0].mxu0
        %v7436 = vpop.f32.mrb[0].mxu0
        %v7437 = vadd.f32 %v7117, %v7436
        %v7438 = vpop.f32.mrb[0].mxu0
        %7439 = vmatprep.mubr.bf16.mxu0 %v7098
        %7440 = vmatmul.mubr.bf16.gmra.mrb[0].mxu0 %v7097
        %v7441 = vpop.f32.mrb[0].mxu0
        %v7442 = vadd.f32 %v7117, %v7441
        %v7443 = vpop.f32.mrb[0].mxu0
        %v7444 = vpop.f32.mrb[0].mxu0
        %v7445 = vadd.f32 %v7117, %v7444
        %v7446 = vpop.f32.mrb[0].mxu0
        %7447 = vmatprep.mubr.bf16.mxu0 %v7102
        %7448 = vmatmul.mubr.bf16.gmra.mrb[0].mxu0 %v7101
        %v7449 = vpop.f32.mrb[0].mxu0
        %v7450 = vadd.f32 %v7117, %v7449
        %v7451 = vpop.f32.mrb[0].mxu0
        %v7452 = vpop.f32.mrb[0].mxu0
        %v7453 = vadd.f32 %v7117, %v7452
        %v7454 = vpop.f32.mrb[0].mxu0
        %7455 = vmatprep.mubr.bf16.mxu0 %v7106
        %7456 = vmatmul.mubr.bf16.gmra.mrb[0].mxu0 %v7105
        %v7457 = vpop.f32.mrb[0].mxu0
        %v7458 = vadd.f32 %v7117, %v7457
        %v7459 = vpop.f32.mrb[0].mxu0
        %v7460 = vpop.f32.mrb[0].mxu0
        %v7461 = vadd.f32 %v7117, %v7460
        %v7462 = vpop.f32.mrb[0].mxu0
        %7463 = vmatprep.mubr.bf16.mxu0 %v7110
        %7464 = vmatmul.mubr.bf16.gmra.mrb[0].mxu0 %v7109
        %v7465 = vpop.f32.mrb[0].mxu0
        %v7466 = vadd.f32 %v7117, %v7465
        %v7467 = vpop.f32.mrb[0].mxu0
        %v7468 = vpop.f32.mrb[0].mxu0
        %v7469 = vadd.f32 %v7117, %v7468
        %v7470 = vpop.f32.mrb[0].mxu0
        %7471 = vdwg.mxu0
        %7472 = vmatprep.subr.bf16.mxu0 0
        %7473 = vmatpush1.bf16.msra.mxu0 %v7263
        %7474 = vmatprep.subr.bf16.mxu0 0
        %7475 = vmatpush1.bf16.msra.mxu0 %v7264
        %7476 = vmatprep.subr.bf16.mxu0 0
        %7477 = vmatpush1.bf16.msra.mxu0 %v7265
        %7478 = vmatprep.subr.bf16.mxu0 0
        %7479 = vmatpush1.bf16.msra.mxu0 %v7266
        %7480 = vmatprep.subr.bf16.mxu0 0
        %7481 = vmatpush1.bf16.msra.mxu0 %v7267
        %7482 = vmatprep.subr.bf16.mxu0 0
        %7483 = vmatpush1.bf16.msra.mxu0 %v7268
        %7484 = vmatprep.subr.bf16.mxu0 0
        %7485 = vmatpush1.bf16.msra.mxu0 %v7269
        %7486 = vmatprep.subr.bf16.mxu0 0
        %7487 = vmatpush1.bf16.msra.mxu0 %v7270
        %7488 = vmatprep.subr.bf16.mxu0 0
        %7489 = vmatpush1.bf16.msra.mxu0 %v7271
        %7490 = vmatprep.subr.bf16.mxu0 0
        %7491 = vmatpush1.bf16.msra.mxu0 %v7272
        %7492 = vmatprep.subr.bf16.mxu0 0
        %7493 = vmatpush1.bf16.msra.mxu0 %v7273
        %7494 = vmatprep.subr.bf16.mxu0 0
        %7495 = vmatpush1.bf16.msra.mxu0 %v7274
        %7496 = vmatprep.subr.bf16.mxu0 0
        %7497 = vmatpush1.bf16.msra.mxu0 %v7275
        %7498 = vmatprep.subr.bf16.mxu0 0
        %7499 = vmatpush1.bf16.msra.mxu0 %v7276
        %7500 = vmatprep.subr.bf16.mxu0 0
        %7501 = vmatpush1.bf16.msra.mxu0 %v7277
        %7502 = vmatprep.subr.bf16.mxu0 0
        %7503 = vmatpush1.bf16.msra.mxu0 %v7278
        %7504 = vmatprep.mubr.bf16.mxu0 %v7052
        %7505 = vmatmul.mubr.bf16.gmra.mrb[0].mxu0 %v7051
        %v7506 = vpop.f32.mrb[0].mxu0
        %v7507 = vadd.f32 %v7346, %v7506
        %v7508 = vpop.f32.mrb[0].mxu0
        %v7509 = vpop.f32.mrb[0].mxu0
        %v7510 = vadd.f32 %v7349, %v7509
        %v7511 = vpop.f32.mrb[0].mxu0
        %7512 = vmatprep.mubr.bf16.mxu0 %v7056
        %7513 = vmatmul.mubr.bf16.gmra.mrb[0].mxu0 %v7055
        %v7514 = vpop.f32.mrb[0].mxu0
        %v7515 = vadd.f32 %v7354, %v7514
        %v7516 = vpop.f32.mrb[0].mxu0
        %v7517 = vpop.f32.mrb[0].mxu0
        %v7518 = vadd.f32 %v7357, %v7517
        %v7519 = vpop.f32.mrb[0].mxu0
        %7520 = vmatprep.mubr.bf16.mxu0 %v7060
        %7521 = vmatmul.mubr.bf16.gmra.mrb[0].mxu0 %v7059
        %v7522 = vpop.f32.mrb[0].mxu0
        %v7523 = vadd.f32 %v7362, %v7522
        %v7524 = vpop.f32.mrb[0].mxu0
        %v7525 = vpop.f32.mrb[0].mxu0
        %v7526 = vadd.f32 %v7365, %v7525
        %v7527 = vpop.f32.mrb[0].mxu0
        %7528 = vmatprep.mubr.bf16.mxu0 %v7064
        %7529 = vmatmul.mubr.bf16.gmra.mrb[0].mxu0 %v7063
        %v7530 = vpop.f32.mrb[0].mxu0
        %v7531 = vadd.f32 %v7370, %v7530
        %v7532 = vpop.f32.mrb[0].mxu0
        %v7533 = vpop.f32.mrb[0].mxu0
        %v7534 = vadd.f32 %v7373, %v7533
        %v7535 = vpop.f32.mrb[0].mxu0
        %7536 = vmatprep.mubr.bf16.mxu0 %v7068
        %7537 = vmatmul.mubr.bf16.gmra.mrb[0].mxu0 %v7067
        %v7538 = vpop.f32.mrb[0].mxu0
        %v7539 = vadd.f32 %v7378, %v7538
        %v7540 = vpop.f32.mrb[0].mxu0
        %v7541 = vpop.f32.mrb[0].mxu0
        %v7542 = vadd.f32 %v7381, %v7541
        %v7543 = vpop.f32.mrb[0].mxu0
        %7544 = vmatprep.mubr.bf16.mxu0 %v7072
        %7545 = vmatmul.mubr.bf16.gmra.mrb[0].mxu0 %v7071
        %v7546 = vpop.f32.mrb[0].mxu0
        %v7547 = vadd.f32 %v7386, %v7546
        %v7548 = vpop.f32.mrb[0].mxu0
        %v7549 = vpop.f32.mrb[0].mxu0
        %v7550 = vadd.f32 %v7389, %v7549
        %v7551 = vpop.f32.mrb[0].mxu0
        %7552 = vmatprep.mubr.bf16.mxu0 %v7076
        %7553 = vmatmul.mubr.bf16.gmra.mrb[0].mxu0 %v7075
        %v7554 = vpop.f32.mrb[0].mxu0
        %v7555 = vadd.f32 %v7394, %v7554
        %v7556 = vpop.f32.mrb[0].mxu0
        %v7557 = vpop.f32.mrb[0].mxu0
        %v7558 = vadd.f32 %v7397, %v7557
        %v7559 = vpop.f32.mrb[0].mxu0
        %7560 = vmatprep.mubr.bf16.mxu0 %v7080
        %7561 = vmatmul.mubr.bf16.gmra.mrb[0].mxu0 %v7079
        %v7562 = vpop.f32.mrb[0].mxu0
        %v7563 = vadd.f32 %v7402, %v7562
        %v7564 = vpop.f32.mrb[0].mxu0
        %v7565 = vpop.f32.mrb[0].mxu0
        %v7566 = vadd.f32 %v7405, %v7565
        %v7567 = vpop.f32.mrb[0].mxu0
        %7568 = vmatprep.mubr.bf16.mxu0 %v7084
        %7569 = vmatmul.mubr.bf16.gmra.mrb[0].mxu0 %v7083
        %v7570 = vpop.f32.mrb[0].mxu0
        %v7571 = vadd.f32 %v7410, %v7570
        %v7572 = vpop.f32.mrb[0].mxu0
        %v7573 = vpop.f32.mrb[0].mxu0
        %v7574 = vadd.f32 %v7413, %v7573
        %v7575 = vpop.f32.mrb[0].mxu0
        %7576 = vmatprep.mubr.bf16.mxu0 %v7088
        %7577 = vmatmul.mubr.bf16.gmra.mrb[0].mxu0 %v7087
        %v7578 = vpop.f32.mrb[0].mxu0
        %v7579 = vadd.f32 %v7418, %v7578
        %v7580 = vpop.f32.mrb[0].mxu0
        %v7581 = vpop.f32.mrb[0].mxu0
        %v7582 = vadd.f32 %v7421, %v7581
        %v7583 = vpop.f32.mrb[0].mxu0
        %7584 = vmatprep.mubr.bf16.mxu0 %v7092
        %7585 = vmatmul.mubr.bf16.gmra.mrb[0].mxu0 %v7091
        %v7586 = vpop.f32.mrb[0].mxu0
        %v7587 = vadd.f32 %v7426, %v7586
        %v7588 = vpop.f32.mrb[0].mxu0
        %v7589 = vpop.f32.mrb[0].mxu0
        %v7590 = vadd.f32 %v7429, %v7589
        %v7591 = vpop.f32.mrb[0].mxu0
        %7592 = vmatprep.mubr.bf16.mxu0 %v7096
        %7593 = vmatmul.mubr.bf16.gmra.mrb[0].mxu0 %v7095
        %v7594 = vpop.f32.mrb[0].mxu0
        %v7595 = vadd.f32 %v7434, %v7594
        %v7596 = vpop.f32.mrb[0].mxu0
        %v7597 = vpop.f32.mrb[0].mxu0
        %v7598 = vadd.f32 %v7437, %v7597
        %v7599 = vpop.f32.mrb[0].mxu0
        %7600 = vmatprep.mubr.bf16.mxu0 %v7100
        %7601 = vmatmul.mubr.bf16.gmra.mrb[0].mxu0 %v7099
        %v7602 = vpop.f32.mrb[0].mxu0
        %v7603 = vadd.f32 %v7442, %v7602
        %v7604 = vpop.f32.mrb[0].mxu0
        %v7605 = vpop.f32.mrb[0].mxu0
        %v7606 = vadd.f32 %v7445, %v7605
        %v7607 = vpop.f32.mrb[0].mxu0
        %7608 = vmatprep.mubr.bf16.mxu0 %v7104
        %7609 = vmatmul.mubr.bf16.gmra.mrb[0].mxu0 %v7103
        %v7610 = vpop.f32.mrb[0].mxu0
        %v7611 = vadd.f32 %v7450, %v7610
        %v7612 = vpop.f32.mrb[0].mxu0
        %v7613 = vpop.f32.mrb[0].mxu0
        %v7614 = vadd.f32 %v7453, %v7613
        %v7615 = vpop.f32.mrb[0].mxu0
        %7616 = vmatprep.mubr.bf16.mxu0 %v7108
        %7617 = vmatmul.mubr.bf16.gmra.mrb[0].mxu0 %v7107
        %v7618 = vpop.f32.mrb[0].mxu0
        %v7619 = vadd.f32 %v7458, %v7618
        %v7620 = vpop.f32.mrb[0].mxu0
        %v7621 = vpop.f32.mrb[0].mxu0
        %v7622 = vadd.f32 %v7461, %v7621
        %v7623 = vpop.f32.mrb[0].mxu0
        %7624 = vmatprep.mubr.bf16.mxu0 %v7112
        %7625 = vmatmul.mubr.bf16.gmra.mrb[0].mxu0 %v7111
        %v7626 = vpop.f32.mrb[0].mxu0
        %v7627 = vadd.f32 %v7466, %v7626
        %v7628 = vpop.f32.mrb[0].mxu0
        %v7629 = vpop.f32.mrb[0].mxu0
        %v7630 = vadd.f32 %v7469, %v7629
        %v7631 = vpop.f32.mrb[0].mxu0
        %7632 = vdwg.mxu0
        %v7633 = vld [vmem:[#allocation25] sm:$0xf]
        %v7634 = vld [vmem:[#allocation25 + $0x4] sm:$0xf]
        %v7635 = vld [vmem:[#allocation25 + $0x8] sm:$0xf]
        %v7636 = vld [vmem:[#allocation25 + $0xc] sm:$0xf]
        %v7637 = vld [vmem:[#allocation25 + $0x10] sm:$0xf]
        %v7638 = vld [vmem:[#allocation25 + $0x14] sm:$0xf]
        %v7639 = vld [vmem:[#allocation25 + $0x18] sm:$0xf]
        %v7640 = vld [vmem:[#allocation25 + $0x1c] sm:$0xf]
        %v7641 = vld [vmem:[#allocation25 + $0x20] sm:$0xf]
        %v7642 = vld [vmem:[#allocation25 + $0x24] sm:$0xf]
        %v7643 = vld [vmem:[#allocation25 + $0x28] sm:$0xf]
        %v7644 = vld [vmem:[#allocation25 + $0x2c] sm:$0xf]
        %v7645 = vld [vmem:[#allocation25 + $0x30] sm:$0xf]
        %v7646 = vld [vmem:[#allocation25 + $0x34] sm:$0xf]
        %v7647 = vld [vmem:[#allocation25 + $0x38] sm:$0xf]
        %v7648 = vld [vmem:[#allocation25 + $0x3c] sm:$0xf]
        %v7649 = vld [vmem:[#allocation25 + $0x40] sm:$0xf]
        %v7650 = vld [vmem:[#allocation25 + $0x44] sm:$0xf]
        %v7651 = vld [vmem:[#allocation25 + $0x48] sm:$0xf]
        %v7652 = vld [vmem:[#allocation25 + $0x4c] sm:$0xf]
        %v7653 = vld [vmem:[#allocation25 + $0x50] sm:$0xf]
        %v7654 = vld [vmem:[#allocation25 + $0x54] sm:$0xf]
        %v7655 = vld [vmem:[#allocation25 + $0x58] sm:$0xf]
        %v7656 = vld [vmem:[#allocation25 + $0x5c] sm:$0xf]
        %v7657 = vld [vmem:[#allocation25 + $0x60] sm:$0xf]
        %v7658 = vld [vmem:[#allocation25 + $0x64] sm:$0xf]
        %v7659 = vld [vmem:[#allocation25 + $0x68] sm:$0xf]
        %v7660 = vld [vmem:[#allocation25 + $0x6c] sm:$0xf]
        %v7661 = vld [vmem:[#allocation25 + $0x70] sm:$0xf]
        %v7662 = vld [vmem:[#allocation25 + $0x74] sm:$0xf]
        %v7663 = vld [vmem:[#allocation25 + $0x78] sm:$0xf]
        %v7664 = vld [vmem:[#allocation25 + $0x7c] sm:$0xf]
        %v7665 = vld [vmem:[%s51] sm:$0xf]
        %v7666 = vld [vmem:[%s51 + $0x4] sm:$0xf]
        %v7667 = vld [vmem:[%s51 + $0x8] sm:$0xf]
        %v7668 = vld [vmem:[%s51 + $0xc] sm:$0xf]
        %v7669 = vld [vmem:[%s51 + $0x10] sm:$0xf]
        %v7670 = vld [vmem:[%s51 + $0x14] sm:$0xf]
        %v7671 = vld [vmem:[%s51 + $0x18] sm:$0xf]
        %v7672 = vld [vmem:[%s51 + $0x1c] sm:$0xf]
        %v7673 = vld [vmem:[%s51 + $0x20] sm:$0xf]
        %v7674 = vld [vmem:[%s51 + $0x24] sm:$0xf]
        %v7675 = vld [vmem:[%s51 + $0x28] sm:$0xf]
        %v7676 = vld [vmem:[%s51 + $0x2c] sm:$0xf]
        %v7677 = vld [vmem:[%s51 + $0x30] sm:$0xf]
        %v7678 = vld [vmem:[%s51 + $0x34] sm:$0xf]
        %v7679 = vld [vmem:[%s51 + $0x38] sm:$0xf]
        %v7680 = vld [vmem:[%s51 + $0x3c] sm:$0xf]
        %v7681 = vld [vmem:[%s53] sm:$0x1]
        %v7698 = vunpack.c.l.b16 %v7665
        %v7699 = vunpack.c.l.b16 %v7666
        %v7700 = vunpack.c.l.b16 %v7667
        %v7701 = vunpack.c.l.b16 %v7668
        %v7702 = vunpack.c.l.b16 %v7669
        %v7703 = vunpack.c.l.b16 %v7670
        %v7704 = vunpack.c.l.b16 %v7671
        %v7705 = vunpack.c.l.b16 %v7672
        %v7706 = vunpack.c.l.b16 %v7673
        %v7707 = vunpack.c.l.b16 %v7674
        %v7708 = vunpack.c.l.b16 %v7675
        %v7709 = vunpack.c.l.b16 %v7676
        %v7710 = vunpack.c.l.b16 %v7677
        %v7711 = vunpack.c.l.b16 %v7678
        %v7712 = vunpack.c.l.b16 %v7679
        %v7713 = vunpack.c.l.b16 %v7680
        %v7714 = vpack.c.b16 %v7699, %v7698
        %v7715 = vpack.c.b16 %v7701, %v7700
        %v7716 = vpack.c.b16 %v7703, %v7702
        %v7717 = vpack.c.b16 %v7705, %v7704
        %v7718 = vpack.c.b16 %v7707, %v7706
        %v7719 = vpack.c.b16 %v7709, %v7708
        %v7720 = vpack.c.b16 %v7711, %v7710
        %v7721 = vpack.c.b16 %v7713, %v7712
        %7730 = vmatprep.subr.bf16.mxu0 0
        %7731 = vmatpush1.bf16.msra.mxu0 %v7714
        %7732 = vmatprep.subr.bf16.mxu0 0
        %7733 = vmatpush1.bf16.msra.mxu0 %v7715
        %7734 = vmatprep.subr.bf16.mxu0 0
        %7735 = vmatpush1.bf16.msra.mxu0 %v7716
        %7736 = vmatprep.subr.bf16.mxu0 0
        %7737 = vmatpush1.bf16.msra.mxu0 %v7717
        %7738 = vmatprep.subr.bf16.mxu0 0
        %7739 = vmatpush1.bf16.msra.mxu0 %v7718
        %7740 = vmatprep.subr.bf16.mxu0 0
        %7741 = vmatpush1.bf16.msra.mxu0 %v7719
        %7742 = vmatprep.subr.bf16.mxu0 0
        %7743 = vmatpush1.bf16.msra.mxu0 %v7720
        %7744 = vmatprep.subr.bf16.mxu0 0
        %7745 = vmatpush1.bf16.msra.mxu0 %v7721
        %7746 = vmatprep.subr.bf16.mxu0 0
        %7747 = vmatpush1.bf16.msra.mxu0 0
        %7748 = vmatprep.subr.bf16.mxu0 0
        %7749 = vmatpush1.bf16.msra.mxu0 0
        %7750 = vmatprep.subr.bf16.mxu0 0
        %7751 = vmatpush1.bf16.msra.mxu0 0
        %7752 = vmatprep.subr.bf16.mxu0 0
        %7753 = vmatpush1.bf16.msra.mxu0 0
        %7754 = vmatprep.subr.bf16.mxu0 0
        %7755 = vmatpush1.bf16.msra.mxu0 0
        %7756 = vmatprep.subr.bf16.mxu0 0
        %7757 = vmatpush1.bf16.msra.mxu0 0
        %7758 = vmatprep.subr.bf16.mxu0 0
        %7759 = vmatpush1.bf16.msra.mxu0 0
        %7760 = vmatprep.subr.bf16.mxu0 0
        %7761 = vmatpush1.bf16.msra.mxu0 0
        %7762 = vmatprep.mubr.bf16.mxu0 0
        %7763 = vmatmul.mubr.bf16.gmra.mrb[0].mxu0 %v1264
        %v7764 = vpop.f32.mrb[0].mxu0
        %v7765 = vadd.f32 0.0, %v7764
        %v7766 = vpop.f32.mrb[0].mxu0
        %v7767 = vpop.f32.mrb[0].mxu0
        %v7768 = vadd.f32 0.0, %v7767
        %v7769 = vpop.f32.mrb[0].mxu0
        %7770 = vmatprep.mubr.bf16.mxu0 0
        %7771 = vmatmul.mubr.bf16.gmra.mrb[0].mxu0 %v1265
        %v7772 = vpop.f32.mrb[0].mxu0
        %v7773 = vadd.f32 0.0, %v7772
        %v7774 = vpop.f32.mrb[0].mxu0
        %v7775 = vpop.f32.mrb[0].mxu0
        %v7776 = vadd.f32 0.0, %v7775
        %v7777 = vpop.f32.mrb[0].mxu0
        %7778 = vmatprep.mubr.bf16.mxu0 0
        %7779 = vmatmul.mubr.bf16.gmra.mrb[0].mxu0 %v1266
        %v7780 = vpop.f32.mrb[0].mxu0
        %v7781 = vadd.f32 0.0, %v7780
        %v7782 = vpop.f32.mrb[0].mxu0
        %v7783 = vpop.f32.mrb[0].mxu0
        %v7784 = vadd.f32 0.0, %v7783
        %v7785 = vpop.f32.mrb[0].mxu0
        %7786 = vmatprep.mubr.bf16.mxu0 0
        %7787 = vmatmul.mubr.bf16.gmra.mrb[0].mxu0 %v1267
        %v7788 = vpop.f32.mrb[0].mxu0
        %v7789 = vadd.f32 0.0, %v7788
        %v7790 = vpop.f32.mrb[0].mxu0
        %v7791 = vpop.f32.mrb[0].mxu0
        %v7792 = vadd.f32 0.0, %v7791
        %v7793 = vpop.f32.mrb[0].mxu0
        %7794 = vmatprep.mubr.bf16.mxu0 0
        %7795 = vmatmul.mubr.bf16.gmra.mrb[0].mxu0 %v1268
        %v7796 = vpop.f32.mrb[0].mxu0
        %v7797 = vadd.f32 0.0, %v7796
        %v7798 = vpop.f32.mrb[0].mxu0
        %v7799 = vpop.f32.mrb[0].mxu0
        %v7800 = vadd.f32 0.0, %v7799
        %v7801 = vpop.f32.mrb[0].mxu0
        %7802 = vmatprep.mubr.bf16.mxu0 0
        %7803 = vmatmul.mubr.bf16.gmra.mrb[0].mxu0 %v1269
        %v7804 = vpop.f32.mrb[0].mxu0
        %v7805 = vadd.f32 0.0, %v7804
        %v7806 = vpop.f32.mrb[0].mxu0
        %v7807 = vpop.f32.mrb[0].mxu0
        %v7808 = vadd.f32 0.0, %v7807
        %v7809 = vpop.f32.mrb[0].mxu0
        %7810 = vmatprep.mubr.bf16.mxu0 0
        %7811 = vmatmul.mubr.bf16.gmra.mrb[0].mxu0 %v1270
        %v7812 = vpop.f32.mrb[0].mxu0
        %v7813 = vadd.f32 0.0, %v7812
        %v7814 = vpop.f32.mrb[0].mxu0
        %v7815 = vpop.f32.mrb[0].mxu0
        %v7816 = vadd.f32 0.0, %v7815
        %v7817 = vpop.f32.mrb[0].mxu0
        %7818 = vmatprep.mubr.bf16.mxu0 0
        %7819 = vmatmul.mubr.bf16.gmra.mrb[0].mxu0 %v1271
        %v7820 = vpop.f32.mrb[0].mxu0
        %v7821 = vadd.f32 0.0, %v7820
        %v7822 = vpop.f32.mrb[0].mxu0
        %v7823 = vpop.f32.mrb[0].mxu0
        %v7824 = vadd.f32 0.0, %v7823
        %v7825 = vpop.f32.mrb[0].mxu0
        %7826 = vmatprep.mubr.bf16.mxu0 0
        %7827 = vmatmul.mubr.bf16.gmra.mrb[0].mxu0 %v1272
        %v7828 = vpop.f32.mrb[0].mxu0
        %v7829 = vadd.f32 0.0, %v7828
        %v7830 = vpop.f32.mrb[0].mxu0
        %v7831 = vpop.f32.mrb[0].mxu0
        %v7832 = vadd.f32 0.0, %v7831
        %v7833 = vpop.f32.mrb[0].mxu0
        %7834 = vmatprep.mubr.bf16.mxu0 0
        %7835 = vmatmul.mubr.bf16.gmra.mrb[0].mxu0 %v1273
        %v7836 = vpop.f32.mrb[0].mxu0
        %v7837 = vadd.f32 0.0, %v7836
        %v7838 = vpop.f32.mrb[0].mxu0
        %v7839 = vpop.f32.mrb[0].mxu0
        %v7840 = vadd.f32 0.0, %v7839
        %v7841 = vpop.f32.mrb[0].mxu0
        %7842 = vmatprep.mubr.bf16.mxu0 0
        %7843 = vmatmul.mubr.bf16.gmra.mrb[0].mxu0 %v1274
        %v7844 = vpop.f32.mrb[0].mxu0
        %v7845 = vadd.f32 0.0, %v7844
        %v7846 = vpop.f32.mrb[0].mxu0
        %v7847 = vpop.f32.mrb[0].mxu0
        %v7848 = vadd.f32 0.0, %v7847
        %v7849 = vpop.f32.mrb[0].mxu0
        %7850 = vmatprep.mubr.bf16.mxu0 0
        %7851 = vmatmul.mubr.bf16.gmra.mrb[0].mxu0 %v1275
        %v7852 = vpop.f32.mrb[0].mxu0
        %v7853 = vadd.f32 0.0, %v7852
        %v7854 = vpop.f32.mrb[0].mxu0
        %v7855 = vpop.f32.mrb[0].mxu0
        %v7856 = vadd.f32 0.0, %v7855
        %v7857 = vpop.f32.mrb[0].mxu0
        %7858 = vmatprep.mubr.bf16.mxu0 0
        %7859 = vmatmul.mubr.bf16.gmra.mrb[0].mxu0 %v1276
        %v7860 = vpop.f32.mrb[0].mxu0
        %v7861 = vadd.f32 0.0, %v7860
        %v7862 = vpop.f32.mrb[0].mxu0
        %v7863 = vpop.f32.mrb[0].mxu0
        %v7864 = vadd.f32 0.0, %v7863
        %v7865 = vpop.f32.mrb[0].mxu0
        %7866 = vmatprep.mubr.bf16.mxu0 0
        %7867 = vmatmul.mubr.bf16.gmra.mrb[0].mxu0 %v1277
        %v7868 = vpop.f32.mrb[0].mxu0
        %v7869 = vadd.f32 0.0, %v7868
        %v7870 = vpop.f32.mrb[0].mxu0
        %v7871 = vpop.f32.mrb[0].mxu0
        %v7872 = vadd.f32 0.0, %v7871
        %v7873 = vpop.f32.mrb[0].mxu0
        %7874 = vmatprep.mubr.bf16.mxu0 0
        %7875 = vmatmul.mubr.bf16.gmra.mrb[0].mxu0 %v1278
        %v7876 = vpop.f32.mrb[0].mxu0
        %v7877 = vadd.f32 0.0, %v7876
        %v7878 = vpop.f32.mrb[0].mxu0
        %v7879 = vpop.f32.mrb[0].mxu0
        %v7880 = vadd.f32 0.0, %v7879
        %v7881 = vpop.f32.mrb[0].mxu0
        %7882 = vmatprep.mubr.bf16.mxu0 0
        %7883 = vmatmul.mubr.bf16.gmra.mrb[0].mxu0 %v1279
        %v7884 = vpop.f32.mrb[0].mxu0
        %v7885 = vadd.f32 0.0, %v7884
        %v7886 = vpop.f32.mrb[0].mxu0
        %v7887 = vpop.f32.mrb[0].mxu0
        %v7888 = vadd.f32 0.0, %v7887
        %v7889 = vpop.f32.mrb[0].mxu0
        %7890 = vdwg.mxu0
        %v7923 = vunpack.c.l.b16 %v7633
        %v7924 = vunpack.c.l.b16 %v7634
        %v7925 = vunpack.c.l.b16 %v7635
        %v7926 = vunpack.c.l.b16 %v7636
        %v7927 = vunpack.c.l.b16 %v7637
        %v7928 = vunpack.c.l.b16 %v7638
        %v7929 = vunpack.c.l.b16 %v7639
        %v7930 = vunpack.c.l.b16 %v7640
        %v7931 = vunpack.c.l.b16 %v7641
        %v7932 = vunpack.c.l.b16 %v7642
        %v7933 = vunpack.c.l.b16 %v7643
        %v7934 = vunpack.c.l.b16 %v7644
        %v7935 = vunpack.c.l.b16 %v7645
        %v7936 = vunpack.c.l.b16 %v7646
        %v7937 = vunpack.c.l.b16 %v7647
        %v7938 = vunpack.c.l.b16 %v7648
        %v7939 = vunpack.c.l.b16 %v7649
        %v7940 = vunpack.c.l.b16 %v7650
        %v7941 = vunpack.c.l.b16 %v7651
        %v7942 = vunpack.c.l.b16 %v7652
        %v7943 = vunpack.c.l.b16 %v7653
        %v7944 = vunpack.c.l.b16 %v7654
        %v7945 = vunpack.c.l.b16 %v7655
        %v7946 = vunpack.c.l.b16 %v7656
        %v7947 = vunpack.c.l.b16 %v7657
        %v7948 = vunpack.c.l.b16 %v7658
        %v7949 = vunpack.c.l.b16 %v7659
        %v7950 = vunpack.c.l.b16 %v7660
        %v7951 = vunpack.c.l.b16 %v7661
        %v7952 = vunpack.c.l.b16 %v7662
        %v7953 = vunpack.c.l.b16 %v7663
        %v7954 = vunpack.c.l.b16 %v7664
        %v7955 = vpack.c.b16 %v7924, %v7923
        %v7956 = vpack.c.b16 %v7926, %v7925
        %v7957 = vpack.c.b16 %v7928, %v7927
        %v7958 = vpack.c.b16 %v7930, %v7929
        %v7959 = vpack.c.b16 %v7932, %v7931
        %v7960 = vpack.c.b16 %v7934, %v7933
        %v7961 = vpack.c.b16 %v7936, %v7935
        %v7962 = vpack.c.b16 %v7938, %v7937
        %v7963 = vpack.c.b16 %v7940, %v7939
        %v7964 = vpack.c.b16 %v7942, %v7941
        %v7965 = vpack.c.b16 %v7944, %v7943
        %v7966 = vpack.c.b16 %v7946, %v7945
        %v7967 = vpack.c.b16 %v7948, %v7947
        %v7968 = vpack.c.b16 %v7950, %v7949
        %v7969 = vpack.c.b16 %v7952, %v7951
        %v7970 = vpack.c.b16 %v7954, %v7953
        %7987 = vmatprep.subr.bf16.mxu0 0
        %7988 = vmatpush1.bf16.msra.mxu0 %v7955
        %7989 = vmatprep.subr.bf16.mxu0 0
        %7990 = vmatpush1.bf16.msra.mxu0 %v7956
        %7991 = vmatprep.subr.bf16.mxu0 0
        %7992 = vmatpush1.bf16.msra.mxu0 %v7957
        %7993 = vmatprep.subr.bf16.mxu0 0
        %7994 = vmatpush1.bf16.msra.mxu0 %v7958
        %7995 = vmatprep.subr.bf16.mxu0 0
        %7996 = vmatpush1.bf16.msra.mxu0 %v7959
        %7997 = vmatprep.subr.bf16.mxu0 0
        %7998 = vmatpush1.bf16.msra.mxu0 %v7960
        %7999 = vmatprep.subr.bf16.mxu0 0
        %8000 = vmatpush1.bf16.msra.mxu0 %v7961
        %8001 = vmatprep.subr.bf16.mxu0 0
        %8002 = vmatpush1.bf16.msra.mxu0 %v7962
        %8003 = vmatprep.subr.bf16.mxu0 0
        %8004 = vmatpush1.bf16.msra.mxu0 %v7963
        %8005 = vmatprep.subr.bf16.mxu0 0
        %8006 = vmatpush1.bf16.msra.mxu0 %v7964
        %8007 = vmatprep.subr.bf16.mxu0 0
        %8008 = vmatpush1.bf16.msra.mxu0 %v7965
        %8009 = vmatprep.subr.bf16.mxu0 0
        %8010 = vmatpush1.bf16.msra.mxu0 %v7966
        %8011 = vmatprep.subr.bf16.mxu0 0
        %8012 = vmatpush1.bf16.msra.mxu0 %v7967
        %8013 = vmatprep.subr.bf16.mxu0 0
        %8014 = vmatpush1.bf16.msra.mxu0 %v7968
        %8015 = vmatprep.subr.bf16.mxu0 0
        %8016 = vmatpush1.bf16.msra.mxu0 %v7969
        %8017 = vmatprep.subr.bf16.mxu0 0
        %8018 = vmatpush1.bf16.msra.mxu0 %v7970
        %8019 = vmatprep.mubr.bf16.mxu0 %v6161
        %8020 = vmatmul.mubr.bf16.gmra.mrb[0].mxu0 %v6160
        %v8021 = vpop.f32.mrb[0].mxu0
        %v8022 = vadd.f32 %v7765, %v8021
        %v8023 = vpop.f32.mrb[0].mxu0
        %v8024 = vpop.f32.mrb[0].mxu0
        %v8025 = vadd.f32 %v7768, %v8024
        %v8026 = vpop.f32.mrb[0].mxu0
        %8027 = vmatprep.mubr.bf16.mxu0 %v6163
        %8028 = vmatmul.mubr.bf16.gmra.mrb[0].mxu0 %v6162
        %v8029 = vpop.f32.mrb[0].mxu0
        %v8030 = vadd.f32 %v7773, %v8029
        %v8031 = vpop.f32.mrb[0].mxu0
        %v8032 = vpop.f32.mrb[0].mxu0
        %v8033 = vadd.f32 %v7776, %v8032
        %v8034 = vpop.f32.mrb[0].mxu0
        %8035 = vmatprep.mubr.bf16.mxu0 %v6165
        %8036 = vmatmul.mubr.bf16.gmra.mrb[0].mxu0 %v6164
        %v8037 = vpop.f32.mrb[0].mxu0
        %v8038 = vadd.f32 %v7781, %v8037
        %v8039 = vpop.f32.mrb[0].mxu0
        %v8040 = vpop.f32.mrb[0].mxu0
        %v8041 = vadd.f32 %v7784, %v8040
        %v8042 = vpop.f32.mrb[0].mxu0
        %8043 = vmatprep.mubr.bf16.mxu0 %v6167
        %8044 = vmatmul.mubr.bf16.gmra.mrb[0].mxu0 %v6166
        %v8045 = vpop.f32.mrb[0].mxu0
        %v8046 = vadd.f32 %v7789, %v8045
        %v8047 = vpop.f32.mrb[0].mxu0
        %v8048 = vpop.f32.mrb[0].mxu0
        %v8049 = vadd.f32 %v7792, %v8048
        %v8050 = vpop.f32.mrb[0].mxu0
        %8051 = vmatprep.mubr.bf16.mxu0 %v6169
        %8052 = vmatmul.mubr.bf16.gmra.mrb[0].mxu0 %v6168
        %v8053 = vpop.f32.mrb[0].mxu0
        %v8054 = vadd.f32 %v7797, %v8053
        %v8055 = vpop.f32.mrb[0].mxu0
        %v8056 = vpop.f32.mrb[0].mxu0
        %v8057 = vadd.f32 %v7800, %v8056
        %v8058 = vpop.f32.mrb[0].mxu0
        %8059 = vmatprep.mubr.bf16.mxu0 %v6171
        %8060 = vmatmul.mubr.bf16.gmra.mrb[0].mxu0 %v6170
        %v8061 = vpop.f32.mrb[0].mxu0
        %v8062 = vadd.f32 %v7805, %v8061
        %v8063 = vpop.f32.mrb[0].mxu0
        %v8064 = vpop.f32.mrb[0].mxu0
        %v8065 = vadd.f32 %v7808, %v8064
        %v8066 = vpop.f32.mrb[0].mxu0
        %8067 = vmatprep.mubr.bf16.mxu0 %v6173
        %8068 = vmatmul.mubr.bf16.gmra.mrb[0].mxu0 %v6172
        %v8069 = vpop.f32.mrb[0].mxu0
        %v8070 = vadd.f32 %v7813, %v8069
        %v8071 = vpop.f32.mrb[0].mxu0
        %v8072 = vpop.f32.mrb[0].mxu0
        %v8073 = vadd.f32 %v7816, %v8072
        %v8074 = vpop.f32.mrb[0].mxu0
        %8075 = vmatprep.mubr.bf16.mxu0 %v6175
        %8076 = vmatmul.mubr.bf16.gmra.mrb[0].mxu0 %v6174
        %v8077 = vpop.f32.mrb[0].mxu0
        %v8078 = vadd.f32 %v7821, %v8077
        %v8079 = vpop.f32.mrb[0].mxu0
        %v8080 = vpop.f32.mrb[0].mxu0
        %v8081 = vadd.f32 %v7824, %v8080
        %v8082 = vpop.f32.mrb[0].mxu0
        %8083 = vmatprep.mubr.bf16.mxu0 %v6177
        %8084 = vmatmul.mubr.bf16.gmra.mrb[0].mxu0 %v6176
        %v8085 = vpop.f32.mrb[0].mxu0
        %v8086 = vadd.f32 %v7829, %v8085
        %v8087 = vpop.f32.mrb[0].mxu0
        %v8088 = vpop.f32.mrb[0].mxu0
        %v8089 = vadd.f32 %v7832, %v8088
        %v8090 = vpop.f32.mrb[0].mxu0
        %8091 = vmatprep.mubr.bf16.mxu0 %v6179
        %8092 = vmatmul.mubr.bf16.gmra.mrb[0].mxu0 %v6178
        %v8093 = vpop.f32.mrb[0].mxu0
        %v8094 = vadd.f32 %v7837, %v8093
        %v8095 = vpop.f32.mrb[0].mxu0
        %v8096 = vpop.f32.mrb[0].mxu0
        %v8097 = vadd.f32 %v7840, %v8096
        %v8098 = vpop.f32.mrb[0].mxu0
        %8099 = vmatprep.mubr.bf16.mxu0 %v6181
        %8100 = vmatmul.mubr.bf16.gmra.mrb[0].mxu0 %v6180
        %v8101 = vpop.f32.mrb[0].mxu0
        %v8102 = vadd.f32 %v7845, %v8101
        %v8103 = vpop.f32.mrb[0].mxu0
        %v8104 = vpop.f32.mrb[0].mxu0
        %v8105 = vadd.f32 %v7848, %v8104
        %v8106 = vpop.f32.mrb[0].mxu0
        %8107 = vmatprep.mubr.bf16.mxu0 %v6183
        %8108 = vmatmul.mubr.bf16.gmra.mrb[0].mxu0 %v6182
        %v8109 = vpop.f32.mrb[0].mxu0
        %v8110 = vadd.f32 %v7853, %v8109
        %v8111 = vpop.f32.mrb[0].mxu0
        %v8112 = vpop.f32.mrb[0].mxu0
        %v8113 = vadd.f32 %v7856, %v8112
        %v8114 = vpop.f32.mrb[0].mxu0
        %8115 = vmatprep.mubr.bf16.mxu0 %v6185
        %8116 = vmatmul.mubr.bf16.gmra.mrb[0].mxu0 %v6184
        %v8117 = vpop.f32.mrb[0].mxu0
        %v8118 = vadd.f32 %v7861, %v8117
        %v8119 = vpop.f32.mrb[0].mxu0
        %v8120 = vpop.f32.mrb[0].mxu0
        %v8121 = vadd.f32 %v7864, %v8120
        %v8122 = vpop.f32.mrb[0].mxu0
        %8123 = vmatprep.mubr.bf16.mxu0 %v6187
        %8124 = vmatmul.mubr.bf16.gmra.mrb[0].mxu0 %v6186
        %v8125 = vpop.f32.mrb[0].mxu0
        %v8126 = vadd.f32 %v7869, %v8125
        %v8127 = vpop.f32.mrb[0].mxu0
        %v8128 = vpop.f32.mrb[0].mxu0
        %v8129 = vadd.f32 %v7872, %v8128
        %v8130 = vpop.f32.mrb[0].mxu0
        %8131 = vmatprep.mubr.bf16.mxu0 %v6189
        %8132 = vmatmul.mubr.bf16.gmra.mrb[0].mxu0 %v6188
        %v8133 = vpop.f32.mrb[0].mxu0
        %v8134 = vadd.f32 %v7877, %v8133
        %v8135 = vpop.f32.mrb[0].mxu0
        %v8136 = vpop.f32.mrb[0].mxu0
        %v8137 = vadd.f32 %v7880, %v8136
        %v8138 = vpop.f32.mrb[0].mxu0
        %8139 = vmatprep.mubr.bf16.mxu0 %v6191
        %8140 = vmatmul.mubr.bf16.gmra.mrb[0].mxu0 %v6190
        %v8141 = vpop.f32.mrb[0].mxu0
        %v8142 = vadd.f32 %v7885, %v8141
        %v8143 = vpop.f32.mrb[0].mxu0
        %v8144 = vpop.f32.mrb[0].mxu0
        %v8145 = vadd.f32 %v7888, %v8144
        %v8146 = vpop.f32.mrb[0].mxu0
        %8147 = vdwg.mxu0
        %v8149 = vlaneseq
        %v8150 = vshrl.u32 %v8149, 7
        %v8151 = vsub.s32 0, %v8150
        %v8152 = vrot.slane %v7681, %v8151
        %v8154 = vadd.f32 %v8022, %v8152
        %v8155 = vadd.f32 %v8025, %v8152
        %v8156 = vadd.f32 %v8030, %v8152
        %v8157 = vadd.f32 %v8033, %v8152
        %v8158 = vadd.f32 %v8038, %v8152
        %v8159 = vadd.f32 %v8041, %v8152
        %v8160 = vadd.f32 %v8046, %v8152
        %v8161 = vadd.f32 %v8049, %v8152
        %v8162 = vadd.f32 %v8054, %v8152
        %v8163 = vadd.f32 %v8057, %v8152
        %v8164 = vadd.f32 %v8062, %v8152
        %v8165 = vadd.f32 %v8065, %v8152
        %v8166 = vadd.f32 %v8070, %v8152
        %v8167 = vadd.f32 %v8073, %v8152
        %v8168 = vadd.f32 %v8078, %v8152
        %v8169 = vadd.f32 %v8081, %v8152
        %v8170 = vadd.f32 %v8086, %v8152
        %v8171 = vadd.f32 %v8089, %v8152
        %v8172 = vadd.f32 %v8094, %v8152
        %v8173 = vadd.f32 %v8097, %v8152
        %v8174 = vadd.f32 %v8102, %v8152
        %v8175 = vadd.f32 %v8105, %v8152
        %v8176 = vadd.f32 %v8110, %v8152
        %v8177 = vadd.f32 %v8113, %v8152
        %v8178 = vadd.f32 %v8118, %v8152
        %v8179 = vadd.f32 %v8121, %v8152
        %v8180 = vadd.f32 %v8126, %v8152
        %v8181 = vadd.f32 %v8129, %v8152
        %v8182 = vadd.f32 %v8134, %v8152
        %v8183 = vadd.f32 %v8137, %v8152
        %v8184 = vadd.f32 %v8142, %v8152
        %v8185 = vadd.f32 %v8145, %v8152
        %v8186 = vmax.f32 %v8154, 0.0
        %v8187 = vmax.f32 %v8155, 0.0
        %v8188 = vmax.f32 %v8156, 0.0
        %v8189 = vmax.f32 %v8157, 0.0
        %v8190 = vmax.f32 %v8158, 0.0
        %v8191 = vmax.f32 %v8159, 0.0
        %v8192 = vmax.f32 %v8160, 0.0
        %v8193 = vmax.f32 %v8161, 0.0
        %v8194 = vmax.f32 %v8162, 0.0
        %v8195 = vmax.f32 %v8163, 0.0
        %v8196 = vmax.f32 %v8164, 0.0
        %v8197 = vmax.f32 %v8165, 0.0
        %v8198 = vmax.f32 %v8166, 0.0
        %v8199 = vmax.f32 %v8167, 0.0
        %v8200 = vmax.f32 %v8168, 0.0
        %v8201 = vmax.f32 %v8169, 0.0
        %v8202 = vmax.f32 %v8170, 0.0
        %v8203 = vmax.f32 %v8171, 0.0
        %v8204 = vmax.f32 %v8172, 0.0
        %v8205 = vmax.f32 %v8173, 0.0
        %v8206 = vmax.f32 %v8174, 0.0
        %v8207 = vmax.f32 %v8175, 0.0
        %v8208 = vmax.f32 %v8176, 0.0
        %v8209 = vmax.f32 %v8177, 0.0
        %v8210 = vmax.f32 %v8178, 0.0
        %v8211 = vmax.f32 %v8179, 0.0
        %v8212 = vmax.f32 %v8180, 0.0
        %v8213 = vmax.f32 %v8181, 0.0
        %v8214 = vmax.f32 %v8182, 0.0
        %v8215 = vmax.f32 %v8183, 0.0
        %v8216 = vmax.f32 %v8184, 0.0
        %v8217 = vmax.f32 %v8185, 0.0
        %v8218 = vld [vmem:[#allocation26] sm:$0xf]
        %v8219 = vld [vmem:[#allocation26 + $0x4] sm:$0xf]
        %v8220 = vld [vmem:[#allocation26 + $0x8] sm:$0xf]
        %v8221 = vld [vmem:[#allocation26 + $0xc] sm:$0xf]
        %v8222 = vld [vmem:[#allocation26 + $0x10] sm:$0xf]
        %v8223 = vld [vmem:[#allocation26 + $0x14] sm:$0xf]
        %v8224 = vld [vmem:[#allocation26 + $0x18] sm:$0xf]
        %v8225 = vld [vmem:[#allocation26 + $0x1c] sm:$0xf]
        %v8226 = vld [vmem:[#allocation26 + $0x20] sm:$0xf]
        %v8227 = vld [vmem:[#allocation26 + $0x24] sm:$0xf]
        %v8228 = vld [vmem:[#allocation26 + $0x28] sm:$0xf]
        %v8229 = vld [vmem:[#allocation26 + $0x2c] sm:$0xf]
        %v8230 = vld [vmem:[#allocation26 + $0x30] sm:$0xf]
        %v8231 = vld [vmem:[#allocation26 + $0x34] sm:$0xf]
        %v8232 = vld [vmem:[#allocation26 + $0x38] sm:$0xf]
        %v8233 = vld [vmem:[#allocation26 + $0x3c] sm:$0xf]
        %v8234 = vld [vmem:[%s57] sm:$0x1]
        %v8235 = vpack.c.bf16 %v8187, %v8186
        %v8236 = vpack.c.bf16 %v8189, %v8188
        %v8237 = vpack.c.bf16 %v8191, %v8190
        %v8238 = vpack.c.bf16 %v8193, %v8192
        %v8239 = vpack.c.bf16 %v8195, %v8194
        %v8240 = vpack.c.bf16 %v8197, %v8196
        %v8241 = vpack.c.bf16 %v8199, %v8198
        %v8242 = vpack.c.bf16 %v8201, %v8200
        %v8243 = vpack.c.bf16 %v8203, %v8202
        %v8244 = vpack.c.bf16 %v8205, %v8204
        %v8245 = vpack.c.bf16 %v8207, %v8206
        %v8246 = vpack.c.bf16 %v8209, %v8208
        %v8247 = vpack.c.bf16 %v8211, %v8210
        %v8248 = vpack.c.bf16 %v8213, %v8212
        %v8249 = vpack.c.bf16 %v8215, %v8214
        %v8250 = vpack.c.bf16 %v8217, %v8216
        %v8252 = vlaneseq
        %v8253 = vshrl.u32 %v8252, 7
        %v8254 = vsub.s32 0, %v8253
        %v8255 = vrot.slane %v8234, %v8254
        %v8273 = vunpack.c.l.b16 %v8218
        %v8274 = vunpack.c.l.b16 %v8219
        %v8275 = vunpack.c.l.b16 %v8220
        %v8276 = vunpack.c.l.b16 %v8221
        %v8277 = vunpack.c.l.b16 %v8222
        %v8278 = vunpack.c.l.b16 %v8223
        %v8279 = vunpack.c.l.b16 %v8224
        %v8280 = vunpack.c.l.b16 %v8225
        %v8281 = vunpack.c.l.b16 %v8226
        %v8282 = vunpack.c.l.b16 %v8227
        %v8283 = vunpack.c.l.b16 %v8228
        %v8284 = vunpack.c.l.b16 %v8229
        %v8285 = vunpack.c.l.b16 %v8230
        %v8286 = vunpack.c.l.b16 %v8231
        %v8287 = vunpack.c.l.b16 %v8232
        %v8288 = vunpack.c.l.b16 %v8233
        %v8289 = vpack.c.b16 %v8274, %v8273
        %v8290 = vpack.c.b16 %v8276, %v8275
        %v8291 = vpack.c.b16 %v8278, %v8277
        %v8292 = vpack.c.b16 %v8280, %v8279
        %v8293 = vpack.c.b16 %v8282, %v8281
        %v8294 = vpack.c.b16 %v8284, %v8283
        %v8295 = vpack.c.b16 %v8286, %v8285
        %v8296 = vpack.c.b16 %v8288, %v8287
        %8305 = vmatprep.subr.bf16.mxu0 0
        %8306 = vmatpush1.bf16.msra.mxu0 %v8289
        %8307 = vmatprep.subr.bf16.mxu0 0
        %8308 = vmatpush1.bf16.msra.mxu0 %v8290
        %8309 = vmatprep.subr.bf16.mxu0 0
        %8310 = vmatpush1.bf16.msra.mxu0 %v8291
        %8311 = vmatprep.subr.bf16.mxu0 0
        %8312 = vmatpush1.bf16.msra.mxu0 %v8292
        %8313 = vmatprep.subr.bf16.mxu0 0
        %8314 = vmatpush1.bf16.msra.mxu0 %v8293
        %8315 = vmatprep.subr.bf16.mxu0 0
        %8316 = vmatpush1.bf16.msra.mxu0 %v8294
        %8317 = vmatprep.subr.bf16.mxu0 0
        %8318 = vmatpush1.bf16.msra.mxu0 %v8295
        %8319 = vmatprep.subr.bf16.mxu0 0
        %8320 = vmatpush1.bf16.msra.mxu0 %v8296
        %8321 = vmatprep.subr.bf16.mxu0 0
        %8322 = vmatpush1.bf16.msra.mxu0 0
        %8323 = vmatprep.subr.bf16.mxu0 0
        %8324 = vmatpush1.bf16.msra.mxu0 0
        %8325 = vmatprep.subr.bf16.mxu0 0
        %8326 = vmatpush1.bf16.msra.mxu0 0
        %8327 = vmatprep.subr.bf16.mxu0 0
        %8328 = vmatpush1.bf16.msra.mxu0 0
        %8329 = vmatprep.subr.bf16.mxu0 0
        %8330 = vmatpush1.bf16.msra.mxu0 0
        %8331 = vmatprep.subr.bf16.mxu0 0
        %8332 = vmatpush1.bf16.msra.mxu0 0
        %8333 = vmatprep.subr.bf16.mxu0 0
        %8334 = vmatpush1.bf16.msra.mxu0 0
        %8335 = vmatprep.subr.bf16.mxu0 0
        %8336 = vmatpush1.bf16.msra.mxu0 0
        %8337 = vmatprep.mubr.bf16.mxu0 0
        %8338 = vmatmul.mubr.bf16.gmra.mrb[0].mxu0 %v8235
        %v8339 = vpop.f32.mrb[0].mxu0
        %v8340 = vadd.f32 %v8255, %v8339
        %v8341 = vpop.f32.mrb[0].mxu0
        %v8342 = vpop.f32.mrb[0].mxu0
        %v8343 = vadd.f32 %v8255, %v8342
        %v8344 = vpop.f32.mrb[0].mxu0
        %8345 = vmatprep.mubr.bf16.mxu0 0
        %8346 = vmatmul.mubr.bf16.gmra.mrb[0].mxu0 %v8236
        %v8347 = vpop.f32.mrb[0].mxu0
        %v8348 = vadd.f32 %v8255, %v8347
        %v8349 = vpop.f32.mrb[0].mxu0
        %v8350 = vpop.f32.mrb[0].mxu0
        %v8351 = vadd.f32 %v8255, %v8350
        %v8352 = vpop.f32.mrb[0].mxu0
        %8353 = vmatprep.mubr.bf16.mxu0 0
        %8354 = vmatmul.mubr.bf16.gmra.mrb[0].mxu0 %v8237
        %v8355 = vpop.f32.mrb[0].mxu0
        %v8356 = vadd.f32 %v8255, %v8355
        %v8357 = vpop.f32.mrb[0].mxu0
        %v8358 = vpop.f32.mrb[0].mxu0
        %v8359 = vadd.f32 %v8255, %v8358
        %v8360 = vpop.f32.mrb[0].mxu0
        %8361 = vmatprep.mubr.bf16.mxu0 0
        %8362 = vmatmul.mubr.bf16.gmra.mrb[0].mxu0 %v8238
        %v8363 = vpop.f32.mrb[0].mxu0
        %v8364 = vadd.f32 %v8255, %v8363
        %v8365 = vpop.f32.mrb[0].mxu0
        %v8366 = vpop.f32.mrb[0].mxu0
        %v8367 = vadd.f32 %v8255, %v8366
        %v8368 = vpop.f32.mrb[0].mxu0
        %8369 = vmatprep.mubr.bf16.mxu0 0
        %8370 = vmatmul.mubr.bf16.gmra.mrb[0].mxu0 %v8239
        %v8371 = vpop.f32.mrb[0].mxu0
        %v8372 = vadd.f32 %v8255, %v8371
        %v8373 = vpop.f32.mrb[0].mxu0
        %v8374 = vpop.f32.mrb[0].mxu0
        %v8375 = vadd.f32 %v8255, %v8374
        %v8376 = vpop.f32.mrb[0].mxu0
        %8377 = vmatprep.mubr.bf16.mxu0 0
        %8378 = vmatmul.mubr.bf16.gmra.mrb[0].mxu0 %v8240
        %v8379 = vpop.f32.mrb[0].mxu0
        %v8380 = vadd.f32 %v8255, %v8379
        %v8381 = vpop.f32.mrb[0].mxu0
        %v8382 = vpop.f32.mrb[0].mxu0
        %v8383 = vadd.f32 %v8255, %v8382
        %v8384 = vpop.f32.mrb[0].mxu0
        %8385 = vmatprep.mubr.bf16.mxu0 0
        %8386 = vmatmul.mubr.bf16.gmra.mrb[0].mxu0 %v8241
        %v8387 = vpop.f32.mrb[0].mxu0
        %v8388 = vadd.f32 %v8255, %v8387
        %v8389 = vpop.f32.mrb[0].mxu0
        %v8390 = vpop.f32.mrb[0].mxu0
        %v8391 = vadd.f32 %v8255, %v8390
        %v8392 = vpop.f32.mrb[0].mxu0
        %8393 = vmatprep.mubr.bf16.mxu0 0
        %8394 = vmatmul.mubr.bf16.gmra.mrb[0].mxu0 %v8242
        %v8395 = vpop.f32.mrb[0].mxu0
        %v8396 = vadd.f32 %v8255, %v8395
        %v8397 = vpop.f32.mrb[0].mxu0
        %v8398 = vpop.f32.mrb[0].mxu0
        %v8399 = vadd.f32 %v8255, %v8398
        %v8400 = vpop.f32.mrb[0].mxu0
        %8401 = vmatprep.mubr.bf16.mxu0 0
        %8402 = vmatmul.mubr.bf16.gmra.mrb[0].mxu0 %v8243
        %v8403 = vpop.f32.mrb[0].mxu0
        %v8404 = vadd.f32 %v8255, %v8403
        %v8405 = vpop.f32.mrb[0].mxu0
        %v8406 = vpop.f32.mrb[0].mxu0
        %v8407 = vadd.f32 %v8255, %v8406
        %v8408 = vpop.f32.mrb[0].mxu0
        %8409 = vmatprep.mubr.bf16.mxu0 0
        %8410 = vmatmul.mubr.bf16.gmra.mrb[0].mxu0 %v8244
        %v8411 = vpop.f32.mrb[0].mxu0
        %v8412 = vadd.f32 %v8255, %v8411
        %v8413 = vpop.f32.mrb[0].mxu0
        %v8414 = vpop.f32.mrb[0].mxu0
        %v8415 = vadd.f32 %v8255, %v8414
        %v8416 = vpop.f32.mrb[0].mxu0
        %8417 = vmatprep.mubr.bf16.mxu0 0
        %8418 = vmatmul.mubr.bf16.gmra.mrb[0].mxu0 %v8245
        %v8419 = vpop.f32.mrb[0].mxu0
        %v8420 = vadd.f32 %v8255, %v8419
        %v8421 = vpop.f32.mrb[0].mxu0
        %v8422 = vpop.f32.mrb[0].mxu0
        %v8423 = vadd.f32 %v8255, %v8422
        %v8424 = vpop.f32.mrb[0].mxu0
        %8425 = vmatprep.mubr.bf16.mxu0 0
        %8426 = vmatmul.mubr.bf16.gmra.mrb[0].mxu0 %v8246
        %v8427 = vpop.f32.mrb[0].mxu0
        %v8428 = vadd.f32 %v8255, %v8427
        %v8429 = vpop.f32.mrb[0].mxu0
        %v8430 = vpop.f32.mrb[0].mxu0
        %v8431 = vadd.f32 %v8255, %v8430
        %v8432 = vpop.f32.mrb[0].mxu0
        %8433 = vmatprep.mubr.bf16.mxu0 0
        %8434 = vmatmul.mubr.bf16.gmra.mrb[0].mxu0 %v8247
        %v8435 = vpop.f32.mrb[0].mxu0
        %v8436 = vadd.f32 %v8255, %v8435
        %v8437 = vpop.f32.mrb[0].mxu0
        %v8438 = vpop.f32.mrb[0].mxu0
        %v8439 = vadd.f32 %v8255, %v8438
        %v8440 = vpop.f32.mrb[0].mxu0
        %8441 = vmatprep.mubr.bf16.mxu0 0
        %8442 = vmatmul.mubr.bf16.gmra.mrb[0].mxu0 %v8248
        %v8443 = vpop.f32.mrb[0].mxu0
        %v8444 = vadd.f32 %v8255, %v8443
        %v8445 = vpop.f32.mrb[0].mxu0
        %v8446 = vpop.f32.mrb[0].mxu0
        %v8447 = vadd.f32 %v8255, %v8446
        %v8448 = vpop.f32.mrb[0].mxu0
        %8449 = vmatprep.mubr.bf16.mxu0 0
        %8450 = vmatmul.mubr.bf16.gmra.mrb[0].mxu0 %v8249
        %v8451 = vpop.f32.mrb[0].mxu0
        %v8452 = vadd.f32 %v8255, %v8451
        %v8453 = vpop.f32.mrb[0].mxu0
        %v8454 = vpop.f32.mrb[0].mxu0
        %v8455 = vadd.f32 %v8255, %v8454
        %v8456 = vpop.f32.mrb[0].mxu0
        %8457 = vmatprep.mubr.bf16.mxu0 0
        %8458 = vmatmul.mubr.bf16.gmra.mrb[0].mxu0 %v8250
        %v8459 = vpop.f32.mrb[0].mxu0
        %v8460 = vadd.f32 %v8255, %v8459
        %v8461 = vpop.f32.mrb[0].mxu0
        %v8462 = vpop.f32.mrb[0].mxu0
        %v8463 = vadd.f32 %v8255, %v8462
        %v8464 = vpop.f32.mrb[0].mxu0
        %8465 = vdwg.mxu0
        %v8466 = vadd.f32 %v8340, %v7507
        %v8467 = vadd.f32 %v8343, %v7510
        %v8468 = vadd.f32 %v8348, %v7515
        %v8469 = vadd.f32 %v8351, %v7518
        %v8470 = vadd.f32 %v8356, %v7523
        %v8471 = vadd.f32 %v8359, %v7526
        %v8472 = vadd.f32 %v8364, %v7531
        %v8473 = vadd.f32 %v8367, %v7534
        %v8474 = vadd.f32 %v8372, %v7539
        %v8475 = vadd.f32 %v8375, %v7542
        %v8476 = vadd.f32 %v8380, %v7547
        %v8477 = vadd.f32 %v8383, %v7550
        %v8478 = vadd.f32 %v8388, %v7555
        %v8479 = vadd.f32 %v8391, %v7558
        %v8480 = vadd.f32 %v8396, %v7563
        %v8481 = vadd.f32 %v8399, %v7566
        %v8482 = vadd.f32 %v8404, %v7571
        %v8483 = vadd.f32 %v8407, %v7574
        %v8484 = vadd.f32 %v8412, %v7579
        %v8485 = vadd.f32 %v8415, %v7582
        %v8486 = vadd.f32 %v8420, %v7587
        %v8487 = vadd.f32 %v8423, %v7590
        %v8488 = vadd.f32 %v8428, %v7595
        %v8489 = vadd.f32 %v8431, %v7598
        %v8490 = vadd.f32 %v8436, %v7603
        %v8491 = vadd.f32 %v8439, %v7606
        %v8492 = vadd.f32 %v8444, %v7611
        %v8493 = vadd.f32 %v8447, %v7614
        %v8494 = vadd.f32 %v8452, %v7619
        %v8495 = vadd.f32 %v8455, %v7622
        %v8496 = vadd.f32 %v8460, %v7627
        %v8497 = vadd.f32 %v8463, %v7630
        %v8498 = vxor.u32 %v8466, 2147483648
        %v8499 = vxor.u32 %v8467, 2147483648
        %v8500 = vxor.u32 %v8468, 2147483648
        %v8501 = vxor.u32 %v8469, 2147483648
        %v8502 = vxor.u32 %v8470, 2147483648
        %v8503 = vxor.u32 %v8471, 2147483648
        %v8504 = vxor.u32 %v8472, 2147483648
        %v8505 = vxor.u32 %v8473, 2147483648
        %v8506 = vxor.u32 %v8474, 2147483648
        %v8507 = vxor.u32 %v8475, 2147483648
        %v8508 = vxor.u32 %v8476, 2147483648
        %v8509 = vxor.u32 %v8477, 2147483648
        %v8510 = vxor.u32 %v8478, 2147483648
        %v8511 = vxor.u32 %v8479, 2147483648
        %v8512 = vxor.u32 %v8480, 2147483648
        %v8513 = vxor.u32 %v8481, 2147483648
        %v8514 = vxor.u32 %v8482, 2147483648
        %v8515 = vxor.u32 %v8483, 2147483648
        %v8516 = vxor.u32 %v8484, 2147483648
        %v8517 = vxor.u32 %v8485, 2147483648
        %v8518 = vxor.u32 %v8486, 2147483648
        %v8519 = vxor.u32 %v8487, 2147483648
        %v8520 = vxor.u32 %v8488, 2147483648
        %v8521 = vxor.u32 %v8489, 2147483648
        %v8522 = vxor.u32 %v8490, 2147483648
        %v8523 = vxor.u32 %v8491, 2147483648
        %v8524 = vxor.u32 %v8492, 2147483648
        %v8525 = vxor.u32 %v8493, 2147483648
        %v8526 = vxor.u32 %v8494, 2147483648
        %v8527 = vxor.u32 %v8495, 2147483648
        %v8528 = vxor.u32 %v8496, 2147483648
        %v8529 = vxor.u32 %v8497, 2147483648
        %v8530 = vmul.f32 %v8498, 1.442695
        %v8531 = vpow.pop %v8530
        %v8532 = vmul.f32 %v8499, 1.442695
        %v8533 = vpow.pop %v8532
        %v8534 = vmul.f32 %v8500, 1.442695
        %v8535 = vpow.pop %v8534
        %v8536 = vmul.f32 %v8501, 1.442695
        %v8537 = vpow.pop %v8536
        %v8538 = vmul.f32 %v8502, 1.442695
        %v8539 = vpow.pop %v8538
        %v8540 = vmul.f32 %v8503, 1.442695
        %v8541 = vpow.pop %v8540
        %v8542 = vmul.f32 %v8504, 1.442695
        %v8543 = vpow.pop %v8542
        %v8544 = vmul.f32 %v8505, 1.442695
        %v8545 = vpow.pop %v8544
        %v8546 = vmul.f32 %v8506, 1.442695
        %v8547 = vpow.pop %v8546
        %v8548 = vmul.f32 %v8507, 1.442695
        %v8549 = vpow.pop %v8548
        %v8550 = vmul.f32 %v8508, 1.442695
        %v8551 = vpow.pop %v8550
        %v8552 = vmul.f32 %v8509, 1.442695
        %v8553 = vpow.pop %v8552
        %v8554 = vmul.f32 %v8510, 1.442695
        %v8555 = vpow.pop %v8554
        %v8556 = vmul.f32 %v8511, 1.442695
        %v8557 = vpow.pop %v8556
        %v8558 = vmul.f32 %v8512, 1.442695
        %v8559 = vpow.pop %v8558
        %v8560 = vmul.f32 %v8513, 1.442695
        %v8561 = vpow.pop %v8560
        %v8562 = vmul.f32 %v8514, 1.442695
        %v8563 = vpow.pop %v8562
        %v8564 = vmul.f32 %v8515, 1.442695
        %v8565 = vpow.pop %v8564
        %v8566 = vmul.f32 %v8516, 1.442695
        %v8567 = vpow.pop %v8566
        %v8568 = vmul.f32 %v8517, 1.442695
        %v8569 = vpow.pop %v8568
        %v8570 = vmul.f32 %v8518, 1.442695
        %v8571 = vpow.pop %v8570
        %v8572 = vmul.f32 %v8519, 1.442695
        %v8573 = vpow.pop %v8572
        %v8574 = vmul.f32 %v8520, 1.442695
        %v8575 = vpow.pop %v8574
        %v8576 = vmul.f32 %v8521, 1.442695
        %v8577 = vpow.pop %v8576
        %v8578 = vmul.f32 %v8522, 1.442695
        %v8579 = vpow.pop %v8578
        %v8580 = vmul.f32 %v8523, 1.442695
        %v8581 = vpow.pop %v8580
        %v8582 = vmul.f32 %v8524, 1.442695
        %v8583 = vpow.pop %v8582
        %v8584 = vmul.f32 %v8525, 1.442695
        %v8585 = vpow.pop %v8584
        %v8586 = vmul.f32 %v8526, 1.442695
        %v8587 = vpow.pop %v8586
        %v8588 = vmul.f32 %v8527, 1.442695
        %v8589 = vpow.pop %v8588
        %v8590 = vmul.f32 %v8528, 1.442695
        %v8591 = vpow.pop %v8590
        %v8592 = vmul.f32 %v8529, 1.442695
        %v8593 = vpow.pop %v8592
        %v8594 = vadd.f32 %v8531, 1.0
        %v8595 = vadd.f32 %v8533, 1.0
        %v8596 = vadd.f32 %v8535, 1.0
        %v8597 = vadd.f32 %v8537, 1.0
        %v8598 = vadd.f32 %v8539, 1.0
        %v8599 = vadd.f32 %v8541, 1.0
        %v8600 = vadd.f32 %v8543, 1.0
        %v8601 = vadd.f32 %v8545, 1.0
        %v8602 = vadd.f32 %v8547, 1.0
        %v8603 = vadd.f32 %v8549, 1.0
        %v8604 = vadd.f32 %v8551, 1.0
        %v8605 = vadd.f32 %v8553, 1.0
        %v8606 = vadd.f32 %v8555, 1.0
        %v8607 = vadd.f32 %v8557, 1.0
        %v8608 = vadd.f32 %v8559, 1.0
        %v8609 = vadd.f32 %v8561, 1.0
        %v8610 = vadd.f32 %v8563, 1.0
        %v8611 = vadd.f32 %v8565, 1.0
        %v8612 = vadd.f32 %v8567, 1.0
        %v8613 = vadd.f32 %v8569, 1.0
        %v8614 = vadd.f32 %v8571, 1.0
        %v8615 = vadd.f32 %v8573, 1.0
        %v8616 = vadd.f32 %v8575, 1.0
        %v8617 = vadd.f32 %v8577, 1.0
        %v8618 = vadd.f32 %v8579, 1.0
        %v8619 = vadd.f32 %v8581, 1.0
        %v8620 = vadd.f32 %v8583, 1.0
        %v8621 = vadd.f32 %v8585, 1.0
        %v8622 = vadd.f32 %v8587, 1.0
        %v8623 = vadd.f32 %v8589, 1.0
        %v8624 = vadd.f32 %v8591, 1.0
        %v8625 = vadd.f32 %v8593, 1.0
        %v8626 = vrcp.pop %v8594
        %v8627 = vmul.f32 1.0, %v8626
        %v8628 = vrcp.pop %v8595
        %v8629 = vmul.f32 1.0, %v8628
        %v8630 = vrcp.pop %v8596
        %v8631 = vmul.f32 1.0, %v8630
        %v8632 = vrcp.pop %v8597
        %v8633 = vmul.f32 1.0, %v8632
        %v8634 = vrcp.pop %v8598
        %v8635 = vmul.f32 1.0, %v8634
        %v8636 = vrcp.pop %v8599
        %v8637 = vmul.f32 1.0, %v8636
        %v8638 = vrcp.pop %v8600
        %v8639 = vmul.f32 1.0, %v8638
        %v8640 = vrcp.pop %v8601
        %v8641 = vmul.f32 1.0, %v8640
        %v8642 = vrcp.pop %v8602
        %v8643 = vmul.f32 1.0, %v8642
        %v8644 = vrcp.pop %v8603
        %v8645 = vmul.f32 1.0, %v8644
        %v8646 = vrcp.pop %v8604
        %v8647 = vmul.f32 1.0, %v8646
        %v8648 = vrcp.pop %v8605
        %v8649 = vmul.f32 1.0, %v8648
        %v8650 = vrcp.pop %v8606
        %v8651 = vmul.f32 1.0, %v8650
        %v8652 = vrcp.pop %v8607
        %v8653 = vmul.f32 1.0, %v8652
        %v8654 = vrcp.pop %v8608
        %v8655 = vmul.f32 1.0, %v8654
        %v8656 = vrcp.pop %v8609
        %v8657 = vmul.f32 1.0, %v8656
        %v8658 = vrcp.pop %v8610
        %v8659 = vmul.f32 1.0, %v8658
        %v8660 = vrcp.pop %v8611
        %v8661 = vmul.f32 1.0, %v8660
        %v8662 = vrcp.pop %v8612
        %v8663 = vmul.f32 1.0, %v8662
        %v8664 = vrcp.pop %v8613
        %v8665 = vmul.f32 1.0, %v8664
        %v8666 = vrcp.pop %v8614
        %v8667 = vmul.f32 1.0, %v8666
        %v8668 = vrcp.pop %v8615
        %v8669 = vmul.f32 1.0, %v8668
        %v8670 = vrcp.pop %v8616
        %v8671 = vmul.f32 1.0, %v8670
        %v8672 = vrcp.pop %v8617
        %v8673 = vmul.f32 1.0, %v8672
        %v8674 = vrcp.pop %v8618
        %v8675 = vmul.f32 1.0, %v8674
        %v8676 = vrcp.pop %v8619
        %v8677 = vmul.f32 1.0, %v8676
        %v8678 = vrcp.pop %v8620
        %v8679 = vmul.f32 1.0, %v8678
        %v8680 = vrcp.pop %v8621
        %v8681 = vmul.f32 1.0, %v8680
        %v8682 = vrcp.pop %v8622
        %v8683 = vmul.f32 1.0, %v8682
        %v8684 = vrcp.pop %v8623
        %v8685 = vmul.f32 1.0, %v8684
        %v8686 = vrcp.pop %v8624
        %v8687 = vmul.f32 1.0, %v8686
        %v8688 = vrcp.pop %v8625
        %v8689 = vmul.f32 1.0, %v8688
        %v8690 = vlaneseq
        %v8691 = vand.u32 %v8690, 127
        %vm8692 = vcmp.eq.s32.totalorder %v8691, 3
        %vm8693 = vcmp.lt.s32.totalorder %v8691, 7
        %v8694 = vsel %vm8693, %v8627, 0.0
        %v8695 = vsel %vm8693, %v8629, 0.0
        %v8696 = vsel %vm8693, %v8631, 0.0
        %v8697 = vsel %vm8693, %v8633, 0.0
        %v8698 = vsel %vm8693, %v8635, 0.0
        %v8699 = vsel %vm8693, %v8637, 0.0
        %v8700 = vsel %vm8693, %v8639, 0.0
        %v8701 = vsel %vm8693, %v8641, 0.0
        %v8702 = vsel %vm8693, %v8643, 0.0
        %v8703 = vsel %vm8693, %v8645, 0.0
        %v8704 = vsel %vm8693, %v8647, 0.0
        %v8705 = vsel %vm8693, %v8649, 0.0
        %v8706 = vsel %vm8693, %v8651, 0.0
        %v8707 = vsel %vm8693, %v8653, 0.0
        %v8708 = vsel %vm8693, %v8655, 0.0
        %v8709 = vsel %vm8693, %v8657, 0.0
        %v8710 = vsel %vm8693, %v8659, 0.0
        %v8711 = vsel %vm8693, %v8661, 0.0
        %v8712 = vsel %vm8693, %v8663, 0.0
        %v8713 = vsel %vm8693, %v8665, 0.0
        %v8714 = vsel %vm8693, %v8667, 0.0
        %v8715 = vsel %vm8693, %v8669, 0.0
        %v8716 = vsel %vm8693, %v8671, 0.0
        %v8717 = vsel %vm8693, %v8673, 0.0
        %v8718 = vsel %vm8693, %v8675, 0.0
        %v8719 = vsel %vm8693, %v8677, 0.0
        %v8720 = vsel %vm8693, %v8679, 0.0
        %v8721 = vsel %vm8693, %v8681, 0.0
        %v8722 = vsel %vm8693, %v8683, 0.0
        %v8723 = vsel %vm8693, %v8685, 0.0
        %v8724 = vsel %vm8693, %v8687, 0.0
        %v8725 = vsel %vm8693, %v8689, 0.0
        %v8726 = vsel %vm8692, %v6034, %v8694
        %v8727 = vsel %vm8692, %v6037, %v8695
        %v8728 = vsel %vm8692, %v6042, %v8696
        %v8729 = vsel %vm8692, %v6045, %v8697
        %v8730 = vsel %vm8692, %v6050, %v8698
        %v8731 = vsel %vm8692, %v6053, %v8699
        %v8732 = vsel %vm8692, %v6058, %v8700
        %v8733 = vsel %vm8692, %v6061, %v8701
        %v8734 = vsel %vm8692, %v6066, %v8702
        %v8735 = vsel %vm8692, %v6069, %v8703
        %v8736 = vsel %vm8692, %v6074, %v8704
        %v8737 = vsel %vm8692, %v6077, %v8705
        %v8738 = vsel %vm8692, %v6082, %v8706
        %v8739 = vsel %vm8692, %v6085, %v8707
        %v8740 = vsel %vm8692, %v6090, %v8708
        %v8741 = vsel %vm8692, %v6093, %v8709
        %v8742 = vsel %vm8692, %v6098, %v8710
        %v8743 = vsel %vm8692, %v6101, %v8711
        %v8744 = vsel %vm8692, %v6106, %v8712
        %v8745 = vsel %vm8692, %v6109, %v8713
        %v8746 = vsel %vm8692, %v6114, %v8714
        %v8747 = vsel %vm8692, %v6117, %v8715
        %v8748 = vsel %vm8692, %v6122, %v8716
        %v8749 = vsel %vm8692, %v6125, %v8717
        %v8750 = vsel %vm8692, %v6130, %v8718
        %v8751 = vsel %vm8692, %v6133, %v8719
        %v8752 = vsel %vm8692, %v6138, %v8720
        %v8753 = vsel %vm8692, %v6141, %v8721
        %v8754 = vsel %vm8692, %v6146, %v8722
        %v8755 = vsel %vm8692, %v6149, %v8723
        %v8756 = vsel %vm8692, %v6154, %v8724
        %v8757 = vsel %vm8692, %v6157, %v8725
        %8758 = vst [vmem:[%s1136] sm:$0xff] %v8726
        %8759 = vst [vmem:[%s1136 + $0x8] sm:$0xff] %v8727
        %8760 = vst [vmem:[%s1136 + $0x10] sm:$0xff] %v8728
        %8761 = vst [vmem:[%s1136 + $0x18] sm:$0xff] %v8729
        %8762 = vst [vmem:[%s1136 + $0x20] sm:$0xff] %v8730
        %8763 = vst [vmem:[%s1136 + $0x28] sm:$0xff] %v8731
        %8764 = vst [vmem:[%s1136 + $0x30] sm:$0xff] %v8732
        %8765 = vst [vmem:[%s1136 + $0x38] sm:$0xff] %v8733
        %8766 = vst [vmem:[%s1136 + $0x40] sm:$0xff] %v8734
        %8767 = vst [vmem:[%s1136 + $0x48] sm:$0xff] %v8735
        %8768 = vst [vmem:[%s1136 + $0x50] sm:$0xff] %v8736
        %8769 = vst [vmem:[%s1136 + $0x58] sm:$0xff] %v8737
        %8770 = vst [vmem:[%s1136 + $0x60] sm:$0xff] %v8738
        %8771 = vst [vmem:[%s1136 + $0x68] sm:$0xff] %v8739
        %8772 = vst [vmem:[%s1136 + $0x70] sm:$0xff] %v8740
        %8773 = vst [vmem:[%s1136 + $0x78] sm:$0xff] %v8741
        %8774 = vst [vmem:[%s1136 + $0x80] sm:$0xff] %v8742
        %8775 = vst [vmem:[%s1136 + $0x88] sm:$0xff] %v8743
        %8776 = vst [vmem:[%s1136 + $0x90] sm:$0xff] %v8744
        %8777 = vst [vmem:[%s1136 + $0x98] sm:$0xff] %v8745
        %8778 = vst [vmem:[%s1136 + $0xa0] sm:$0xff] %v8746
        %8779 = vst [vmem:[%s1136 + $0xa8] sm:$0xff] %v8747
        %8780 = vst [vmem:[%s1136 + $0xb0] sm:$0xff] %v8748
        %8781 = vst [vmem:[%s1136 + $0xb8] sm:$0xff] %v8749
        %8782 = vst [vmem:[%s1136 + $0xc0] sm:$0xff] %v8750
        %8783 = vst [vmem:[%s1136 + $0xc8] sm:$0xff] %v8751
        %8784 = vst [vmem:[%s1136 + $0xd0] sm:$0xff] %v8752
        %8785 = vst [vmem:[%s1136 + $0xd8] sm:$0xff] %v8753
        %8786 = vst [vmem:[%s1136 + $0xe0] sm:$0xff] %v8754
        %8787 = vst [vmem:[%s1136 + $0xe8] sm:$0xff] %v8755
        %8788 = vst [vmem:[%s1136 + $0xf0] sm:$0xff] %v8756
        %8789 = vst [vmem:[%s1136 + $0xf8] sm:$0xff] %v8757
        %s8790 = sand.u32 %s706, 1
        %s8791 = scalar_lea.sflag [#allocation4], %s8790
        %s8792 = sand.u32 %s706, 1
        %s8793 = smul.addr %s8792, 256
        %s8794 = scalar_lea.vmem [#allocation28], %s8793
        // Predicated region
        $region201: #{tpu_custom_call.1} parent=135 // pred_check
          %p8795 = pneg %p716
        $region202: #{tpu_custom_call.1} parent=135 // pred_check_branch
          %8797 = sbr.rel (%p8795) target = $region204
        $region203: #{tpu_custom_call.1} parent=135 // pred_region
          %s8798 = smul.u32 32, %s84
          %s8800 = ssub.s32 4096, 4096
          %8801 = vsyncadd %s8791, %s8800
          %s8802 = smul.addr %s8798, 128
          %s8803 = scalar_lea.hbm %s59, %s8802
          %s8804 = sshll.u32 %s8794, 4
          %s8805 = int_to_ptr.vmem [resolvable:$true] %s8804
          %8810 = dma.vmem_to_hbm [thread:$0]  %s8805, 4096, %s8803, %s8791, 128, 128, 8
        $region204: #{tpu_custom_call.1} parent=135 // pred_fallthru
          _
      $region136: #{tpu_custom_call.1} parent=5 // pred_fallthru
        _
      %p8811 = scmp.le.s32.totalorder 2, %s79
      // Predicated region
      $region205: #{tpu_custom_call.1} parent=5 // pred_check
        %p8812 = pneg %p8811
      $region206: #{tpu_custom_call.1} parent=5 // pred_check_branch
        %8814 = sbr.rel (%p8812) target = $region208
      $region207: #{tpu_custom_call.1} parent=5 // pred_region
        %s8815 = ssub.s32 %s79, 2
        // Predicated region
        $region209: #{tpu_custom_call.1} parent=207 // pred_check
          %p8816 = pneg %p722
        $region210: #{tpu_custom_call.1} parent=207 // pred_check_branch
          %8818 = sbr.rel (%p8816) target = $region212
        $region211: #{tpu_custom_call.1} parent=207 // pred_region
          %s8819 = sand.u32 %s707, 1
          %s8820 = scalar_lea.sflag [#allocation4], %s8819
          %s8821 = sand.u32 %s707, 1
          %s8822 = smul.addr %s8821, 256
          %s8823 = scalar_lea.vmem [#allocation28], %s8822
          %8824 = dma.done %s8820, 4096
        $region212: #{tpu_custom_call.1} parent=207 // pred_fallthru
          _
      $region208: #{tpu_custom_call.1} parent=5 // pred_fallthru
        _
    $region6: #{tpu_custom_call.1} parent=1 // loop_footer
      %s83 = sadd.s32 1, %s79
    $region7: #{tpu_custom_call.1} parent=1 // loop_footer_branch
      %78 = sbr.rel target = $region3
    $region8: #{tpu_custom_call.1} parent=1 // loop_exit
      _
    %8825 = vsyncpa [#allocation3], 1
    %s8826 = scalar_lea.sflag [#allocation3], 1
    %8827 = vsyncpa %s8826, 1
    %8828 = vsyncpa [#allocation6], 1
    %8829 = vsyncpa [#allocation9], 1
    %8830 = vsyncpa [#allocation12], 1
    %8831 = vsyncpa [#allocation15], 1
    %8832 = vsyncpa [#allocation18], 1
    %8833 = vsyncpa [#allocation21], 1
    %8834 = vsyncpa [#allocation24], 1
    %8835 = vsyncpa [#allocation27], 1
    %8836 = vsyncpa [#allocation4], 1
    %s8837 = scalar_lea.sflag [#allocation4], 1
    %8838 = vsyncpa %s8837, 1

</llo_original>
